<compile_context>
chip_gen: v7x
topology: tpu7x:2x2x1
jax: 0.10.0
libtpu: 0.0.40
codegen_flags: <defaults>
</compile_context>

<pallas_src>
from collections import namedtuple

import jax
import jax.numpy as jnp
from jax.experimental import pallas as pl

N, CIN, H, W = 2, 4, 16, 16     # input shape (NCHW, as in PyTorch)
COUT = 8                        # conv output channels
HID = 32                        # linear output features
KH = KW = 3                     # conv kernel
HW = H * W                      # flattened spatial (lane) extent per image
PAD = 32                        # lane zero-padding per side (>= W + 1 = 17)


# ---------------------------------------------------------------------------
# Fused Pallas kernel: in-kernel im2col + conv + ReLU + global-avg-pool + head
# ---------------------------------------------------------------------------
def fused_conv_pool_linear_kernel(x_ref, w_conv_ref, b_conv_ref,
                                  w_lin_ref, b_lin_ref,
                                  feat_ref, logits_ref):
    """feat[n] = relu(conv3x3_same(x[n])); logits[n] = mean_hw(feat[n]) @ Wl + bl.

    x_ref      : (N, CIN, HW + 2*PAD)  zero-padded along the flattened HW lanes
    w_conv_ref : (9*COUT, CIN)         rows [t*COUT:(t+1)*COUT] = w[:, :, kh, kw]
    b_conv_ref : (COUT, 1)
    w_lin_ref  : (COUT, HID)
    b_lin_ref  : (1, HID)
    feat_ref   : (N, COUT, HW)         lane-dense, caller (NCHW-flat) order
    logits_ref : (N, HID)
    """
    n_batch, cout, hw = feat_ref.shape
    cin = x_ref.shape[1]

    # Column-boundary masks.  The zero lane-padding of x already provides the
    # zeros for out-of-image rows (dh = +-1 at h = 0 / H-1), so only the
    # horizontal (dw) boundaries need explicit masking.
    col = jax.lax.broadcasted_iota(jnp.int32, (cin, hw), 1) % W
    valid = {-1: col >= 1,          # tap reads (h+dh, w-1): invalid at w == 0
             0: None,
             1: col <= W - 2}       # tap reads (h+dh, w+1): invalid at w == W-1

    b_conv = b_conv_ref[...]        # (COUT, 1)
    w_lin = w_lin_ref[...]          # (COUT, HID)
    b_lin = b_lin_ref[...]          # (1, HID)

    for n in range(n_batch):                        # static (N = 2)
        xb = x_ref[n]                               # (CIN, HW + 2*PAD)
        acc = jnp.zeros((cout, hw), jnp.float32)
        for t in range(KH * KW):                    # static 9 taps
            dh, dw = t // KW - 1, t % KW - 1
            start = PAD + dh * W + dw               # static lane offset
            tap = xb[:, start:start + hw]           # (CIN, HW) shifted window
            if valid[dw] is not None:
                tap = jnp.where(valid[dw], tap, 0.0)
            w_t = w_conv_ref[pl.ds(t * cout, cout), :]        # (COUT, CIN)
            acc = acc + jnp.dot(w_t, tap,
                                precision=jax.lax.Precision.HIGHEST,
                                preferred_element_type=jnp.float32)
        feat_n = jnp.maximum(acc + b_conv, 0.0)     # (COUT, HW), lane-dense
        feat_ref[n] = feat_n                        # full 256-lane rows: unmasked

        # Global average pool + linear head on the VPU/XLU (operands are tiny).
        pooled = jnp.mean(feat_n, axis=-1, keepdims=True)              # (COUT, 1)
        row = jnp.sum(pooled * w_lin, axis=0, keepdims=True) + b_lin   # (1, HID)
        logits_ref[pl.ds(n, 1), :] = row


# ---------------------------------------------------------------------------
# Wrapper around the single pallas_call
# ---------------------------------------------------------------------------
@jax.jit
def inner_model(params, x):
    """Synthetic model returning a nested dict (like many detection heads)."""
    n, cin, h, w = x.shape
    cout = params["w_conv"].shape[0]
    hid = params["w_lin"].shape[1]
    hw = h * w

    # Flatten HW onto the lane axis and zero-pad it (one tiny XLA op, ~10 KiB).
    # The pad makes every 3x3 tap a plain static lane-window read in-kernel and
    # also supplies the SAME-padding zeros for the top/bottom rows.
    x_flat = jnp.pad(x.reshape(n, cin, hw), ((0, 0), (0, 0), (PAD, PAD)))

    # Conv weight regrouped per tap: rows [t*COUT:(t+1)*COUT] == w[:, :, kh, kw].
    w_conv9 = params["w_conv"].transpose(2, 3, 0, 1).reshape(KH * KW * cout, cin)
    b_conv_col = params["b_conv"].reshape(cout, 1)
    b_lin_row = params["b_lin"].reshape(1, hid)

    feat_flat, logits = pl.pallas_call(
        fused_conv_pool_linear_kernel,
        out_shape=(jax.ShapeDtypeStruct((n, cout, hw), jnp.float32),
                   jax.ShapeDtypeStruct((n, hid), jnp.float32)),
        in_specs=[
            pl.BlockSpec((n, cin, hw + 2 * PAD), lambda: (0, 0, 0)),
            pl.BlockSpec((KH * KW * cout, cin), lambda: (0, 0)),
            pl.BlockSpec((cout, 1), lambda: (0, 0)),
            pl.BlockSpec((cout, hid), lambda: (0, 0)),
            pl.BlockSpec((1, hid), lambda: (0, 0)),
        ],
        out_specs=(pl.BlockSpec((n, cout, hw), lambda: (0, 0, 0)),
                   pl.BlockSpec((n, hid), lambda: (0, 0))),
    )(x_flat, w_conv9, b_conv_col, params["w_lin"], b_lin_row)

    # Only a trailing-dim split remains (feat is already in caller order).
    feat = feat_flat.reshape(n, cout, h, w)
    return {"features": {"conv": feat}, "logits": logits}


# ---------------------------------------------------------------------------
# TensorBoardGraphs wrapper semantics (pure Python container restructuring)
# ---------------------------------------------------------------------------
def flat_dict(ddict, dict_name=None):
    f_dict = {}
    for k in ddict.keys():
        fix_dict_name = ""
        if isinstance(ddict[k], dict):
            f_dict.update(flat_dict(ddict[k], k))
            continue
        if dict_name is not None:
            fix_dict_name = dict_name + "__"
        fix_dict_name = f"{fix_dict_name}{k}"
        f_dict.update({fix_dict_name: ddict[k]})
    return f_dict


def tensorboard_graphs_forward(params, x):
    """Reproduces TensorBoardGraphs.forward: run model, flatten dict output."""
    data = inner_model(params, x)
    if isinstance(data, dict):
        data = flat_dict(data)
        data_named_tuple = namedtuple("ModelEndpoints", sorted(data.keys()))
        data = data_named_tuple(**data)
    elif isinstance(data, list):
        data = tuple(data)
    return data


def init_params():
    """Deterministic parameter initialization (no checkpoint loading)."""
    key = jax.random.PRNGKey(0)
    k1, k2, k3, k4 = jax.random.split(key, 4)
    return {
        "w_conv": jax.random.normal(k1, (COUT, CIN, KH, KW), jnp.float32) * 0.1,
        "b_conv": jax.random.normal(k2, (COUT,), jnp.float32) * 0.01,
        "w_lin": jax.random.normal(k3, (COUT, HID), jnp.float32) * 0.1,
        "b_lin": jax.random.normal(k4, (HID,), jnp.float32) * 0.01,
    }


if __name__ == "__main__":
    params = init_params()
    x = jax.random.normal(jax.random.PRNGKey(0), (N, CIN, H, W), jnp.float32)

    out = tensorboard_graphs_forward(params, x)
    jax.block_until_ready(out.features__conv)
    jax.block_until_ready(out.logits)

    # Structural checks (TensorBoardGraphs contract).
    assert type(out).__name__ == "ModelEndpoints"
    assert out._fields == ("features__conv", "logits")
    assert out.features__conv.shape == (N, COUT, H, W)
    assert out.logits.shape == (N, HID)

    # Numerical check against a pure-JAX reference of the inner model.
    ref_feat = jax.lax.conv_general_dilated(
        x, params["w_conv"], (1, 1), "SAME",
        dimension_numbers=("NCHW", "OIHW", "NCHW"),
        precision=jax.lax.Precision.HIGHEST,
    ) + params["b_conv"][None, :, None, None]
    ref_feat = jnp.maximum(ref_feat, 0.0)
    ref_logits = ref_feat.mean(axis=(2, 3)) @ params["w_lin"] + params["b_lin"]
    assert jnp.allclose(out.features__conv, ref_feat, atol=1e-3, rtol=1e-3)
    assert jnp.allclose(out.logits, ref_logits, atol=1e-3, rtol=1e-3)

    print("KERNEL_OK")
</pallas_src>

<mosaic_0001>
module attributes {stable_mosaic.version = 11 : i64} {
  func.func @fused_conv_pool_linear_kernel(%arg0: memref<2x4x320xf32, #tpu.memory_space<vmem>>, %arg1: memref<72x4xf32, #tpu.memory_space<vmem>>, %arg2: memref<8x1xf32, #tpu.memory_space<vmem>>, %arg3: memref<8x32xf32, #tpu.memory_space<vmem>>, %arg4: memref<1x32xf32, #tpu.memory_space<vmem>>, %arg5: memref<2x8x256xf32, #tpu.memory_space<vmem>>, %arg6: memref<2x32xf32, #tpu.memory_space<vmem>>) attributes {dimension_semantics = [], scalar_prefetch = 0 : i64, scratch_operands = 0 : i64, tpu.core_type = #tpu.core_type<tc>} {
    %0 = tpu.iota {dimensions = array<i32: 1>} : vector<4x256xi32>
    %c16_i32 = arith.constant 16 : i32
    %c0_i32 = arith.constant 0 : i32
    %1 = arith.cmpi eq, %c16_i32, %c0_i32 : i32
    %c1_i32 = arith.constant 1 : i32
    %2 = arith.select %1, %c1_i32, %c16_i32 : i32
    %3 = vector.broadcast %2 : i32 to vector<4x256xi32>
    %4 = arith.remsi %0, %3 : vector<4x256xi32>
    %c0_i32_0 = arith.constant 0 : i32
    %5 = vector.broadcast %c0_i32_0 : i32 to vector<4x256xi32>
    %6 = arith.cmpi ne, %4, %5 : vector<4x256xi32>
    %c0_i32_1 = arith.constant 0 : i32
    %7 = vector.broadcast %c0_i32_1 : i32 to vector<4x256xi32>
    %8 = arith.cmpi slt, %4, %7 : vector<4x256xi32>
    %c0_i32_2 = arith.constant 0 : i32
    %9 = arith.cmpi slt, %2, %c0_i32_2 : i32
    %10 = vector.broadcast %9 : i1 to vector<4x256xi1>
    %11 = vector.broadcast %10 : vector<4x256xi1> to vector<4x256xi1>
    %12 = arith.xori %8, %11 : vector<4x256xi1>
    %13 = arith.andi %12, %6 : vector<4x256xi1>
    %14 = vector.broadcast %2 : i32 to vector<4x256xi32>
    %15 = arith.addi %4, %14 : vector<4x256xi32>
    %16 = arith.select %13, %15, %4 : vector<4x256xi1>, vector<4x256xi32>
    %c1_i32_3 = arith.constant 1 : i32
    %17 = vector.broadcast %c1_i32_3 : i32 to vector<4x256xi32>
    %18 = arith.cmpi sge, %16, %17 : vector<4x256xi32>
    %c14_i32 = arith.constant 14 : i32
    %19 = vector.broadcast %c14_i32 : i32 to vector<4x256xi32>
    %20 = arith.cmpi sle, %16, %19 : vector<4x256xi32>
    %c0 = arith.constant 0 : index
    %c0_4 = arith.constant 0 : index
    %21 = vector.load %arg2[%c0, %c0_4] : memref<8x1xf32, #tpu.memory_space<vmem>>, vector<8x1xf32>
    %c0_5 = arith.constant 0 : index
    %c0_6 = arith.constant 0 : index
    %22 = vector.load %arg3[%c0_5, %c0_6] : memref<8x32xf32, #tpu.memory_space<vmem>>, vector<8x32xf32>
    %c0_7 = arith.constant 0 : index
    %c0_8 = arith.constant 0 : index
    %23 = vector.load %arg4[%c0_7, %c0_8] : memref<1x32xf32, #tpu.memory_space<vmem>>, vector<1x32xf32>
    %c0_9 = arith.constant 0 : index
    %c0_10 = arith.constant 0 : index
    %c0_11 = arith.constant 0 : index
    %24 = vector.load %arg0[%c0_9, %c0_10, %c0_11] : memref<2x4x320xf32, #tpu.memory_space<vmem>>, vector<1x4x320xf32>
    %25 = vector.shape_cast %24 : vector<1x4x320xf32> to vector<4x320xf32>
    %cst = arith.constant 0.000000e+00 : f32
    %26 = vector.broadcast %cst : f32 to vector<8x256xf32>
    %27 = vector.extract_strided_slice %25 {offsets = [0, 15], sizes = [4, 256], strides = [1, 1]} : vector<4x320xf32> to vector<4x256xf32>
    %cst_12 = arith.constant 0.000000e+00 : f32
    %28 = vector.broadcast %cst_12 : f32 to vector<4x256xf32>
    %29 = arith.select %18, %27, %28 : vector<4x256xi1>, vector<4x256xf32>
    %c0_13 = arith.constant 0 : index
    %c0_14 = arith.constant 0 : index
    %30 = vector.load %arg1[%c0_13, %c0_14] : memref<72x4xf32, #tpu.memory_space<vmem>>, vector<8x4xf32>
    %cst_15 = arith.constant dense<0.000000e+00> : vector<8x256xf32>
    %31 = tpu.matmul %30, %29, %cst_15 {dimension_numbers = #tpu.dot_dimension_numbers<[1], [0], [0], [1], [0, 0, 1, 1], [], []>, precision = #tpu.contract_precision<fp32>} : vector<8x4xf32>, vector<4x256xf32>, vector<8x256xf32> -> vector<8x256xf32>
    %32 = arith.addf %26, %31 : vector<8x256xf32>
    %33 = vector.extract_strided_slice %25 {offsets = [0, 16], sizes = [4, 256], strides = [1, 1]} : vector<4x320xf32> to vector<4x256xf32>
    %c8 = arith.constant 8 : index
    %c0_16 = arith.constant 0 : index
    %34 = vector.load %arg1[%c8, %c0_16] : memref<72x4xf32, #tpu.memory_space<vmem>>, vector<8x4xf32>
    %cst_17 = arith.constant dense<0.000000e+00> : vector<8x256xf32>
    %35 = tpu.matmul %34, %33, %cst_17 {dimension_numbers = #tpu.dot_dimension_numbers<[1], [0], [0], [1], [0, 0, 1, 1], [], []>, precision = #tpu.contract_precision<fp32>} : vector<8x4xf32>, vector<4x256xf32>, vector<8x256xf32> -> vector<8x256xf32>
    %36 = arith.addf %32, %35 : vector<8x256xf32>
    %37 = vector.extract_strided_slice %25 {offsets = [0, 17], sizes = [4, 256], strides = [1, 1]} : vector<4x320xf32> to vector<4x256xf32>
    %cst_18 = arith.constant 0.000000e+00 : f32
    %38 = vector.broadcast %cst_18 : f32 to vector<4x256xf32>
    %39 = arith.select %20, %37, %38 : vector<4x256xi1>, vector<4x256xf32>
    %c16 = arith.constant 16 : index
    %c0_19 = arith.constant 0 : index
    %40 = vector.load %arg1[%c16, %c0_19] : memref<72x4xf32, #tpu.memory_space<vmem>>, vector<8x4xf32>
    %cst_20 = arith.constant dense<0.000000e+00> : vector<8x256xf32>
    %41 = tpu.matmul %40, %39, %cst_20 {dimension_numbers = #tpu.dot_dimension_numbers<[1], [0], [0], [1], [0, 0, 1, 1], [], []>, precision = #tpu.contract_precision<fp32>} : vector<8x4xf32>, vector<4x256xf32>, vector<8x256xf32> -> vector<8x256xf32>
    %42 = arith.addf %36, %41 : vector<8x256xf32>
    %43 = vector.extract_strided_slice %25 {offsets = [0, 31], sizes = [4, 256], strides = [1, 1]} : vector<4x320xf32> to vector<4x256xf32>
    %cst_21 = arith.constant 0.000000e+00 : f32
    %44 = vector.broadcast %cst_21 : f32 to vector<4x256xf32>
    %45 = arith.select %18, %43, %44 : vector<4x256xi1>, vector<4x256xf32>
    %c24 = arith.constant 24 : index
    %c0_22 = arith.constant 0 : index
    %46 = vector.load %arg1[%c24, %c0_22] : memref<72x4xf32, #tpu.memory_space<vmem>>, vector<8x4xf32>
    %cst_23 = arith.constant dense<0.000000e+00> : vector<8x256xf32>
    %47 = tpu.matmul %46, %45, %cst_23 {dimension_numbers = #tpu.dot_dimension_numbers<[1], [0], [0], [1], [0, 0, 1, 1], [], []>, precision = #tpu.contract_precision<fp32>} : vector<8x4xf32>, vector<4x256xf32>, vector<8x256xf32> -> vector<8x256xf32>
    %48 = arith.addf %42, %47 : vector<8x256xf32>
    %49 = vector.extract_strided_slice %25 {offsets = [0, 32], sizes = [4, 256], strides = [1, 1]} : vector<4x320xf32> to vector<4x256xf32>
    %c32 = arith.constant 32 : index
    %c0_24 = arith.constant 0 : index
    %50 = vector.load %arg1[%c32, %c0_24] : memref<72x4xf32, #tpu.memory_space<vmem>>, vector<8x4xf32>
    %cst_25 = arith.constant dense<0.000000e+00> : vector<8x256xf32>
    %51 = tpu.matmul %50, %49, %cst_25 {dimension_numbers = #tpu.dot_dimension_numbers<[1], [0], [0], [1], [0, 0, 1, 1], [], []>, precision = #tpu.contract_precision<fp32>} : vector<8x4xf32>, vector<4x256xf32>, vector<8x256xf32> -> vector<8x256xf32>
    %52 = arith.addf %48, %51 : vector<8x256xf32>
    %53 = vector.extract_strided_slice %25 {offsets = [0, 33], sizes = [4, 256], strides = [1, 1]} : vector<4x320xf32> to vector<4x256xf32>
    %cst_26 = arith.constant 0.000000e+00 : f32
    %54 = vector.broadcast %cst_26 : f32 to vector<4x256xf32>
    %55 = arith.select %20, %53, %54 : vector<4x256xi1>, vector<4x256xf32>
    %c40 = arith.constant 40 : index
    %c0_27 = arith.constant 0 : index
    %56 = vector.load %arg1[%c40, %c0_27] : memref<72x4xf32, #tpu.memory_space<vmem>>, vector<8x4xf32>
    %cst_28 = arith.constant dense<0.000000e+00> : vector<8x256xf32>
    %57 = tpu.matmul %56, %55, %cst_28 {dimension_numbers = #tpu.dot_dimension_numbers<[1], [0], [0], [1], [0, 0, 1, 1], [], []>, precision = #tpu.contract_precision<fp32>} : vector<8x4xf32>, vector<4x256xf32>, vector<8x256xf32> -> vector<8x256xf32>
    %58 = arith.addf %52, %57 : vector<8x256xf32>
    %59 = vector.extract_strided_slice %25 {offsets = [0, 47], sizes = [4, 256], strides = [1, 1]} : vector<4x320xf32> to vector<4x256xf32>
    %cst_29 = arith.constant 0.000000e+00 : f32
    %60 = vector.broadcast %cst_29 : f32 to vector<4x256xf32>
    %61 = arith.select %18, %59, %60 : vector<4x256xi1>, vector<4x256xf32>
    %c48 = arith.constant 48 : index
    %c0_30 = arith.constant 0 : index
    %62 = vector.load %arg1[%c48, %c0_30] : memref<72x4xf32, #tpu.memory_space<vmem>>, vector<8x4xf32>
    %cst_31 = arith.constant dense<0.000000e+00> : vector<8x256xf32>
    %63 = tpu.matmul %62, %61, %cst_31 {dimension_numbers = #tpu.dot_dimension_numbers<[1], [0], [0], [1], [0, 0, 1, 1], [], []>, precision = #tpu.contract_precision<fp32>} : vector<8x4xf32>, vector<4x256xf32>, vector<8x256xf32> -> vector<8x256xf32>
    %64 = arith.addf %58, %63 : vector<8x256xf32>
    %65 = vector.extract_strided_slice %25 {offsets = [0, 48], sizes = [4, 256], strides = [1, 1]} : vector<4x320xf32> to vector<4x256xf32>
    %c56 = arith.constant 56 : index
    %c0_32 = arith.constant 0 : index
    %66 = vector.load %arg1[%c56, %c0_32] : memref<72x4xf32, #tpu.memory_space<vmem>>, vector<8x4xf32>
    %cst_33 = arith.constant dense<0.000000e+00> : vector<8x256xf32>
    %67 = tpu.matmul %66, %65, %cst_33 {dimension_numbers = #tpu.dot_dimension_numbers<[1], [0], [0], [1], [0, 0, 1, 1], [], []>, precision = #tpu.contract_precision<fp32>} : vector<8x4xf32>, vector<4x256xf32>, vector<8x256xf32> -> vector<8x256xf32>
    %68 = arith.addf %64, %67 : vector<8x256xf32>
    %69 = vector.extract_strided_slice %25 {offsets = [0, 49], sizes = [4, 256], strides = [1, 1]} : vector<4x320xf32> to vector<4x256xf32>
    %cst_34 = arith.constant 0.000000e+00 : f32
    %70 = vector.broadcast %cst_34 : f32 to vector<4x256xf32>
    %71 = arith.select %20, %69, %70 : vector<4x256xi1>, vector<4x256xf32>
    %c64 = arith.constant 64 : index
    %c0_35 = arith.constant 0 : index
    %72 = vector.load %arg1[%c64, %c0_35] : memref<72x4xf32, #tpu.memory_space<vmem>>, vector<8x4xf32>
    %cst_36 = arith.constant dense<0.000000e+00> : vector<8x256xf32>
    %73 = tpu.matmul %72, %71, %cst_36 {dimension_numbers = #tpu.dot_dimension_numbers<[1], [0], [0], [1], [0, 0, 1, 1], [], []>, precision = #tpu.contract_precision<fp32>} : vector<8x4xf32>, vector<4x256xf32>, vector<8x256xf32> -> vector<8x256xf32>
    %74 = arith.addf %68, %73 : vector<8x256xf32>
    %75 = vector.broadcast %21 : vector<8x1xf32> to vector<8x256xf32>
    %76 = arith.addf %74, %75 : vector<8x256xf32>
    %cst_37 = arith.constant 0.000000e+00 : f32
    %77 = vector.broadcast %cst_37 : f32 to vector<8x256xf32>
    %78 = arith.maximumf %76, %77 : vector<8x256xf32>
    %c0_38 = arith.constant 0 : index
    %c0_39 = arith.constant 0 : index
    %c0_40 = arith.constant 0 : index
    %79 = vector.load %arg5[%c0_38, %c0_39, %c0_40] : memref<2x8x256xf32, #tpu.memory_space<vmem>>, vector<1x8x256xf32>
    %80 = vector.shape_cast %79 : vector<1x8x256xf32> to vector<8x256xf32>
    %81 = vector.shape_cast %78 : vector<8x256xf32> to vector<1x8x256xf32>
    tpu.vector_store %arg5[%c0_38, %c0_39, %c0_40], %81 {strides = array<i32>} : memref<2x8x256xf32, #tpu.memory_space<vmem>>, vector<1x8x256xf32>,
    %cst_41 = arith.constant dense<0.000000e+00> : vector<8xf32>
    %82 = vector.multi_reduction <add>, %78, %cst_41 [1] : vector<8x256xf32> to vector<8xf32>
    %83 = vector.shape_cast %82 : vector<8xf32> to vector<8x1xf32>
    %cst_42 = arith.constant 2.560000e+02 : f32
    %84 = vector.broadcast %cst_42 : f32 to vector<8x1xf32>
    %85 = arith.divf %83, %84 : vector<8x1xf32>
    %86 = vector.broadcast %85 : vector<8x1xf32> to vector<8x32xf32>
    %87 = arith.mulf %86, %22 : vector<8x32xf32>
    %cst_43 = arith.constant dense<0.000000e+00> : vector<32xf32>
    %88 = vector.multi_reduction <add>, %87, %cst_43 [0] : vector<8x32xf32> to vector<32xf32>
    %89 = vector.shape_cast %88 : vector<32xf32> to vector<1x32xf32>
    %90 = arith.addf %89, %23 : vector<1x32xf32>
    %c0_44 = arith.constant 0 : index
    %c0_45 = arith.constant 0 : index
    %91 = vector.load %arg6[%c0_44, %c0_45] : memref<2x32xf32, #tpu.memory_space<vmem>>, vector<1x32xf32>
    tpu.vector_store %arg6[%c0_44, %c0_45], %90 {strides = array<i32>} : memref<2x32xf32, #tpu.memory_space<vmem>>, vector<1x32xf32>,
    %c1 = arith.constant 1 : index
    %c0_46 = arith.constant 0 : index
    %c0_47 = arith.constant 0 : index
    %92 = vector.load %arg0[%c1, %c0_46, %c0_47] : memref<2x4x320xf32, #tpu.memory_space<vmem>>, vector<1x4x320xf32>
    %93 = vector.shape_cast %92 : vector<1x4x320xf32> to vector<4x320xf32>
    %cst_48 = arith.constant 0.000000e+00 : f32
    %94 = vector.broadcast %cst_48 : f32 to vector<8x256xf32>
    %95 = vector.extract_strided_slice %93 {offsets = [0, 15], sizes = [4, 256], strides = [1, 1]} : vector<4x320xf32> to vector<4x256xf32>
    %cst_49 = arith.constant 0.000000e+00 : f32
    %96 = vector.broadcast %cst_49 : f32 to vector<4x256xf32>
    %97 = arith.select %18, %95, %96 : vector<4x256xi1>, vector<4x256xf32>
    %c0_50 = arith.constant 0 : index
    %c0_51 = arith.constant 0 : index
    %98 = vector.load %arg1[%c0_50, %c0_51] : memref<72x4xf32, #tpu.memory_space<vmem>>, vector<8x4xf32>
    %cst_52 = arith.constant dense<0.000000e+00> : vector<8x256xf32>
    %99 = tpu.matmul %98, %97, %cst_52 {dimension_numbers = #tpu.dot_dimension_numbers<[1], [0], [0], [1], [0, 0, 1, 1], [], []>, precision = #tpu.contract_precision<fp32>} : vector<8x4xf32>, vector<4x256xf32>, vector<8x256xf32> -> vector<8x256xf32>
    %100 = arith.addf %94, %99 : vector<8x256xf32>
    %101 = vector.extract_strided_slice %93 {offsets = [0, 16], sizes = [4, 256], strides = [1, 1]} : vector<4x320xf32> to vector<4x256xf32>
    %c8_53 = arith.constant 8 : index
    %c0_54 = arith.constant 0 : index
    %102 = vector.load %arg1[%c8_53, %c0_54] : memref<72x4xf32, #tpu.memory_space<vmem>>, vector<8x4xf32>
    %cst_55 = arith.constant dense<0.000000e+00> : vector<8x256xf32>
    %103 = tpu.matmul %102, %101, %cst_55 {dimension_numbers = #tpu.dot_dimension_numbers<[1], [0], [0], [1], [0, 0, 1, 1], [], []>, precision = #tpu.contract_precision<fp32>} : vector<8x4xf32>, vector<4x256xf32>, vector<8x256xf32> -> vector<8x256xf32>
    %104 = arith.addf %100, %103 : vector<8x256xf32>
    %105 = vector.extract_strided_slice %93 {offsets = [0, 17], sizes = [4, 256], strides = [1, 1]} : vector<4x320xf32> to vector<4x256xf32>
    %cst_56 = arith.constant 0.000000e+00 : f32
    %106 = vector.broadcast %cst_56 : f32 to vector<4x256xf32>
    %107 = arith.select %20, %105, %106 : vector<4x256xi1>, vector<4x256xf32>
    %c16_57 = arith.constant 16 : index
    %c0_58 = arith.constant 0 : index
    %108 = vector.load %arg1[%c16_57, %c0_58] : memref<72x4xf32, #tpu.memory_space<vmem>>, vector<8x4xf32>
    %cst_59 = arith.constant dense<0.000000e+00> : vector<8x256xf32>
    %109 = tpu.matmul %108, %107, %cst_59 {dimension_numbers = #tpu.dot_dimension_numbers<[1], [0], [0], [1], [0, 0, 1, 1], [], []>, precision = #tpu.contract_precision<fp32>} : vector<8x4xf32>, vector<4x256xf32>, vector<8x256xf32> -> vector<8x256xf32>
    %110 = arith.addf %104, %109 : vector<8x256xf32>
    %111 = vector.extract_strided_slice %93 {offsets = [0, 31], sizes = [4, 256], strides = [1, 1]} : vector<4x320xf32> to vector<4x256xf32>
    %cst_60 = arith.constant 0.000000e+00 : f32
    %112 = vector.broadcast %cst_60 : f32 to vector<4x256xf32>
    %113 = arith.select %18, %111, %112 : vector<4x256xi1>, vector<4x256xf32>
    %c24_61 = arith.constant 24 : index
    %c0_62 = arith.constant 0 : index
    %114 = vector.load %arg1[%c24_61, %c0_62] : memref<72x4xf32, #tpu.memory_space<vmem>>, vector<8x4xf32>
    %cst_63 = arith.constant dense<0.000000e+00> : vector<8x256xf32>
    %115 = tpu.matmul %114, %113, %cst_63 {dimension_numbers = #tpu.dot_dimension_numbers<[1], [0], [0], [1], [0, 0, 1, 1], [], []>, precision = #tpu.contract_precision<fp32>} : vector<8x4xf32>, vector<4x256xf32>, vector<8x256xf32> -> vector<8x256xf32>
    %116 = arith.addf %110, %115 : vector<8x256xf32>
    %117 = vector.extract_strided_slice %93 {offsets = [0, 32], sizes = [4, 256], strides = [1, 1]} : vector<4x320xf32> to vector<4x256xf32>
    %c32_64 = arith.constant 32 : index
    %c0_65 = arith.constant 0 : index
    %118 = vector.load %arg1[%c32_64, %c0_65] : memref<72x4xf32, #tpu.memory_space<vmem>>, vector<8x4xf32>
    %cst_66 = arith.constant dense<0.000000e+00> : vector<8x256xf32>
    %119 = tpu.matmul %118, %117, %cst_66 {dimension_numbers = #tpu.dot_dimension_numbers<[1], [0], [0], [1], [0, 0, 1, 1], [], []>, precision = #tpu.contract_precision<fp32>} : vector<8x4xf32>, vector<4x256xf32>, vector<8x256xf32> -> vector<8x256xf32>
    %120 = arith.addf %116, %119 : vector<8x256xf32>
    %121 = vector.extract_strided_slice %93 {offsets = [0, 33], sizes = [4, 256], strides = [1, 1]} : vector<4x320xf32> to vector<4x256xf32>
    %cst_67 = arith.constant 0.000000e+00 : f32
    %122 = vector.broadcast %cst_67 : f32 to vector<4x256xf32>
    %123 = arith.select %20, %121, %122 : vector<4x256xi1>, vector<4x256xf32>
    %c40_68 = arith.constant 40 : index
    %c0_69 = arith.constant 0 : index
    %124 = vector.load %arg1[%c40_68, %c0_69] : memref<72x4xf32, #tpu.memory_space<vmem>>, vector<8x4xf32>
    %cst_70 = arith.constant dense<0.000000e+00> : vector<8x256xf32>
    %125 = tpu.matmul %124, %123, %cst_70 {dimension_numbers = #tpu.dot_dimension_numbers<[1], [0], [0], [1], [0, 0, 1, 1], [], []>, precision = #tpu.contract_precision<fp32>} : vector<8x4xf32>, vector<4x256xf32>, vector<8x256xf32> -> vector<8x256xf32>
    %126 = arith.addf %120, %125 : vector<8x256xf32>
    %127 = vector.extract_strided_slice %93 {offsets = [0, 47], sizes = [4, 256], strides = [1, 1]} : vector<4x320xf32> to vector<4x256xf32>
    %cst_71 = arith.constant 0.000000e+00 : f32
    %128 = vector.broadcast %cst_71 : f32 to vector<4x256xf32>
    %129 = arith.select %18, %127, %128 : vector<4x256xi1>, vector<4x256xf32>
    %c48_72 = arith.constant 48 : index
    %c0_73 = arith.constant 0 : index
    %130 = vector.load %arg1[%c48_72, %c0_73] : memref<72x4xf32, #tpu.memory_space<vmem>>, vector<8x4xf32>
    %cst_74 = arith.constant dense<0.000000e+00> : vector<8x256xf32>
    %131 = tpu.matmul %130, %129, %cst_74 {dimension_numbers = #tpu.dot_dimension_numbers<[1], [0], [0], [1], [0, 0, 1, 1], [], []>, precision = #tpu.contract_precision<fp32>} : vector<8x4xf32>, vector<4x256xf32>, vector<8x256xf32> -> vector<8x256xf32>
    %132 = arith.addf %126, %131 : vector<8x256xf32>
    %133 = vector.extract_strided_slice %93 {offsets = [0, 48], sizes = [4, 256], strides = [1, 1]} : vector<4x320xf32> to vector<4x256xf32>
    %c56_75 = arith.constant 56 : index
    %c0_76 = arith.constant 0 : index
    %134 = vector.load %arg1[%c56_75, %c0_76] : memref<72x4xf32, #tpu.memory_space<vmem>>, vector<8x4xf32>
    %cst_77 = arith.constant dense<0.000000e+00> : vector<8x256xf32>
    %135 = tpu.matmul %134, %133, %cst_77 {dimension_numbers = #tpu.dot_dimension_numbers<[1], [0], [0], [1], [0, 0, 1, 1], [], []>, precision = #tpu.contract_precision<fp32>} : vector<8x4xf32>, vector<4x256xf32>, vector<8x256xf32> -> vector<8x256xf32>
    %136 = arith.addf %132, %135 : vector<8x256xf32>
    %137 = vector.extract_strided_slice %93 {offsets = [0, 49], sizes = [4, 256], strides = [1, 1]} : vector<4x320xf32> to vector<4x256xf32>
    %cst_78 = arith.constant 0.000000e+00 : f32
    %138 = vector.broadcast %cst_78 : f32 to vector<4x256xf32>
    %139 = arith.select %20, %137, %138 : vector<4x256xi1>, vector<4x256xf32>
    %c64_79 = arith.constant 64 : index
    %c0_80 = arith.constant 0 : index
    %140 = vector.load %arg1[%c64_79, %c0_80] : memref<72x4xf32, #tpu.memory_space<vmem>>, vector<8x4xf32>
    %cst_81 = arith.constant dense<0.000000e+00> : vector<8x256xf32>
    %141 = tpu.matmul %140, %139, %cst_81 {dimension_numbers = #tpu.dot_dimension_numbers<[1], [0], [0], [1], [0, 0, 1, 1], [], []>, precision = #tpu.contract_precision<fp32>} : vector<8x4xf32>, vector<4x256xf32>, vector<8x256xf32> -> vector<8x256xf32>
    %142 = arith.addf %136, %141 : vector<8x256xf32>
    %143 = vector.broadcast %21 : vector<8x1xf32> to vector<8x256xf32>
    %144 = arith.addf %142, %143 : vector<8x256xf32>
    %cst_82 = arith.constant 0.000000e+00 : f32
    %145 = vector.broadcast %cst_82 : f32 to vector<8x256xf32>
    %146 = arith.maximumf %144, %145 : vector<8x256xf32>
    %c1_83 = arith.constant 1 : index
    %c0_84 = arith.constant 0 : index
    %c0_85 = arith.constant 0 : index
    %147 = vector.load %arg5[%c1_83, %c0_84, %c0_85] : memref<2x8x256xf32, #tpu.memory_space<vmem>>, vector<1x8x256xf32>
    %148 = vector.shape_cast %147 : vector<1x8x256xf32> to vector<8x256xf32>
    %149 = vector.shape_cast %146 : vector<8x256xf32> to vector<1x8x256xf32>
    tpu.vector_store %arg5[%c1_83, %c0_84, %c0_85], %149 {strides = array<i32>} : memref<2x8x256xf32, #tpu.memory_space<vmem>>, vector<1x8x256xf32>,
    %cst_86 = arith.constant dense<0.000000e+00> : vector<8xf32>
    %150 = vector.multi_reduction <add>, %146, %cst_86 [1] : vector<8x256xf32> to vector<8xf32>
    %151 = vector.shape_cast %150 : vector<8xf32> to vector<8x1xf32>
    %cst_87 = arith.constant 2.560000e+02 : f32
    %152 = vector.broadcast %cst_87 : f32 to vector<8x1xf32>
    %153 = arith.divf %151, %152 : vector<8x1xf32>
    %154 = vector.broadcast %153 : vector<8x1xf32> to vector<8x32xf32>
    %155 = arith.mulf %154, %22 : vector<8x32xf32>
    %cst_88 = arith.constant dense<0.000000e+00> : vector<32xf32>
    %156 = vector.multi_reduction <add>, %155, %cst_88 [0] : vector<8x32xf32> to vector<32xf32>
    %157 = vector.shape_cast %156 : vector<32xf32> to vector<1x32xf32>
    %158 = arith.addf %157, %23 : vector<1x32xf32>
    %c1_89 = arith.constant 1 : index
    %c0_90 = arith.constant 0 : index
    %159 = vector.load %arg6[%c1_89, %c0_90] : memref<2x32xf32, #tpu.memory_space<vmem>>, vector<1x32xf32>
    tpu.vector_store %arg6[%c1_89, %c0_90], %158 {strides = array<i32>} : memref<2x32xf32, #tpu.memory_space<vmem>>, vector<1x32xf32>,
    return
  }
}

</mosaic_0001>

<llo_original>
// kernel: inner_model.1
$region0: #{inner_model.1}
  #allocation0 [shape = 'u32[]', space=smem, size = 0x4, offset = 0x4, fixed_abs, tag = 'smem constant byte address 0x4 - core index']
  #allocation1 [shape = 'u32[144,128]{1,0:T(1,128)}', space=vmem, size = 0x12000, scoped, tag = 'internal scratch']
  %s0 = inlined_call_operand.vmem [shape: f32[2,4,320], index: 0, kind: input, shape index: {}]
  %s1 = inlined_call_operand.vmem [shape: f32[72,4], index: 1, kind: input, shape index: {}]
  %s2 = inlined_call_operand.vmem [shape: f32[8,1], index: 2, kind: input, shape index: {}]
  %s3 = inlined_call_operand.vmem [shape: f32[8,32], index: 3, kind: input, shape index: {}]
  %s4 = inlined_call_operand.vmem [shape: f32[1,32], index: 4, kind: input, shape index: {}]
  %s5 = inlined_call_operand.vmem [shape: f32[2,8,256], index: 5, kind: output, shape index: {0}]
  %s6 = inlined_call_operand.hbm [shape: f32[2,32], index: 6, kind: output, shape index: {1}]
  %7 = xla_tuple %s5, %s6
  %s8 = sld [smem:[#allocation0]]
  $region38: #{inner_model.1} parent=0
    _
  %s10 = ssub.s32 1, %s8
  %s11 = scalar_select 0, %s10, %s8
  $region1: #{inner_model.1} parent=0
    #allocation2 [shape = 'u8[1024]{0}', space=vmem, size = 0x400, scoped, tag = 'output window, operand 1, single buffered']
    #allocation3 [shape = 's32[1]{0}', space=sflag, size = 0x4, scoped, tag = 'scoped memory for inner_model.1']
    %12 = vsyncpa [#allocation3], 0
    // Predicated region
    $region2: #{inner_model.1} parent=1 // pred_check
      _
    $region3: #{inner_model.1} parent=1 // pred_check_branch
      %14 = sbr.rel (0) target = $region5
    $region4: #{inner_model.1} parent=1 // pred_region
      _
    $region5: #{inner_model.1} parent=1 // pred_fallthru
      _
    // Predicated region
    $region6: #{inner_model.1} parent=1 // pred_check
      _
    $region7: #{inner_model.1} parent=1 // pred_check_branch
      %16 = sbr.rel (0) target = $region9
    $region8: #{inner_model.1} parent=1 // pred_region
      _
    $region9: #{inner_model.1} parent=1 // pred_fallthru
      _
    // Predicated region
    $region10: #{inner_model.1} parent=1 // pred_check
      _
    $region11: #{inner_model.1} parent=1 // pred_check_branch
      %18 = sbr.rel (0) target = $region13
    $region12: #{inner_model.1} parent=1 // pred_region
      _
    $region13: #{inner_model.1} parent=1 // pred_fallthru
      _
    // Predicated region
    $region14: #{inner_model.1} parent=1 // pred_check
      _
    $region15: #{inner_model.1} parent=1 // pred_check_branch
      %20 = sbr.rel (0) target = $region17
    $region16: #{inner_model.1} parent=1 // pred_region
      _
    $region17: #{inner_model.1} parent=1 // pred_fallthru
      _
    // Predicated region
    $region18: #{inner_model.1} parent=1 // pred_check
      _
    $region19: #{inner_model.1} parent=1 // pred_check_branch
      %22 = sbr.rel (0) target = $region21
    $region20: #{inner_model.1} parent=1 // pred_region
      _
    $region21: #{inner_model.1} parent=1 // pred_fallthru
      _
    %v23 = vlaneseq
    %v24 = vand.u32 %v23, 127
    %v25 = vadd.s32 %v24, 128
    %vm26 = vcmp.lt.s32.totalorder %v24, 0
    %v27 = vsub.s32 0, %v24
    %v28 = vsel %vm26, %v27, %v24
    %v29 = vshrl.u32 %v28, 4
    %v30 = vand.u32 %v28, 15
    %v31 = vsub.s32 0, %v30
    %v32 = vsel %vm26, %v31, %v30
    %vm33 = vcmp.lt.s32.totalorder %v25, 0
    %v34 = vsub.s32 0, %v25
    %v35 = vsel %vm33, %v34, %v25
    %v36 = vshrl.u32 %v35, 4
    %v37 = vand.u32 %v35, 15
    %v38 = vsub.s32 0, %v37
    %v39 = vsel %vm33, %v38, %v37
    %vm40 = vcmp.ne.s32.totalorder %v32, 0
    %vm41 = vcmp.ne.s32.totalorder %v39, 0
    %vm42 = vcmp.lt.s32.totalorder %v32, 0
    %vm43 = vcmp.lt.s32.totalorder %v39, 0
    %vm44 = vmand %vm42, %vm40
    %vm45 = vmand %vm43, %vm41
    %v46 = vadd.s32 %v32, 16
    %v47 = vadd.s32 %v39, 16
    %v48 = vsel %vm44, %v46, %v32
    %v49 = vsel %vm45, %v47, %v39
    %vm50 = vcmp.ge.s32.totalorder %v48, 1
    %vm51 = vcmp.ge.s32.totalorder %v49, 1
    %vm52 = vcmp.le.s32.totalorder %v48, 14
    %vm53 = vcmp.le.s32.totalorder %v49, 14
    %v54 = vld [vmem:[%s2] sm:$0xff]
    %v55 = vld [vmem:[%s3] sm:$0xff]
    %v56 = vld [vmem:[%s4] sm:$0x1]
    %v57 = vld [vmem:[%s0] sm:$0xff]
    %v58 = vld [vmem:[%s0 + $0x8] sm:$0xf]
    %v61 = vcombine.high %v57, %v57
    %62 = vrot.lane.b32.xlu0 %v57, 113
    %v63 = vpop.permute.xlu0 %62
    %64 = vrot.lane.b32.xlu0 %v61, 113
    %v65 = vpop.permute.xlu0 %64
    %66 = vrot.lane.b32.xlu0 %v58, 113
    %v67 = vpop.permute.xlu0 %66
    %vm68 = vcmask 924672
    %v69 = vsel %vm68, %v63, %v65
    %v70 = vsel %vm68, %v65, %v67
    %v73 = vsel %vm50, %v69, 0.0
    %v74 = vsel %vm51, %v70, 0.0
    %v75 = vld [vmem:[%s1] sm:$0xff]
    %v76 = vld [vmem:[%s1 + $0x8] sm:$0xff]
    %77 = vrot.lane.b32.xlu0 %v57, 112
    %v78 = vpop.permute.xlu0 %77
    %79 = vrot.lane.b32.xlu0 %v61, 112
    %v80 = vpop.permute.xlu0 %79
    %81 = vrot.lane.b32.xlu0 %v58, 112
    %v82 = vpop.permute.xlu0 %81
    %vm83 = vcmask 916480
    %v84 = vsel %vm83, %v78, %v80
    %v85 = vsel %vm83, %v80, %v82
    %vm86 = vcmask 31744
    %v88 = vsel %vm86, %v76, 0
    %vm90 = vcmask 1043456
    %v91 = vsel %vm90, %v84, 0
    %v93 = vsel %vm90, %v85, 0
    %v95 = vand.u32 %v93, 4294901760
    %96 = vmatprep.subr.mxu0 %v95
    %v97 = vand.u32 %v91, 4294901760
    %98 = vmatpush1.msra.mxu0 %v97
    %99 = vmatprep.subr.mxu0 0.0
    %100 = vmatpush1.msra.mxu0 0.0
    %101 = vmatprep.subr.mxu0 0.0
    %102 = vmatpush1.msra.mxu0 0.0
    %103 = vmatprep.subr.mxu0 0.0
    %104 = vmatpush1.msra.mxu0 0.0
    %105 = vmatprep.subr.mxu0 0.0
    %106 = vmatpush1.msra.mxu0 0.0
    %107 = vmatprep.subr.mxu0 0.0
    %108 = vmatpush1.msra.mxu0 0.0
    %109 = vmatprep.subr.mxu0 0.0
    %110 = vmatpush1.msra.mxu0 0.0
    %111 = vmatprep.subr.mxu0 0.0
    %112 = vmatpush1.msra.mxu0 0.0
    %113 = vmatprep.subr.mxu0 0.0
    %114 = vmatpush1.msra.mxu0 0.0
    %115 = vmatprep.subr.mxu0 0.0
    %116 = vmatpush1.msra.mxu0 0.0
    %117 = vmatprep.subr.mxu0 0.0
    %118 = vmatpush1.msra.mxu0 0.0
    %119 = vmatprep.subr.mxu0 0.0
    %120 = vmatpush1.msra.mxu0 0.0
    %121 = vmatprep.subr.mxu0 0.0
    %122 = vmatpush1.msra.mxu0 0.0
    %123 = vmatprep.subr.mxu0 0.0
    %124 = vmatpush1.msra.mxu0 0.0
    %125 = vmatprep.subr.mxu0 0.0
    %126 = vmatpush1.msra.mxu0 0.0
    %127 = vmatprep.subr.mxu0 0.0
    %128 = vmatpush1.msra.mxu0 0.0
    %129 = vmatprep.subr.mxu0 0.0
    %130 = vmatpush1.msra.mxu0 0.0
    %131 = vmatprep.subr.mxu0 0.0
    %132 = vmatpush1.msra.mxu0 0.0
    %133 = vmatprep.subr.mxu0 0.0
    %134 = vmatpush1.msra.mxu0 0.0
    %135 = vmatprep.subr.mxu0 0.0
    %136 = vmatpush1.msra.mxu0 0.0
    %137 = vmatprep.subr.mxu0 0.0
    %138 = vmatpush1.msra.mxu0 0.0
    %139 = vmatprep.subr.mxu0 0.0
    %140 = vmatpush1.msra.mxu0 0.0
    %141 = vmatprep.subr.mxu0 0.0
    %142 = vmatpush1.msra.mxu0 0.0
    %143 = vmatprep.subr.mxu0 0.0
    %144 = vmatpush1.msra.mxu0 0.0
    %145 = vmatprep.subr.mxu0 0.0
    %146 = vmatpush1.msra.mxu0 0.0
    %147 = vmatprep.subr.mxu0 0.0
    %148 = vmatpush1.msra.mxu0 0.0
    %149 = vmatprep.subr.mxu0 0.0
    %150 = vmatpush1.msra.mxu0 0.0
    %151 = vmatprep.subr.mxu0 0.0
    %152 = vmatpush1.msra.mxu0 0.0
    %153 = vmatprep.subr.mxu0 0.0
    %154 = vmatpush1.msra.mxu0 0.0
    %155 = vmatprep.subr.mxu0 0.0
    %156 = vmatpush1.msra.mxu0 0.0
    %157 = vmatprep.subr.mxu0 0.0
    %158 = vmatpush1.msra.mxu0 0.0
    %159 = vmatprep.subr.mxu0 0.0
    %160 = vmatpush1.msra.mxu0 0.0
    %161 = vmatprep.mubr.f32.mxu0 0.0
    %v162 = vand.u32 %v88, 4294901760
    %v163 = vsub.f32 %v88, %v162
    %v164 = vand.u32 %v163, 4294901760
    %v165 = vsub.f32 %v163, %v164
    %v166 = vand.u32 %v165, 4294901760
    %167 = vmatmul.mubr.f32.gmra.mrb[0].mxu0 %v166
    %v168 = vpop.f32.mrb[0].mxu0
    %v169 = vadd.f32 0.0, %v168
    %v170 = vpop.f32.mrb[0].mxu0
    %v171 = vadd.f32 0.0, %v170
    %172 = vdwg.mxu0
    %v173 = vand.u32 %v93, 4294901760
    %v174 = vsub.f32 %v93, %v173
    %v175 = vand.u32 %v174, 4294901760
    %v176 = vsub.f32 %v174, %v175
    %v177 = vand.u32 %v176, 4294901760
    %178 = vmatprep.subr.mxu0 %v177
    %v179 = vand.u32 %v91, 4294901760
    %v180 = vsub.f32 %v91, %v179
    %v181 = vand.u32 %v180, 4294901760
    %v182 = vsub.f32 %v180, %v181
    %v183 = vand.u32 %v182, 4294901760
    %184 = vmatpush1.msra.mxu0 %v183
    %185 = vmatprep.subr.mxu0 0.0
    %186 = vmatpush1.msra.mxu0 0.0
    %187 = vmatprep.subr.mxu0 0.0
    %188 = vmatpush1.msra.mxu0 0.0
    %189 = vmatprep.subr.mxu0 0.0
    %190 = vmatpush1.msra.mxu0 0.0
    %191 = vmatprep.subr.mxu0 0.0
    %192 = vmatpush1.msra.mxu0 0.0
    %193 = vmatprep.subr.mxu0 0.0
    %194 = vmatpush1.msra.mxu0 0.0
    %195 = vmatprep.subr.mxu0 0.0
    %196 = vmatpush1.msra.mxu0 0.0
    %197 = vmatprep.subr.mxu0 0.0
    %198 = vmatpush1.msra.mxu0 0.0
    %199 = vmatprep.subr.mxu0 0.0
    %200 = vmatpush1.msra.mxu0 0.0
    %201 = vmatprep.subr.mxu0 0.0
    %202 = vmatpush1.msra.mxu0 0.0
    %203 = vmatprep.subr.mxu0 0.0
    %204 = vmatpush1.msra.mxu0 0.0
    %205 = vmatprep.subr.mxu0 0.0
    %206 = vmatpush1.msra.mxu0 0.0
    %207 = vmatprep.subr.mxu0 0.0
    %208 = vmatpush1.msra.mxu0 0.0
    %209 = vmatprep.subr.mxu0 0.0
    %210 = vmatpush1.msra.mxu0 0.0
    %211 = vmatprep.subr.mxu0 0.0
    %212 = vmatpush1.msra.mxu0 0.0
    %213 = vmatprep.subr.mxu0 0.0
    %214 = vmatpush1.msra.mxu0 0.0
    %215 = vmatprep.subr.mxu0 0.0
    %216 = vmatpush1.msra.mxu0 0.0
    %217 = vmatprep.subr.mxu0 0.0
    %218 = vmatpush1.msra.mxu0 0.0
    %219 = vmatprep.subr.mxu0 0.0
    %220 = vmatpush1.msra.mxu0 0.0
    %221 = vmatprep.subr.mxu0 0.0
    %222 = vmatpush1.msra.mxu0 0.0
    %223 = vmatprep.subr.mxu0 0.0
    %224 = vmatpush1.msra.mxu0 0.0
    %225 = vmatprep.subr.mxu0 0.0
    %226 = vmatpush1.msra.mxu0 0.0
    %227 = vmatprep.subr.mxu0 0.0
    %228 = vmatpush1.msra.mxu0 0.0
    %229 = vmatprep.subr.mxu0 0.0
    %230 = vmatpush1.msra.mxu0 0.0
    %231 = vmatprep.subr.mxu0 0.0
    %232 = vmatpush1.msra.mxu0 0.0
    %233 = vmatprep.subr.mxu0 0.0
    %234 = vmatpush1.msra.mxu0 0.0
    %235 = vmatprep.subr.mxu0 0.0
    %236 = vmatpush1.msra.mxu0 0.0
    %237 = vmatprep.subr.mxu0 0.0
    %238 = vmatpush1.msra.mxu0 0.0
    %239 = vmatprep.subr.mxu0 0.0
    %240 = vmatpush1.msra.mxu0 0.0
    %241 = vmatprep.subr.mxu0 0.0
    %242 = vmatpush1.msra.mxu0 0.0
    %243 = vmatprep.subr.mxu0 0.0
    %244 = vmatpush1.msra.mxu0 0.0
    %245 = vmatprep.subr.mxu0 0.0
    %246 = vmatpush1.msra.mxu0 0.0
    %247 = vmatprep.mubr.f32.mxu0 0.0
    %v248 = vand.u32 %v88, 4294901760
    %249 = vmatmul.mubr.f32.gmra.mrb[0].mxu0 %v248
    %v250 = vpop.f32.mrb[0].mxu0
    %v251 = vadd.f32 %v169, %v250
    %v252 = vpop.f32.mrb[0].mxu0
    %v253 = vadd.f32 %v171, %v252
    %254 = vdwg.mxu0
    %v255 = vand.u32 %v93, 4294901760
    %v256 = vsub.f32 %v93, %v255
    %257 = vmatprep.subr.mxu0 %v256
    %v258 = vand.u32 %v91, 4294901760
    %v259 = vsub.f32 %v91, %v258
    %260 = vmatpush1.msra.mxu0 %v259
    %261 = vmatprep.subr.mxu0 0.0
    %262 = vmatpush1.msra.mxu0 0.0
    %263 = vmatprep.subr.mxu0 0.0
    %264 = vmatpush1.msra.mxu0 0.0
    %265 = vmatprep.subr.mxu0 0.0
    %266 = vmatpush1.msra.mxu0 0.0
    %267 = vmatprep.subr.mxu0 0.0
    %268 = vmatpush1.msra.mxu0 0.0
    %269 = vmatprep.subr.mxu0 0.0
    %270 = vmatpush1.msra.mxu0 0.0
    %271 = vmatprep.subr.mxu0 0.0
    %272 = vmatpush1.msra.mxu0 0.0
    %273 = vmatprep.subr.mxu0 0.0
    %274 = vmatpush1.msra.mxu0 0.0
    %275 = vmatprep.subr.mxu0 0.0
    %276 = vmatpush1.msra.mxu0 0.0
    %277 = vmatprep.subr.mxu0 0.0
    %278 = vmatpush1.msra.mxu0 0.0
    %279 = vmatprep.subr.mxu0 0.0
    %280 = vmatpush1.msra.mxu0 0.0
    %281 = vmatprep.subr.mxu0 0.0
    %282 = vmatpush1.msra.mxu0 0.0
    %283 = vmatprep.subr.mxu0 0.0
    %284 = vmatpush1.msra.mxu0 0.0
    %285 = vmatprep.subr.mxu0 0.0
    %286 = vmatpush1.msra.mxu0 0.0
    %287 = vmatprep.subr.mxu0 0.0
    %288 = vmatpush1.msra.mxu0 0.0
    %289 = vmatprep.subr.mxu0 0.0
    %290 = vmatpush1.msra.mxu0 0.0
    %291 = vmatprep.subr.mxu0 0.0
    %292 = vmatpush1.msra.mxu0 0.0
    %293 = vmatprep.subr.mxu0 0.0
    %294 = vmatpush1.msra.mxu0 0.0
    %295 = vmatprep.subr.mxu0 0.0
    %296 = vmatpush1.msra.mxu0 0.0
    %297 = vmatprep.subr.mxu0 0.0
    %298 = vmatpush1.msra.mxu0 0.0
    %299 = vmatprep.subr.mxu0 0.0
    %300 = vmatpush1.msra.mxu0 0.0
    %301 = vmatprep.subr.mxu0 0.0
    %302 = vmatpush1.msra.mxu0 0.0
    %303 = vmatprep.subr.mxu0 0.0
    %304 = vmatpush1.msra.mxu0 0.0
    %305 = vmatprep.subr.mxu0 0.0
    %306 = vmatpush1.msra.mxu0 0.0
    %307 = vmatprep.subr.mxu0 0.0
    %308 = vmatpush1.msra.mxu0 0.0
    %309 = vmatprep.subr.mxu0 0.0
    %310 = vmatpush1.msra.mxu0 0.0
    %311 = vmatprep.subr.mxu0 0.0
    %312 = vmatpush1.msra.mxu0 0.0
    %313 = vmatprep.subr.mxu0 0.0
    %314 = vmatpush1.msra.mxu0 0.0
    %315 = vmatprep.subr.mxu0 0.0
    %316 = vmatpush1.msra.mxu0 0.0
    %317 = vmatprep.subr.mxu0 0.0
    %318 = vmatpush1.msra.mxu0 0.0
    %319 = vmatprep.subr.mxu0 0.0
    %320 = vmatpush1.msra.mxu0 0.0
    %321 = vmatprep.subr.mxu0 0.0
    %322 = vmatpush1.msra.mxu0 0.0
    %323 = vmatprep.mubr.f32.mxu0 0.0
    %v324 = vand.u32 %v88, 4294901760
    %v325 = vsub.f32 %v88, %v324
    %326 = vmatmul.mubr.f32.gmra.mrb[0].mxu0 %v325
    %v327 = vpop.f32.mrb[0].mxu0
    %v328 = vadd.f32 %v251, %v327
    %v329 = vpop.f32.mrb[0].mxu0
    %v330 = vadd.f32 %v253, %v329
    %331 = vdwg.mxu0
    %v332 = vand.u32 %v93, 4294901760
    %333 = vmatprep.subr.mxu0 %v332
    %v334 = vand.u32 %v91, 4294901760
    %335 = vmatpush1.msra.mxu0 %v334
    %336 = vmatprep.subr.mxu0 0.0
    %337 = vmatpush1.msra.mxu0 0.0
    %338 = vmatprep.subr.mxu0 0.0
    %339 = vmatpush1.msra.mxu0 0.0
    %340 = vmatprep.subr.mxu0 0.0
    %341 = vmatpush1.msra.mxu0 0.0
    %342 = vmatprep.subr.mxu0 0.0
    %343 = vmatpush1.msra.mxu0 0.0
    %344 = vmatprep.subr.mxu0 0.0
    %345 = vmatpush1.msra.mxu0 0.0
    %346 = vmatprep.subr.mxu0 0.0
    %347 = vmatpush1.msra.mxu0 0.0
    %348 = vmatprep.subr.mxu0 0.0
    %349 = vmatpush1.msra.mxu0 0.0
    %350 = vmatprep.subr.mxu0 0.0
    %351 = vmatpush1.msra.mxu0 0.0
    %352 = vmatprep.subr.mxu0 0.0
    %353 = vmatpush1.msra.mxu0 0.0
    %354 = vmatprep.subr.mxu0 0.0
    %355 = vmatpush1.msra.mxu0 0.0
    %356 = vmatprep.subr.mxu0 0.0
    %357 = vmatpush1.msra.mxu0 0.0
    %358 = vmatprep.subr.mxu0 0.0
    %359 = vmatpush1.msra.mxu0 0.0
    %360 = vmatprep.subr.mxu0 0.0
    %361 = vmatpush1.msra.mxu0 0.0
    %362 = vmatprep.subr.mxu0 0.0
    %363 = vmatpush1.msra.mxu0 0.0
    %364 = vmatprep.subr.mxu0 0.0
    %365 = vmatpush1.msra.mxu0 0.0
    %366 = vmatprep.subr.mxu0 0.0
    %367 = vmatpush1.msra.mxu0 0.0
    %368 = vmatprep.subr.mxu0 0.0
    %369 = vmatpush1.msra.mxu0 0.0
    %370 = vmatprep.subr.mxu0 0.0
    %371 = vmatpush1.msra.mxu0 0.0
    %372 = vmatprep.subr.mxu0 0.0
    %373 = vmatpush1.msra.mxu0 0.0
    %374 = vmatprep.subr.mxu0 0.0
    %375 = vmatpush1.msra.mxu0 0.0
    %376 = vmatprep.subr.mxu0 0.0
    %377 = vmatpush1.msra.mxu0 0.0
    %378 = vmatprep.subr.mxu0 0.0
    %379 = vmatpush1.msra.mxu0 0.0
    %380 = vmatprep.subr.mxu0 0.0
    %381 = vmatpush1.msra.mxu0 0.0
    %382 = vmatprep.subr.mxu0 0.0
    %383 = vmatpush1.msra.mxu0 0.0
    %384 = vmatprep.subr.mxu0 0.0
    %385 = vmatpush1.msra.mxu0 0.0
    %386 = vmatprep.subr.mxu0 0.0
    %387 = vmatpush1.msra.mxu0 0.0
    %388 = vmatprep.subr.mxu0 0.0
    %389 = vmatpush1.msra.mxu0 0.0
    %390 = vmatprep.subr.mxu0 0.0
    %391 = vmatpush1.msra.mxu0 0.0
    %392 = vmatprep.subr.mxu0 0.0
    %393 = vmatpush1.msra.mxu0 0.0
    %394 = vmatprep.subr.mxu0 0.0
    %395 = vmatpush1.msra.mxu0 0.0
    %396 = vmatprep.subr.mxu0 0.0
    %397 = vmatpush1.msra.mxu0 0.0
    %398 = vmatprep.mubr.f32.mxu0 0.0
    %v399 = vand.u32 %v88, 4294901760
    %v400 = vsub.f32 %v88, %v399
    %v401 = vand.u32 %v400, 4294901760
    %402 = vmatmul.mubr.f32.gmra.mrb[0].mxu0 %v401
    %v403 = vpop.f32.mrb[0].mxu0
    %v404 = vadd.f32 %v328, %v403
    %v405 = vpop.f32.mrb[0].mxu0
    %v406 = vadd.f32 %v330, %v405
    %407 = vdwg.mxu0
    %v408 = vand.u32 %v93, 4294901760
    %v409 = vsub.f32 %v93, %v408
    %v410 = vand.u32 %v409, 4294901760
    %411 = vmatprep.subr.mxu0 %v410
    %v412 = vand.u32 %v91, 4294901760
    %v413 = vsub.f32 %v91, %v412
    %v414 = vand.u32 %v413, 4294901760
    %415 = vmatpush1.msra.mxu0 %v414
    %416 = vmatprep.subr.mxu0 0.0
    %417 = vmatpush1.msra.mxu0 0.0
    %418 = vmatprep.subr.mxu0 0.0
    %419 = vmatpush1.msra.mxu0 0.0
    %420 = vmatprep.subr.mxu0 0.0
    %421 = vmatpush1.msra.mxu0 0.0
    %422 = vmatprep.subr.mxu0 0.0
    %423 = vmatpush1.msra.mxu0 0.0
    %424 = vmatprep.subr.mxu0 0.0
    %425 = vmatpush1.msra.mxu0 0.0
    %426 = vmatprep.subr.mxu0 0.0
    %427 = vmatpush1.msra.mxu0 0.0
    %428 = vmatprep.subr.mxu0 0.0
    %429 = vmatpush1.msra.mxu0 0.0
    %430 = vmatprep.subr.mxu0 0.0
    %431 = vmatpush1.msra.mxu0 0.0
    %432 = vmatprep.subr.mxu0 0.0
    %433 = vmatpush1.msra.mxu0 0.0
    %434 = vmatprep.subr.mxu0 0.0
    %435 = vmatpush1.msra.mxu0 0.0
    %436 = vmatprep.subr.mxu0 0.0
    %437 = vmatpush1.msra.mxu0 0.0
    %438 = vmatprep.subr.mxu0 0.0
    %439 = vmatpush1.msra.mxu0 0.0
    %440 = vmatprep.subr.mxu0 0.0
    %441 = vmatpush1.msra.mxu0 0.0
    %442 = vmatprep.subr.mxu0 0.0
    %443 = vmatpush1.msra.mxu0 0.0
    %444 = vmatprep.subr.mxu0 0.0
    %445 = vmatpush1.msra.mxu0 0.0
    %446 = vmatprep.subr.mxu0 0.0
    %447 = vmatpush1.msra.mxu0 0.0
    %448 = vmatprep.subr.mxu0 0.0
    %449 = vmatpush1.msra.mxu0 0.0
    %450 = vmatprep.subr.mxu0 0.0
    %451 = vmatpush1.msra.mxu0 0.0
    %452 = vmatprep.subr.mxu0 0.0
    %453 = vmatpush1.msra.mxu0 0.0
    %454 = vmatprep.subr.mxu0 0.0
    %455 = vmatpush1.msra.mxu0 0.0
    %456 = vmatprep.subr.mxu0 0.0
    %457 = vmatpush1.msra.mxu0 0.0
    %458 = vmatprep.subr.mxu0 0.0
    %459 = vmatpush1.msra.mxu0 0.0
    %460 = vmatprep.subr.mxu0 0.0
    %461 = vmatpush1.msra.mxu0 0.0
    %462 = vmatprep.subr.mxu0 0.0
    %463 = vmatpush1.msra.mxu0 0.0
    %464 = vmatprep.subr.mxu0 0.0
    %465 = vmatpush1.msra.mxu0 0.0
    %466 = vmatprep.subr.mxu0 0.0
    %467 = vmatpush1.msra.mxu0 0.0
    %468 = vmatprep.subr.mxu0 0.0
    %469 = vmatpush1.msra.mxu0 0.0
    %470 = vmatprep.subr.mxu0 0.0
    %471 = vmatpush1.msra.mxu0 0.0
    %472 = vmatprep.subr.mxu0 0.0
    %473 = vmatpush1.msra.mxu0 0.0
    %474 = vmatprep.subr.mxu0 0.0
    %475 = vmatpush1.msra.mxu0 0.0
    %476 = vmatprep.subr.mxu0 0.0
    %477 = vmatpush1.msra.mxu0 0.0
    %478 = vmatprep.mubr.f32.mxu0 0.0
    %v479 = vand.u32 %v88, 4294901760
    %480 = vmatmul.mubr.f32.gmra.mrb[0].mxu0 %v479
    %v481 = vpop.f32.mrb[0].mxu0
    %v482 = vadd.f32 %v404, %v481
    %v483 = vpop.f32.mrb[0].mxu0
    %v484 = vadd.f32 %v406, %v483
    %485 = vdwg.mxu0
    %v486 = vand.u32 %v93, 4294901760
    %487 = vmatprep.subr.mxu0 %v486
    %v488 = vand.u32 %v91, 4294901760
    %489 = vmatpush1.msra.mxu0 %v488
    %490 = vmatprep.subr.mxu0 0.0
    %491 = vmatpush1.msra.mxu0 0.0
    %492 = vmatprep.subr.mxu0 0.0
    %493 = vmatpush1.msra.mxu0 0.0
    %494 = vmatprep.subr.mxu0 0.0
    %495 = vmatpush1.msra.mxu0 0.0
    %496 = vmatprep.subr.mxu0 0.0
    %497 = vmatpush1.msra.mxu0 0.0
    %498 = vmatprep.subr.mxu0 0.0
    %499 = vmatpush1.msra.mxu0 0.0
    %500 = vmatprep.subr.mxu0 0.0
    %501 = vmatpush1.msra.mxu0 0.0
    %502 = vmatprep.subr.mxu0 0.0
    %503 = vmatpush1.msra.mxu0 0.0
    %504 = vmatprep.subr.mxu0 0.0
    %505 = vmatpush1.msra.mxu0 0.0
    %506 = vmatprep.subr.mxu0 0.0
    %507 = vmatpush1.msra.mxu0 0.0
    %508 = vmatprep.subr.mxu0 0.0
    %509 = vmatpush1.msra.mxu0 0.0
    %510 = vmatprep.subr.mxu0 0.0
    %511 = vmatpush1.msra.mxu0 0.0
    %512 = vmatprep.subr.mxu0 0.0
    %513 = vmatpush1.msra.mxu0 0.0
    %514 = vmatprep.subr.mxu0 0.0
    %515 = vmatpush1.msra.mxu0 0.0
    %516 = vmatprep.subr.mxu0 0.0
    %517 = vmatpush1.msra.mxu0 0.0
    %518 = vmatprep.subr.mxu0 0.0
    %519 = vmatpush1.msra.mxu0 0.0
    %520 = vmatprep.subr.mxu0 0.0
    %521 = vmatpush1.msra.mxu0 0.0
    %522 = vmatprep.subr.mxu0 0.0
    %523 = vmatpush1.msra.mxu0 0.0
    %524 = vmatprep.subr.mxu0 0.0
    %525 = vmatpush1.msra.mxu0 0.0
    %526 = vmatprep.subr.mxu0 0.0
    %527 = vmatpush1.msra.mxu0 0.0
    %528 = vmatprep.subr.mxu0 0.0
    %529 = vmatpush1.msra.mxu0 0.0
    %530 = vmatprep.subr.mxu0 0.0
    %531 = vmatpush1.msra.mxu0 0.0
    %532 = vmatprep.subr.mxu0 0.0
    %533 = vmatpush1.msra.mxu0 0.0
    %534 = vmatprep.subr.mxu0 0.0
    %535 = vmatpush1.msra.mxu0 0.0
    %536 = vmatprep.subr.mxu0 0.0
    %537 = vmatpush1.msra.mxu0 0.0
    %538 = vmatprep.subr.mxu0 0.0
    %539 = vmatpush1.msra.mxu0 0.0
    %540 = vmatprep.subr.mxu0 0.0
    %541 = vmatpush1.msra.mxu0 0.0
    %542 = vmatprep.subr.mxu0 0.0
    %543 = vmatpush1.msra.mxu0 0.0
    %544 = vmatprep.subr.mxu0 0.0
    %545 = vmatpush1.msra.mxu0 0.0
    %546 = vmatprep.subr.mxu0 0.0
    %547 = vmatpush1.msra.mxu0 0.0
    %548 = vmatprep.subr.mxu0 0.0
    %549 = vmatpush1.msra.mxu0 0.0
    %550 = vmatprep.subr.mxu0 0.0
    %551 = vmatpush1.msra.mxu0 0.0
    %552 = vmatprep.mubr.f32.mxu0 0.0
    %v553 = vand.u32 %v88, 4294901760
    %554 = vmatmul.mubr.f32.gmra.mrb[0].mxu0 %v553
    %v555 = vpop.f32.mrb[0].mxu0
    %v556 = vadd.f32 %v482, %v555
    %v557 = vpop.f32.mrb[0].mxu0
    %v558 = vadd.f32 %v484, %v557
    %559 = vdwg.mxu0
    %v561 = vsel %vm86, %v75, 0
    %v564 = vsel %vm90, %v73, 0
    %v567 = vsel %vm90, %v74, 0
    %v569 = vand.u32 %v567, 4294901760
    %570 = vmatprep.subr.mxu0 %v569
    %v571 = vand.u32 %v564, 4294901760
    %572 = vmatpush1.msra.mxu0 %v571
    %573 = vmatprep.subr.mxu0 0.0
    %574 = vmatpush1.msra.mxu0 0.0
    %575 = vmatprep.subr.mxu0 0.0
    %576 = vmatpush1.msra.mxu0 0.0
    %577 = vmatprep.subr.mxu0 0.0
    %578 = vmatpush1.msra.mxu0 0.0
    %579 = vmatprep.subr.mxu0 0.0
    %580 = vmatpush1.msra.mxu0 0.0
    %581 = vmatprep.subr.mxu0 0.0
    %582 = vmatpush1.msra.mxu0 0.0
    %583 = vmatprep.subr.mxu0 0.0
    %584 = vmatpush1.msra.mxu0 0.0
    %585 = vmatprep.subr.mxu0 0.0
    %586 = vmatpush1.msra.mxu0 0.0
    %587 = vmatprep.subr.mxu0 0.0
    %588 = vmatpush1.msra.mxu0 0.0
    %589 = vmatprep.subr.mxu0 0.0
    %590 = vmatpush1.msra.mxu0 0.0
    %591 = vmatprep.subr.mxu0 0.0
    %592 = vmatpush1.msra.mxu0 0.0
    %593 = vmatprep.subr.mxu0 0.0
    %594 = vmatpush1.msra.mxu0 0.0
    %595 = vmatprep.subr.mxu0 0.0
    %596 = vmatpush1.msra.mxu0 0.0
    %597 = vmatprep.subr.mxu0 0.0
    %598 = vmatpush1.msra.mxu0 0.0
    %599 = vmatprep.subr.mxu0 0.0
    %600 = vmatpush1.msra.mxu0 0.0
    %601 = vmatprep.subr.mxu0 0.0
    %602 = vmatpush1.msra.mxu0 0.0
    %603 = vmatprep.subr.mxu0 0.0
    %604 = vmatpush1.msra.mxu0 0.0
    %605 = vmatprep.subr.mxu0 0.0
    %606 = vmatpush1.msra.mxu0 0.0
    %607 = vmatprep.subr.mxu0 0.0
    %608 = vmatpush1.msra.mxu0 0.0
    %609 = vmatprep.subr.mxu0 0.0
    %610 = vmatpush1.msra.mxu0 0.0
    %611 = vmatprep.subr.mxu0 0.0
    %612 = vmatpush1.msra.mxu0 0.0
    %613 = vmatprep.subr.mxu0 0.0
    %614 = vmatpush1.msra.mxu0 0.0
    %615 = vmatprep.subr.mxu0 0.0
    %616 = vmatpush1.msra.mxu0 0.0
    %617 = vmatprep.subr.mxu0 0.0
    %618 = vmatpush1.msra.mxu0 0.0
    %619 = vmatprep.subr.mxu0 0.0
    %620 = vmatpush1.msra.mxu0 0.0
    %621 = vmatprep.subr.mxu0 0.0
    %622 = vmatpush1.msra.mxu0 0.0
    %623 = vmatprep.subr.mxu0 0.0
    %624 = vmatpush1.msra.mxu0 0.0
    %625 = vmatprep.subr.mxu0 0.0
    %626 = vmatpush1.msra.mxu0 0.0
    %627 = vmatprep.subr.mxu0 0.0
    %628 = vmatpush1.msra.mxu0 0.0
    %629 = vmatprep.subr.mxu0 0.0
    %630 = vmatpush1.msra.mxu0 0.0
    %631 = vmatprep.subr.mxu0 0.0
    %632 = vmatpush1.msra.mxu0 0.0
    %633 = vmatprep.subr.mxu0 0.0
    %634 = vmatpush1.msra.mxu0 0.0
    %635 = vmatprep.mubr.f32.mxu0 0.0
    %v636 = vand.u32 %v561, 4294901760
    %v637 = vsub.f32 %v561, %v636
    %v638 = vand.u32 %v637, 4294901760
    %v639 = vsub.f32 %v637, %v638
    %v640 = vand.u32 %v639, 4294901760
    %641 = vmatmul.mubr.f32.gmra.mrb[0].mxu0 %v640
    %v642 = vpop.f32.mrb[0].mxu0
    %v643 = vadd.f32 %v556, %v642
    %v644 = vpop.f32.mrb[0].mxu0
    %v645 = vadd.f32 %v558, %v644
    %646 = vdwg.mxu0
    %v647 = vand.u32 %v567, 4294901760
    %v648 = vsub.f32 %v567, %v647
    %v649 = vand.u32 %v648, 4294901760
    %v650 = vsub.f32 %v648, %v649
    %v651 = vand.u32 %v650, 4294901760
    %652 = vmatprep.subr.mxu0 %v651
    %v653 = vand.u32 %v564, 4294901760
    %v654 = vsub.f32 %v564, %v653
    %v655 = vand.u32 %v654, 4294901760
    %v656 = vsub.f32 %v654, %v655
    %v657 = vand.u32 %v656, 4294901760
    %658 = vmatpush1.msra.mxu0 %v657
    %659 = vmatprep.subr.mxu0 0.0
    %660 = vmatpush1.msra.mxu0 0.0
    %661 = vmatprep.subr.mxu0 0.0
    %662 = vmatpush1.msra.mxu0 0.0
    %663 = vmatprep.subr.mxu0 0.0
    %664 = vmatpush1.msra.mxu0 0.0
    %665 = vmatprep.subr.mxu0 0.0
    %666 = vmatpush1.msra.mxu0 0.0
    %667 = vmatprep.subr.mxu0 0.0
    %668 = vmatpush1.msra.mxu0 0.0
    %669 = vmatprep.subr.mxu0 0.0
    %670 = vmatpush1.msra.mxu0 0.0
    %671 = vmatprep.subr.mxu0 0.0
    %672 = vmatpush1.msra.mxu0 0.0
    %673 = vmatprep.subr.mxu0 0.0
    %674 = vmatpush1.msra.mxu0 0.0
    %675 = vmatprep.subr.mxu0 0.0
    %676 = vmatpush1.msra.mxu0 0.0
    %677 = vmatprep.subr.mxu0 0.0
    %678 = vmatpush1.msra.mxu0 0.0
    %679 = vmatprep.subr.mxu0 0.0
    %680 = vmatpush1.msra.mxu0 0.0
    %681 = vmatprep.subr.mxu0 0.0
    %682 = vmatpush1.msra.mxu0 0.0
    %683 = vmatprep.subr.mxu0 0.0
    %684 = vmatpush1.msra.mxu0 0.0
    %685 = vmatprep.subr.mxu0 0.0
    %686 = vmatpush1.msra.mxu0 0.0
    %687 = vmatprep.subr.mxu0 0.0
    %688 = vmatpush1.msra.mxu0 0.0
    %689 = vmatprep.subr.mxu0 0.0
    %690 = vmatpush1.msra.mxu0 0.0
    %691 = vmatprep.subr.mxu0 0.0
    %692 = vmatpush1.msra.mxu0 0.0
    %693 = vmatprep.subr.mxu0 0.0
    %694 = vmatpush1.msra.mxu0 0.0
    %695 = vmatprep.subr.mxu0 0.0
    %696 = vmatpush1.msra.mxu0 0.0
    %697 = vmatprep.subr.mxu0 0.0
    %698 = vmatpush1.msra.mxu0 0.0
    %699 = vmatprep.subr.mxu0 0.0
    %700 = vmatpush1.msra.mxu0 0.0
    %701 = vmatprep.subr.mxu0 0.0
    %702 = vmatpush1.msra.mxu0 0.0
    %703 = vmatprep.subr.mxu0 0.0
    %704 = vmatpush1.msra.mxu0 0.0
    %705 = vmatprep.subr.mxu0 0.0
    %706 = vmatpush1.msra.mxu0 0.0
    %707 = vmatprep.subr.mxu0 0.0
    %708 = vmatpush1.msra.mxu0 0.0
    %709 = vmatprep.subr.mxu0 0.0
    %710 = vmatpush1.msra.mxu0 0.0
    %711 = vmatprep.subr.mxu0 0.0
    %712 = vmatpush1.msra.mxu0 0.0
    %713 = vmatprep.subr.mxu0 0.0
    %714 = vmatpush1.msra.mxu0 0.0
    %715 = vmatprep.subr.mxu0 0.0
    %716 = vmatpush1.msra.mxu0 0.0
    %717 = vmatprep.subr.mxu0 0.0
    %718 = vmatpush1.msra.mxu0 0.0
    %719 = vmatprep.subr.mxu0 0.0
    %720 = vmatpush1.msra.mxu0 0.0
    %721 = vmatprep.mubr.f32.mxu0 0.0
    %v722 = vand.u32 %v561, 4294901760
    %723 = vmatmul.mubr.f32.gmra.mrb[0].mxu0 %v722
    %v724 = vpop.f32.mrb[0].mxu0
    %v725 = vadd.f32 %v643, %v724
    %v726 = vpop.f32.mrb[0].mxu0
    %v727 = vadd.f32 %v645, %v726
    %728 = vdwg.mxu0
    %v729 = vand.u32 %v567, 4294901760
    %v730 = vsub.f32 %v567, %v729
    %731 = vmatprep.subr.mxu0 %v730
    %v732 = vand.u32 %v564, 4294901760
    %v733 = vsub.f32 %v564, %v732
    %734 = vmatpush1.msra.mxu0 %v733
    %735 = vmatprep.subr.mxu0 0.0
    %736 = vmatpush1.msra.mxu0 0.0
    %737 = vmatprep.subr.mxu0 0.0
    %738 = vmatpush1.msra.mxu0 0.0
    %739 = vmatprep.subr.mxu0 0.0
    %740 = vmatpush1.msra.mxu0 0.0
    %741 = vmatprep.subr.mxu0 0.0
    %742 = vmatpush1.msra.mxu0 0.0
    %743 = vmatprep.subr.mxu0 0.0
    %744 = vmatpush1.msra.mxu0 0.0
    %745 = vmatprep.subr.mxu0 0.0
    %746 = vmatpush1.msra.mxu0 0.0
    %747 = vmatprep.subr.mxu0 0.0
    %748 = vmatpush1.msra.mxu0 0.0
    %749 = vmatprep.subr.mxu0 0.0
    %750 = vmatpush1.msra.mxu0 0.0
    %751 = vmatprep.subr.mxu0 0.0
    %752 = vmatpush1.msra.mxu0 0.0
    %753 = vmatprep.subr.mxu0 0.0
    %754 = vmatpush1.msra.mxu0 0.0
    %755 = vmatprep.subr.mxu0 0.0
    %756 = vmatpush1.msra.mxu0 0.0
    %757 = vmatprep.subr.mxu0 0.0
    %758 = vmatpush1.msra.mxu0 0.0
    %759 = vmatprep.subr.mxu0 0.0
    %760 = vmatpush1.msra.mxu0 0.0
    %761 = vmatprep.subr.mxu0 0.0
    %762 = vmatpush1.msra.mxu0 0.0
    %763 = vmatprep.subr.mxu0 0.0
    %764 = vmatpush1.msra.mxu0 0.0
    %765 = vmatprep.subr.mxu0 0.0
    %766 = vmatpush1.msra.mxu0 0.0
    %767 = vmatprep.subr.mxu0 0.0
    %768 = vmatpush1.msra.mxu0 0.0
    %769 = vmatprep.subr.mxu0 0.0
    %770 = vmatpush1.msra.mxu0 0.0
    %771 = vmatprep.subr.mxu0 0.0
    %772 = vmatpush1.msra.mxu0 0.0
    %773 = vmatprep.subr.mxu0 0.0
    %774 = vmatpush1.msra.mxu0 0.0
    %775 = vmatprep.subr.mxu0 0.0
    %776 = vmatpush1.msra.mxu0 0.0
    %777 = vmatprep.subr.mxu0 0.0
    %778 = vmatpush1.msra.mxu0 0.0
    %779 = vmatprep.subr.mxu0 0.0
    %780 = vmatpush1.msra.mxu0 0.0
    %781 = vmatprep.subr.mxu0 0.0
    %782 = vmatpush1.msra.mxu0 0.0
    %783 = vmatprep.subr.mxu0 0.0
    %784 = vmatpush1.msra.mxu0 0.0
    %785 = vmatprep.subr.mxu0 0.0
    %786 = vmatpush1.msra.mxu0 0.0
    %787 = vmatprep.subr.mxu0 0.0
    %788 = vmatpush1.msra.mxu0 0.0
    %789 = vmatprep.subr.mxu0 0.0
    %790 = vmatpush1.msra.mxu0 0.0
    %791 = vmatprep.subr.mxu0 0.0
    %792 = vmatpush1.msra.mxu0 0.0
    %793 = vmatprep.subr.mxu0 0.0
    %794 = vmatpush1.msra.mxu0 0.0
    %795 = vmatprep.subr.mxu0 0.0
    %796 = vmatpush1.msra.mxu0 0.0
    %797 = vmatprep.mubr.f32.mxu0 0.0
    %v798 = vand.u32 %v561, 4294901760
    %v799 = vsub.f32 %v561, %v798
    %800 = vmatmul.mubr.f32.gmra.mrb[0].mxu0 %v799
    %v801 = vpop.f32.mrb[0].mxu0
    %v802 = vadd.f32 %v725, %v801
    %v803 = vpop.f32.mrb[0].mxu0
    %v804 = vadd.f32 %v727, %v803
    %805 = vdwg.mxu0
    %v806 = vand.u32 %v567, 4294901760
    %807 = vmatprep.subr.mxu0 %v806
    %v808 = vand.u32 %v564, 4294901760
    %809 = vmatpush1.msra.mxu0 %v808
    %810 = vmatprep.subr.mxu0 0.0
    %811 = vmatpush1.msra.mxu0 0.0
    %812 = vmatprep.subr.mxu0 0.0
    %813 = vmatpush1.msra.mxu0 0.0
    %814 = vmatprep.subr.mxu0 0.0
    %815 = vmatpush1.msra.mxu0 0.0
    %816 = vmatprep.subr.mxu0 0.0
    %817 = vmatpush1.msra.mxu0 0.0
    %818 = vmatprep.subr.mxu0 0.0
    %819 = vmatpush1.msra.mxu0 0.0
    %820 = vmatprep.subr.mxu0 0.0
    %821 = vmatpush1.msra.mxu0 0.0
    %822 = vmatprep.subr.mxu0 0.0
    %823 = vmatpush1.msra.mxu0 0.0
    %824 = vmatprep.subr.mxu0 0.0
    %825 = vmatpush1.msra.mxu0 0.0
    %826 = vmatprep.subr.mxu0 0.0
    %827 = vmatpush1.msra.mxu0 0.0
    %828 = vmatprep.subr.mxu0 0.0
    %829 = vmatpush1.msra.mxu0 0.0
    %830 = vmatprep.subr.mxu0 0.0
    %831 = vmatpush1.msra.mxu0 0.0
    %832 = vmatprep.subr.mxu0 0.0
    %833 = vmatpush1.msra.mxu0 0.0
    %834 = vmatprep.subr.mxu0 0.0
    %835 = vmatpush1.msra.mxu0 0.0
    %836 = vmatprep.subr.mxu0 0.0
    %837 = vmatpush1.msra.mxu0 0.0
    %838 = vmatprep.subr.mxu0 0.0
    %839 = vmatpush1.msra.mxu0 0.0
    %840 = vmatprep.subr.mxu0 0.0
    %841 = vmatpush1.msra.mxu0 0.0
    %842 = vmatprep.subr.mxu0 0.0
    %843 = vmatpush1.msra.mxu0 0.0
    %844 = vmatprep.subr.mxu0 0.0
    %845 = vmatpush1.msra.mxu0 0.0
    %846 = vmatprep.subr.mxu0 0.0
    %847 = vmatpush1.msra.mxu0 0.0
    %848 = vmatprep.subr.mxu0 0.0
    %849 = vmatpush1.msra.mxu0 0.0
    %850 = vmatprep.subr.mxu0 0.0
    %851 = vmatpush1.msra.mxu0 0.0
    %852 = vmatprep.subr.mxu0 0.0
    %853 = vmatpush1.msra.mxu0 0.0
    %854 = vmatprep.subr.mxu0 0.0
    %855 = vmatpush1.msra.mxu0 0.0
    %856 = vmatprep.subr.mxu0 0.0
    %857 = vmatpush1.msra.mxu0 0.0
    %858 = vmatprep.subr.mxu0 0.0
    %859 = vmatpush1.msra.mxu0 0.0
    %860 = vmatprep.subr.mxu0 0.0
    %861 = vmatpush1.msra.mxu0 0.0
    %862 = vmatprep.subr.mxu0 0.0
    %863 = vmatpush1.msra.mxu0 0.0
    %864 = vmatprep.subr.mxu0 0.0
    %865 = vmatpush1.msra.mxu0 0.0
    %866 = vmatprep.subr.mxu0 0.0
    %867 = vmatpush1.msra.mxu0 0.0
    %868 = vmatprep.subr.mxu0 0.0
    %869 = vmatpush1.msra.mxu0 0.0
    %870 = vmatprep.subr.mxu0 0.0
    %871 = vmatpush1.msra.mxu0 0.0
    %872 = vmatprep.mubr.f32.mxu0 0.0
    %v873 = vand.u32 %v561, 4294901760
    %v874 = vsub.f32 %v561, %v873
    %v875 = vand.u32 %v874, 4294901760
    %876 = vmatmul.mubr.f32.gmra.mrb[0].mxu0 %v875
    %v877 = vpop.f32.mrb[0].mxu0
    %v878 = vadd.f32 %v802, %v877
    %v879 = vpop.f32.mrb[0].mxu0
    %v880 = vadd.f32 %v804, %v879
    %881 = vdwg.mxu0
    %v882 = vand.u32 %v567, 4294901760
    %v883 = vsub.f32 %v567, %v882
    %v884 = vand.u32 %v883, 4294901760
    %885 = vmatprep.subr.mxu0 %v884
    %v886 = vand.u32 %v564, 4294901760
    %v887 = vsub.f32 %v564, %v886
    %v888 = vand.u32 %v887, 4294901760
    %889 = vmatpush1.msra.mxu0 %v888
    %890 = vmatprep.subr.mxu0 0.0
    %891 = vmatpush1.msra.mxu0 0.0
    %892 = vmatprep.subr.mxu0 0.0
    %893 = vmatpush1.msra.mxu0 0.0
    %894 = vmatprep.subr.mxu0 0.0
    %895 = vmatpush1.msra.mxu0 0.0
    %896 = vmatprep.subr.mxu0 0.0
    %897 = vmatpush1.msra.mxu0 0.0
    %898 = vmatprep.subr.mxu0 0.0
    %899 = vmatpush1.msra.mxu0 0.0
    %900 = vmatprep.subr.mxu0 0.0
    %901 = vmatpush1.msra.mxu0 0.0
    %902 = vmatprep.subr.mxu0 0.0
    %903 = vmatpush1.msra.mxu0 0.0
    %904 = vmatprep.subr.mxu0 0.0
    %905 = vmatpush1.msra.mxu0 0.0
    %906 = vmatprep.subr.mxu0 0.0
    %907 = vmatpush1.msra.mxu0 0.0
    %908 = vmatprep.subr.mxu0 0.0
    %909 = vmatpush1.msra.mxu0 0.0
    %910 = vmatprep.subr.mxu0 0.0
    %911 = vmatpush1.msra.mxu0 0.0
    %912 = vmatprep.subr.mxu0 0.0
    %913 = vmatpush1.msra.mxu0 0.0
    %914 = vmatprep.subr.mxu0 0.0
    %915 = vmatpush1.msra.mxu0 0.0
    %916 = vmatprep.subr.mxu0 0.0
    %917 = vmatpush1.msra.mxu0 0.0
    %918 = vmatprep.subr.mxu0 0.0
    %919 = vmatpush1.msra.mxu0 0.0
    %920 = vmatprep.subr.mxu0 0.0
    %921 = vmatpush1.msra.mxu0 0.0
    %922 = vmatprep.subr.mxu0 0.0
    %923 = vmatpush1.msra.mxu0 0.0
    %924 = vmatprep.subr.mxu0 0.0
    %925 = vmatpush1.msra.mxu0 0.0
    %926 = vmatprep.subr.mxu0 0.0
    %927 = vmatpush1.msra.mxu0 0.0
    %928 = vmatprep.subr.mxu0 0.0
    %929 = vmatpush1.msra.mxu0 0.0
    %930 = vmatprep.subr.mxu0 0.0
    %931 = vmatpush1.msra.mxu0 0.0
    %932 = vmatprep.subr.mxu0 0.0
    %933 = vmatpush1.msra.mxu0 0.0
    %934 = vmatprep.subr.mxu0 0.0
    %935 = vmatpush1.msra.mxu0 0.0
    %936 = vmatprep.subr.mxu0 0.0
    %937 = vmatpush1.msra.mxu0 0.0
    %938 = vmatprep.subr.mxu0 0.0
    %939 = vmatpush1.msra.mxu0 0.0
    %940 = vmatprep.subr.mxu0 0.0
    %941 = vmatpush1.msra.mxu0 0.0
    %942 = vmatprep.subr.mxu0 0.0
    %943 = vmatpush1.msra.mxu0 0.0
    %944 = vmatprep.subr.mxu0 0.0
    %945 = vmatpush1.msra.mxu0 0.0
    %946 = vmatprep.subr.mxu0 0.0
    %947 = vmatpush1.msra.mxu0 0.0
    %948 = vmatprep.subr.mxu0 0.0
    %949 = vmatpush1.msra.mxu0 0.0
    %950 = vmatprep.subr.mxu0 0.0
    %951 = vmatpush1.msra.mxu0 0.0
    %952 = vmatprep.mubr.f32.mxu0 0.0
    %v953 = vand.u32 %v561, 4294901760
    %954 = vmatmul.mubr.f32.gmra.mrb[0].mxu0 %v953
    %v955 = vpop.f32.mrb[0].mxu0
    %v956 = vadd.f32 %v878, %v955
    %v957 = vpop.f32.mrb[0].mxu0
    %v958 = vadd.f32 %v880, %v957
    %959 = vdwg.mxu0
    %v960 = vand.u32 %v567, 4294901760
    %961 = vmatprep.subr.mxu0 %v960
    %v962 = vand.u32 %v564, 4294901760
    %963 = vmatpush1.msra.mxu0 %v962
    %964 = vmatprep.subr.mxu0 0.0
    %965 = vmatpush1.msra.mxu0 0.0
    %966 = vmatprep.subr.mxu0 0.0
    %967 = vmatpush1.msra.mxu0 0.0
    %968 = vmatprep.subr.mxu0 0.0
    %969 = vmatpush1.msra.mxu0 0.0
    %970 = vmatprep.subr.mxu0 0.0
    %971 = vmatpush1.msra.mxu0 0.0
    %972 = vmatprep.subr.mxu0 0.0
    %973 = vmatpush1.msra.mxu0 0.0
    %974 = vmatprep.subr.mxu0 0.0
    %975 = vmatpush1.msra.mxu0 0.0
    %976 = vmatprep.subr.mxu0 0.0
    %977 = vmatpush1.msra.mxu0 0.0
    %978 = vmatprep.subr.mxu0 0.0
    %979 = vmatpush1.msra.mxu0 0.0
    %980 = vmatprep.subr.mxu0 0.0
    %981 = vmatpush1.msra.mxu0 0.0
    %982 = vmatprep.subr.mxu0 0.0
    %983 = vmatpush1.msra.mxu0 0.0
    %984 = vmatprep.subr.mxu0 0.0
    %985 = vmatpush1.msra.mxu0 0.0
    %986 = vmatprep.subr.mxu0 0.0
    %987 = vmatpush1.msra.mxu0 0.0
    %988 = vmatprep.subr.mxu0 0.0
    %989 = vmatpush1.msra.mxu0 0.0
    %990 = vmatprep.subr.mxu0 0.0
    %991 = vmatpush1.msra.mxu0 0.0
    %992 = vmatprep.subr.mxu0 0.0
    %993 = vmatpush1.msra.mxu0 0.0
    %994 = vmatprep.subr.mxu0 0.0
    %995 = vmatpush1.msra.mxu0 0.0
    %996 = vmatprep.subr.mxu0 0.0
    %997 = vmatpush1.msra.mxu0 0.0
    %998 = vmatprep.subr.mxu0 0.0
    %999 = vmatpush1.msra.mxu0 0.0
    %1000 = vmatprep.subr.mxu0 0.0
    %1001 = vmatpush1.msra.mxu0 0.0
    %1002 = vmatprep.subr.mxu0 0.0
    %1003 = vmatpush1.msra.mxu0 0.0
    %1004 = vmatprep.subr.mxu0 0.0
    %1005 = vmatpush1.msra.mxu0 0.0
    %1006 = vmatprep.subr.mxu0 0.0
    %1007 = vmatpush1.msra.mxu0 0.0
    %1008 = vmatprep.subr.mxu0 0.0
    %1009 = vmatpush1.msra.mxu0 0.0
    %1010 = vmatprep.subr.mxu0 0.0
    %1011 = vmatpush1.msra.mxu0 0.0
    %1012 = vmatprep.subr.mxu0 0.0
    %1013 = vmatpush1.msra.mxu0 0.0
    %1014 = vmatprep.subr.mxu0 0.0
    %1015 = vmatpush1.msra.mxu0 0.0
    %1016 = vmatprep.subr.mxu0 0.0
    %1017 = vmatpush1.msra.mxu0 0.0
    %1018 = vmatprep.subr.mxu0 0.0
    %1019 = vmatpush1.msra.mxu0 0.0
    %1020 = vmatprep.subr.mxu0 0.0
    %1021 = vmatpush1.msra.mxu0 0.0
    %1022 = vmatprep.subr.mxu0 0.0
    %1023 = vmatpush1.msra.mxu0 0.0
    %1024 = vmatprep.subr.mxu0 0.0
    %1025 = vmatpush1.msra.mxu0 0.0
    %1026 = vmatprep.mubr.f32.mxu0 0.0
    %v1027 = vand.u32 %v561, 4294901760
    %1028 = vmatmul.mubr.f32.gmra.mrb[0].mxu0 %v1027
    %v1029 = vpop.f32.mrb[0].mxu0
    %v1030 = vadd.f32 %v956, %v1029
    %v1031 = vpop.f32.mrb[0].mxu0
    %v1032 = vadd.f32 %v958, %v1031
    %1033 = vdwg.mxu0
    %1034 = vrot.lane.b32.xlu0 %v57, 111
    %v1035 = vpop.permute.xlu0 %1034
    %1036 = vrot.lane.b32.xlu0 %v61, 111
    %v1037 = vpop.permute.xlu0 %1036
    %1038 = vrot.lane.b32.xlu0 %v58, 111
    %v1039 = vpop.permute.xlu0 %1038
    %vm1040 = vcmask 908288
    %v1041 = vsel %vm1040, %v1035, %v1037
    %v1042 = vsel %vm1040, %v1037, %v1039
    %v1045 = vsel %vm52, %v1041, 0.0
    %v1046 = vsel %vm53, %v1042, 0.0
    %v1047 = vld [vmem:[%s1 + $0x10] sm:$0xff]
    %v1049 = vsel %vm86, %v1047, 0
    %v1052 = vsel %vm90, %v1045, 0
    %v1055 = vsel %vm90, %v1046, 0
    %v1057 = vand.u32 %v1055, 4294901760
    %1058 = vmatprep.subr.mxu0 %v1057
    %v1059 = vand.u32 %v1052, 4294901760
    %1060 = vmatpush1.msra.mxu0 %v1059
    %1061 = vmatprep.subr.mxu0 0.0
    %1062 = vmatpush1.msra.mxu0 0.0
    %1063 = vmatprep.subr.mxu0 0.0
    %1064 = vmatpush1.msra.mxu0 0.0
    %1065 = vmatprep.subr.mxu0 0.0
    %1066 = vmatpush1.msra.mxu0 0.0
    %1067 = vmatprep.subr.mxu0 0.0
    %1068 = vmatpush1.msra.mxu0 0.0
    %1069 = vmatprep.subr.mxu0 0.0
    %1070 = vmatpush1.msra.mxu0 0.0
    %1071 = vmatprep.subr.mxu0 0.0
    %1072 = vmatpush1.msra.mxu0 0.0
    %1073 = vmatprep.subr.mxu0 0.0
    %1074 = vmatpush1.msra.mxu0 0.0
    %1075 = vmatprep.subr.mxu0 0.0
    %1076 = vmatpush1.msra.mxu0 0.0
    %1077 = vmatprep.subr.mxu0 0.0
    %1078 = vmatpush1.msra.mxu0 0.0
    %1079 = vmatprep.subr.mxu0 0.0
    %1080 = vmatpush1.msra.mxu0 0.0
    %1081 = vmatprep.subr.mxu0 0.0
    %1082 = vmatpush1.msra.mxu0 0.0
    %1083 = vmatprep.subr.mxu0 0.0
    %1084 = vmatpush1.msra.mxu0 0.0
    %1085 = vmatprep.subr.mxu0 0.0
    %1086 = vmatpush1.msra.mxu0 0.0
    %1087 = vmatprep.subr.mxu0 0.0
    %1088 = vmatpush1.msra.mxu0 0.0
    %1089 = vmatprep.subr.mxu0 0.0
    %1090 = vmatpush1.msra.mxu0 0.0
    %1091 = vmatprep.subr.mxu0 0.0
    %1092 = vmatpush1.msra.mxu0 0.0
    %1093 = vmatprep.subr.mxu0 0.0
    %1094 = vmatpush1.msra.mxu0 0.0
    %1095 = vmatprep.subr.mxu0 0.0
    %1096 = vmatpush1.msra.mxu0 0.0
    %1097 = vmatprep.subr.mxu0 0.0
    %1098 = vmatpush1.msra.mxu0 0.0
    %1099 = vmatprep.subr.mxu0 0.0
    %1100 = vmatpush1.msra.mxu0 0.0
    %1101 = vmatprep.subr.mxu0 0.0
    %1102 = vmatpush1.msra.mxu0 0.0
    %1103 = vmatprep.subr.mxu0 0.0
    %1104 = vmatpush1.msra.mxu0 0.0
    %1105 = vmatprep.subr.mxu0 0.0
    %1106 = vmatpush1.msra.mxu0 0.0
    %1107 = vmatprep.subr.mxu0 0.0
    %1108 = vmatpush1.msra.mxu0 0.0
    %1109 = vmatprep.subr.mxu0 0.0
    %1110 = vmatpush1.msra.mxu0 0.0
    %1111 = vmatprep.subr.mxu0 0.0
    %1112 = vmatpush1.msra.mxu0 0.0
    %1113 = vmatprep.subr.mxu0 0.0
    %1114 = vmatpush1.msra.mxu0 0.0
    %1115 = vmatprep.subr.mxu0 0.0
    %1116 = vmatpush1.msra.mxu0 0.0
    %1117 = vmatprep.subr.mxu0 0.0
    %1118 = vmatpush1.msra.mxu0 0.0
    %1119 = vmatprep.subr.mxu0 0.0
    %1120 = vmatpush1.msra.mxu0 0.0
    %1121 = vmatprep.subr.mxu0 0.0
    %1122 = vmatpush1.msra.mxu0 0.0
    %1123 = vmatprep.mubr.f32.mxu0 0.0
    %v1124 = vand.u32 %v1049, 4294901760
    %v1125 = vsub.f32 %v1049, %v1124
    %v1126 = vand.u32 %v1125, 4294901760
    %v1127 = vsub.f32 %v1125, %v1126
    %v1128 = vand.u32 %v1127, 4294901760
    %1129 = vmatmul.mubr.f32.gmra.mrb[0].mxu0 %v1128
    %v1130 = vpop.f32.mrb[0].mxu0
    %v1131 = vadd.f32 0.0, %v1130
    %v1132 = vpop.f32.mrb[0].mxu0
    %v1133 = vadd.f32 0.0, %v1132
    %1134 = vdwg.mxu0
    %v1135 = vand.u32 %v1055, 4294901760
    %v1136 = vsub.f32 %v1055, %v1135
    %v1137 = vand.u32 %v1136, 4294901760
    %v1138 = vsub.f32 %v1136, %v1137
    %v1139 = vand.u32 %v1138, 4294901760
    %1140 = vmatprep.subr.mxu0 %v1139
    %v1141 = vand.u32 %v1052, 4294901760
    %v1142 = vsub.f32 %v1052, %v1141
    %v1143 = vand.u32 %v1142, 4294901760
    %v1144 = vsub.f32 %v1142, %v1143
    %v1145 = vand.u32 %v1144, 4294901760
    %1146 = vmatpush1.msra.mxu0 %v1145
    %1147 = vmatprep.subr.mxu0 0.0
    %1148 = vmatpush1.msra.mxu0 0.0
    %1149 = vmatprep.subr.mxu0 0.0
    %1150 = vmatpush1.msra.mxu0 0.0
    %1151 = vmatprep.subr.mxu0 0.0
    %1152 = vmatpush1.msra.mxu0 0.0
    %1153 = vmatprep.subr.mxu0 0.0
    %1154 = vmatpush1.msra.mxu0 0.0
    %1155 = vmatprep.subr.mxu0 0.0
    %1156 = vmatpush1.msra.mxu0 0.0
    %1157 = vmatprep.subr.mxu0 0.0
    %1158 = vmatpush1.msra.mxu0 0.0
    %1159 = vmatprep.subr.mxu0 0.0
    %1160 = vmatpush1.msra.mxu0 0.0
    %1161 = vmatprep.subr.mxu0 0.0
    %1162 = vmatpush1.msra.mxu0 0.0
    %1163 = vmatprep.subr.mxu0 0.0
    %1164 = vmatpush1.msra.mxu0 0.0
    %1165 = vmatprep.subr.mxu0 0.0
    %1166 = vmatpush1.msra.mxu0 0.0
    %1167 = vmatprep.subr.mxu0 0.0
    %1168 = vmatpush1.msra.mxu0 0.0
    %1169 = vmatprep.subr.mxu0 0.0
    %1170 = vmatpush1.msra.mxu0 0.0
    %1171 = vmatprep.subr.mxu0 0.0
    %1172 = vmatpush1.msra.mxu0 0.0
    %1173 = vmatprep.subr.mxu0 0.0
    %1174 = vmatpush1.msra.mxu0 0.0
    %1175 = vmatprep.subr.mxu0 0.0
    %1176 = vmatpush1.msra.mxu0 0.0
    %1177 = vmatprep.subr.mxu0 0.0
    %1178 = vmatpush1.msra.mxu0 0.0
    %1179 = vmatprep.subr.mxu0 0.0
    %1180 = vmatpush1.msra.mxu0 0.0
    %1181 = vmatprep.subr.mxu0 0.0
    %1182 = vmatpush1.msra.mxu0 0.0
    %1183 = vmatprep.subr.mxu0 0.0
    %1184 = vmatpush1.msra.mxu0 0.0
    %1185 = vmatprep.subr.mxu0 0.0
    %1186 = vmatpush1.msra.mxu0 0.0
    %1187 = vmatprep.subr.mxu0 0.0
    %1188 = vmatpush1.msra.mxu0 0.0
    %1189 = vmatprep.subr.mxu0 0.0
    %1190 = vmatpush1.msra.mxu0 0.0
    %1191 = vmatprep.subr.mxu0 0.0
    %1192 = vmatpush1.msra.mxu0 0.0
    %1193 = vmatprep.subr.mxu0 0.0
    %1194 = vmatpush1.msra.mxu0 0.0
    %1195 = vmatprep.subr.mxu0 0.0
    %1196 = vmatpush1.msra.mxu0 0.0
    %1197 = vmatprep.subr.mxu0 0.0
    %1198 = vmatpush1.msra.mxu0 0.0
    %1199 = vmatprep.subr.mxu0 0.0
    %1200 = vmatpush1.msra.mxu0 0.0
    %1201 = vmatprep.subr.mxu0 0.0
    %1202 = vmatpush1.msra.mxu0 0.0
    %1203 = vmatprep.subr.mxu0 0.0
    %1204 = vmatpush1.msra.mxu0 0.0
    %1205 = vmatprep.subr.mxu0 0.0
    %1206 = vmatpush1.msra.mxu0 0.0
    %1207 = vmatprep.subr.mxu0 0.0
    %1208 = vmatpush1.msra.mxu0 0.0
    %1209 = vmatprep.mubr.f32.mxu0 0.0
    %v1210 = vand.u32 %v1049, 4294901760
    %1211 = vmatmul.mubr.f32.gmra.mrb[0].mxu0 %v1210
    %v1212 = vpop.f32.mrb[0].mxu0
    %v1213 = vadd.f32 %v1131, %v1212
    %v1214 = vpop.f32.mrb[0].mxu0
    %v1215 = vadd.f32 %v1133, %v1214
    %1216 = vdwg.mxu0
    %v1217 = vand.u32 %v1055, 4294901760
    %v1218 = vsub.f32 %v1055, %v1217
    %1219 = vmatprep.subr.mxu0 %v1218
    %v1220 = vand.u32 %v1052, 4294901760
    %v1221 = vsub.f32 %v1052, %v1220
    %1222 = vmatpush1.msra.mxu0 %v1221
    %1223 = vmatprep.subr.mxu0 0.0
    %1224 = vmatpush1.msra.mxu0 0.0
    %1225 = vmatprep.subr.mxu0 0.0
    %1226 = vmatpush1.msra.mxu0 0.0
    %1227 = vmatprep.subr.mxu0 0.0
    %1228 = vmatpush1.msra.mxu0 0.0
    %1229 = vmatprep.subr.mxu0 0.0
    %1230 = vmatpush1.msra.mxu0 0.0
    %1231 = vmatprep.subr.mxu0 0.0
    %1232 = vmatpush1.msra.mxu0 0.0
    %1233 = vmatprep.subr.mxu0 0.0
    %1234 = vmatpush1.msra.mxu0 0.0
    %1235 = vmatprep.subr.mxu0 0.0
    %1236 = vmatpush1.msra.mxu0 0.0
    %1237 = vmatprep.subr.mxu0 0.0
    %1238 = vmatpush1.msra.mxu0 0.0
    %1239 = vmatprep.subr.mxu0 0.0
    %1240 = vmatpush1.msra.mxu0 0.0
    %1241 = vmatprep.subr.mxu0 0.0
    %1242 = vmatpush1.msra.mxu0 0.0
    %1243 = vmatprep.subr.mxu0 0.0
    %1244 = vmatpush1.msra.mxu0 0.0
    %1245 = vmatprep.subr.mxu0 0.0
    %1246 = vmatpush1.msra.mxu0 0.0
    %1247 = vmatprep.subr.mxu0 0.0
    %1248 = vmatpush1.msra.mxu0 0.0
    %1249 = vmatprep.subr.mxu0 0.0
    %1250 = vmatpush1.msra.mxu0 0.0
    %1251 = vmatprep.subr.mxu0 0.0
    %1252 = vmatpush1.msra.mxu0 0.0
    %1253 = vmatprep.subr.mxu0 0.0
    %1254 = vmatpush1.msra.mxu0 0.0
    %1255 = vmatprep.subr.mxu0 0.0
    %1256 = vmatpush1.msra.mxu0 0.0
    %1257 = vmatprep.subr.mxu0 0.0
    %1258 = vmatpush1.msra.mxu0 0.0
    %1259 = vmatprep.subr.mxu0 0.0
    %1260 = vmatpush1.msra.mxu0 0.0
    %1261 = vmatprep.subr.mxu0 0.0
    %1262 = vmatpush1.msra.mxu0 0.0
    %1263 = vmatprep.subr.mxu0 0.0
    %1264 = vmatpush1.msra.mxu0 0.0
    %1265 = vmatprep.subr.mxu0 0.0
    %1266 = vmatpush1.msra.mxu0 0.0
    %1267 = vmatprep.subr.mxu0 0.0
    %1268 = vmatpush1.msra.mxu0 0.0
    %1269 = vmatprep.subr.mxu0 0.0
    %1270 = vmatpush1.msra.mxu0 0.0
    %1271 = vmatprep.subr.mxu0 0.0
    %1272 = vmatpush1.msra.mxu0 0.0
    %1273 = vmatprep.subr.mxu0 0.0
    %1274 = vmatpush1.msra.mxu0 0.0
    %1275 = vmatprep.subr.mxu0 0.0
    %1276 = vmatpush1.msra.mxu0 0.0
    %1277 = vmatprep.subr.mxu0 0.0
    %1278 = vmatpush1.msra.mxu0 0.0
    %1279 = vmatprep.subr.mxu0 0.0
    %1280 = vmatpush1.msra.mxu0 0.0
    %1281 = vmatprep.subr.mxu0 0.0
    %1282 = vmatpush1.msra.mxu0 0.0
    %1283 = vmatprep.subr.mxu0 0.0
    %1284 = vmatpush1.msra.mxu0 0.0
    %1285 = vmatprep.mubr.f32.mxu0 0.0
    %v1286 = vand.u32 %v1049, 4294901760
    %v1287 = vsub.f32 %v1049, %v1286
    %1288 = vmatmul.mubr.f32.gmra.mrb[0].mxu0 %v1287
    %v1289 = vpop.f32.mrb[0].mxu0
    %v1290 = vadd.f32 %v1213, %v1289
    %v1291 = vpop.f32.mrb[0].mxu0
    %v1292 = vadd.f32 %v1215, %v1291
    %1293 = vdwg.mxu0
    %v1294 = vand.u32 %v1055, 4294901760
    %1295 = vmatprep.subr.mxu0 %v1294
    %v1296 = vand.u32 %v1052, 4294901760
    %1297 = vmatpush1.msra.mxu0 %v1296
    %1298 = vmatprep.subr.mxu0 0.0
    %1299 = vmatpush1.msra.mxu0 0.0
    %1300 = vmatprep.subr.mxu0 0.0
    %1301 = vmatpush1.msra.mxu0 0.0
    %1302 = vmatprep.subr.mxu0 0.0
    %1303 = vmatpush1.msra.mxu0 0.0
    %1304 = vmatprep.subr.mxu0 0.0
    %1305 = vmatpush1.msra.mxu0 0.0
    %1306 = vmatprep.subr.mxu0 0.0
    %1307 = vmatpush1.msra.mxu0 0.0
    %1308 = vmatprep.subr.mxu0 0.0
    %1309 = vmatpush1.msra.mxu0 0.0
    %1310 = vmatprep.subr.mxu0 0.0
    %1311 = vmatpush1.msra.mxu0 0.0
    %1312 = vmatprep.subr.mxu0 0.0
    %1313 = vmatpush1.msra.mxu0 0.0
    %1314 = vmatprep.subr.mxu0 0.0
    %1315 = vmatpush1.msra.mxu0 0.0
    %1316 = vmatprep.subr.mxu0 0.0
    %1317 = vmatpush1.msra.mxu0 0.0
    %1318 = vmatprep.subr.mxu0 0.0
    %1319 = vmatpush1.msra.mxu0 0.0
    %1320 = vmatprep.subr.mxu0 0.0
    %1321 = vmatpush1.msra.mxu0 0.0
    %1322 = vmatprep.subr.mxu0 0.0
    %1323 = vmatpush1.msra.mxu0 0.0
    %1324 = vmatprep.subr.mxu0 0.0
    %1325 = vmatpush1.msra.mxu0 0.0
    %1326 = vmatprep.subr.mxu0 0.0
    %1327 = vmatpush1.msra.mxu0 0.0
    %1328 = vmatprep.subr.mxu0 0.0
    %1329 = vmatpush1.msra.mxu0 0.0
    %1330 = vmatprep.subr.mxu0 0.0
    %1331 = vmatpush1.msra.mxu0 0.0
    %1332 = vmatprep.subr.mxu0 0.0
    %1333 = vmatpush1.msra.mxu0 0.0
    %1334 = vmatprep.subr.mxu0 0.0
    %1335 = vmatpush1.msra.mxu0 0.0
    %1336 = vmatprep.subr.mxu0 0.0
    %1337 = vmatpush1.msra.mxu0 0.0
    %1338 = vmatprep.subr.mxu0 0.0
    %1339 = vmatpush1.msra.mxu0 0.0
    %1340 = vmatprep.subr.mxu0 0.0
    %1341 = vmatpush1.msra.mxu0 0.0
    %1342 = vmatprep.subr.mxu0 0.0
    %1343 = vmatpush1.msra.mxu0 0.0
    %1344 = vmatprep.subr.mxu0 0.0
    %1345 = vmatpush1.msra.mxu0 0.0
    %1346 = vmatprep.subr.mxu0 0.0
    %1347 = vmatpush1.msra.mxu0 0.0
    %1348 = vmatprep.subr.mxu0 0.0
    %1349 = vmatpush1.msra.mxu0 0.0
    %1350 = vmatprep.subr.mxu0 0.0
    %1351 = vmatpush1.msra.mxu0 0.0
    %1352 = vmatprep.subr.mxu0 0.0
    %1353 = vmatpush1.msra.mxu0 0.0
    %1354 = vmatprep.subr.mxu0 0.0
    %1355 = vmatpush1.msra.mxu0 0.0
    %1356 = vmatprep.subr.mxu0 0.0
    %1357 = vmatpush1.msra.mxu0 0.0
    %1358 = vmatprep.subr.mxu0 0.0
    %1359 = vmatpush1.msra.mxu0 0.0
    %1360 = vmatprep.mubr.f32.mxu0 0.0
    %v1361 = vand.u32 %v1049, 4294901760
    %v1362 = vsub.f32 %v1049, %v1361
    %v1363 = vand.u32 %v1362, 4294901760
    %1364 = vmatmul.mubr.f32.gmra.mrb[0].mxu0 %v1363
    %v1365 = vpop.f32.mrb[0].mxu0
    %v1366 = vadd.f32 %v1290, %v1365
    %v1367 = vpop.f32.mrb[0].mxu0
    %v1368 = vadd.f32 %v1292, %v1367
    %1369 = vdwg.mxu0
    %v1370 = vand.u32 %v1055, 4294901760
    %v1371 = vsub.f32 %v1055, %v1370
    %v1372 = vand.u32 %v1371, 4294901760
    %1373 = vmatprep.subr.mxu0 %v1372
    %v1374 = vand.u32 %v1052, 4294901760
    %v1375 = vsub.f32 %v1052, %v1374
    %v1376 = vand.u32 %v1375, 4294901760
    %1377 = vmatpush1.msra.mxu0 %v1376
    %1378 = vmatprep.subr.mxu0 0.0
    %1379 = vmatpush1.msra.mxu0 0.0
    %1380 = vmatprep.subr.mxu0 0.0
    %1381 = vmatpush1.msra.mxu0 0.0
    %1382 = vmatprep.subr.mxu0 0.0
    %1383 = vmatpush1.msra.mxu0 0.0
    %1384 = vmatprep.subr.mxu0 0.0
    %1385 = vmatpush1.msra.mxu0 0.0
    %1386 = vmatprep.subr.mxu0 0.0
    %1387 = vmatpush1.msra.mxu0 0.0
    %1388 = vmatprep.subr.mxu0 0.0
    %1389 = vmatpush1.msra.mxu0 0.0
    %1390 = vmatprep.subr.mxu0 0.0
    %1391 = vmatpush1.msra.mxu0 0.0
    %1392 = vmatprep.subr.mxu0 0.0
    %1393 = vmatpush1.msra.mxu0 0.0
    %1394 = vmatprep.subr.mxu0 0.0
    %1395 = vmatpush1.msra.mxu0 0.0
    %1396 = vmatprep.subr.mxu0 0.0
    %1397 = vmatpush1.msra.mxu0 0.0
    %1398 = vmatprep.subr.mxu0 0.0
    %1399 = vmatpush1.msra.mxu0 0.0
    %1400 = vmatprep.subr.mxu0 0.0
    %1401 = vmatpush1.msra.mxu0 0.0
    %1402 = vmatprep.subr.mxu0 0.0
    %1403 = vmatpush1.msra.mxu0 0.0
    %1404 = vmatprep.subr.mxu0 0.0
    %1405 = vmatpush1.msra.mxu0 0.0
    %1406 = vmatprep.subr.mxu0 0.0
    %1407 = vmatpush1.msra.mxu0 0.0
    %1408 = vmatprep.subr.mxu0 0.0
    %1409 = vmatpush1.msra.mxu0 0.0
    %1410 = vmatprep.subr.mxu0 0.0
    %1411 = vmatpush1.msra.mxu0 0.0
    %1412 = vmatprep.subr.mxu0 0.0
    %1413 = vmatpush1.msra.mxu0 0.0
    %1414 = vmatprep.subr.mxu0 0.0
    %1415 = vmatpush1.msra.mxu0 0.0
    %1416 = vmatprep.subr.mxu0 0.0
    %1417 = vmatpush1.msra.mxu0 0.0
    %1418 = vmatprep.subr.mxu0 0.0
    %1419 = vmatpush1.msra.mxu0 0.0
    %1420 = vmatprep.subr.mxu0 0.0
    %1421 = vmatpush1.msra.mxu0 0.0
    %1422 = vmatprep.subr.mxu0 0.0
    %1423 = vmatpush1.msra.mxu0 0.0
    %1424 = vmatprep.subr.mxu0 0.0
    %1425 = vmatpush1.msra.mxu0 0.0
    %1426 = vmatprep.subr.mxu0 0.0
    %1427 = vmatpush1.msra.mxu0 0.0
    %1428 = vmatprep.subr.mxu0 0.0
    %1429 = vmatpush1.msra.mxu0 0.0
    %1430 = vmatprep.subr.mxu0 0.0
    %1431 = vmatpush1.msra.mxu0 0.0
    %1432 = vmatprep.subr.mxu0 0.0
    %1433 = vmatpush1.msra.mxu0 0.0
    %1434 = vmatprep.subr.mxu0 0.0
    %1435 = vmatpush1.msra.mxu0 0.0
    %1436 = vmatprep.subr.mxu0 0.0
    %1437 = vmatpush1.msra.mxu0 0.0
    %1438 = vmatprep.subr.mxu0 0.0
    %1439 = vmatpush1.msra.mxu0 0.0
    %1440 = vmatprep.mubr.f32.mxu0 0.0
    %v1441 = vand.u32 %v1049, 4294901760
    %1442 = vmatmul.mubr.f32.gmra.mrb[0].mxu0 %v1441
    %v1443 = vpop.f32.mrb[0].mxu0
    %v1444 = vadd.f32 %v1366, %v1443
    %v1445 = vpop.f32.mrb[0].mxu0
    %v1446 = vadd.f32 %v1368, %v1445
    %1447 = vdwg.mxu0
    %v1448 = vand.u32 %v1055, 4294901760
    %1449 = vmatprep.subr.mxu0 %v1448
    %v1450 = vand.u32 %v1052, 4294901760
    %1451 = vmatpush1.msra.mxu0 %v1450
    %1452 = vmatprep.subr.mxu0 0.0
    %1453 = vmatpush1.msra.mxu0 0.0
    %1454 = vmatprep.subr.mxu0 0.0
    %1455 = vmatpush1.msra.mxu0 0.0
    %1456 = vmatprep.subr.mxu0 0.0
    %1457 = vmatpush1.msra.mxu0 0.0
    %1458 = vmatprep.subr.mxu0 0.0
    %1459 = vmatpush1.msra.mxu0 0.0
    %1460 = vmatprep.subr.mxu0 0.0
    %1461 = vmatpush1.msra.mxu0 0.0
    %1462 = vmatprep.subr.mxu0 0.0
    %1463 = vmatpush1.msra.mxu0 0.0
    %1464 = vmatprep.subr.mxu0 0.0
    %1465 = vmatpush1.msra.mxu0 0.0
    %1466 = vmatprep.subr.mxu0 0.0
    %1467 = vmatpush1.msra.mxu0 0.0
    %1468 = vmatprep.subr.mxu0 0.0
    %1469 = vmatpush1.msra.mxu0 0.0
    %1470 = vmatprep.subr.mxu0 0.0
    %1471 = vmatpush1.msra.mxu0 0.0
    %1472 = vmatprep.subr.mxu0 0.0
    %1473 = vmatpush1.msra.mxu0 0.0
    %1474 = vmatprep.subr.mxu0 0.0
    %1475 = vmatpush1.msra.mxu0 0.0
    %1476 = vmatprep.subr.mxu0 0.0
    %1477 = vmatpush1.msra.mxu0 0.0
    %1478 = vmatprep.subr.mxu0 0.0
    %1479 = vmatpush1.msra.mxu0 0.0
    %1480 = vmatprep.subr.mxu0 0.0
    %1481 = vmatpush1.msra.mxu0 0.0
    %1482 = vmatprep.subr.mxu0 0.0
    %1483 = vmatpush1.msra.mxu0 0.0
    %1484 = vmatprep.subr.mxu0 0.0
    %1485 = vmatpush1.msra.mxu0 0.0
    %1486 = vmatprep.subr.mxu0 0.0
    %1487 = vmatpush1.msra.mxu0 0.0
    %1488 = vmatprep.subr.mxu0 0.0
    %1489 = vmatpush1.msra.mxu0 0.0
    %1490 = vmatprep.subr.mxu0 0.0
    %1491 = vmatpush1.msra.mxu0 0.0
    %1492 = vmatprep.subr.mxu0 0.0
    %1493 = vmatpush1.msra.mxu0 0.0
    %1494 = vmatprep.subr.mxu0 0.0
    %1495 = vmatpush1.msra.mxu0 0.0
    %1496 = vmatprep.subr.mxu0 0.0
    %1497 = vmatpush1.msra.mxu0 0.0
    %1498 = vmatprep.subr.mxu0 0.0
    %1499 = vmatpush1.msra.mxu0 0.0
    %1500 = vmatprep.subr.mxu0 0.0
    %1501 = vmatpush1.msra.mxu0 0.0
    %1502 = vmatprep.subr.mxu0 0.0
    %1503 = vmatpush1.msra.mxu0 0.0
    %1504 = vmatprep.subr.mxu0 0.0
    %1505 = vmatpush1.msra.mxu0 0.0
    %1506 = vmatprep.subr.mxu0 0.0
    %1507 = vmatpush1.msra.mxu0 0.0
    %1508 = vmatprep.subr.mxu0 0.0
    %1509 = vmatpush1.msra.mxu0 0.0
    %1510 = vmatprep.subr.mxu0 0.0
    %1511 = vmatpush1.msra.mxu0 0.0
    %1512 = vmatprep.subr.mxu0 0.0
    %1513 = vmatpush1.msra.mxu0 0.0
    %1514 = vmatprep.mubr.f32.mxu0 0.0
    %v1515 = vand.u32 %v1049, 4294901760
    %1516 = vmatmul.mubr.f32.gmra.mrb[0].mxu0 %v1515
    %v1517 = vpop.f32.mrb[0].mxu0
    %v1518 = vadd.f32 %v1444, %v1517
    %v1519 = vpop.f32.mrb[0].mxu0
    %v1520 = vadd.f32 %v1446, %v1519
    %1521 = vdwg.mxu0
    %v1522 = vadd.f32 %v1030, %v1518
    %v1523 = vadd.f32 %v1032, %v1520
    %1524 = vrot.lane.b32.xlu0 %v57, 97
    %v1525 = vpop.permute.xlu0 %1524
    %1526 = vrot.lane.b32.xlu0 %v61, 97
    %v1527 = vpop.permute.xlu0 %1526
    %1528 = vrot.lane.b32.xlu0 %v58, 97
    %v1529 = vpop.permute.xlu0 %1528
    %vm1530 = vcmask 793600
    %v1531 = vsel %vm1530, %v1525, %v1527
    %v1532 = vsel %vm1530, %v1527, %v1529
    %v1535 = vsel %vm50, %v1531, 0.0
    %v1536 = vsel %vm51, %v1532, 0.0
    %v1537 = vld [vmem:[%s1 + $0x18] sm:$0xff]
    %v1539 = vsel %vm86, %v1537, 0
    %v1542 = vsel %vm90, %v1535, 0
    %v1545 = vsel %vm90, %v1536, 0
    %v1547 = vand.u32 %v1545, 4294901760
    %1548 = vmatprep.subr.mxu0 %v1547
    %v1549 = vand.u32 %v1542, 4294901760
    %1550 = vmatpush1.msra.mxu0 %v1549
    %1551 = vmatprep.subr.mxu0 0.0
    %1552 = vmatpush1.msra.mxu0 0.0
    %1553 = vmatprep.subr.mxu0 0.0
    %1554 = vmatpush1.msra.mxu0 0.0
    %1555 = vmatprep.subr.mxu0 0.0
    %1556 = vmatpush1.msra.mxu0 0.0
    %1557 = vmatprep.subr.mxu0 0.0
    %1558 = vmatpush1.msra.mxu0 0.0
    %1559 = vmatprep.subr.mxu0 0.0
    %1560 = vmatpush1.msra.mxu0 0.0
    %1561 = vmatprep.subr.mxu0 0.0
    %1562 = vmatpush1.msra.mxu0 0.0
    %1563 = vmatprep.subr.mxu0 0.0
    %1564 = vmatpush1.msra.mxu0 0.0
    %1565 = vmatprep.subr.mxu0 0.0
    %1566 = vmatpush1.msra.mxu0 0.0
    %1567 = vmatprep.subr.mxu0 0.0
    %1568 = vmatpush1.msra.mxu0 0.0
    %1569 = vmatprep.subr.mxu0 0.0
    %1570 = vmatpush1.msra.mxu0 0.0
    %1571 = vmatprep.subr.mxu0 0.0
    %1572 = vmatpush1.msra.mxu0 0.0
    %1573 = vmatprep.subr.mxu0 0.0
    %1574 = vmatpush1.msra.mxu0 0.0
    %1575 = vmatprep.subr.mxu0 0.0
    %1576 = vmatpush1.msra.mxu0 0.0
    %1577 = vmatprep.subr.mxu0 0.0
    %1578 = vmatpush1.msra.mxu0 0.0
    %1579 = vmatprep.subr.mxu0 0.0
    %1580 = vmatpush1.msra.mxu0 0.0
    %1581 = vmatprep.subr.mxu0 0.0
    %1582 = vmatpush1.msra.mxu0 0.0
    %1583 = vmatprep.subr.mxu0 0.0
    %1584 = vmatpush1.msra.mxu0 0.0
    %1585 = vmatprep.subr.mxu0 0.0
    %1586 = vmatpush1.msra.mxu0 0.0
    %1587 = vmatprep.subr.mxu0 0.0
    %1588 = vmatpush1.msra.mxu0 0.0
    %1589 = vmatprep.subr.mxu0 0.0
    %1590 = vmatpush1.msra.mxu0 0.0
    %1591 = vmatprep.subr.mxu0 0.0
    %1592 = vmatpush1.msra.mxu0 0.0
    %1593 = vmatprep.subr.mxu0 0.0
    %1594 = vmatpush1.msra.mxu0 0.0
    %1595 = vmatprep.subr.mxu0 0.0
    %1596 = vmatpush1.msra.mxu0 0.0
    %1597 = vmatprep.subr.mxu0 0.0
    %1598 = vmatpush1.msra.mxu0 0.0
    %1599 = vmatprep.subr.mxu0 0.0
    %1600 = vmatpush1.msra.mxu0 0.0
    %1601 = vmatprep.subr.mxu0 0.0
    %1602 = vmatpush1.msra.mxu0 0.0
    %1603 = vmatprep.subr.mxu0 0.0
    %1604 = vmatpush1.msra.mxu0 0.0
    %1605 = vmatprep.subr.mxu0 0.0
    %1606 = vmatpush1.msra.mxu0 0.0
    %1607 = vmatprep.subr.mxu0 0.0
    %1608 = vmatpush1.msra.mxu0 0.0
    %1609 = vmatprep.subr.mxu0 0.0
    %1610 = vmatpush1.msra.mxu0 0.0
    %1611 = vmatprep.subr.mxu0 0.0
    %1612 = vmatpush1.msra.mxu0 0.0
    %1613 = vmatprep.mubr.f32.mxu0 0.0
    %v1614 = vand.u32 %v1539, 4294901760
    %v1615 = vsub.f32 %v1539, %v1614
    %v1616 = vand.u32 %v1615, 4294901760
    %v1617 = vsub.f32 %v1615, %v1616
    %v1618 = vand.u32 %v1617, 4294901760
    %1619 = vmatmul.mubr.f32.gmra.mrb[0].mxu0 %v1618
    %v1620 = vpop.f32.mrb[0].mxu0
    %v1621 = vadd.f32 0.0, %v1620
    %v1622 = vpop.f32.mrb[0].mxu0
    %v1623 = vadd.f32 0.0, %v1622
    %1624 = vdwg.mxu0
    %v1625 = vand.u32 %v1545, 4294901760
    %v1626 = vsub.f32 %v1545, %v1625
    %v1627 = vand.u32 %v1626, 4294901760
    %v1628 = vsub.f32 %v1626, %v1627
    %v1629 = vand.u32 %v1628, 4294901760
    %1630 = vmatprep.subr.mxu0 %v1629
    %v1631 = vand.u32 %v1542, 4294901760
    %v1632 = vsub.f32 %v1542, %v1631
    %v1633 = vand.u32 %v1632, 4294901760
    %v1634 = vsub.f32 %v1632, %v1633
    %v1635 = vand.u32 %v1634, 4294901760
    %1636 = vmatpush1.msra.mxu0 %v1635
    %1637 = vmatprep.subr.mxu0 0.0
    %1638 = vmatpush1.msra.mxu0 0.0
    %1639 = vmatprep.subr.mxu0 0.0
    %1640 = vmatpush1.msra.mxu0 0.0
    %1641 = vmatprep.subr.mxu0 0.0
    %1642 = vmatpush1.msra.mxu0 0.0
    %1643 = vmatprep.subr.mxu0 0.0
    %1644 = vmatpush1.msra.mxu0 0.0
    %1645 = vmatprep.subr.mxu0 0.0
    %1646 = vmatpush1.msra.mxu0 0.0
    %1647 = vmatprep.subr.mxu0 0.0
    %1648 = vmatpush1.msra.mxu0 0.0
    %1649 = vmatprep.subr.mxu0 0.0
    %1650 = vmatpush1.msra.mxu0 0.0
    %1651 = vmatprep.subr.mxu0 0.0
    %1652 = vmatpush1.msra.mxu0 0.0
    %1653 = vmatprep.subr.mxu0 0.0
    %1654 = vmatpush1.msra.mxu0 0.0
    %1655 = vmatprep.subr.mxu0 0.0
    %1656 = vmatpush1.msra.mxu0 0.0
    %1657 = vmatprep.subr.mxu0 0.0
    %1658 = vmatpush1.msra.mxu0 0.0
    %1659 = vmatprep.subr.mxu0 0.0
    %1660 = vmatpush1.msra.mxu0 0.0
    %1661 = vmatprep.subr.mxu0 0.0
    %1662 = vmatpush1.msra.mxu0 0.0
    %1663 = vmatprep.subr.mxu0 0.0
    %1664 = vmatpush1.msra.mxu0 0.0
    %1665 = vmatprep.subr.mxu0 0.0
    %1666 = vmatpush1.msra.mxu0 0.0
    %1667 = vmatprep.subr.mxu0 0.0
    %1668 = vmatpush1.msra.mxu0 0.0
    %1669 = vmatprep.subr.mxu0 0.0
    %1670 = vmatpush1.msra.mxu0 0.0
    %1671 = vmatprep.subr.mxu0 0.0
    %1672 = vmatpush1.msra.mxu0 0.0
    %1673 = vmatprep.subr.mxu0 0.0
    %1674 = vmatpush1.msra.mxu0 0.0
    %1675 = vmatprep.subr.mxu0 0.0
    %1676 = vmatpush1.msra.mxu0 0.0
    %1677 = vmatprep.subr.mxu0 0.0
    %1678 = vmatpush1.msra.mxu0 0.0
    %1679 = vmatprep.subr.mxu0 0.0
    %1680 = vmatpush1.msra.mxu0 0.0
    %1681 = vmatprep.subr.mxu0 0.0
    %1682 = vmatpush1.msra.mxu0 0.0
    %1683 = vmatprep.subr.mxu0 0.0
    %1684 = vmatpush1.msra.mxu0 0.0
    %1685 = vmatprep.subr.mxu0 0.0
    %1686 = vmatpush1.msra.mxu0 0.0
    %1687 = vmatprep.subr.mxu0 0.0
    %1688 = vmatpush1.msra.mxu0 0.0
    %1689 = vmatprep.subr.mxu0 0.0
    %1690 = vmatpush1.msra.mxu0 0.0
    %1691 = vmatprep.subr.mxu0 0.0
    %1692 = vmatpush1.msra.mxu0 0.0
    %1693 = vmatprep.subr.mxu0 0.0
    %1694 = vmatpush1.msra.mxu0 0.0
    %1695 = vmatprep.subr.mxu0 0.0
    %1696 = vmatpush1.msra.mxu0 0.0
    %1697 = vmatprep.subr.mxu0 0.0
    %1698 = vmatpush1.msra.mxu0 0.0
    %1699 = vmatprep.mubr.f32.mxu0 0.0
    %v1700 = vand.u32 %v1539, 4294901760
    %1701 = vmatmul.mubr.f32.gmra.mrb[0].mxu0 %v1700
    %v1702 = vpop.f32.mrb[0].mxu0
    %v1703 = vadd.f32 %v1621, %v1702
    %v1704 = vpop.f32.mrb[0].mxu0
    %v1705 = vadd.f32 %v1623, %v1704
    %1706 = vdwg.mxu0
    %v1707 = vand.u32 %v1545, 4294901760
    %v1708 = vsub.f32 %v1545, %v1707
    %1709 = vmatprep.subr.mxu0 %v1708
    %v1710 = vand.u32 %v1542, 4294901760
    %v1711 = vsub.f32 %v1542, %v1710
    %1712 = vmatpush1.msra.mxu0 %v1711
    %1713 = vmatprep.subr.mxu0 0.0
    %1714 = vmatpush1.msra.mxu0 0.0
    %1715 = vmatprep.subr.mxu0 0.0
    %1716 = vmatpush1.msra.mxu0 0.0
    %1717 = vmatprep.subr.mxu0 0.0
    %1718 = vmatpush1.msra.mxu0 0.0
    %1719 = vmatprep.subr.mxu0 0.0
    %1720 = vmatpush1.msra.mxu0 0.0
    %1721 = vmatprep.subr.mxu0 0.0
    %1722 = vmatpush1.msra.mxu0 0.0
    %1723 = vmatprep.subr.mxu0 0.0
    %1724 = vmatpush1.msra.mxu0 0.0
    %1725 = vmatprep.subr.mxu0 0.0
    %1726 = vmatpush1.msra.mxu0 0.0
    %1727 = vmatprep.subr.mxu0 0.0
    %1728 = vmatpush1.msra.mxu0 0.0
    %1729 = vmatprep.subr.mxu0 0.0
    %1730 = vmatpush1.msra.mxu0 0.0
    %1731 = vmatprep.subr.mxu0 0.0
    %1732 = vmatpush1.msra.mxu0 0.0
    %1733 = vmatprep.subr.mxu0 0.0
    %1734 = vmatpush1.msra.mxu0 0.0
    %1735 = vmatprep.subr.mxu0 0.0
    %1736 = vmatpush1.msra.mxu0 0.0
    %1737 = vmatprep.subr.mxu0 0.0
    %1738 = vmatpush1.msra.mxu0 0.0
    %1739 = vmatprep.subr.mxu0 0.0
    %1740 = vmatpush1.msra.mxu0 0.0
    %1741 = vmatprep.subr.mxu0 0.0
    %1742 = vmatpush1.msra.mxu0 0.0
    %1743 = vmatprep.subr.mxu0 0.0
    %1744 = vmatpush1.msra.mxu0 0.0
    %1745 = vmatprep.subr.mxu0 0.0
    %1746 = vmatpush1.msra.mxu0 0.0
    %1747 = vmatprep.subr.mxu0 0.0
    %1748 = vmatpush1.msra.mxu0 0.0
    %1749 = vmatprep.subr.mxu0 0.0
    %1750 = vmatpush1.msra.mxu0 0.0
    %1751 = vmatprep.subr.mxu0 0.0
    %1752 = vmatpush1.msra.mxu0 0.0
    %1753 = vmatprep.subr.mxu0 0.0
    %1754 = vmatpush1.msra.mxu0 0.0
    %1755 = vmatprep.subr.mxu0 0.0
    %1756 = vmatpush1.msra.mxu0 0.0
    %1757 = vmatprep.subr.mxu0 0.0
    %1758 = vmatpush1.msra.mxu0 0.0
    %1759 = vmatprep.subr.mxu0 0.0
    %1760 = vmatpush1.msra.mxu0 0.0
    %1761 = vmatprep.subr.mxu0 0.0
    %1762 = vmatpush1.msra.mxu0 0.0
    %1763 = vmatprep.subr.mxu0 0.0
    %1764 = vmatpush1.msra.mxu0 0.0
    %1765 = vmatprep.subr.mxu0 0.0
    %1766 = vmatpush1.msra.mxu0 0.0
    %1767 = vmatprep.subr.mxu0 0.0
    %1768 = vmatpush1.msra.mxu0 0.0
    %1769 = vmatprep.subr.mxu0 0.0
    %1770 = vmatpush1.msra.mxu0 0.0
    %1771 = vmatprep.subr.mxu0 0.0
    %1772 = vmatpush1.msra.mxu0 0.0
    %1773 = vmatprep.subr.mxu0 0.0
    %1774 = vmatpush1.msra.mxu0 0.0
    %1775 = vmatprep.mubr.f32.mxu0 0.0
    %v1776 = vand.u32 %v1539, 4294901760
    %v1777 = vsub.f32 %v1539, %v1776
    %1778 = vmatmul.mubr.f32.gmra.mrb[0].mxu0 %v1777
    %v1779 = vpop.f32.mrb[0].mxu0
    %v1780 = vadd.f32 %v1703, %v1779
    %v1781 = vpop.f32.mrb[0].mxu0
    %v1782 = vadd.f32 %v1705, %v1781
    %1783 = vdwg.mxu0
    %v1784 = vand.u32 %v1545, 4294901760
    %1785 = vmatprep.subr.mxu0 %v1784
    %v1786 = vand.u32 %v1542, 4294901760
    %1787 = vmatpush1.msra.mxu0 %v1786
    %1788 = vmatprep.subr.mxu0 0.0
    %1789 = vmatpush1.msra.mxu0 0.0
    %1790 = vmatprep.subr.mxu0 0.0
    %1791 = vmatpush1.msra.mxu0 0.0
    %1792 = vmatprep.subr.mxu0 0.0
    %1793 = vmatpush1.msra.mxu0 0.0
    %1794 = vmatprep.subr.mxu0 0.0
    %1795 = vmatpush1.msra.mxu0 0.0
    %1796 = vmatprep.subr.mxu0 0.0
    %1797 = vmatpush1.msra.mxu0 0.0
    %1798 = vmatprep.subr.mxu0 0.0
    %1799 = vmatpush1.msra.mxu0 0.0
    %1800 = vmatprep.subr.mxu0 0.0
    %1801 = vmatpush1.msra.mxu0 0.0
    %1802 = vmatprep.subr.mxu0 0.0
    %1803 = vmatpush1.msra.mxu0 0.0
    %1804 = vmatprep.subr.mxu0 0.0
    %1805 = vmatpush1.msra.mxu0 0.0
    %1806 = vmatprep.subr.mxu0 0.0
    %1807 = vmatpush1.msra.mxu0 0.0
    %1808 = vmatprep.subr.mxu0 0.0
    %1809 = vmatpush1.msra.mxu0 0.0
    %1810 = vmatprep.subr.mxu0 0.0
    %1811 = vmatpush1.msra.mxu0 0.0
    %1812 = vmatprep.subr.mxu0 0.0
    %1813 = vmatpush1.msra.mxu0 0.0
    %1814 = vmatprep.subr.mxu0 0.0
    %1815 = vmatpush1.msra.mxu0 0.0
    %1816 = vmatprep.subr.mxu0 0.0
    %1817 = vmatpush1.msra.mxu0 0.0
    %1818 = vmatprep.subr.mxu0 0.0
    %1819 = vmatpush1.msra.mxu0 0.0
    %1820 = vmatprep.subr.mxu0 0.0
    %1821 = vmatpush1.msra.mxu0 0.0
    %1822 = vmatprep.subr.mxu0 0.0
    %1823 = vmatpush1.msra.mxu0 0.0
    %1824 = vmatprep.subr.mxu0 0.0
    %1825 = vmatpush1.msra.mxu0 0.0
    %1826 = vmatprep.subr.mxu0 0.0
    %1827 = vmatpush1.msra.mxu0 0.0
    %1828 = vmatprep.subr.mxu0 0.0
    %1829 = vmatpush1.msra.mxu0 0.0
    %1830 = vmatprep.subr.mxu0 0.0
    %1831 = vmatpush1.msra.mxu0 0.0
    %1832 = vmatprep.subr.mxu0 0.0
    %1833 = vmatpush1.msra.mxu0 0.0
    %1834 = vmatprep.subr.mxu0 0.0
    %1835 = vmatpush1.msra.mxu0 0.0
    %1836 = vmatprep.subr.mxu0 0.0
    %1837 = vmatpush1.msra.mxu0 0.0
    %1838 = vmatprep.subr.mxu0 0.0
    %1839 = vmatpush1.msra.mxu0 0.0
    %1840 = vmatprep.subr.mxu0 0.0
    %1841 = vmatpush1.msra.mxu0 0.0
    %1842 = vmatprep.subr.mxu0 0.0
    %1843 = vmatpush1.msra.mxu0 0.0
    %1844 = vmatprep.subr.mxu0 0.0
    %1845 = vmatpush1.msra.mxu0 0.0
    %1846 = vmatprep.subr.mxu0 0.0
    %1847 = vmatpush1.msra.mxu0 0.0
    %1848 = vmatprep.subr.mxu0 0.0
    %1849 = vmatpush1.msra.mxu0 0.0
    %1850 = vmatprep.mubr.f32.mxu0 0.0
    %v1851 = vand.u32 %v1539, 4294901760
    %v1852 = vsub.f32 %v1539, %v1851
    %v1853 = vand.u32 %v1852, 4294901760
    %1854 = vmatmul.mubr.f32.gmra.mrb[0].mxu0 %v1853
    %v1855 = vpop.f32.mrb[0].mxu0
    %v1856 = vadd.f32 %v1780, %v1855
    %v1857 = vpop.f32.mrb[0].mxu0
    %v1858 = vadd.f32 %v1782, %v1857
    %1859 = vdwg.mxu0
    %v1860 = vand.u32 %v1545, 4294901760
    %v1861 = vsub.f32 %v1545, %v1860
    %v1862 = vand.u32 %v1861, 4294901760
    %1863 = vmatprep.subr.mxu0 %v1862
    %v1864 = vand.u32 %v1542, 4294901760
    %v1865 = vsub.f32 %v1542, %v1864
    %v1866 = vand.u32 %v1865, 4294901760
    %1867 = vmatpush1.msra.mxu0 %v1866
    %1868 = vmatprep.subr.mxu0 0.0
    %1869 = vmatpush1.msra.mxu0 0.0
    %1870 = vmatprep.subr.mxu0 0.0
    %1871 = vmatpush1.msra.mxu0 0.0
    %1872 = vmatprep.subr.mxu0 0.0
    %1873 = vmatpush1.msra.mxu0 0.0
    %1874 = vmatprep.subr.mxu0 0.0
    %1875 = vmatpush1.msra.mxu0 0.0
    %1876 = vmatprep.subr.mxu0 0.0
    %1877 = vmatpush1.msra.mxu0 0.0
    %1878 = vmatprep.subr.mxu0 0.0
    %1879 = vmatpush1.msra.mxu0 0.0
    %1880 = vmatprep.subr.mxu0 0.0
    %1881 = vmatpush1.msra.mxu0 0.0
    %1882 = vmatprep.subr.mxu0 0.0
    %1883 = vmatpush1.msra.mxu0 0.0
    %1884 = vmatprep.subr.mxu0 0.0
    %1885 = vmatpush1.msra.mxu0 0.0
    %1886 = vmatprep.subr.mxu0 0.0
    %1887 = vmatpush1.msra.mxu0 0.0
    %1888 = vmatprep.subr.mxu0 0.0
    %1889 = vmatpush1.msra.mxu0 0.0
    %1890 = vmatprep.subr.mxu0 0.0
    %1891 = vmatpush1.msra.mxu0 0.0
    %1892 = vmatprep.subr.mxu0 0.0
    %1893 = vmatpush1.msra.mxu0 0.0
    %1894 = vmatprep.subr.mxu0 0.0
    %1895 = vmatpush1.msra.mxu0 0.0
    %1896 = vmatprep.subr.mxu0 0.0
    %1897 = vmatpush1.msra.mxu0 0.0
    %1898 = vmatprep.subr.mxu0 0.0
    %1899 = vmatpush1.msra.mxu0 0.0
    %1900 = vmatprep.subr.mxu0 0.0
    %1901 = vmatpush1.msra.mxu0 0.0
    %1902 = vmatprep.subr.mxu0 0.0
    %1903 = vmatpush1.msra.mxu0 0.0
    %1904 = vmatprep.subr.mxu0 0.0
    %1905 = vmatpush1.msra.mxu0 0.0
    %1906 = vmatprep.subr.mxu0 0.0
    %1907 = vmatpush1.msra.mxu0 0.0
    %1908 = vmatprep.subr.mxu0 0.0
    %1909 = vmatpush1.msra.mxu0 0.0
    %1910 = vmatprep.subr.mxu0 0.0
    %1911 = vmatpush1.msra.mxu0 0.0
    %1912 = vmatprep.subr.mxu0 0.0
    %1913 = vmatpush1.msra.mxu0 0.0
    %1914 = vmatprep.subr.mxu0 0.0
    %1915 = vmatpush1.msra.mxu0 0.0
    %1916 = vmatprep.subr.mxu0 0.0
    %1917 = vmatpush1.msra.mxu0 0.0
    %1918 = vmatprep.subr.mxu0 0.0
    %1919 = vmatpush1.msra.mxu0 0.0
    %1920 = vmatprep.subr.mxu0 0.0
    %1921 = vmatpush1.msra.mxu0 0.0
    %1922 = vmatprep.subr.mxu0 0.0
    %1923 = vmatpush1.msra.mxu0 0.0
    %1924 = vmatprep.subr.mxu0 0.0
    %1925 = vmatpush1.msra.mxu0 0.0
    %1926 = vmatprep.subr.mxu0 0.0
    %1927 = vmatpush1.msra.mxu0 0.0
    %1928 = vmatprep.subr.mxu0 0.0
    %1929 = vmatpush1.msra.mxu0 0.0
    %1930 = vmatprep.mubr.f32.mxu0 0.0
    %v1931 = vand.u32 %v1539, 4294901760
    %1932 = vmatmul.mubr.f32.gmra.mrb[0].mxu0 %v1931
    %v1933 = vpop.f32.mrb[0].mxu0
    %v1934 = vadd.f32 %v1856, %v1933
    %v1935 = vpop.f32.mrb[0].mxu0
    %v1936 = vadd.f32 %v1858, %v1935
    %1937 = vdwg.mxu0
    %v1938 = vand.u32 %v1545, 4294901760
    %1939 = vmatprep.subr.mxu0 %v1938
    %v1940 = vand.u32 %v1542, 4294901760
    %1941 = vmatpush1.msra.mxu0 %v1940
    %1942 = vmatprep.subr.mxu0 0.0
    %1943 = vmatpush1.msra.mxu0 0.0
    %1944 = vmatprep.subr.mxu0 0.0
    %1945 = vmatpush1.msra.mxu0 0.0
    %1946 = vmatprep.subr.mxu0 0.0
    %1947 = vmatpush1.msra.mxu0 0.0
    %1948 = vmatprep.subr.mxu0 0.0
    %1949 = vmatpush1.msra.mxu0 0.0
    %1950 = vmatprep.subr.mxu0 0.0
    %1951 = vmatpush1.msra.mxu0 0.0
    %1952 = vmatprep.subr.mxu0 0.0
    %1953 = vmatpush1.msra.mxu0 0.0
    %1954 = vmatprep.subr.mxu0 0.0
    %1955 = vmatpush1.msra.mxu0 0.0
    %1956 = vmatprep.subr.mxu0 0.0
    %1957 = vmatpush1.msra.mxu0 0.0
    %1958 = vmatprep.subr.mxu0 0.0
    %1959 = vmatpush1.msra.mxu0 0.0
    %1960 = vmatprep.subr.mxu0 0.0
    %1961 = vmatpush1.msra.mxu0 0.0
    %1962 = vmatprep.subr.mxu0 0.0
    %1963 = vmatpush1.msra.mxu0 0.0
    %1964 = vmatprep.subr.mxu0 0.0
    %1965 = vmatpush1.msra.mxu0 0.0
    %1966 = vmatprep.subr.mxu0 0.0
    %1967 = vmatpush1.msra.mxu0 0.0
    %1968 = vmatprep.subr.mxu0 0.0
    %1969 = vmatpush1.msra.mxu0 0.0
    %1970 = vmatprep.subr.mxu0 0.0
    %1971 = vmatpush1.msra.mxu0 0.0
    %1972 = vmatprep.subr.mxu0 0.0
    %1973 = vmatpush1.msra.mxu0 0.0
    %1974 = vmatprep.subr.mxu0 0.0
    %1975 = vmatpush1.msra.mxu0 0.0
    %1976 = vmatprep.subr.mxu0 0.0
    %1977 = vmatpush1.msra.mxu0 0.0
    %1978 = vmatprep.subr.mxu0 0.0
    %1979 = vmatpush1.msra.mxu0 0.0
    %1980 = vmatprep.subr.mxu0 0.0
    %1981 = vmatpush1.msra.mxu0 0.0
    %1982 = vmatprep.subr.mxu0 0.0
    %1983 = vmatpush1.msra.mxu0 0.0
    %1984 = vmatprep.subr.mxu0 0.0
    %1985 = vmatpush1.msra.mxu0 0.0
    %1986 = vmatprep.subr.mxu0 0.0
    %1987 = vmatpush1.msra.mxu0 0.0
    %1988 = vmatprep.subr.mxu0 0.0
    %1989 = vmatpush1.msra.mxu0 0.0
    %1990 = vmatprep.subr.mxu0 0.0
    %1991 = vmatpush1.msra.mxu0 0.0
    %1992 = vmatprep.subr.mxu0 0.0
    %1993 = vmatpush1.msra.mxu0 0.0
    %1994 = vmatprep.subr.mxu0 0.0
    %1995 = vmatpush1.msra.mxu0 0.0
    %1996 = vmatprep.subr.mxu0 0.0
    %1997 = vmatpush1.msra.mxu0 0.0
    %1998 = vmatprep.subr.mxu0 0.0
    %1999 = vmatpush1.msra.mxu0 0.0
    %2000 = vmatprep.subr.mxu0 0.0
    %2001 = vmatpush1.msra.mxu0 0.0
    %2002 = vmatprep.subr.mxu0 0.0
    %2003 = vmatpush1.msra.mxu0 0.0
    %2004 = vmatprep.mubr.f32.mxu0 0.0
    %v2005 = vand.u32 %v1539, 4294901760
    %2006 = vmatmul.mubr.f32.gmra.mrb[0].mxu0 %v2005
    %v2007 = vpop.f32.mrb[0].mxu0
    %v2008 = vadd.f32 %v1934, %v2007
    %v2009 = vpop.f32.mrb[0].mxu0
    %v2010 = vadd.f32 %v1936, %v2009
    %2011 = vdwg.mxu0
    %v2012 = vadd.f32 %v1522, %v2008
    %v2013 = vadd.f32 %v1523, %v2010
    %v2014 = vld [vmem:[%s1 + $0x20] sm:$0xff]
    %2015 = vrot.lane.b32.xlu0 %v57, 96
    %v2016 = vpop.permute.xlu0 %2015
    %2017 = vrot.lane.b32.xlu0 %v61, 96
    %v2018 = vpop.permute.xlu0 %2017
    %2019 = vrot.lane.b32.xlu0 %v58, 96
    %v2020 = vpop.permute.xlu0 %2019
    %vm2021 = vcmask 785408
    %v2022 = vsel %vm2021, %v2016, %v2018
    %v2023 = vsel %vm2021, %v2018, %v2020
    %v2025 = vsel %vm86, %v2014, 0
    %v2027 = vsel %vm90, %v2022, 0
    %v2029 = vsel %vm90, %v2023, 0
    %v2031 = vand.u32 %v2029, 4294901760
    %2032 = vmatprep.subr.mxu0 %v2031
    %v2033 = vand.u32 %v2027, 4294901760
    %2034 = vmatpush1.msra.mxu0 %v2033
    %2035 = vmatprep.subr.mxu0 0.0
    %2036 = vmatpush1.msra.mxu0 0.0
    %2037 = vmatprep.subr.mxu0 0.0
    %2038 = vmatpush1.msra.mxu0 0.0
    %2039 = vmatprep.subr.mxu0 0.0
    %2040 = vmatpush1.msra.mxu0 0.0
    %2041 = vmatprep.subr.mxu0 0.0
    %2042 = vmatpush1.msra.mxu0 0.0
    %2043 = vmatprep.subr.mxu0 0.0
    %2044 = vmatpush1.msra.mxu0 0.0
    %2045 = vmatprep.subr.mxu0 0.0
    %2046 = vmatpush1.msra.mxu0 0.0
    %2047 = vmatprep.subr.mxu0 0.0
    %2048 = vmatpush1.msra.mxu0 0.0
    %2049 = vmatprep.subr.mxu0 0.0
    %2050 = vmatpush1.msra.mxu0 0.0
    %2051 = vmatprep.subr.mxu0 0.0
    %2052 = vmatpush1.msra.mxu0 0.0
    %2053 = vmatprep.subr.mxu0 0.0
    %2054 = vmatpush1.msra.mxu0 0.0
    %2055 = vmatprep.subr.mxu0 0.0
    %2056 = vmatpush1.msra.mxu0 0.0
    %2057 = vmatprep.subr.mxu0 0.0
    %2058 = vmatpush1.msra.mxu0 0.0
    %2059 = vmatprep.subr.mxu0 0.0
    %2060 = vmatpush1.msra.mxu0 0.0
    %2061 = vmatprep.subr.mxu0 0.0
    %2062 = vmatpush1.msra.mxu0 0.0
    %2063 = vmatprep.subr.mxu0 0.0
    %2064 = vmatpush1.msra.mxu0 0.0
    %2065 = vmatprep.subr.mxu0 0.0
    %2066 = vmatpush1.msra.mxu0 0.0
    %2067 = vmatprep.subr.mxu0 0.0
    %2068 = vmatpush1.msra.mxu0 0.0
    %2069 = vmatprep.subr.mxu0 0.0
    %2070 = vmatpush1.msra.mxu0 0.0
    %2071 = vmatprep.subr.mxu0 0.0
    %2072 = vmatpush1.msra.mxu0 0.0
    %2073 = vmatprep.subr.mxu0 0.0
    %2074 = vmatpush1.msra.mxu0 0.0
    %2075 = vmatprep.subr.mxu0 0.0
    %2076 = vmatpush1.msra.mxu0 0.0
    %2077 = vmatprep.subr.mxu0 0.0
    %2078 = vmatpush1.msra.mxu0 0.0
    %2079 = vmatprep.subr.mxu0 0.0
    %2080 = vmatpush1.msra.mxu0 0.0
    %2081 = vmatprep.subr.mxu0 0.0
    %2082 = vmatpush1.msra.mxu0 0.0
    %2083 = vmatprep.subr.mxu0 0.0
    %2084 = vmatpush1.msra.mxu0 0.0
    %2085 = vmatprep.subr.mxu0 0.0
    %2086 = vmatpush1.msra.mxu0 0.0
    %2087 = vmatprep.subr.mxu0 0.0
    %2088 = vmatpush1.msra.mxu0 0.0
    %2089 = vmatprep.subr.mxu0 0.0
    %2090 = vmatpush1.msra.mxu0 0.0
    %2091 = vmatprep.subr.mxu0 0.0
    %2092 = vmatpush1.msra.mxu0 0.0
    %2093 = vmatprep.subr.mxu0 0.0
    %2094 = vmatpush1.msra.mxu0 0.0
    %2095 = vmatprep.subr.mxu0 0.0
    %2096 = vmatpush1.msra.mxu0 0.0
    %2097 = vmatprep.mubr.f32.mxu0 0.0
    %v2098 = vand.u32 %v2025, 4294901760
    %v2099 = vsub.f32 %v2025, %v2098
    %v2100 = vand.u32 %v2099, 4294901760
    %v2101 = vsub.f32 %v2099, %v2100
    %v2102 = vand.u32 %v2101, 4294901760
    %2103 = vmatmul.mubr.f32.gmra.mrb[0].mxu0 %v2102
    %v2104 = vpop.f32.mrb[0].mxu0
    %v2105 = vadd.f32 0.0, %v2104
    %v2106 = vpop.f32.mrb[0].mxu0
    %v2107 = vadd.f32 0.0, %v2106
    %2108 = vdwg.mxu0
    %v2109 = vand.u32 %v2029, 4294901760
    %v2110 = vsub.f32 %v2029, %v2109
    %v2111 = vand.u32 %v2110, 4294901760
    %v2112 = vsub.f32 %v2110, %v2111
    %v2113 = vand.u32 %v2112, 4294901760
    %2114 = vmatprep.subr.mxu0 %v2113
    %v2115 = vand.u32 %v2027, 4294901760
    %v2116 = vsub.f32 %v2027, %v2115
    %v2117 = vand.u32 %v2116, 4294901760
    %v2118 = vsub.f32 %v2116, %v2117
    %v2119 = vand.u32 %v2118, 4294901760
    %2120 = vmatpush1.msra.mxu0 %v2119
    %2121 = vmatprep.subr.mxu0 0.0
    %2122 = vmatpush1.msra.mxu0 0.0
    %2123 = vmatprep.subr.mxu0 0.0
    %2124 = vmatpush1.msra.mxu0 0.0
    %2125 = vmatprep.subr.mxu0 0.0
    %2126 = vmatpush1.msra.mxu0 0.0
    %2127 = vmatprep.subr.mxu0 0.0
    %2128 = vmatpush1.msra.mxu0 0.0
    %2129 = vmatprep.subr.mxu0 0.0
    %2130 = vmatpush1.msra.mxu0 0.0
    %2131 = vmatprep.subr.mxu0 0.0
    %2132 = vmatpush1.msra.mxu0 0.0
    %2133 = vmatprep.subr.mxu0 0.0
    %2134 = vmatpush1.msra.mxu0 0.0
    %2135 = vmatprep.subr.mxu0 0.0
    %2136 = vmatpush1.msra.mxu0 0.0
    %2137 = vmatprep.subr.mxu0 0.0
    %2138 = vmatpush1.msra.mxu0 0.0
    %2139 = vmatprep.subr.mxu0 0.0
    %2140 = vmatpush1.msra.mxu0 0.0
    %2141 = vmatprep.subr.mxu0 0.0
    %2142 = vmatpush1.msra.mxu0 0.0
    %2143 = vmatprep.subr.mxu0 0.0
    %2144 = vmatpush1.msra.mxu0 0.0
    %2145 = vmatprep.subr.mxu0 0.0
    %2146 = vmatpush1.msra.mxu0 0.0
    %2147 = vmatprep.subr.mxu0 0.0
    %2148 = vmatpush1.msra.mxu0 0.0
    %2149 = vmatprep.subr.mxu0 0.0
    %2150 = vmatpush1.msra.mxu0 0.0
    %2151 = vmatprep.subr.mxu0 0.0
    %2152 = vmatpush1.msra.mxu0 0.0
    %2153 = vmatprep.subr.mxu0 0.0
    %2154 = vmatpush1.msra.mxu0 0.0
    %2155 = vmatprep.subr.mxu0 0.0
    %2156 = vmatpush1.msra.mxu0 0.0
    %2157 = vmatprep.subr.mxu0 0.0
    %2158 = vmatpush1.msra.mxu0 0.0
    %2159 = vmatprep.subr.mxu0 0.0
    %2160 = vmatpush1.msra.mxu0 0.0
    %2161 = vmatprep.subr.mxu0 0.0
    %2162 = vmatpush1.msra.mxu0 0.0
    %2163 = vmatprep.subr.mxu0 0.0
    %2164 = vmatpush1.msra.mxu0 0.0
    %2165 = vmatprep.subr.mxu0 0.0
    %2166 = vmatpush1.msra.mxu0 0.0
    %2167 = vmatprep.subr.mxu0 0.0
    %2168 = vmatpush1.msra.mxu0 0.0
    %2169 = vmatprep.subr.mxu0 0.0
    %2170 = vmatpush1.msra.mxu0 0.0
    %2171 = vmatprep.subr.mxu0 0.0
    %2172 = vmatpush1.msra.mxu0 0.0
    %2173 = vmatprep.subr.mxu0 0.0
    %2174 = vmatpush1.msra.mxu0 0.0
    %2175 = vmatprep.subr.mxu0 0.0
    %2176 = vmatpush1.msra.mxu0 0.0
    %2177 = vmatprep.subr.mxu0 0.0
    %2178 = vmatpush1.msra.mxu0 0.0
    %2179 = vmatprep.subr.mxu0 0.0
    %2180 = vmatpush1.msra.mxu0 0.0
    %2181 = vmatprep.subr.mxu0 0.0
    %2182 = vmatpush1.msra.mxu0 0.0
    %2183 = vmatprep.mubr.f32.mxu0 0.0
    %v2184 = vand.u32 %v2025, 4294901760
    %2185 = vmatmul.mubr.f32.gmra.mrb[0].mxu0 %v2184
    %v2186 = vpop.f32.mrb[0].mxu0
    %v2187 = vadd.f32 %v2105, %v2186
    %v2188 = vpop.f32.mrb[0].mxu0
    %v2189 = vadd.f32 %v2107, %v2188
    %2190 = vdwg.mxu0
    %v2191 = vand.u32 %v2029, 4294901760
    %v2192 = vsub.f32 %v2029, %v2191
    %2193 = vmatprep.subr.mxu0 %v2192
    %v2194 = vand.u32 %v2027, 4294901760
    %v2195 = vsub.f32 %v2027, %v2194
    %2196 = vmatpush1.msra.mxu0 %v2195
    %2197 = vmatprep.subr.mxu0 0.0
    %2198 = vmatpush1.msra.mxu0 0.0
    %2199 = vmatprep.subr.mxu0 0.0
    %2200 = vmatpush1.msra.mxu0 0.0
    %2201 = vmatprep.subr.mxu0 0.0
    %2202 = vmatpush1.msra.mxu0 0.0
    %2203 = vmatprep.subr.mxu0 0.0
    %2204 = vmatpush1.msra.mxu0 0.0
    %2205 = vmatprep.subr.mxu0 0.0
    %2206 = vmatpush1.msra.mxu0 0.0
    %2207 = vmatprep.subr.mxu0 0.0
    %2208 = vmatpush1.msra.mxu0 0.0
    %2209 = vmatprep.subr.mxu0 0.0
    %2210 = vmatpush1.msra.mxu0 0.0
    %2211 = vmatprep.subr.mxu0 0.0
    %2212 = vmatpush1.msra.mxu0 0.0
    %2213 = vmatprep.subr.mxu0 0.0
    %2214 = vmatpush1.msra.mxu0 0.0
    %2215 = vmatprep.subr.mxu0 0.0
    %2216 = vmatpush1.msra.mxu0 0.0
    %2217 = vmatprep.subr.mxu0 0.0
    %2218 = vmatpush1.msra.mxu0 0.0
    %2219 = vmatprep.subr.mxu0 0.0
    %2220 = vmatpush1.msra.mxu0 0.0
    %2221 = vmatprep.subr.mxu0 0.0
    %2222 = vmatpush1.msra.mxu0 0.0
    %2223 = vmatprep.subr.mxu0 0.0
    %2224 = vmatpush1.msra.mxu0 0.0
    %2225 = vmatprep.subr.mxu0 0.0
    %2226 = vmatpush1.msra.mxu0 0.0
    %2227 = vmatprep.subr.mxu0 0.0
    %2228 = vmatpush1.msra.mxu0 0.0
    %2229 = vmatprep.subr.mxu0 0.0
    %2230 = vmatpush1.msra.mxu0 0.0
    %2231 = vmatprep.subr.mxu0 0.0
    %2232 = vmatpush1.msra.mxu0 0.0
    %2233 = vmatprep.subr.mxu0 0.0
    %2234 = vmatpush1.msra.mxu0 0.0
    %2235 = vmatprep.subr.mxu0 0.0
    %2236 = vmatpush1.msra.mxu0 0.0
    %2237 = vmatprep.subr.mxu0 0.0
    %2238 = vmatpush1.msra.mxu0 0.0
    %2239 = vmatprep.subr.mxu0 0.0
    %2240 = vmatpush1.msra.mxu0 0.0
    %2241 = vmatprep.subr.mxu0 0.0
    %2242 = vmatpush1.msra.mxu0 0.0
    %2243 = vmatprep.subr.mxu0 0.0
    %2244 = vmatpush1.msra.mxu0 0.0
    %2245 = vmatprep.subr.mxu0 0.0
    %2246 = vmatpush1.msra.mxu0 0.0
    %2247 = vmatprep.subr.mxu0 0.0
    %2248 = vmatpush1.msra.mxu0 0.0
    %2249 = vmatprep.subr.mxu0 0.0
    %2250 = vmatpush1.msra.mxu0 0.0
    %2251 = vmatprep.subr.mxu0 0.0
    %2252 = vmatpush1.msra.mxu0 0.0
    %2253 = vmatprep.subr.mxu0 0.0
    %2254 = vmatpush1.msra.mxu0 0.0
    %2255 = vmatprep.subr.mxu0 0.0
    %2256 = vmatpush1.msra.mxu0 0.0
    %2257 = vmatprep.subr.mxu0 0.0
    %2258 = vmatpush1.msra.mxu0 0.0
    %2259 = vmatprep.mubr.f32.mxu0 0.0
    %v2260 = vand.u32 %v2025, 4294901760
    %v2261 = vsub.f32 %v2025, %v2260
    %2262 = vmatmul.mubr.f32.gmra.mrb[0].mxu0 %v2261
    %v2263 = vpop.f32.mrb[0].mxu0
    %v2264 = vadd.f32 %v2187, %v2263
    %v2265 = vpop.f32.mrb[0].mxu0
    %v2266 = vadd.f32 %v2189, %v2265
    %2267 = vdwg.mxu0
    %v2268 = vand.u32 %v2029, 4294901760
    %2269 = vmatprep.subr.mxu0 %v2268
    %v2270 = vand.u32 %v2027, 4294901760
    %2271 = vmatpush1.msra.mxu0 %v2270
    %2272 = vmatprep.subr.mxu0 0.0
    %2273 = vmatpush1.msra.mxu0 0.0
    %2274 = vmatprep.subr.mxu0 0.0
    %2275 = vmatpush1.msra.mxu0 0.0
    %2276 = vmatprep.subr.mxu0 0.0
    %2277 = vmatpush1.msra.mxu0 0.0
    %2278 = vmatprep.subr.mxu0 0.0
    %2279 = vmatpush1.msra.mxu0 0.0
    %2280 = vmatprep.subr.mxu0 0.0
    %2281 = vmatpush1.msra.mxu0 0.0
    %2282 = vmatprep.subr.mxu0 0.0
    %2283 = vmatpush1.msra.mxu0 0.0
    %2284 = vmatprep.subr.mxu0 0.0
    %2285 = vmatpush1.msra.mxu0 0.0
    %2286 = vmatprep.subr.mxu0 0.0
    %2287 = vmatpush1.msra.mxu0 0.0
    %2288 = vmatprep.subr.mxu0 0.0
    %2289 = vmatpush1.msra.mxu0 0.0
    %2290 = vmatprep.subr.mxu0 0.0
    %2291 = vmatpush1.msra.mxu0 0.0
    %2292 = vmatprep.subr.mxu0 0.0
    %2293 = vmatpush1.msra.mxu0 0.0
    %2294 = vmatprep.subr.mxu0 0.0
    %2295 = vmatpush1.msra.mxu0 0.0
    %2296 = vmatprep.subr.mxu0 0.0
    %2297 = vmatpush1.msra.mxu0 0.0
    %2298 = vmatprep.subr.mxu0 0.0
    %2299 = vmatpush1.msra.mxu0 0.0
    %2300 = vmatprep.subr.mxu0 0.0
    %2301 = vmatpush1.msra.mxu0 0.0
    %2302 = vmatprep.subr.mxu0 0.0
    %2303 = vmatpush1.msra.mxu0 0.0
    %2304 = vmatprep.subr.mxu0 0.0
    %2305 = vmatpush1.msra.mxu0 0.0
    %2306 = vmatprep.subr.mxu0 0.0
    %2307 = vmatpush1.msra.mxu0 0.0
    %2308 = vmatprep.subr.mxu0 0.0
    %2309 = vmatpush1.msra.mxu0 0.0
    %2310 = vmatprep.subr.mxu0 0.0
    %2311 = vmatpush1.msra.mxu0 0.0
    %2312 = vmatprep.subr.mxu0 0.0
    %2313 = vmatpush1.msra.mxu0 0.0
    %2314 = vmatprep.subr.mxu0 0.0
    %2315 = vmatpush1.msra.mxu0 0.0
    %2316 = vmatprep.subr.mxu0 0.0
    %2317 = vmatpush1.msra.mxu0 0.0
    %2318 = vmatprep.subr.mxu0 0.0
    %2319 = vmatpush1.msra.mxu0 0.0
    %2320 = vmatprep.subr.mxu0 0.0
    %2321 = vmatpush1.msra.mxu0 0.0
    %2322 = vmatprep.subr.mxu0 0.0
    %2323 = vmatpush1.msra.mxu0 0.0
    %2324 = vmatprep.subr.mxu0 0.0
    %2325 = vmatpush1.msra.mxu0 0.0
    %2326 = vmatprep.subr.mxu0 0.0
    %2327 = vmatpush1.msra.mxu0 0.0
    %2328 = vmatprep.subr.mxu0 0.0
    %2329 = vmatpush1.msra.mxu0 0.0
    %2330 = vmatprep.subr.mxu0 0.0
    %2331 = vmatpush1.msra.mxu0 0.0
    %2332 = vmatprep.subr.mxu0 0.0
    %2333 = vmatpush1.msra.mxu0 0.0
    %2334 = vmatprep.mubr.f32.mxu0 0.0
    %v2335 = vand.u32 %v2025, 4294901760
    %v2336 = vsub.f32 %v2025, %v2335
    %v2337 = vand.u32 %v2336, 4294901760
    %2338 = vmatmul.mubr.f32.gmra.mrb[0].mxu0 %v2337
    %v2339 = vpop.f32.mrb[0].mxu0
    %v2340 = vadd.f32 %v2264, %v2339
    %v2341 = vpop.f32.mrb[0].mxu0
    %v2342 = vadd.f32 %v2266, %v2341
    %2343 = vdwg.mxu0
    %v2344 = vand.u32 %v2029, 4294901760
    %v2345 = vsub.f32 %v2029, %v2344
    %v2346 = vand.u32 %v2345, 4294901760
    %2347 = vmatprep.subr.mxu0 %v2346
    %v2348 = vand.u32 %v2027, 4294901760
    %v2349 = vsub.f32 %v2027, %v2348
    %v2350 = vand.u32 %v2349, 4294901760
    %2351 = vmatpush1.msra.mxu0 %v2350
    %2352 = vmatprep.subr.mxu0 0.0
    %2353 = vmatpush1.msra.mxu0 0.0
    %2354 = vmatprep.subr.mxu0 0.0
    %2355 = vmatpush1.msra.mxu0 0.0
    %2356 = vmatprep.subr.mxu0 0.0
    %2357 = vmatpush1.msra.mxu0 0.0
    %2358 = vmatprep.subr.mxu0 0.0
    %2359 = vmatpush1.msra.mxu0 0.0
    %2360 = vmatprep.subr.mxu0 0.0
    %2361 = vmatpush1.msra.mxu0 0.0
    %2362 = vmatprep.subr.mxu0 0.0
    %2363 = vmatpush1.msra.mxu0 0.0
    %2364 = vmatprep.subr.mxu0 0.0
    %2365 = vmatpush1.msra.mxu0 0.0
    %2366 = vmatprep.subr.mxu0 0.0
    %2367 = vmatpush1.msra.mxu0 0.0
    %2368 = vmatprep.subr.mxu0 0.0
    %2369 = vmatpush1.msra.mxu0 0.0
    %2370 = vmatprep.subr.mxu0 0.0
    %2371 = vmatpush1.msra.mxu0 0.0
    %2372 = vmatprep.subr.mxu0 0.0
    %2373 = vmatpush1.msra.mxu0 0.0
    %2374 = vmatprep.subr.mxu0 0.0
    %2375 = vmatpush1.msra.mxu0 0.0
    %2376 = vmatprep.subr.mxu0 0.0
    %2377 = vmatpush1.msra.mxu0 0.0
    %2378 = vmatprep.subr.mxu0 0.0
    %2379 = vmatpush1.msra.mxu0 0.0
    %2380 = vmatprep.subr.mxu0 0.0
    %2381 = vmatpush1.msra.mxu0 0.0
    %2382 = vmatprep.subr.mxu0 0.0
    %2383 = vmatpush1.msra.mxu0 0.0
    %2384 = vmatprep.subr.mxu0 0.0
    %2385 = vmatpush1.msra.mxu0 0.0
    %2386 = vmatprep.subr.mxu0 0.0
    %2387 = vmatpush1.msra.mxu0 0.0
    %2388 = vmatprep.subr.mxu0 0.0
    %2389 = vmatpush1.msra.mxu0 0.0
    %2390 = vmatprep.subr.mxu0 0.0
    %2391 = vmatpush1.msra.mxu0 0.0
    %2392 = vmatprep.subr.mxu0 0.0
    %2393 = vmatpush1.msra.mxu0 0.0
    %2394 = vmatprep.subr.mxu0 0.0
    %2395 = vmatpush1.msra.mxu0 0.0
    %2396 = vmatprep.subr.mxu0 0.0
    %2397 = vmatpush1.msra.mxu0 0.0
    %2398 = vmatprep.subr.mxu0 0.0
    %2399 = vmatpush1.msra.mxu0 0.0
    %2400 = vmatprep.subr.mxu0 0.0
    %2401 = vmatpush1.msra.mxu0 0.0
    %2402 = vmatprep.subr.mxu0 0.0
    %2403 = vmatpush1.msra.mxu0 0.0
    %2404 = vmatprep.subr.mxu0 0.0
    %2405 = vmatpush1.msra.mxu0 0.0
    %2406 = vmatprep.subr.mxu0 0.0
    %2407 = vmatpush1.msra.mxu0 0.0
    %2408 = vmatprep.subr.mxu0 0.0
    %2409 = vmatpush1.msra.mxu0 0.0
    %2410 = vmatprep.subr.mxu0 0.0
    %2411 = vmatpush1.msra.mxu0 0.0
    %2412 = vmatprep.subr.mxu0 0.0
    %2413 = vmatpush1.msra.mxu0 0.0
    %2414 = vmatprep.mubr.f32.mxu0 0.0
    %v2415 = vand.u32 %v2025, 4294901760
    %2416 = vmatmul.mubr.f32.gmra.mrb[0].mxu0 %v2415
    %v2417 = vpop.f32.mrb[0].mxu0
    %v2418 = vadd.f32 %v2340, %v2417
    %v2419 = vpop.f32.mrb[0].mxu0
    %v2420 = vadd.f32 %v2342, %v2419
    %2421 = vdwg.mxu0
    %v2422 = vand.u32 %v2029, 4294901760
    %2423 = vmatprep.subr.mxu0 %v2422
    %v2424 = vand.u32 %v2027, 4294901760
    %2425 = vmatpush1.msra.mxu0 %v2424
    %2426 = vmatprep.subr.mxu0 0.0
    %2427 = vmatpush1.msra.mxu0 0.0
    %2428 = vmatprep.subr.mxu0 0.0
    %2429 = vmatpush1.msra.mxu0 0.0
    %2430 = vmatprep.subr.mxu0 0.0
    %2431 = vmatpush1.msra.mxu0 0.0
    %2432 = vmatprep.subr.mxu0 0.0
    %2433 = vmatpush1.msra.mxu0 0.0
    %2434 = vmatprep.subr.mxu0 0.0
    %2435 = vmatpush1.msra.mxu0 0.0
    %2436 = vmatprep.subr.mxu0 0.0
    %2437 = vmatpush1.msra.mxu0 0.0
    %2438 = vmatprep.subr.mxu0 0.0
    %2439 = vmatpush1.msra.mxu0 0.0
    %2440 = vmatprep.subr.mxu0 0.0
    %2441 = vmatpush1.msra.mxu0 0.0
    %2442 = vmatprep.subr.mxu0 0.0
    %2443 = vmatpush1.msra.mxu0 0.0
    %2444 = vmatprep.subr.mxu0 0.0
    %2445 = vmatpush1.msra.mxu0 0.0
    %2446 = vmatprep.subr.mxu0 0.0
    %2447 = vmatpush1.msra.mxu0 0.0
    %2448 = vmatprep.subr.mxu0 0.0
    %2449 = vmatpush1.msra.mxu0 0.0
    %2450 = vmatprep.subr.mxu0 0.0
    %2451 = vmatpush1.msra.mxu0 0.0
    %2452 = vmatprep.subr.mxu0 0.0
    %2453 = vmatpush1.msra.mxu0 0.0
    %2454 = vmatprep.subr.mxu0 0.0
    %2455 = vmatpush1.msra.mxu0 0.0
    %2456 = vmatprep.subr.mxu0 0.0
    %2457 = vmatpush1.msra.mxu0 0.0
    %2458 = vmatprep.subr.mxu0 0.0
    %2459 = vmatpush1.msra.mxu0 0.0
    %2460 = vmatprep.subr.mxu0 0.0
    %2461 = vmatpush1.msra.mxu0 0.0
    %2462 = vmatprep.subr.mxu0 0.0
    %2463 = vmatpush1.msra.mxu0 0.0
    %2464 = vmatprep.subr.mxu0 0.0
    %2465 = vmatpush1.msra.mxu0 0.0
    %2466 = vmatprep.subr.mxu0 0.0
    %2467 = vmatpush1.msra.mxu0 0.0
    %2468 = vmatprep.subr.mxu0 0.0
    %2469 = vmatpush1.msra.mxu0 0.0
    %2470 = vmatprep.subr.mxu0 0.0
    %2471 = vmatpush1.msra.mxu0 0.0
    %2472 = vmatprep.subr.mxu0 0.0
    %2473 = vmatpush1.msra.mxu0 0.0
    %2474 = vmatprep.subr.mxu0 0.0
    %2475 = vmatpush1.msra.mxu0 0.0
    %2476 = vmatprep.subr.mxu0 0.0
    %2477 = vmatpush1.msra.mxu0 0.0
    %2478 = vmatprep.subr.mxu0 0.0
    %2479 = vmatpush1.msra.mxu0 0.0
    %2480 = vmatprep.subr.mxu0 0.0
    %2481 = vmatpush1.msra.mxu0 0.0
    %2482 = vmatprep.subr.mxu0 0.0
    %2483 = vmatpush1.msra.mxu0 0.0
    %2484 = vmatprep.subr.mxu0 0.0
    %2485 = vmatpush1.msra.mxu0 0.0
    %2486 = vmatprep.subr.mxu0 0.0
    %2487 = vmatpush1.msra.mxu0 0.0
    %2488 = vmatprep.mubr.f32.mxu0 0.0
    %v2489 = vand.u32 %v2025, 4294901760
    %2490 = vmatmul.mubr.f32.gmra.mrb[0].mxu0 %v2489
    %v2491 = vpop.f32.mrb[0].mxu0
    %v2492 = vadd.f32 %v2418, %v2491
    %v2493 = vpop.f32.mrb[0].mxu0
    %v2494 = vadd.f32 %v2420, %v2493
    %2495 = vdwg.mxu0
    %v2496 = vadd.f32 %v2012, %v2492
    %v2497 = vadd.f32 %v2013, %v2494
    %2498 = vrot.lane.b32.xlu0 %v57, 95
    %v2499 = vpop.permute.xlu0 %2498
    %2500 = vrot.lane.b32.xlu0 %v61, 95
    %v2501 = vpop.permute.xlu0 %2500
    %2502 = vrot.lane.b32.xlu0 %v58, 95
    %v2503 = vpop.permute.xlu0 %2502
    %vm2504 = vcmask 777216
    %v2505 = vsel %vm2504, %v2499, %v2501
    %v2506 = vsel %vm2504, %v2501, %v2503
    %v2509 = vsel %vm52, %v2505, 0.0
    %v2510 = vsel %vm53, %v2506, 0.0
    %v2511 = vld [vmem:[%s1 + $0x28] sm:$0xff]
    %v2513 = vsel %vm86, %v2511, 0
    %v2516 = vsel %vm90, %v2509, 0
    %v2519 = vsel %vm90, %v2510, 0
    %v2521 = vand.u32 %v2519, 4294901760
    %2522 = vmatprep.subr.mxu0 %v2521
    %v2523 = vand.u32 %v2516, 4294901760
    %2524 = vmatpush1.msra.mxu0 %v2523
    %2525 = vmatprep.subr.mxu0 0.0
    %2526 = vmatpush1.msra.mxu0 0.0
    %2527 = vmatprep.subr.mxu0 0.0
    %2528 = vmatpush1.msra.mxu0 0.0
    %2529 = vmatprep.subr.mxu0 0.0
    %2530 = vmatpush1.msra.mxu0 0.0
    %2531 = vmatprep.subr.mxu0 0.0
    %2532 = vmatpush1.msra.mxu0 0.0
    %2533 = vmatprep.subr.mxu0 0.0
    %2534 = vmatpush1.msra.mxu0 0.0
    %2535 = vmatprep.subr.mxu0 0.0
    %2536 = vmatpush1.msra.mxu0 0.0
    %2537 = vmatprep.subr.mxu0 0.0
    %2538 = vmatpush1.msra.mxu0 0.0
    %2539 = vmatprep.subr.mxu0 0.0
    %2540 = vmatpush1.msra.mxu0 0.0
    %2541 = vmatprep.subr.mxu0 0.0
    %2542 = vmatpush1.msra.mxu0 0.0
    %2543 = vmatprep.subr.mxu0 0.0
    %2544 = vmatpush1.msra.mxu0 0.0
    %2545 = vmatprep.subr.mxu0 0.0
    %2546 = vmatpush1.msra.mxu0 0.0
    %2547 = vmatprep.subr.mxu0 0.0
    %2548 = vmatpush1.msra.mxu0 0.0
    %2549 = vmatprep.subr.mxu0 0.0
    %2550 = vmatpush1.msra.mxu0 0.0
    %2551 = vmatprep.subr.mxu0 0.0
    %2552 = vmatpush1.msra.mxu0 0.0
    %2553 = vmatprep.subr.mxu0 0.0
    %2554 = vmatpush1.msra.mxu0 0.0
    %2555 = vmatprep.subr.mxu0 0.0
    %2556 = vmatpush1.msra.mxu0 0.0
    %2557 = vmatprep.subr.mxu0 0.0
    %2558 = vmatpush1.msra.mxu0 0.0
    %2559 = vmatprep.subr.mxu0 0.0
    %2560 = vmatpush1.msra.mxu0 0.0
    %2561 = vmatprep.subr.mxu0 0.0
    %2562 = vmatpush1.msra.mxu0 0.0
    %2563 = vmatprep.subr.mxu0 0.0
    %2564 = vmatpush1.msra.mxu0 0.0
    %2565 = vmatprep.subr.mxu0 0.0
    %2566 = vmatpush1.msra.mxu0 0.0
    %2567 = vmatprep.subr.mxu0 0.0
    %2568 = vmatpush1.msra.mxu0 0.0
    %2569 = vmatprep.subr.mxu0 0.0
    %2570 = vmatpush1.msra.mxu0 0.0
    %2571 = vmatprep.subr.mxu0 0.0
    %2572 = vmatpush1.msra.mxu0 0.0
    %2573 = vmatprep.subr.mxu0 0.0
    %2574 = vmatpush1.msra.mxu0 0.0
    %2575 = vmatprep.subr.mxu0 0.0
    %2576 = vmatpush1.msra.mxu0 0.0
    %2577 = vmatprep.subr.mxu0 0.0
    %2578 = vmatpush1.msra.mxu0 0.0
    %2579 = vmatprep.subr.mxu0 0.0
    %2580 = vmatpush1.msra.mxu0 0.0
    %2581 = vmatprep.subr.mxu0 0.0
    %2582 = vmatpush1.msra.mxu0 0.0
    %2583 = vmatprep.subr.mxu0 0.0
    %2584 = vmatpush1.msra.mxu0 0.0
    %2585 = vmatprep.subr.mxu0 0.0
    %2586 = vmatpush1.msra.mxu0 0.0
    %2587 = vmatprep.mubr.f32.mxu0 0.0
    %v2588 = vand.u32 %v2513, 4294901760
    %v2589 = vsub.f32 %v2513, %v2588
    %v2590 = vand.u32 %v2589, 4294901760
    %v2591 = vsub.f32 %v2589, %v2590
    %v2592 = vand.u32 %v2591, 4294901760
    %2593 = vmatmul.mubr.f32.gmra.mrb[0].mxu0 %v2592
    %v2594 = vpop.f32.mrb[0].mxu0
    %v2595 = vadd.f32 0.0, %v2594
    %v2596 = vpop.f32.mrb[0].mxu0
    %v2597 = vadd.f32 0.0, %v2596
    %2598 = vdwg.mxu0
    %v2599 = vand.u32 %v2519, 4294901760
    %v2600 = vsub.f32 %v2519, %v2599
    %v2601 = vand.u32 %v2600, 4294901760
    %v2602 = vsub.f32 %v2600, %v2601
    %v2603 = vand.u32 %v2602, 4294901760
    %2604 = vmatprep.subr.mxu0 %v2603
    %v2605 = vand.u32 %v2516, 4294901760
    %v2606 = vsub.f32 %v2516, %v2605
    %v2607 = vand.u32 %v2606, 4294901760
    %v2608 = vsub.f32 %v2606, %v2607
    %v2609 = vand.u32 %v2608, 4294901760
    %2610 = vmatpush1.msra.mxu0 %v2609
    %2611 = vmatprep.subr.mxu0 0.0
    %2612 = vmatpush1.msra.mxu0 0.0
    %2613 = vmatprep.subr.mxu0 0.0
    %2614 = vmatpush1.msra.mxu0 0.0
    %2615 = vmatprep.subr.mxu0 0.0
    %2616 = vmatpush1.msra.mxu0 0.0
    %2617 = vmatprep.subr.mxu0 0.0
    %2618 = vmatpush1.msra.mxu0 0.0
    %2619 = vmatprep.subr.mxu0 0.0
    %2620 = vmatpush1.msra.mxu0 0.0
    %2621 = vmatprep.subr.mxu0 0.0
    %2622 = vmatpush1.msra.mxu0 0.0
    %2623 = vmatprep.subr.mxu0 0.0
    %2624 = vmatpush1.msra.mxu0 0.0
    %2625 = vmatprep.subr.mxu0 0.0
    %2626 = vmatpush1.msra.mxu0 0.0
    %2627 = vmatprep.subr.mxu0 0.0
    %2628 = vmatpush1.msra.mxu0 0.0
    %2629 = vmatprep.subr.mxu0 0.0
    %2630 = vmatpush1.msra.mxu0 0.0
    %2631 = vmatprep.subr.mxu0 0.0
    %2632 = vmatpush1.msra.mxu0 0.0
    %2633 = vmatprep.subr.mxu0 0.0
    %2634 = vmatpush1.msra.mxu0 0.0
    %2635 = vmatprep.subr.mxu0 0.0
    %2636 = vmatpush1.msra.mxu0 0.0
    %2637 = vmatprep.subr.mxu0 0.0
    %2638 = vmatpush1.msra.mxu0 0.0
    %2639 = vmatprep.subr.mxu0 0.0
    %2640 = vmatpush1.msra.mxu0 0.0
    %2641 = vmatprep.subr.mxu0 0.0
    %2642 = vmatpush1.msra.mxu0 0.0
    %2643 = vmatprep.subr.mxu0 0.0
    %2644 = vmatpush1.msra.mxu0 0.0
    %2645 = vmatprep.subr.mxu0 0.0
    %2646 = vmatpush1.msra.mxu0 0.0
    %2647 = vmatprep.subr.mxu0 0.0
    %2648 = vmatpush1.msra.mxu0 0.0
    %2649 = vmatprep.subr.mxu0 0.0
    %2650 = vmatpush1.msra.mxu0 0.0
    %2651 = vmatprep.subr.mxu0 0.0
    %2652 = vmatpush1.msra.mxu0 0.0
    %2653 = vmatprep.subr.mxu0 0.0
    %2654 = vmatpush1.msra.mxu0 0.0
    %2655 = vmatprep.subr.mxu0 0.0
    %2656 = vmatpush1.msra.mxu0 0.0
    %2657 = vmatprep.subr.mxu0 0.0
    %2658 = vmatpush1.msra.mxu0 0.0
    %2659 = vmatprep.subr.mxu0 0.0
    %2660 = vmatpush1.msra.mxu0 0.0
    %2661 = vmatprep.subr.mxu0 0.0
    %2662 = vmatpush1.msra.mxu0 0.0
    %2663 = vmatprep.subr.mxu0 0.0
    %2664 = vmatpush1.msra.mxu0 0.0
    %2665 = vmatprep.subr.mxu0 0.0
    %2666 = vmatpush1.msra.mxu0 0.0
    %2667 = vmatprep.subr.mxu0 0.0
    %2668 = vmatpush1.msra.mxu0 0.0
    %2669 = vmatprep.subr.mxu0 0.0
    %2670 = vmatpush1.msra.mxu0 0.0
    %2671 = vmatprep.subr.mxu0 0.0
    %2672 = vmatpush1.msra.mxu0 0.0
    %2673 = vmatprep.mubr.f32.mxu0 0.0
    %v2674 = vand.u32 %v2513, 4294901760
    %2675 = vmatmul.mubr.f32.gmra.mrb[0].mxu0 %v2674
    %v2676 = vpop.f32.mrb[0].mxu0
    %v2677 = vadd.f32 %v2595, %v2676
    %v2678 = vpop.f32.mrb[0].mxu0
    %v2679 = vadd.f32 %v2597, %v2678
    %2680 = vdwg.mxu0
    %v2681 = vand.u32 %v2519, 4294901760
    %v2682 = vsub.f32 %v2519, %v2681
    %2683 = vmatprep.subr.mxu0 %v2682
    %v2684 = vand.u32 %v2516, 4294901760
    %v2685 = vsub.f32 %v2516, %v2684
    %2686 = vmatpush1.msra.mxu0 %v2685
    %2687 = vmatprep.subr.mxu0 0.0
    %2688 = vmatpush1.msra.mxu0 0.0
    %2689 = vmatprep.subr.mxu0 0.0
    %2690 = vmatpush1.msra.mxu0 0.0
    %2691 = vmatprep.subr.mxu0 0.0
    %2692 = vmatpush1.msra.mxu0 0.0
    %2693 = vmatprep.subr.mxu0 0.0
    %2694 = vmatpush1.msra.mxu0 0.0
    %2695 = vmatprep.subr.mxu0 0.0
    %2696 = vmatpush1.msra.mxu0 0.0
    %2697 = vmatprep.subr.mxu0 0.0
    %2698 = vmatpush1.msra.mxu0 0.0
    %2699 = vmatprep.subr.mxu0 0.0
    %2700 = vmatpush1.msra.mxu0 0.0
    %2701 = vmatprep.subr.mxu0 0.0
    %2702 = vmatpush1.msra.mxu0 0.0
    %2703 = vmatprep.subr.mxu0 0.0
    %2704 = vmatpush1.msra.mxu0 0.0
    %2705 = vmatprep.subr.mxu0 0.0
    %2706 = vmatpush1.msra.mxu0 0.0
    %2707 = vmatprep.subr.mxu0 0.0
    %2708 = vmatpush1.msra.mxu0 0.0
    %2709 = vmatprep.subr.mxu0 0.0
    %2710 = vmatpush1.msra.mxu0 0.0
    %2711 = vmatprep.subr.mxu0 0.0
    %2712 = vmatpush1.msra.mxu0 0.0
    %2713 = vmatprep.subr.mxu0 0.0
    %2714 = vmatpush1.msra.mxu0 0.0
    %2715 = vmatprep.subr.mxu0 0.0
    %2716 = vmatpush1.msra.mxu0 0.0
    %2717 = vmatprep.subr.mxu0 0.0
    %2718 = vmatpush1.msra.mxu0 0.0
    %2719 = vmatprep.subr.mxu0 0.0
    %2720 = vmatpush1.msra.mxu0 0.0
    %2721 = vmatprep.subr.mxu0 0.0
    %2722 = vmatpush1.msra.mxu0 0.0
    %2723 = vmatprep.subr.mxu0 0.0
    %2724 = vmatpush1.msra.mxu0 0.0
    %2725 = vmatprep.subr.mxu0 0.0
    %2726 = vmatpush1.msra.mxu0 0.0
    %2727 = vmatprep.subr.mxu0 0.0
    %2728 = vmatpush1.msra.mxu0 0.0
    %2729 = vmatprep.subr.mxu0 0.0
    %2730 = vmatpush1.msra.mxu0 0.0
    %2731 = vmatprep.subr.mxu0 0.0
    %2732 = vmatpush1.msra.mxu0 0.0
    %2733 = vmatprep.subr.mxu0 0.0
    %2734 = vmatpush1.msra.mxu0 0.0
    %2735 = vmatprep.subr.mxu0 0.0
    %2736 = vmatpush1.msra.mxu0 0.0
    %2737 = vmatprep.subr.mxu0 0.0
    %2738 = vmatpush1.msra.mxu0 0.0
    %2739 = vmatprep.subr.mxu0 0.0
    %2740 = vmatpush1.msra.mxu0 0.0
    %2741 = vmatprep.subr.mxu0 0.0
    %2742 = vmatpush1.msra.mxu0 0.0
    %2743 = vmatprep.subr.mxu0 0.0
    %2744 = vmatpush1.msra.mxu0 0.0
    %2745 = vmatprep.subr.mxu0 0.0
    %2746 = vmatpush1.msra.mxu0 0.0
    %2747 = vmatprep.subr.mxu0 0.0
    %2748 = vmatpush1.msra.mxu0 0.0
    %2749 = vmatprep.mubr.f32.mxu0 0.0
    %v2750 = vand.u32 %v2513, 4294901760
    %v2751 = vsub.f32 %v2513, %v2750
    %2752 = vmatmul.mubr.f32.gmra.mrb[0].mxu0 %v2751
    %v2753 = vpop.f32.mrb[0].mxu0
    %v2754 = vadd.f32 %v2677, %v2753
    %v2755 = vpop.f32.mrb[0].mxu0
    %v2756 = vadd.f32 %v2679, %v2755
    %2757 = vdwg.mxu0
    %v2758 = vand.u32 %v2519, 4294901760
    %2759 = vmatprep.subr.mxu0 %v2758
    %v2760 = vand.u32 %v2516, 4294901760
    %2761 = vmatpush1.msra.mxu0 %v2760
    %2762 = vmatprep.subr.mxu0 0.0
    %2763 = vmatpush1.msra.mxu0 0.0
    %2764 = vmatprep.subr.mxu0 0.0
    %2765 = vmatpush1.msra.mxu0 0.0
    %2766 = vmatprep.subr.mxu0 0.0
    %2767 = vmatpush1.msra.mxu0 0.0
    %2768 = vmatprep.subr.mxu0 0.0
    %2769 = vmatpush1.msra.mxu0 0.0
    %2770 = vmatprep.subr.mxu0 0.0
    %2771 = vmatpush1.msra.mxu0 0.0
    %2772 = vmatprep.subr.mxu0 0.0
    %2773 = vmatpush1.msra.mxu0 0.0
    %2774 = vmatprep.subr.mxu0 0.0
    %2775 = vmatpush1.msra.mxu0 0.0
    %2776 = vmatprep.subr.mxu0 0.0
    %2777 = vmatpush1.msra.mxu0 0.0
    %2778 = vmatprep.subr.mxu0 0.0
    %2779 = vmatpush1.msra.mxu0 0.0
    %2780 = vmatprep.subr.mxu0 0.0
    %2781 = vmatpush1.msra.mxu0 0.0
    %2782 = vmatprep.subr.mxu0 0.0
    %2783 = vmatpush1.msra.mxu0 0.0
    %2784 = vmatprep.subr.mxu0 0.0
    %2785 = vmatpush1.msra.mxu0 0.0
    %2786 = vmatprep.subr.mxu0 0.0
    %2787 = vmatpush1.msra.mxu0 0.0
    %2788 = vmatprep.subr.mxu0 0.0
    %2789 = vmatpush1.msra.mxu0 0.0
    %2790 = vmatprep.subr.mxu0 0.0
    %2791 = vmatpush1.msra.mxu0 0.0
    %2792 = vmatprep.subr.mxu0 0.0
    %2793 = vmatpush1.msra.mxu0 0.0
    %2794 = vmatprep.subr.mxu0 0.0
    %2795 = vmatpush1.msra.mxu0 0.0
    %2796 = vmatprep.subr.mxu0 0.0
    %2797 = vmatpush1.msra.mxu0 0.0
    %2798 = vmatprep.subr.mxu0 0.0
    %2799 = vmatpush1.msra.mxu0 0.0
    %2800 = vmatprep.subr.mxu0 0.0
    %2801 = vmatpush1.msra.mxu0 0.0
    %2802 = vmatprep.subr.mxu0 0.0
    %2803 = vmatpush1.msra.mxu0 0.0
    %2804 = vmatprep.subr.mxu0 0.0
    %2805 = vmatpush1.msra.mxu0 0.0
    %2806 = vmatprep.subr.mxu0 0.0
    %2807 = vmatpush1.msra.mxu0 0.0
    %2808 = vmatprep.subr.mxu0 0.0
    %2809 = vmatpush1.msra.mxu0 0.0
    %2810 = vmatprep.subr.mxu0 0.0
    %2811 = vmatpush1.msra.mxu0 0.0
    %2812 = vmatprep.subr.mxu0 0.0
    %2813 = vmatpush1.msra.mxu0 0.0
    %2814 = vmatprep.subr.mxu0 0.0
    %2815 = vmatpush1.msra.mxu0 0.0
    %2816 = vmatprep.subr.mxu0 0.0
    %2817 = vmatpush1.msra.mxu0 0.0
    %2818 = vmatprep.subr.mxu0 0.0
    %2819 = vmatpush1.msra.mxu0 0.0
    %2820 = vmatprep.subr.mxu0 0.0
    %2821 = vmatpush1.msra.mxu0 0.0
    %2822 = vmatprep.subr.mxu0 0.0
    %2823 = vmatpush1.msra.mxu0 0.0
    %2824 = vmatprep.mubr.f32.mxu0 0.0
    %v2825 = vand.u32 %v2513, 4294901760
    %v2826 = vsub.f32 %v2513, %v2825
    %v2827 = vand.u32 %v2826, 4294901760
    %2828 = vmatmul.mubr.f32.gmra.mrb[0].mxu0 %v2827
    %v2829 = vpop.f32.mrb[0].mxu0
    %v2830 = vadd.f32 %v2754, %v2829
    %v2831 = vpop.f32.mrb[0].mxu0
    %v2832 = vadd.f32 %v2756, %v2831
    %2833 = vdwg.mxu0
    %v2834 = vand.u32 %v2519, 4294901760
    %v2835 = vsub.f32 %v2519, %v2834
    %v2836 = vand.u32 %v2835, 4294901760
    %2837 = vmatprep.subr.mxu0 %v2836
    %v2838 = vand.u32 %v2516, 4294901760
    %v2839 = vsub.f32 %v2516, %v2838
    %v2840 = vand.u32 %v2839, 4294901760
    %2841 = vmatpush1.msra.mxu0 %v2840
    %2842 = vmatprep.subr.mxu0 0.0
    %2843 = vmatpush1.msra.mxu0 0.0
    %2844 = vmatprep.subr.mxu0 0.0
    %2845 = vmatpush1.msra.mxu0 0.0
    %2846 = vmatprep.subr.mxu0 0.0
    %2847 = vmatpush1.msra.mxu0 0.0
    %2848 = vmatprep.subr.mxu0 0.0
    %2849 = vmatpush1.msra.mxu0 0.0
    %2850 = vmatprep.subr.mxu0 0.0
    %2851 = vmatpush1.msra.mxu0 0.0
    %2852 = vmatprep.subr.mxu0 0.0
    %2853 = vmatpush1.msra.mxu0 0.0
    %2854 = vmatprep.subr.mxu0 0.0
    %2855 = vmatpush1.msra.mxu0 0.0
    %2856 = vmatprep.subr.mxu0 0.0
    %2857 = vmatpush1.msra.mxu0 0.0
    %2858 = vmatprep.subr.mxu0 0.0
    %2859 = vmatpush1.msra.mxu0 0.0
    %2860 = vmatprep.subr.mxu0 0.0
    %2861 = vmatpush1.msra.mxu0 0.0
    %2862 = vmatprep.subr.mxu0 0.0
    %2863 = vmatpush1.msra.mxu0 0.0
    %2864 = vmatprep.subr.mxu0 0.0
    %2865 = vmatpush1.msra.mxu0 0.0
    %2866 = vmatprep.subr.mxu0 0.0
    %2867 = vmatpush1.msra.mxu0 0.0
    %2868 = vmatprep.subr.mxu0 0.0
    %2869 = vmatpush1.msra.mxu0 0.0
    %2870 = vmatprep.subr.mxu0 0.0
    %2871 = vmatpush1.msra.mxu0 0.0
    %2872 = vmatprep.subr.mxu0 0.0
    %2873 = vmatpush1.msra.mxu0 0.0
    %2874 = vmatprep.subr.mxu0 0.0
    %2875 = vmatpush1.msra.mxu0 0.0
    %2876 = vmatprep.subr.mxu0 0.0
    %2877 = vmatpush1.msra.mxu0 0.0
    %2878 = vmatprep.subr.mxu0 0.0
    %2879 = vmatpush1.msra.mxu0 0.0
    %2880 = vmatprep.subr.mxu0 0.0
    %2881 = vmatpush1.msra.mxu0 0.0
    %2882 = vmatprep.subr.mxu0 0.0
    %2883 = vmatpush1.msra.mxu0 0.0
    %2884 = vmatprep.subr.mxu0 0.0
    %2885 = vmatpush1.msra.mxu0 0.0
    %2886 = vmatprep.subr.mxu0 0.0
    %2887 = vmatpush1.msra.mxu0 0.0
    %2888 = vmatprep.subr.mxu0 0.0
    %2889 = vmatpush1.msra.mxu0 0.0
    %2890 = vmatprep.subr.mxu0 0.0
    %2891 = vmatpush1.msra.mxu0 0.0
    %2892 = vmatprep.subr.mxu0 0.0
    %2893 = vmatpush1.msra.mxu0 0.0
    %2894 = vmatprep.subr.mxu0 0.0
    %2895 = vmatpush1.msra.mxu0 0.0
    %2896 = vmatprep.subr.mxu0 0.0
    %2897 = vmatpush1.msra.mxu0 0.0
    %2898 = vmatprep.subr.mxu0 0.0
    %2899 = vmatpush1.msra.mxu0 0.0
    %2900 = vmatprep.subr.mxu0 0.0
    %2901 = vmatpush1.msra.mxu0 0.0
    %2902 = vmatprep.subr.mxu0 0.0
    %2903 = vmatpush1.msra.mxu0 0.0
    %2904 = vmatprep.mubr.f32.mxu0 0.0
    %v2905 = vand.u32 %v2513, 4294901760
    %2906 = vmatmul.mubr.f32.gmra.mrb[0].mxu0 %v2905
    %v2907 = vpop.f32.mrb[0].mxu0
    %v2908 = vadd.f32 %v2830, %v2907
    %v2909 = vpop.f32.mrb[0].mxu0
    %v2910 = vadd.f32 %v2832, %v2909
    %2911 = vdwg.mxu0
    %v2912 = vand.u32 %v2519, 4294901760
    %2913 = vmatprep.subr.mxu0 %v2912
    %v2914 = vand.u32 %v2516, 4294901760
    %2915 = vmatpush1.msra.mxu0 %v2914
    %2916 = vmatprep.subr.mxu0 0.0
    %2917 = vmatpush1.msra.mxu0 0.0
    %2918 = vmatprep.subr.mxu0 0.0
    %2919 = vmatpush1.msra.mxu0 0.0
    %2920 = vmatprep.subr.mxu0 0.0
    %2921 = vmatpush1.msra.mxu0 0.0
    %2922 = vmatprep.subr.mxu0 0.0
    %2923 = vmatpush1.msra.mxu0 0.0
    %2924 = vmatprep.subr.mxu0 0.0
    %2925 = vmatpush1.msra.mxu0 0.0
    %2926 = vmatprep.subr.mxu0 0.0
    %2927 = vmatpush1.msra.mxu0 0.0
    %2928 = vmatprep.subr.mxu0 0.0
    %2929 = vmatpush1.msra.mxu0 0.0
    %2930 = vmatprep.subr.mxu0 0.0
    %2931 = vmatpush1.msra.mxu0 0.0
    %2932 = vmatprep.subr.mxu0 0.0
    %2933 = vmatpush1.msra.mxu0 0.0
    %2934 = vmatprep.subr.mxu0 0.0
    %2935 = vmatpush1.msra.mxu0 0.0
    %2936 = vmatprep.subr.mxu0 0.0
    %2937 = vmatpush1.msra.mxu0 0.0
    %2938 = vmatprep.subr.mxu0 0.0
    %2939 = vmatpush1.msra.mxu0 0.0
    %2940 = vmatprep.subr.mxu0 0.0
    %2941 = vmatpush1.msra.mxu0 0.0
    %2942 = vmatprep.subr.mxu0 0.0
    %2943 = vmatpush1.msra.mxu0 0.0
    %2944 = vmatprep.subr.mxu0 0.0
    %2945 = vmatpush1.msra.mxu0 0.0
    %2946 = vmatprep.subr.mxu0 0.0
    %2947 = vmatpush1.msra.mxu0 0.0
    %2948 = vmatprep.subr.mxu0 0.0
    %2949 = vmatpush1.msra.mxu0 0.0
    %2950 = vmatprep.subr.mxu0 0.0
    %2951 = vmatpush1.msra.mxu0 0.0
    %2952 = vmatprep.subr.mxu0 0.0
    %2953 = vmatpush1.msra.mxu0 0.0
    %2954 = vmatprep.subr.mxu0 0.0
    %2955 = vmatpush1.msra.mxu0 0.0
    %2956 = vmatprep.subr.mxu0 0.0
    %2957 = vmatpush1.msra.mxu0 0.0
    %2958 = vmatprep.subr.mxu0 0.0
    %2959 = vmatpush1.msra.mxu0 0.0
    %2960 = vmatprep.subr.mxu0 0.0
    %2961 = vmatpush1.msra.mxu0 0.0
    %2962 = vmatprep.subr.mxu0 0.0
    %2963 = vmatpush1.msra.mxu0 0.0
    %2964 = vmatprep.subr.mxu0 0.0
    %2965 = vmatpush1.msra.mxu0 0.0
    %2966 = vmatprep.subr.mxu0 0.0
    %2967 = vmatpush1.msra.mxu0 0.0
    %2968 = vmatprep.subr.mxu0 0.0
    %2969 = vmatpush1.msra.mxu0 0.0
    %2970 = vmatprep.subr.mxu0 0.0
    %2971 = vmatpush1.msra.mxu0 0.0
    %2972 = vmatprep.subr.mxu0 0.0
    %2973 = vmatpush1.msra.mxu0 0.0
    %2974 = vmatprep.subr.mxu0 0.0
    %2975 = vmatpush1.msra.mxu0 0.0
    %2976 = vmatprep.subr.mxu0 0.0
    %2977 = vmatpush1.msra.mxu0 0.0
    %2978 = vmatprep.mubr.f32.mxu0 0.0
    %v2979 = vand.u32 %v2513, 4294901760
    %2980 = vmatmul.mubr.f32.gmra.mrb[0].mxu0 %v2979
    %v2981 = vpop.f32.mrb[0].mxu0
    %v2982 = vadd.f32 %v2908, %v2981
    %v2983 = vpop.f32.mrb[0].mxu0
    %v2984 = vadd.f32 %v2910, %v2983
    %2985 = vdwg.mxu0
    %v2986 = vadd.f32 %v2496, %v2982
    %v2987 = vadd.f32 %v2497, %v2984
    %2988 = vrot.lane.b32.xlu0 %v57, 81
    %v2989 = vpop.permute.xlu0 %2988
    %2990 = vrot.lane.b32.xlu0 %v61, 81
    %v2991 = vpop.permute.xlu0 %2990
    %2992 = vrot.lane.b32.xlu0 %v58, 81
    %v2993 = vpop.permute.xlu0 %2992
    %vm2994 = vcmask 662528
    %v2995 = vsel %vm2994, %v2989, %v2991
    %v2996 = vsel %vm2994, %v2991, %v2993
    %v2999 = vsel %vm50, %v2995, 0.0
    %v3000 = vsel %vm51, %v2996, 0.0
    %v3001 = vld [vmem:[%s1 + $0x30] sm:$0xff]
    %v3003 = vsel %vm86, %v3001, 0
    %v3006 = vsel %vm90, %v2999, 0
    %v3009 = vsel %vm90, %v3000, 0
    %v3011 = vand.u32 %v3009, 4294901760
    %3012 = vmatprep.subr.mxu0 %v3011
    %v3013 = vand.u32 %v3006, 4294901760
    %3014 = vmatpush1.msra.mxu0 %v3013
    %3015 = vmatprep.subr.mxu0 0.0
    %3016 = vmatpush1.msra.mxu0 0.0
    %3017 = vmatprep.subr.mxu0 0.0
    %3018 = vmatpush1.msra.mxu0 0.0
    %3019 = vmatprep.subr.mxu0 0.0
    %3020 = vmatpush1.msra.mxu0 0.0
    %3021 = vmatprep.subr.mxu0 0.0
    %3022 = vmatpush1.msra.mxu0 0.0
    %3023 = vmatprep.subr.mxu0 0.0
    %3024 = vmatpush1.msra.mxu0 0.0
    %3025 = vmatprep.subr.mxu0 0.0
    %3026 = vmatpush1.msra.mxu0 0.0
    %3027 = vmatprep.subr.mxu0 0.0
    %3028 = vmatpush1.msra.mxu0 0.0
    %3029 = vmatprep.subr.mxu0 0.0
    %3030 = vmatpush1.msra.mxu0 0.0
    %3031 = vmatprep.subr.mxu0 0.0
    %3032 = vmatpush1.msra.mxu0 0.0
    %3033 = vmatprep.subr.mxu0 0.0
    %3034 = vmatpush1.msra.mxu0 0.0
    %3035 = vmatprep.subr.mxu0 0.0
    %3036 = vmatpush1.msra.mxu0 0.0
    %3037 = vmatprep.subr.mxu0 0.0
    %3038 = vmatpush1.msra.mxu0 0.0
    %3039 = vmatprep.subr.mxu0 0.0
    %3040 = vmatpush1.msra.mxu0 0.0
    %3041 = vmatprep.subr.mxu0 0.0
    %3042 = vmatpush1.msra.mxu0 0.0
    %3043 = vmatprep.subr.mxu0 0.0
    %3044 = vmatpush1.msra.mxu0 0.0
    %3045 = vmatprep.subr.mxu0 0.0
    %3046 = vmatpush1.msra.mxu0 0.0
    %3047 = vmatprep.subr.mxu0 0.0
    %3048 = vmatpush1.msra.mxu0 0.0
    %3049 = vmatprep.subr.mxu0 0.0
    %3050 = vmatpush1.msra.mxu0 0.0
    %3051 = vmatprep.subr.mxu0 0.0
    %3052 = vmatpush1.msra.mxu0 0.0
    %3053 = vmatprep.subr.mxu0 0.0
    %3054 = vmatpush1.msra.mxu0 0.0
    %3055 = vmatprep.subr.mxu0 0.0
    %3056 = vmatpush1.msra.mxu0 0.0
    %3057 = vmatprep.subr.mxu0 0.0
    %3058 = vmatpush1.msra.mxu0 0.0
    %3059 = vmatprep.subr.mxu0 0.0
    %3060 = vmatpush1.msra.mxu0 0.0
    %3061 = vmatprep.subr.mxu0 0.0
    %3062 = vmatpush1.msra.mxu0 0.0
    %3063 = vmatprep.subr.mxu0 0.0
    %3064 = vmatpush1.msra.mxu0 0.0
    %3065 = vmatprep.subr.mxu0 0.0
    %3066 = vmatpush1.msra.mxu0 0.0
    %3067 = vmatprep.subr.mxu0 0.0
    %3068 = vmatpush1.msra.mxu0 0.0
    %3069 = vmatprep.subr.mxu0 0.0
    %3070 = vmatpush1.msra.mxu0 0.0
    %3071 = vmatprep.subr.mxu0 0.0
    %3072 = vmatpush1.msra.mxu0 0.0
    %3073 = vmatprep.subr.mxu0 0.0
    %3074 = vmatpush1.msra.mxu0 0.0
    %3075 = vmatprep.subr.mxu0 0.0
    %3076 = vmatpush1.msra.mxu0 0.0
    %3077 = vmatprep.mubr.f32.mxu0 0.0
    %v3078 = vand.u32 %v3003, 4294901760
    %v3079 = vsub.f32 %v3003, %v3078
    %v3080 = vand.u32 %v3079, 4294901760
    %v3081 = vsub.f32 %v3079, %v3080
    %v3082 = vand.u32 %v3081, 4294901760
    %3083 = vmatmul.mubr.f32.gmra.mrb[0].mxu0 %v3082
    %v3084 = vpop.f32.mrb[0].mxu0
    %v3085 = vadd.f32 0.0, %v3084
    %v3086 = vpop.f32.mrb[0].mxu0
    %v3087 = vadd.f32 0.0, %v3086
    %3088 = vdwg.mxu0
    %v3089 = vand.u32 %v3009, 4294901760
    %v3090 = vsub.f32 %v3009, %v3089
    %v3091 = vand.u32 %v3090, 4294901760
    %v3092 = vsub.f32 %v3090, %v3091
    %v3093 = vand.u32 %v3092, 4294901760
    %3094 = vmatprep.subr.mxu0 %v3093
    %v3095 = vand.u32 %v3006, 4294901760
    %v3096 = vsub.f32 %v3006, %v3095
    %v3097 = vand.u32 %v3096, 4294901760
    %v3098 = vsub.f32 %v3096, %v3097
    %v3099 = vand.u32 %v3098, 4294901760
    %3100 = vmatpush1.msra.mxu0 %v3099
    %3101 = vmatprep.subr.mxu0 0.0
    %3102 = vmatpush1.msra.mxu0 0.0
    %3103 = vmatprep.subr.mxu0 0.0
    %3104 = vmatpush1.msra.mxu0 0.0
    %3105 = vmatprep.subr.mxu0 0.0
    %3106 = vmatpush1.msra.mxu0 0.0
    %3107 = vmatprep.subr.mxu0 0.0
    %3108 = vmatpush1.msra.mxu0 0.0
    %3109 = vmatprep.subr.mxu0 0.0
    %3110 = vmatpush1.msra.mxu0 0.0
    %3111 = vmatprep.subr.mxu0 0.0
    %3112 = vmatpush1.msra.mxu0 0.0
    %3113 = vmatprep.subr.mxu0 0.0
    %3114 = vmatpush1.msra.mxu0 0.0
    %3115 = vmatprep.subr.mxu0 0.0
    %3116 = vmatpush1.msra.mxu0 0.0
    %3117 = vmatprep.subr.mxu0 0.0
    %3118 = vmatpush1.msra.mxu0 0.0
    %3119 = vmatprep.subr.mxu0 0.0
    %3120 = vmatpush1.msra.mxu0 0.0
    %3121 = vmatprep.subr.mxu0 0.0
    %3122 = vmatpush1.msra.mxu0 0.0
    %3123 = vmatprep.subr.mxu0 0.0
    %3124 = vmatpush1.msra.mxu0 0.0
    %3125 = vmatprep.subr.mxu0 0.0
    %3126 = vmatpush1.msra.mxu0 0.0
    %3127 = vmatprep.subr.mxu0 0.0
    %3128 = vmatpush1.msra.mxu0 0.0
    %3129 = vmatprep.subr.mxu0 0.0
    %3130 = vmatpush1.msra.mxu0 0.0
    %3131 = vmatprep.subr.mxu0 0.0
    %3132 = vmatpush1.msra.mxu0 0.0
    %3133 = vmatprep.subr.mxu0 0.0
    %3134 = vmatpush1.msra.mxu0 0.0
    %3135 = vmatprep.subr.mxu0 0.0
    %3136 = vmatpush1.msra.mxu0 0.0
    %3137 = vmatprep.subr.mxu0 0.0
    %3138 = vmatpush1.msra.mxu0 0.0
    %3139 = vmatprep.subr.mxu0 0.0
    %3140 = vmatpush1.msra.mxu0 0.0
    %3141 = vmatprep.subr.mxu0 0.0
    %3142 = vmatpush1.msra.mxu0 0.0
    %3143 = vmatprep.subr.mxu0 0.0
    %3144 = vmatpush1.msra.mxu0 0.0
    %3145 = vmatprep.subr.mxu0 0.0
    %3146 = vmatpush1.msra.mxu0 0.0
    %3147 = vmatprep.subr.mxu0 0.0
    %3148 = vmatpush1.msra.mxu0 0.0
    %3149 = vmatprep.subr.mxu0 0.0
    %3150 = vmatpush1.msra.mxu0 0.0
    %3151 = vmatprep.subr.mxu0 0.0
    %3152 = vmatpush1.msra.mxu0 0.0
    %3153 = vmatprep.subr.mxu0 0.0
    %3154 = vmatpush1.msra.mxu0 0.0
    %3155 = vmatprep.subr.mxu0 0.0
    %3156 = vmatpush1.msra.mxu0 0.0
    %3157 = vmatprep.subr.mxu0 0.0
    %3158 = vmatpush1.msra.mxu0 0.0
    %3159 = vmatprep.subr.mxu0 0.0
    %3160 = vmatpush1.msra.mxu0 0.0
    %3161 = vmatprep.subr.mxu0 0.0
    %3162 = vmatpush1.msra.mxu0 0.0
    %3163 = vmatprep.mubr.f32.mxu0 0.0
    %v3164 = vand.u32 %v3003, 4294901760
    %3165 = vmatmul.mubr.f32.gmra.mrb[0].mxu0 %v3164
    %v3166 = vpop.f32.mrb[0].mxu0
    %v3167 = vadd.f32 %v3085, %v3166
    %v3168 = vpop.f32.mrb[0].mxu0
    %v3169 = vadd.f32 %v3087, %v3168
    %3170 = vdwg.mxu0
    %v3171 = vand.u32 %v3009, 4294901760
    %v3172 = vsub.f32 %v3009, %v3171
    %3173 = vmatprep.subr.mxu0 %v3172
    %v3174 = vand.u32 %v3006, 4294901760
    %v3175 = vsub.f32 %v3006, %v3174
    %3176 = vmatpush1.msra.mxu0 %v3175
    %3177 = vmatprep.subr.mxu0 0.0
    %3178 = vmatpush1.msra.mxu0 0.0
    %3179 = vmatprep.subr.mxu0 0.0
    %3180 = vmatpush1.msra.mxu0 0.0
    %3181 = vmatprep.subr.mxu0 0.0
    %3182 = vmatpush1.msra.mxu0 0.0
    %3183 = vmatprep.subr.mxu0 0.0
    %3184 = vmatpush1.msra.mxu0 0.0
    %3185 = vmatprep.subr.mxu0 0.0
    %3186 = vmatpush1.msra.mxu0 0.0
    %3187 = vmatprep.subr.mxu0 0.0
    %3188 = vmatpush1.msra.mxu0 0.0
    %3189 = vmatprep.subr.mxu0 0.0
    %3190 = vmatpush1.msra.mxu0 0.0
    %3191 = vmatprep.subr.mxu0 0.0
    %3192 = vmatpush1.msra.mxu0 0.0
    %3193 = vmatprep.subr.mxu0 0.0
    %3194 = vmatpush1.msra.mxu0 0.0
    %3195 = vmatprep.subr.mxu0 0.0
    %3196 = vmatpush1.msra.mxu0 0.0
    %3197 = vmatprep.subr.mxu0 0.0
    %3198 = vmatpush1.msra.mxu0 0.0
    %3199 = vmatprep.subr.mxu0 0.0
    %3200 = vmatpush1.msra.mxu0 0.0
    %3201 = vmatprep.subr.mxu0 0.0
    %3202 = vmatpush1.msra.mxu0 0.0
    %3203 = vmatprep.subr.mxu0 0.0
    %3204 = vmatpush1.msra.mxu0 0.0
    %3205 = vmatprep.subr.mxu0 0.0
    %3206 = vmatpush1.msra.mxu0 0.0
    %3207 = vmatprep.subr.mxu0 0.0
    %3208 = vmatpush1.msra.mxu0 0.0
    %3209 = vmatprep.subr.mxu0 0.0
    %3210 = vmatpush1.msra.mxu0 0.0
    %3211 = vmatprep.subr.mxu0 0.0
    %3212 = vmatpush1.msra.mxu0 0.0
    %3213 = vmatprep.subr.mxu0 0.0
    %3214 = vmatpush1.msra.mxu0 0.0
    %3215 = vmatprep.subr.mxu0 0.0
    %3216 = vmatpush1.msra.mxu0 0.0
    %3217 = vmatprep.subr.mxu0 0.0
    %3218 = vmatpush1.msra.mxu0 0.0
    %3219 = vmatprep.subr.mxu0 0.0
    %3220 = vmatpush1.msra.mxu0 0.0
    %3221 = vmatprep.subr.mxu0 0.0
    %3222 = vmatpush1.msra.mxu0 0.0
    %3223 = vmatprep.subr.mxu0 0.0
    %3224 = vmatpush1.msra.mxu0 0.0
    %3225 = vmatprep.subr.mxu0 0.0
    %3226 = vmatpush1.msra.mxu0 0.0
    %3227 = vmatprep.subr.mxu0 0.0
    %3228 = vmatpush1.msra.mxu0 0.0
    %3229 = vmatprep.subr.mxu0 0.0
    %3230 = vmatpush1.msra.mxu0 0.0
    %3231 = vmatprep.subr.mxu0 0.0
    %3232 = vmatpush1.msra.mxu0 0.0
    %3233 = vmatprep.subr.mxu0 0.0
    %3234 = vmatpush1.msra.mxu0 0.0
    %3235 = vmatprep.subr.mxu0 0.0
    %3236 = vmatpush1.msra.mxu0 0.0
    %3237 = vmatprep.subr.mxu0 0.0
    %3238 = vmatpush1.msra.mxu0 0.0
    %3239 = vmatprep.mubr.f32.mxu0 0.0
    %v3240 = vand.u32 %v3003, 4294901760
    %v3241 = vsub.f32 %v3003, %v3240
    %3242 = vmatmul.mubr.f32.gmra.mrb[0].mxu0 %v3241
    %v3243 = vpop.f32.mrb[0].mxu0
    %v3244 = vadd.f32 %v3167, %v3243
    %v3245 = vpop.f32.mrb[0].mxu0
    %v3246 = vadd.f32 %v3169, %v3245
    %3247 = vdwg.mxu0
    %v3248 = vand.u32 %v3009, 4294901760
    %3249 = vmatprep.subr.mxu0 %v3248
    %v3250 = vand.u32 %v3006, 4294901760
    %3251 = vmatpush1.msra.mxu0 %v3250
    %3252 = vmatprep.subr.mxu0 0.0
    %3253 = vmatpush1.msra.mxu0 0.0
    %3254 = vmatprep.subr.mxu0 0.0
    %3255 = vmatpush1.msra.mxu0 0.0
    %3256 = vmatprep.subr.mxu0 0.0
    %3257 = vmatpush1.msra.mxu0 0.0
    %3258 = vmatprep.subr.mxu0 0.0
    %3259 = vmatpush1.msra.mxu0 0.0
    %3260 = vmatprep.subr.mxu0 0.0
    %3261 = vmatpush1.msra.mxu0 0.0
    %3262 = vmatprep.subr.mxu0 0.0
    %3263 = vmatpush1.msra.mxu0 0.0
    %3264 = vmatprep.subr.mxu0 0.0
    %3265 = vmatpush1.msra.mxu0 0.0
    %3266 = vmatprep.subr.mxu0 0.0
    %3267 = vmatpush1.msra.mxu0 0.0
    %3268 = vmatprep.subr.mxu0 0.0
    %3269 = vmatpush1.msra.mxu0 0.0
    %3270 = vmatprep.subr.mxu0 0.0
    %3271 = vmatpush1.msra.mxu0 0.0
    %3272 = vmatprep.subr.mxu0 0.0
    %3273 = vmatpush1.msra.mxu0 0.0
    %3274 = vmatprep.subr.mxu0 0.0
    %3275 = vmatpush1.msra.mxu0 0.0
    %3276 = vmatprep.subr.mxu0 0.0
    %3277 = vmatpush1.msra.mxu0 0.0
    %3278 = vmatprep.subr.mxu0 0.0
    %3279 = vmatpush1.msra.mxu0 0.0
    %3280 = vmatprep.subr.mxu0 0.0
    %3281 = vmatpush1.msra.mxu0 0.0
    %3282 = vmatprep.subr.mxu0 0.0
    %3283 = vmatpush1.msra.mxu0 0.0
    %3284 = vmatprep.subr.mxu0 0.0
    %3285 = vmatpush1.msra.mxu0 0.0
    %3286 = vmatprep.subr.mxu0 0.0
    %3287 = vmatpush1.msra.mxu0 0.0
    %3288 = vmatprep.subr.mxu0 0.0
    %3289 = vmatpush1.msra.mxu0 0.0
    %3290 = vmatprep.subr.mxu0 0.0
    %3291 = vmatpush1.msra.mxu0 0.0
    %3292 = vmatprep.subr.mxu0 0.0
    %3293 = vmatpush1.msra.mxu0 0.0
    %3294 = vmatprep.subr.mxu0 0.0
    %3295 = vmatpush1.msra.mxu0 0.0
    %3296 = vmatprep.subr.mxu0 0.0
    %3297 = vmatpush1.msra.mxu0 0.0
    %3298 = vmatprep.subr.mxu0 0.0
    %3299 = vmatpush1.msra.mxu0 0.0
    %3300 = vmatprep.subr.mxu0 0.0
    %3301 = vmatpush1.msra.mxu0 0.0
    %3302 = vmatprep.subr.mxu0 0.0
    %3303 = vmatpush1.msra.mxu0 0.0
    %3304 = vmatprep.subr.mxu0 0.0
    %3305 = vmatpush1.msra.mxu0 0.0
    %3306 = vmatprep.subr.mxu0 0.0
    %3307 = vmatpush1.msra.mxu0 0.0
    %3308 = vmatprep.subr.mxu0 0.0
    %3309 = vmatpush1.msra.mxu0 0.0
    %3310 = vmatprep.subr.mxu0 0.0
    %3311 = vmatpush1.msra.mxu0 0.0
    %3312 = vmatprep.subr.mxu0 0.0
    %3313 = vmatpush1.msra.mxu0 0.0
    %3314 = vmatprep.mubr.f32.mxu0 0.0
    %v3315 = vand.u32 %v3003, 4294901760
    %v3316 = vsub.f32 %v3003, %v3315
    %v3317 = vand.u32 %v3316, 4294901760
    %3318 = vmatmul.mubr.f32.gmra.mrb[0].mxu0 %v3317
    %v3319 = vpop.f32.mrb[0].mxu0
    %v3320 = vadd.f32 %v3244, %v3319
    %v3321 = vpop.f32.mrb[0].mxu0
    %v3322 = vadd.f32 %v3246, %v3321
    %3323 = vdwg.mxu0
    %v3324 = vand.u32 %v3009, 4294901760
    %v3325 = vsub.f32 %v3009, %v3324
    %v3326 = vand.u32 %v3325, 4294901760
    %3327 = vmatprep.subr.mxu0 %v3326
    %v3328 = vand.u32 %v3006, 4294901760
    %v3329 = vsub.f32 %v3006, %v3328
    %v3330 = vand.u32 %v3329, 4294901760
    %3331 = vmatpush1.msra.mxu0 %v3330
    %3332 = vmatprep.subr.mxu0 0.0
    %3333 = vmatpush1.msra.mxu0 0.0
    %3334 = vmatprep.subr.mxu0 0.0
    %3335 = vmatpush1.msra.mxu0 0.0
    %3336 = vmatprep.subr.mxu0 0.0
    %3337 = vmatpush1.msra.mxu0 0.0
    %3338 = vmatprep.subr.mxu0 0.0
    %3339 = vmatpush1.msra.mxu0 0.0
    %3340 = vmatprep.subr.mxu0 0.0
    %3341 = vmatpush1.msra.mxu0 0.0
    %3342 = vmatprep.subr.mxu0 0.0
    %3343 = vmatpush1.msra.mxu0 0.0
    %3344 = vmatprep.subr.mxu0 0.0
    %3345 = vmatpush1.msra.mxu0 0.0
    %3346 = vmatprep.subr.mxu0 0.0
    %3347 = vmatpush1.msra.mxu0 0.0
    %3348 = vmatprep.subr.mxu0 0.0
    %3349 = vmatpush1.msra.mxu0 0.0
    %3350 = vmatprep.subr.mxu0 0.0
    %3351 = vmatpush1.msra.mxu0 0.0
    %3352 = vmatprep.subr.mxu0 0.0
    %3353 = vmatpush1.msra.mxu0 0.0
    %3354 = vmatprep.subr.mxu0 0.0
    %3355 = vmatpush1.msra.mxu0 0.0
    %3356 = vmatprep.subr.mxu0 0.0
    %3357 = vmatpush1.msra.mxu0 0.0
    %3358 = vmatprep.subr.mxu0 0.0
    %3359 = vmatpush1.msra.mxu0 0.0
    %3360 = vmatprep.subr.mxu0 0.0
    %3361 = vmatpush1.msra.mxu0 0.0
    %3362 = vmatprep.subr.mxu0 0.0
    %3363 = vmatpush1.msra.mxu0 0.0
    %3364 = vmatprep.subr.mxu0 0.0
    %3365 = vmatpush1.msra.mxu0 0.0
    %3366 = vmatprep.subr.mxu0 0.0
    %3367 = vmatpush1.msra.mxu0 0.0
    %3368 = vmatprep.subr.mxu0 0.0
    %3369 = vmatpush1.msra.mxu0 0.0
    %3370 = vmatprep.subr.mxu0 0.0
    %3371 = vmatpush1.msra.mxu0 0.0
    %3372 = vmatprep.subr.mxu0 0.0
    %3373 = vmatpush1.msra.mxu0 0.0
    %3374 = vmatprep.subr.mxu0 0.0
    %3375 = vmatpush1.msra.mxu0 0.0
    %3376 = vmatprep.subr.mxu0 0.0
    %3377 = vmatpush1.msra.mxu0 0.0
    %3378 = vmatprep.subr.mxu0 0.0
    %3379 = vmatpush1.msra.mxu0 0.0
    %3380 = vmatprep.subr.mxu0 0.0
    %3381 = vmatpush1.msra.mxu0 0.0
    %3382 = vmatprep.subr.mxu0 0.0
    %3383 = vmatpush1.msra.mxu0 0.0
    %3384 = vmatprep.subr.mxu0 0.0
    %3385 = vmatpush1.msra.mxu0 0.0
    %3386 = vmatprep.subr.mxu0 0.0
    %3387 = vmatpush1.msra.mxu0 0.0
    %3388 = vmatprep.subr.mxu0 0.0
    %3389 = vmatpush1.msra.mxu0 0.0
    %3390 = vmatprep.subr.mxu0 0.0
    %3391 = vmatpush1.msra.mxu0 0.0
    %3392 = vmatprep.subr.mxu0 0.0
    %3393 = vmatpush1.msra.mxu0 0.0
    %3394 = vmatprep.mubr.f32.mxu0 0.0
    %v3395 = vand.u32 %v3003, 4294901760
    %3396 = vmatmul.mubr.f32.gmra.mrb[0].mxu0 %v3395
    %v3397 = vpop.f32.mrb[0].mxu0
    %v3398 = vadd.f32 %v3320, %v3397
    %v3399 = vpop.f32.mrb[0].mxu0
    %v3400 = vadd.f32 %v3322, %v3399
    %3401 = vdwg.mxu0
    %v3402 = vand.u32 %v3009, 4294901760
    %3403 = vmatprep.subr.mxu0 %v3402
    %v3404 = vand.u32 %v3006, 4294901760
    %3405 = vmatpush1.msra.mxu0 %v3404
    %3406 = vmatprep.subr.mxu0 0.0
    %3407 = vmatpush1.msra.mxu0 0.0
    %3408 = vmatprep.subr.mxu0 0.0
    %3409 = vmatpush1.msra.mxu0 0.0
    %3410 = vmatprep.subr.mxu0 0.0
    %3411 = vmatpush1.msra.mxu0 0.0
    %3412 = vmatprep.subr.mxu0 0.0
    %3413 = vmatpush1.msra.mxu0 0.0
    %3414 = vmatprep.subr.mxu0 0.0
    %3415 = vmatpush1.msra.mxu0 0.0
    %3416 = vmatprep.subr.mxu0 0.0
    %3417 = vmatpush1.msra.mxu0 0.0
    %3418 = vmatprep.subr.mxu0 0.0
    %3419 = vmatpush1.msra.mxu0 0.0
    %3420 = vmatprep.subr.mxu0 0.0
    %3421 = vmatpush1.msra.mxu0 0.0
    %3422 = vmatprep.subr.mxu0 0.0
    %3423 = vmatpush1.msra.mxu0 0.0
    %3424 = vmatprep.subr.mxu0 0.0
    %3425 = vmatpush1.msra.mxu0 0.0
    %3426 = vmatprep.subr.mxu0 0.0
    %3427 = vmatpush1.msra.mxu0 0.0
    %3428 = vmatprep.subr.mxu0 0.0
    %3429 = vmatpush1.msra.mxu0 0.0
    %3430 = vmatprep.subr.mxu0 0.0
    %3431 = vmatpush1.msra.mxu0 0.0
    %3432 = vmatprep.subr.mxu0 0.0
    %3433 = vmatpush1.msra.mxu0 0.0
    %3434 = vmatprep.subr.mxu0 0.0
    %3435 = vmatpush1.msra.mxu0 0.0
    %3436 = vmatprep.subr.mxu0 0.0
    %3437 = vmatpush1.msra.mxu0 0.0
    %3438 = vmatprep.subr.mxu0 0.0
    %3439 = vmatpush1.msra.mxu0 0.0
    %3440 = vmatprep.subr.mxu0 0.0
    %3441 = vmatpush1.msra.mxu0 0.0
    %3442 = vmatprep.subr.mxu0 0.0
    %3443 = vmatpush1.msra.mxu0 0.0
    %3444 = vmatprep.subr.mxu0 0.0
    %3445 = vmatpush1.msra.mxu0 0.0
    %3446 = vmatprep.subr.mxu0 0.0
    %3447 = vmatpush1.msra.mxu0 0.0
    %3448 = vmatprep.subr.mxu0 0.0
    %3449 = vmatpush1.msra.mxu0 0.0
    %3450 = vmatprep.subr.mxu0 0.0
    %3451 = vmatpush1.msra.mxu0 0.0
    %3452 = vmatprep.subr.mxu0 0.0
    %3453 = vmatpush1.msra.mxu0 0.0
    %3454 = vmatprep.subr.mxu0 0.0
    %3455 = vmatpush1.msra.mxu0 0.0
    %3456 = vmatprep.subr.mxu0 0.0
    %3457 = vmatpush1.msra.mxu0 0.0
    %3458 = vmatprep.subr.mxu0 0.0
    %3459 = vmatpush1.msra.mxu0 0.0
    %3460 = vmatprep.subr.mxu0 0.0
    %3461 = vmatpush1.msra.mxu0 0.0
    %3462 = vmatprep.subr.mxu0 0.0
    %3463 = vmatpush1.msra.mxu0 0.0
    %3464 = vmatprep.subr.mxu0 0.0
    %3465 = vmatpush1.msra.mxu0 0.0
    %3466 = vmatprep.subr.mxu0 0.0
    %3467 = vmatpush1.msra.mxu0 0.0
    %3468 = vmatprep.mubr.f32.mxu0 0.0
    %v3469 = vand.u32 %v3003, 4294901760
    %3470 = vmatmul.mubr.f32.gmra.mrb[0].mxu0 %v3469
    %v3471 = vpop.f32.mrb[0].mxu0
    %v3472 = vadd.f32 %v3398, %v3471
    %v3473 = vpop.f32.mrb[0].mxu0
    %v3474 = vadd.f32 %v3400, %v3473
    %3475 = vdwg.mxu0
    %v3476 = vadd.f32 %v2986, %v3472
    %v3477 = vadd.f32 %v2987, %v3474
    %v3478 = vld [vmem:[%s1 + $0x38] sm:$0xff]
    %3479 = vrot.lane.b32.xlu0 %v57, 80
    %v3480 = vpop.permute.xlu0 %3479
    %3481 = vrot.lane.b32.xlu0 %v61, 80
    %v3482 = vpop.permute.xlu0 %3481
    %3483 = vrot.lane.b32.xlu0 %v58, 80
    %v3484 = vpop.permute.xlu0 %3483
    %vm3485 = vcmask 654336
    %v3486 = vsel %vm3485, %v3480, %v3482
    %v3487 = vsel %vm3485, %v3482, %v3484
    %v3489 = vsel %vm86, %v3478, 0
    %v3491 = vsel %vm90, %v3486, 0
    %v3493 = vsel %vm90, %v3487, 0
    %v3495 = vand.u32 %v3493, 4294901760
    %3496 = vmatprep.subr.mxu0 %v3495
    %v3497 = vand.u32 %v3491, 4294901760
    %3498 = vmatpush1.msra.mxu0 %v3497
    %3499 = vmatprep.subr.mxu0 0.0
    %3500 = vmatpush1.msra.mxu0 0.0
    %3501 = vmatprep.subr.mxu0 0.0
    %3502 = vmatpush1.msra.mxu0 0.0
    %3503 = vmatprep.subr.mxu0 0.0
    %3504 = vmatpush1.msra.mxu0 0.0
    %3505 = vmatprep.subr.mxu0 0.0
    %3506 = vmatpush1.msra.mxu0 0.0
    %3507 = vmatprep.subr.mxu0 0.0
    %3508 = vmatpush1.msra.mxu0 0.0
    %3509 = vmatprep.subr.mxu0 0.0
    %3510 = vmatpush1.msra.mxu0 0.0
    %3511 = vmatprep.subr.mxu0 0.0
    %3512 = vmatpush1.msra.mxu0 0.0
    %3513 = vmatprep.subr.mxu0 0.0
    %3514 = vmatpush1.msra.mxu0 0.0
    %3515 = vmatprep.subr.mxu0 0.0
    %3516 = vmatpush1.msra.mxu0 0.0
    %3517 = vmatprep.subr.mxu0 0.0
    %3518 = vmatpush1.msra.mxu0 0.0
    %3519 = vmatprep.subr.mxu0 0.0
    %3520 = vmatpush1.msra.mxu0 0.0
    %3521 = vmatprep.subr.mxu0 0.0
    %3522 = vmatpush1.msra.mxu0 0.0
    %3523 = vmatprep.subr.mxu0 0.0
    %3524 = vmatpush1.msra.mxu0 0.0
    %3525 = vmatprep.subr.mxu0 0.0
    %3526 = vmatpush1.msra.mxu0 0.0
    %3527 = vmatprep.subr.mxu0 0.0
    %3528 = vmatpush1.msra.mxu0 0.0
    %3529 = vmatprep.subr.mxu0 0.0
    %3530 = vmatpush1.msra.mxu0 0.0
    %3531 = vmatprep.subr.mxu0 0.0
    %3532 = vmatpush1.msra.mxu0 0.0
    %3533 = vmatprep.subr.mxu0 0.0
    %3534 = vmatpush1.msra.mxu0 0.0
    %3535 = vmatprep.subr.mxu0 0.0
    %3536 = vmatpush1.msra.mxu0 0.0
    %3537 = vmatprep.subr.mxu0 0.0
    %3538 = vmatpush1.msra.mxu0 0.0
    %3539 = vmatprep.subr.mxu0 0.0
    %3540 = vmatpush1.msra.mxu0 0.0
    %3541 = vmatprep.subr.mxu0 0.0
    %3542 = vmatpush1.msra.mxu0 0.0
    %3543 = vmatprep.subr.mxu0 0.0
    %3544 = vmatpush1.msra.mxu0 0.0
    %3545 = vmatprep.subr.mxu0 0.0
    %3546 = vmatpush1.msra.mxu0 0.0
    %3547 = vmatprep.subr.mxu0 0.0
    %3548 = vmatpush1.msra.mxu0 0.0
    %3549 = vmatprep.subr.mxu0 0.0
    %3550 = vmatpush1.msra.mxu0 0.0
    %3551 = vmatprep.subr.mxu0 0.0
    %3552 = vmatpush1.msra.mxu0 0.0
    %3553 = vmatprep.subr.mxu0 0.0
    %3554 = vmatpush1.msra.mxu0 0.0
    %3555 = vmatprep.subr.mxu0 0.0
    %3556 = vmatpush1.msra.mxu0 0.0
    %3557 = vmatprep.subr.mxu0 0.0
    %3558 = vmatpush1.msra.mxu0 0.0
    %3559 = vmatprep.subr.mxu0 0.0
    %3560 = vmatpush1.msra.mxu0 0.0
    %3561 = vmatprep.mubr.f32.mxu0 0.0
    %v3562 = vand.u32 %v3489, 4294901760
    %v3563 = vsub.f32 %v3489, %v3562
    %v3564 = vand.u32 %v3563, 4294901760
    %v3565 = vsub.f32 %v3563, %v3564
    %v3566 = vand.u32 %v3565, 4294901760
    %3567 = vmatmul.mubr.f32.gmra.mrb[0].mxu0 %v3566
    %v3568 = vpop.f32.mrb[0].mxu0
    %v3569 = vadd.f32 0.0, %v3568
    %v3570 = vpop.f32.mrb[0].mxu0
    %v3571 = vadd.f32 0.0, %v3570
    %3572 = vdwg.mxu0
    %v3573 = vand.u32 %v3493, 4294901760
    %v3574 = vsub.f32 %v3493, %v3573
    %v3575 = vand.u32 %v3574, 4294901760
    %v3576 = vsub.f32 %v3574, %v3575
    %v3577 = vand.u32 %v3576, 4294901760
    %3578 = vmatprep.subr.mxu0 %v3577
    %v3579 = vand.u32 %v3491, 4294901760
    %v3580 = vsub.f32 %v3491, %v3579
    %v3581 = vand.u32 %v3580, 4294901760
    %v3582 = vsub.f32 %v3580, %v3581
    %v3583 = vand.u32 %v3582, 4294901760
    %3584 = vmatpush1.msra.mxu0 %v3583
    %3585 = vmatprep.subr.mxu0 0.0
    %3586 = vmatpush1.msra.mxu0 0.0
    %3587 = vmatprep.subr.mxu0 0.0
    %3588 = vmatpush1.msra.mxu0 0.0
    %3589 = vmatprep.subr.mxu0 0.0
    %3590 = vmatpush1.msra.mxu0 0.0
    %3591 = vmatprep.subr.mxu0 0.0
    %3592 = vmatpush1.msra.mxu0 0.0
    %3593 = vmatprep.subr.mxu0 0.0
    %3594 = vmatpush1.msra.mxu0 0.0
    %3595 = vmatprep.subr.mxu0 0.0
    %3596 = vmatpush1.msra.mxu0 0.0
    %3597 = vmatprep.subr.mxu0 0.0
    %3598 = vmatpush1.msra.mxu0 0.0
    %3599 = vmatprep.subr.mxu0 0.0
    %3600 = vmatpush1.msra.mxu0 0.0
    %3601 = vmatprep.subr.mxu0 0.0
    %3602 = vmatpush1.msra.mxu0 0.0
    %3603 = vmatprep.subr.mxu0 0.0
    %3604 = vmatpush1.msra.mxu0 0.0
    %3605 = vmatprep.subr.mxu0 0.0
    %3606 = vmatpush1.msra.mxu0 0.0
    %3607 = vmatprep.subr.mxu0 0.0
    %3608 = vmatpush1.msra.mxu0 0.0
    %3609 = vmatprep.subr.mxu0 0.0
    %3610 = vmatpush1.msra.mxu0 0.0
    %3611 = vmatprep.subr.mxu0 0.0
    %3612 = vmatpush1.msra.mxu0 0.0
    %3613 = vmatprep.subr.mxu0 0.0
    %3614 = vmatpush1.msra.mxu0 0.0
    %3615 = vmatprep.subr.mxu0 0.0
    %3616 = vmatpush1.msra.mxu0 0.0
    %3617 = vmatprep.subr.mxu0 0.0
    %3618 = vmatpush1.msra.mxu0 0.0
    %3619 = vmatprep.subr.mxu0 0.0
    %3620 = vmatpush1.msra.mxu0 0.0
    %3621 = vmatprep.subr.mxu0 0.0
    %3622 = vmatpush1.msra.mxu0 0.0
    %3623 = vmatprep.subr.mxu0 0.0
    %3624 = vmatpush1.msra.mxu0 0.0
    %3625 = vmatprep.subr.mxu0 0.0
    %3626 = vmatpush1.msra.mxu0 0.0
    %3627 = vmatprep.subr.mxu0 0.0
    %3628 = vmatpush1.msra.mxu0 0.0
    %3629 = vmatprep.subr.mxu0 0.0
    %3630 = vmatpush1.msra.mxu0 0.0
    %3631 = vmatprep.subr.mxu0 0.0
    %3632 = vmatpush1.msra.mxu0 0.0
    %3633 = vmatprep.subr.mxu0 0.0
    %3634 = vmatpush1.msra.mxu0 0.0
    %3635 = vmatprep.subr.mxu0 0.0
    %3636 = vmatpush1.msra.mxu0 0.0
    %3637 = vmatprep.subr.mxu0 0.0
    %3638 = vmatpush1.msra.mxu0 0.0
    %3639 = vmatprep.subr.mxu0 0.0
    %3640 = vmatpush1.msra.mxu0 0.0
    %3641 = vmatprep.subr.mxu0 0.0
    %3642 = vmatpush1.msra.mxu0 0.0
    %3643 = vmatprep.subr.mxu0 0.0
    %3644 = vmatpush1.msra.mxu0 0.0
    %3645 = vmatprep.subr.mxu0 0.0
    %3646 = vmatpush1.msra.mxu0 0.0
    %3647 = vmatprep.mubr.f32.mxu0 0.0
    %v3648 = vand.u32 %v3489, 4294901760
    %3649 = vmatmul.mubr.f32.gmra.mrb[0].mxu0 %v3648
    %v3650 = vpop.f32.mrb[0].mxu0
    %v3651 = vadd.f32 %v3569, %v3650
    %v3652 = vpop.f32.mrb[0].mxu0
    %v3653 = vadd.f32 %v3571, %v3652
    %3654 = vdwg.mxu0
    %v3655 = vand.u32 %v3493, 4294901760
    %v3656 = vsub.f32 %v3493, %v3655
    %3657 = vmatprep.subr.mxu0 %v3656
    %v3658 = vand.u32 %v3491, 4294901760
    %v3659 = vsub.f32 %v3491, %v3658
    %3660 = vmatpush1.msra.mxu0 %v3659
    %3661 = vmatprep.subr.mxu0 0.0
    %3662 = vmatpush1.msra.mxu0 0.0
    %3663 = vmatprep.subr.mxu0 0.0
    %3664 = vmatpush1.msra.mxu0 0.0
    %3665 = vmatprep.subr.mxu0 0.0
    %3666 = vmatpush1.msra.mxu0 0.0
    %3667 = vmatprep.subr.mxu0 0.0
    %3668 = vmatpush1.msra.mxu0 0.0
    %3669 = vmatprep.subr.mxu0 0.0
    %3670 = vmatpush1.msra.mxu0 0.0
    %3671 = vmatprep.subr.mxu0 0.0
    %3672 = vmatpush1.msra.mxu0 0.0
    %3673 = vmatprep.subr.mxu0 0.0
    %3674 = vmatpush1.msra.mxu0 0.0
    %3675 = vmatprep.subr.mxu0 0.0
    %3676 = vmatpush1.msra.mxu0 0.0
    %3677 = vmatprep.subr.mxu0 0.0
    %3678 = vmatpush1.msra.mxu0 0.0
    %3679 = vmatprep.subr.mxu0 0.0
    %3680 = vmatpush1.msra.mxu0 0.0
    %3681 = vmatprep.subr.mxu0 0.0
    %3682 = vmatpush1.msra.mxu0 0.0
    %3683 = vmatprep.subr.mxu0 0.0
    %3684 = vmatpush1.msra.mxu0 0.0
    %3685 = vmatprep.subr.mxu0 0.0
    %3686 = vmatpush1.msra.mxu0 0.0
    %3687 = vmatprep.subr.mxu0 0.0
    %3688 = vmatpush1.msra.mxu0 0.0
    %3689 = vmatprep.subr.mxu0 0.0
    %3690 = vmatpush1.msra.mxu0 0.0
    %3691 = vmatprep.subr.mxu0 0.0
    %3692 = vmatpush1.msra.mxu0 0.0
    %3693 = vmatprep.subr.mxu0 0.0
    %3694 = vmatpush1.msra.mxu0 0.0
    %3695 = vmatprep.subr.mxu0 0.0
    %3696 = vmatpush1.msra.mxu0 0.0
    %3697 = vmatprep.subr.mxu0 0.0
    %3698 = vmatpush1.msra.mxu0 0.0
    %3699 = vmatprep.subr.mxu0 0.0
    %3700 = vmatpush1.msra.mxu0 0.0
    %3701 = vmatprep.subr.mxu0 0.0
    %3702 = vmatpush1.msra.mxu0 0.0
    %3703 = vmatprep.subr.mxu0 0.0
    %3704 = vmatpush1.msra.mxu0 0.0
    %3705 = vmatprep.subr.mxu0 0.0
    %3706 = vmatpush1.msra.mxu0 0.0
    %3707 = vmatprep.subr.mxu0 0.0
    %3708 = vmatpush1.msra.mxu0 0.0
    %3709 = vmatprep.subr.mxu0 0.0
    %3710 = vmatpush1.msra.mxu0 0.0
    %3711 = vmatprep.subr.mxu0 0.0
    %3712 = vmatpush1.msra.mxu0 0.0
    %3713 = vmatprep.subr.mxu0 0.0
    %3714 = vmatpush1.msra.mxu0 0.0
    %3715 = vmatprep.subr.mxu0 0.0
    %3716 = vmatpush1.msra.mxu0 0.0
    %3717 = vmatprep.subr.mxu0 0.0
    %3718 = vmatpush1.msra.mxu0 0.0
    %3719 = vmatprep.subr.mxu0 0.0
    %3720 = vmatpush1.msra.mxu0 0.0
    %3721 = vmatprep.subr.mxu0 0.0
    %3722 = vmatpush1.msra.mxu0 0.0
    %3723 = vmatprep.mubr.f32.mxu0 0.0
    %v3724 = vand.u32 %v3489, 4294901760
    %v3725 = vsub.f32 %v3489, %v3724
    %3726 = vmatmul.mubr.f32.gmra.mrb[0].mxu0 %v3725
    %v3727 = vpop.f32.mrb[0].mxu0
    %v3728 = vadd.f32 %v3651, %v3727
    %v3729 = vpop.f32.mrb[0].mxu0
    %v3730 = vadd.f32 %v3653, %v3729
    %3731 = vdwg.mxu0
    %v3732 = vand.u32 %v3493, 4294901760
    %3733 = vmatprep.subr.mxu0 %v3732
    %v3734 = vand.u32 %v3491, 4294901760
    %3735 = vmatpush1.msra.mxu0 %v3734
    %3736 = vmatprep.subr.mxu0 0.0
    %3737 = vmatpush1.msra.mxu0 0.0
    %3738 = vmatprep.subr.mxu0 0.0
    %3739 = vmatpush1.msra.mxu0 0.0
    %3740 = vmatprep.subr.mxu0 0.0
    %3741 = vmatpush1.msra.mxu0 0.0
    %3742 = vmatprep.subr.mxu0 0.0
    %3743 = vmatpush1.msra.mxu0 0.0
    %3744 = vmatprep.subr.mxu0 0.0
    %3745 = vmatpush1.msra.mxu0 0.0
    %3746 = vmatprep.subr.mxu0 0.0
    %3747 = vmatpush1.msra.mxu0 0.0
    %3748 = vmatprep.subr.mxu0 0.0
    %3749 = vmatpush1.msra.mxu0 0.0
    %3750 = vmatprep.subr.mxu0 0.0
    %3751 = vmatpush1.msra.mxu0 0.0
    %3752 = vmatprep.subr.mxu0 0.0
    %3753 = vmatpush1.msra.mxu0 0.0
    %3754 = vmatprep.subr.mxu0 0.0
    %3755 = vmatpush1.msra.mxu0 0.0
    %3756 = vmatprep.subr.mxu0 0.0
    %3757 = vmatpush1.msra.mxu0 0.0
    %3758 = vmatprep.subr.mxu0 0.0
    %3759 = vmatpush1.msra.mxu0 0.0
    %3760 = vmatprep.subr.mxu0 0.0
    %3761 = vmatpush1.msra.mxu0 0.0
    %3762 = vmatprep.subr.mxu0 0.0
    %3763 = vmatpush1.msra.mxu0 0.0
    %3764 = vmatprep.subr.mxu0 0.0
    %3765 = vmatpush1.msra.mxu0 0.0
    %3766 = vmatprep.subr.mxu0 0.0
    %3767 = vmatpush1.msra.mxu0 0.0
    %3768 = vmatprep.subr.mxu0 0.0
    %3769 = vmatpush1.msra.mxu0 0.0
    %3770 = vmatprep.subr.mxu0 0.0
    %3771 = vmatpush1.msra.mxu0 0.0
    %3772 = vmatprep.subr.mxu0 0.0
    %3773 = vmatpush1.msra.mxu0 0.0
    %3774 = vmatprep.subr.mxu0 0.0
    %3775 = vmatpush1.msra.mxu0 0.0
    %3776 = vmatprep.subr.mxu0 0.0
    %3777 = vmatpush1.msra.mxu0 0.0
    %3778 = vmatprep.subr.mxu0 0.0
    %3779 = vmatpush1.msra.mxu0 0.0
    %3780 = vmatprep.subr.mxu0 0.0
    %3781 = vmatpush1.msra.mxu0 0.0
    %3782 = vmatprep.subr.mxu0 0.0
    %3783 = vmatpush1.msra.mxu0 0.0
    %3784 = vmatprep.subr.mxu0 0.0
    %3785 = vmatpush1.msra.mxu0 0.0
    %3786 = vmatprep.subr.mxu0 0.0
    %3787 = vmatpush1.msra.mxu0 0.0
    %3788 = vmatprep.subr.mxu0 0.0
    %3789 = vmatpush1.msra.mxu0 0.0
    %3790 = vmatprep.subr.mxu0 0.0
    %3791 = vmatpush1.msra.mxu0 0.0
    %3792 = vmatprep.subr.mxu0 0.0
    %3793 = vmatpush1.msra.mxu0 0.0
    %3794 = vmatprep.subr.mxu0 0.0
    %3795 = vmatpush1.msra.mxu0 0.0
    %3796 = vmatprep.subr.mxu0 0.0
    %3797 = vmatpush1.msra.mxu0 0.0
    %3798 = vmatprep.mubr.f32.mxu0 0.0
    %v3799 = vand.u32 %v3489, 4294901760
    %v3800 = vsub.f32 %v3489, %v3799
    %v3801 = vand.u32 %v3800, 4294901760
    %3802 = vmatmul.mubr.f32.gmra.mrb[0].mxu0 %v3801
    %v3803 = vpop.f32.mrb[0].mxu0
    %v3804 = vadd.f32 %v3728, %v3803
    %v3805 = vpop.f32.mrb[0].mxu0
    %v3806 = vadd.f32 %v3730, %v3805
    %3807 = vdwg.mxu0
    %v3808 = vand.u32 %v3493, 4294901760
    %v3809 = vsub.f32 %v3493, %v3808
    %v3810 = vand.u32 %v3809, 4294901760
    %3811 = vmatprep.subr.mxu0 %v3810
    %v3812 = vand.u32 %v3491, 4294901760
    %v3813 = vsub.f32 %v3491, %v3812
    %v3814 = vand.u32 %v3813, 4294901760
    %3815 = vmatpush1.msra.mxu0 %v3814
    %3816 = vmatprep.subr.mxu0 0.0
    %3817 = vmatpush1.msra.mxu0 0.0
    %3818 = vmatprep.subr.mxu0 0.0
    %3819 = vmatpush1.msra.mxu0 0.0
    %3820 = vmatprep.subr.mxu0 0.0
    %3821 = vmatpush1.msra.mxu0 0.0
    %3822 = vmatprep.subr.mxu0 0.0
    %3823 = vmatpush1.msra.mxu0 0.0
    %3824 = vmatprep.subr.mxu0 0.0
    %3825 = vmatpush1.msra.mxu0 0.0
    %3826 = vmatprep.subr.mxu0 0.0
    %3827 = vmatpush1.msra.mxu0 0.0
    %3828 = vmatprep.subr.mxu0 0.0
    %3829 = vmatpush1.msra.mxu0 0.0
    %3830 = vmatprep.subr.mxu0 0.0
    %3831 = vmatpush1.msra.mxu0 0.0
    %3832 = vmatprep.subr.mxu0 0.0
    %3833 = vmatpush1.msra.mxu0 0.0
    %3834 = vmatprep.subr.mxu0 0.0
    %3835 = vmatpush1.msra.mxu0 0.0
    %3836 = vmatprep.subr.mxu0 0.0
    %3837 = vmatpush1.msra.mxu0 0.0
    %3838 = vmatprep.subr.mxu0 0.0
    %3839 = vmatpush1.msra.mxu0 0.0
    %3840 = vmatprep.subr.mxu0 0.0
    %3841 = vmatpush1.msra.mxu0 0.0
    %3842 = vmatprep.subr.mxu0 0.0
    %3843 = vmatpush1.msra.mxu0 0.0
    %3844 = vmatprep.subr.mxu0 0.0
    %3845 = vmatpush1.msra.mxu0 0.0
    %3846 = vmatprep.subr.mxu0 0.0
    %3847 = vmatpush1.msra.mxu0 0.0
    %3848 = vmatprep.subr.mxu0 0.0
    %3849 = vmatpush1.msra.mxu0 0.0
    %3850 = vmatprep.subr.mxu0 0.0
    %3851 = vmatpush1.msra.mxu0 0.0
    %3852 = vmatprep.subr.mxu0 0.0
    %3853 = vmatpush1.msra.mxu0 0.0
    %3854 = vmatprep.subr.mxu0 0.0
    %3855 = vmatpush1.msra.mxu0 0.0
    %3856 = vmatprep.subr.mxu0 0.0
    %3857 = vmatpush1.msra.mxu0 0.0
    %3858 = vmatprep.subr.mxu0 0.0
    %3859 = vmatpush1.msra.mxu0 0.0
    %3860 = vmatprep.subr.mxu0 0.0
    %3861 = vmatpush1.msra.mxu0 0.0
    %3862 = vmatprep.subr.mxu0 0.0
    %3863 = vmatpush1.msra.mxu0 0.0
    %3864 = vmatprep.subr.mxu0 0.0
    %3865 = vmatpush1.msra.mxu0 0.0
    %3866 = vmatprep.subr.mxu0 0.0
    %3867 = vmatpush1.msra.mxu0 0.0
    %3868 = vmatprep.subr.mxu0 0.0
    %3869 = vmatpush1.msra.mxu0 0.0
    %3870 = vmatprep.subr.mxu0 0.0
    %3871 = vmatpush1.msra.mxu0 0.0
    %3872 = vmatprep.subr.mxu0 0.0
    %3873 = vmatpush1.msra.mxu0 0.0
    %3874 = vmatprep.subr.mxu0 0.0
    %3875 = vmatpush1.msra.mxu0 0.0
    %3876 = vmatprep.subr.mxu0 0.0
    %3877 = vmatpush1.msra.mxu0 0.0
    %3878 = vmatprep.mubr.f32.mxu0 0.0
    %v3879 = vand.u32 %v3489, 4294901760
    %3880 = vmatmul.mubr.f32.gmra.mrb[0].mxu0 %v3879
    %v3881 = vpop.f32.mrb[0].mxu0
    %v3882 = vadd.f32 %v3804, %v3881
    %v3883 = vpop.f32.mrb[0].mxu0
    %v3884 = vadd.f32 %v3806, %v3883
    %3885 = vdwg.mxu0
    %v3886 = vand.u32 %v3493, 4294901760
    %3887 = vmatprep.subr.mxu0 %v3886
    %v3888 = vand.u32 %v3491, 4294901760
    %3889 = vmatpush1.msra.mxu0 %v3888
    %3890 = vmatprep.subr.mxu0 0.0
    %3891 = vmatpush1.msra.mxu0 0.0
    %3892 = vmatprep.subr.mxu0 0.0
    %3893 = vmatpush1.msra.mxu0 0.0
    %3894 = vmatprep.subr.mxu0 0.0
    %3895 = vmatpush1.msra.mxu0 0.0
    %3896 = vmatprep.subr.mxu0 0.0
    %3897 = vmatpush1.msra.mxu0 0.0
    %3898 = vmatprep.subr.mxu0 0.0
    %3899 = vmatpush1.msra.mxu0 0.0
    %3900 = vmatprep.subr.mxu0 0.0
    %3901 = vmatpush1.msra.mxu0 0.0
    %3902 = vmatprep.subr.mxu0 0.0
    %3903 = vmatpush1.msra.mxu0 0.0
    %3904 = vmatprep.subr.mxu0 0.0
    %3905 = vmatpush1.msra.mxu0 0.0
    %3906 = vmatprep.subr.mxu0 0.0
    %3907 = vmatpush1.msra.mxu0 0.0
    %3908 = vmatprep.subr.mxu0 0.0
    %3909 = vmatpush1.msra.mxu0 0.0
    %3910 = vmatprep.subr.mxu0 0.0
    %3911 = vmatpush1.msra.mxu0 0.0
    %3912 = vmatprep.subr.mxu0 0.0
    %3913 = vmatpush1.msra.mxu0 0.0
    %3914 = vmatprep.subr.mxu0 0.0
    %3915 = vmatpush1.msra.mxu0 0.0
    %3916 = vmatprep.subr.mxu0 0.0
    %3917 = vmatpush1.msra.mxu0 0.0
    %3918 = vmatprep.subr.mxu0 0.0
    %3919 = vmatpush1.msra.mxu0 0.0
    %3920 = vmatprep.subr.mxu0 0.0
    %3921 = vmatpush1.msra.mxu0 0.0
    %3922 = vmatprep.subr.mxu0 0.0
    %3923 = vmatpush1.msra.mxu0 0.0
    %3924 = vmatprep.subr.mxu0 0.0
    %3925 = vmatpush1.msra.mxu0 0.0
    %3926 = vmatprep.subr.mxu0 0.0
    %3927 = vmatpush1.msra.mxu0 0.0
    %3928 = vmatprep.subr.mxu0 0.0
    %3929 = vmatpush1.msra.mxu0 0.0
    %3930 = vmatprep.subr.mxu0 0.0
    %3931 = vmatpush1.msra.mxu0 0.0
    %3932 = vmatprep.subr.mxu0 0.0
    %3933 = vmatpush1.msra.mxu0 0.0
    %3934 = vmatprep.subr.mxu0 0.0
    %3935 = vmatpush1.msra.mxu0 0.0
    %3936 = vmatprep.subr.mxu0 0.0
    %3937 = vmatpush1.msra.mxu0 0.0
    %3938 = vmatprep.subr.mxu0 0.0
    %3939 = vmatpush1.msra.mxu0 0.0
    %3940 = vmatprep.subr.mxu0 0.0
    %3941 = vmatpush1.msra.mxu0 0.0
    %3942 = vmatprep.subr.mxu0 0.0
    %3943 = vmatpush1.msra.mxu0 0.0
    %3944 = vmatprep.subr.mxu0 0.0
    %3945 = vmatpush1.msra.mxu0 0.0
    %3946 = vmatprep.subr.mxu0 0.0
    %3947 = vmatpush1.msra.mxu0 0.0
    %3948 = vmatprep.subr.mxu0 0.0
    %3949 = vmatpush1.msra.mxu0 0.0
    %3950 = vmatprep.subr.mxu0 0.0
    %3951 = vmatpush1.msra.mxu0 0.0
    %3952 = vmatprep.mubr.f32.mxu0 0.0
    %v3953 = vand.u32 %v3489, 4294901760
    %3954 = vmatmul.mubr.f32.gmra.mrb[0].mxu0 %v3953
    %v3955 = vpop.f32.mrb[0].mxu0
    %v3956 = vadd.f32 %v3882, %v3955
    %v3957 = vpop.f32.mrb[0].mxu0
    %v3958 = vadd.f32 %v3884, %v3957
    %3959 = vdwg.mxu0
    %v3960 = vadd.f32 %v3476, %v3956
    %v3961 = vadd.f32 %v3477, %v3958
    %3962 = vrot.lane.b32.xlu0 %v57, 79
    %v3963 = vpop.permute.xlu0 %3962
    %3964 = vrot.lane.b32.xlu0 %v61, 79
    %v3965 = vpop.permute.xlu0 %3964
    %3966 = vrot.lane.b32.xlu0 %v58, 79
    %v3967 = vpop.permute.xlu0 %3966
    %vm3968 = vcmask 646144
    %v3969 = vsel %vm3968, %v3963, %v3965
    %v3970 = vsel %vm3968, %v3965, %v3967
    %v3973 = vsel %vm52, %v3969, 0.0
    %v3974 = vsel %vm53, %v3970, 0.0
    %v3975 = vld [vmem:[%s1 + $0x40] sm:$0xff]
    %v3977 = vsel %vm86, %v3975, 0
    %v3980 = vsel %vm90, %v3973, 0
    %v3983 = vsel %vm90, %v3974, 0
    %v3985 = vand.u32 %v3983, 4294901760
    %3986 = vmatprep.subr.mxu0 %v3985
    %v3987 = vand.u32 %v3980, 4294901760
    %3988 = vmatpush1.msra.mxu0 %v3987
    %3989 = vmatprep.subr.mxu0 0.0
    %3990 = vmatpush1.msra.mxu0 0.0
    %3991 = vmatprep.subr.mxu0 0.0
    %3992 = vmatpush1.msra.mxu0 0.0
    %3993 = vmatprep.subr.mxu0 0.0
    %3994 = vmatpush1.msra.mxu0 0.0
    %3995 = vmatprep.subr.mxu0 0.0
    %3996 = vmatpush1.msra.mxu0 0.0
    %3997 = vmatprep.subr.mxu0 0.0
    %3998 = vmatpush1.msra.mxu0 0.0
    %3999 = vmatprep.subr.mxu0 0.0
    %4000 = vmatpush1.msra.mxu0 0.0
    %4001 = vmatprep.subr.mxu0 0.0
    %4002 = vmatpush1.msra.mxu0 0.0
    %4003 = vmatprep.subr.mxu0 0.0
    %4004 = vmatpush1.msra.mxu0 0.0
    %4005 = vmatprep.subr.mxu0 0.0
    %4006 = vmatpush1.msra.mxu0 0.0
    %4007 = vmatprep.subr.mxu0 0.0
    %4008 = vmatpush1.msra.mxu0 0.0
    %4009 = vmatprep.subr.mxu0 0.0
    %4010 = vmatpush1.msra.mxu0 0.0
    %4011 = vmatprep.subr.mxu0 0.0
    %4012 = vmatpush1.msra.mxu0 0.0
    %4013 = vmatprep.subr.mxu0 0.0
    %4014 = vmatpush1.msra.mxu0 0.0
    %4015 = vmatprep.subr.mxu0 0.0
    %4016 = vmatpush1.msra.mxu0 0.0
    %4017 = vmatprep.subr.mxu0 0.0
    %4018 = vmatpush1.msra.mxu0 0.0
    %4019 = vmatprep.subr.mxu0 0.0
    %4020 = vmatpush1.msra.mxu0 0.0
    %4021 = vmatprep.subr.mxu0 0.0
    %4022 = vmatpush1.msra.mxu0 0.0
    %4023 = vmatprep.subr.mxu0 0.0
    %4024 = vmatpush1.msra.mxu0 0.0
    %4025 = vmatprep.subr.mxu0 0.0
    %4026 = vmatpush1.msra.mxu0 0.0
    %4027 = vmatprep.subr.mxu0 0.0
    %4028 = vmatpush1.msra.mxu0 0.0
    %4029 = vmatprep.subr.mxu0 0.0
    %4030 = vmatpush1.msra.mxu0 0.0
    %4031 = vmatprep.subr.mxu0 0.0
    %4032 = vmatpush1.msra.mxu0 0.0
    %4033 = vmatprep.subr.mxu0 0.0
    %4034 = vmatpush1.msra.mxu0 0.0
    %4035 = vmatprep.subr.mxu0 0.0
    %4036 = vmatpush1.msra.mxu0 0.0
    %4037 = vmatprep.subr.mxu0 0.0
    %4038 = vmatpush1.msra.mxu0 0.0
    %4039 = vmatprep.subr.mxu0 0.0
    %4040 = vmatpush1.msra.mxu0 0.0
    %4041 = vmatprep.subr.mxu0 0.0
    %4042 = vmatpush1.msra.mxu0 0.0
    %4043 = vmatprep.subr.mxu0 0.0
    %4044 = vmatpush1.msra.mxu0 0.0
    %4045 = vmatprep.subr.mxu0 0.0
    %4046 = vmatpush1.msra.mxu0 0.0
    %4047 = vmatprep.subr.mxu0 0.0
    %4048 = vmatpush1.msra.mxu0 0.0
    %4049 = vmatprep.subr.mxu0 0.0
    %4050 = vmatpush1.msra.mxu0 0.0
    %4051 = vmatprep.mubr.f32.mxu0 0.0
    %v4052 = vand.u32 %v3977, 4294901760
    %v4053 = vsub.f32 %v3977, %v4052
    %v4054 = vand.u32 %v4053, 4294901760
    %v4055 = vsub.f32 %v4053, %v4054
    %v4056 = vand.u32 %v4055, 4294901760
    %4057 = vmatmul.mubr.f32.gmra.mrb[0].mxu0 %v4056
    %v4058 = vpop.f32.mrb[0].mxu0
    %v4059 = vadd.f32 0.0, %v4058
    %v4060 = vpop.f32.mrb[0].mxu0
    %v4061 = vadd.f32 0.0, %v4060
    %4062 = vdwg.mxu0
    %v4063 = vand.u32 %v3983, 4294901760
    %v4064 = vsub.f32 %v3983, %v4063
    %v4065 = vand.u32 %v4064, 4294901760
    %v4066 = vsub.f32 %v4064, %v4065
    %v4067 = vand.u32 %v4066, 4294901760
    %4068 = vmatprep.subr.mxu0 %v4067
    %v4069 = vand.u32 %v3980, 4294901760
    %v4070 = vsub.f32 %v3980, %v4069
    %v4071 = vand.u32 %v4070, 4294901760
    %v4072 = vsub.f32 %v4070, %v4071
    %v4073 = vand.u32 %v4072, 4294901760
    %4074 = vmatpush1.msra.mxu0 %v4073
    %4075 = vmatprep.subr.mxu0 0.0
    %4076 = vmatpush1.msra.mxu0 0.0
    %4077 = vmatprep.subr.mxu0 0.0
    %4078 = vmatpush1.msra.mxu0 0.0
    %4079 = vmatprep.subr.mxu0 0.0
    %4080 = vmatpush1.msra.mxu0 0.0
    %4081 = vmatprep.subr.mxu0 0.0
    %4082 = vmatpush1.msra.mxu0 0.0
    %4083 = vmatprep.subr.mxu0 0.0
    %4084 = vmatpush1.msra.mxu0 0.0
    %4085 = vmatprep.subr.mxu0 0.0
    %4086 = vmatpush1.msra.mxu0 0.0
    %4087 = vmatprep.subr.mxu0 0.0
    %4088 = vmatpush1.msra.mxu0 0.0
    %4089 = vmatprep.subr.mxu0 0.0
    %4090 = vmatpush1.msra.mxu0 0.0
    %4091 = vmatprep.subr.mxu0 0.0
    %4092 = vmatpush1.msra.mxu0 0.0
    %4093 = vmatprep.subr.mxu0 0.0
    %4094 = vmatpush1.msra.mxu0 0.0
    %4095 = vmatprep.subr.mxu0 0.0
    %4096 = vmatpush1.msra.mxu0 0.0
    %4097 = vmatprep.subr.mxu0 0.0
    %4098 = vmatpush1.msra.mxu0 0.0
    %4099 = vmatprep.subr.mxu0 0.0
    %4100 = vmatpush1.msra.mxu0 0.0
    %4101 = vmatprep.subr.mxu0 0.0
    %4102 = vmatpush1.msra.mxu0 0.0
    %4103 = vmatprep.subr.mxu0 0.0
    %4104 = vmatpush1.msra.mxu0 0.0
    %4105 = vmatprep.subr.mxu0 0.0
    %4106 = vmatpush1.msra.mxu0 0.0
    %4107 = vmatprep.subr.mxu0 0.0
    %4108 = vmatpush1.msra.mxu0 0.0
    %4109 = vmatprep.subr.mxu0 0.0
    %4110 = vmatpush1.msra.mxu0 0.0
    %4111 = vmatprep.subr.mxu0 0.0
    %4112 = vmatpush1.msra.mxu0 0.0
    %4113 = vmatprep.subr.mxu0 0.0
    %4114 = vmatpush1.msra.mxu0 0.0
    %4115 = vmatprep.subr.mxu0 0.0
    %4116 = vmatpush1.msra.mxu0 0.0
    %4117 = vmatprep.subr.mxu0 0.0
    %4118 = vmatpush1.msra.mxu0 0.0
    %4119 = vmatprep.subr.mxu0 0.0
    %4120 = vmatpush1.msra.mxu0 0.0
    %4121 = vmatprep.subr.mxu0 0.0
    %4122 = vmatpush1.msra.mxu0 0.0
    %4123 = vmatprep.subr.mxu0 0.0
    %4124 = vmatpush1.msra.mxu0 0.0
    %4125 = vmatprep.subr.mxu0 0.0
    %4126 = vmatpush1.msra.mxu0 0.0
    %4127 = vmatprep.subr.mxu0 0.0
    %4128 = vmatpush1.msra.mxu0 0.0
    %4129 = vmatprep.subr.mxu0 0.0
    %4130 = vmatpush1.msra.mxu0 0.0
    %4131 = vmatprep.subr.mxu0 0.0
    %4132 = vmatpush1.msra.mxu0 0.0
    %4133 = vmatprep.subr.mxu0 0.0
    %4134 = vmatpush1.msra.mxu0 0.0
    %4135 = vmatprep.subr.mxu0 0.0
    %4136 = vmatpush1.msra.mxu0 0.0
    %4137 = vmatprep.mubr.f32.mxu0 0.0
    %v4138 = vand.u32 %v3977, 4294901760
    %4139 = vmatmul.mubr.f32.gmra.mrb[0].mxu0 %v4138
    %v4140 = vpop.f32.mrb[0].mxu0
    %v4141 = vadd.f32 %v4059, %v4140
    %v4142 = vpop.f32.mrb[0].mxu0
    %v4143 = vadd.f32 %v4061, %v4142
    %4144 = vdwg.mxu0
    %v4145 = vand.u32 %v3983, 4294901760
    %v4146 = vsub.f32 %v3983, %v4145
    %4147 = vmatprep.subr.mxu0 %v4146
    %v4148 = vand.u32 %v3980, 4294901760
    %v4149 = vsub.f32 %v3980, %v4148
    %4150 = vmatpush1.msra.mxu0 %v4149
    %4151 = vmatprep.subr.mxu0 0.0
    %4152 = vmatpush1.msra.mxu0 0.0
    %4153 = vmatprep.subr.mxu0 0.0
    %4154 = vmatpush1.msra.mxu0 0.0
    %4155 = vmatprep.subr.mxu0 0.0
    %4156 = vmatpush1.msra.mxu0 0.0
    %4157 = vmatprep.subr.mxu0 0.0
    %4158 = vmatpush1.msra.mxu0 0.0
    %4159 = vmatprep.subr.mxu0 0.0
    %4160 = vmatpush1.msra.mxu0 0.0
    %4161 = vmatprep.subr.mxu0 0.0
    %4162 = vmatpush1.msra.mxu0 0.0
    %4163 = vmatprep.subr.mxu0 0.0
    %4164 = vmatpush1.msra.mxu0 0.0
    %4165 = vmatprep.subr.mxu0 0.0
    %4166 = vmatpush1.msra.mxu0 0.0
    %4167 = vmatprep.subr.mxu0 0.0
    %4168 = vmatpush1.msra.mxu0 0.0
    %4169 = vmatprep.subr.mxu0 0.0
    %4170 = vmatpush1.msra.mxu0 0.0
    %4171 = vmatprep.subr.mxu0 0.0
    %4172 = vmatpush1.msra.mxu0 0.0
    %4173 = vmatprep.subr.mxu0 0.0
    %4174 = vmatpush1.msra.mxu0 0.0
    %4175 = vmatprep.subr.mxu0 0.0
    %4176 = vmatpush1.msra.mxu0 0.0
    %4177 = vmatprep.subr.mxu0 0.0
    %4178 = vmatpush1.msra.mxu0 0.0
    %4179 = vmatprep.subr.mxu0 0.0
    %4180 = vmatpush1.msra.mxu0 0.0
    %4181 = vmatprep.subr.mxu0 0.0
    %4182 = vmatpush1.msra.mxu0 0.0
    %4183 = vmatprep.subr.mxu0 0.0
    %4184 = vmatpush1.msra.mxu0 0.0
    %4185 = vmatprep.subr.mxu0 0.0
    %4186 = vmatpush1.msra.mxu0 0.0
    %4187 = vmatprep.subr.mxu0 0.0
    %4188 = vmatpush1.msra.mxu0 0.0
    %4189 = vmatprep.subr.mxu0 0.0
    %4190 = vmatpush1.msra.mxu0 0.0
    %4191 = vmatprep.subr.mxu0 0.0
    %4192 = vmatpush1.msra.mxu0 0.0
    %4193 = vmatprep.subr.mxu0 0.0
    %4194 = vmatpush1.msra.mxu0 0.0
    %4195 = vmatprep.subr.mxu0 0.0
    %4196 = vmatpush1.msra.mxu0 0.0
    %4197 = vmatprep.subr.mxu0 0.0
    %4198 = vmatpush1.msra.mxu0 0.0
    %4199 = vmatprep.subr.mxu0 0.0
    %4200 = vmatpush1.msra.mxu0 0.0
    %4201 = vmatprep.subr.mxu0 0.0
    %4202 = vmatpush1.msra.mxu0 0.0
    %4203 = vmatprep.subr.mxu0 0.0
    %4204 = vmatpush1.msra.mxu0 0.0
    %4205 = vmatprep.subr.mxu0 0.0
    %4206 = vmatpush1.msra.mxu0 0.0
    %4207 = vmatprep.subr.mxu0 0.0
    %4208 = vmatpush1.msra.mxu0 0.0
    %4209 = vmatprep.subr.mxu0 0.0
    %4210 = vmatpush1.msra.mxu0 0.0
    %4211 = vmatprep.subr.mxu0 0.0
    %4212 = vmatpush1.msra.mxu0 0.0
    %4213 = vmatprep.mubr.f32.mxu0 0.0
    %v4214 = vand.u32 %v3977, 4294901760
    %v4215 = vsub.f32 %v3977, %v4214
    %4216 = vmatmul.mubr.f32.gmra.mrb[0].mxu0 %v4215
    %v4217 = vpop.f32.mrb[0].mxu0
    %v4218 = vadd.f32 %v4141, %v4217
    %v4219 = vpop.f32.mrb[0].mxu0
    %v4220 = vadd.f32 %v4143, %v4219
    %4221 = vdwg.mxu0
    %v4222 = vand.u32 %v3983, 4294901760
    %4223 = vmatprep.subr.mxu0 %v4222
    %v4224 = vand.u32 %v3980, 4294901760
    %4225 = vmatpush1.msra.mxu0 %v4224
    %4226 = vmatprep.subr.mxu0 0.0
    %4227 = vmatpush1.msra.mxu0 0.0
    %4228 = vmatprep.subr.mxu0 0.0
    %4229 = vmatpush1.msra.mxu0 0.0
    %4230 = vmatprep.subr.mxu0 0.0
    %4231 = vmatpush1.msra.mxu0 0.0
    %4232 = vmatprep.subr.mxu0 0.0
    %4233 = vmatpush1.msra.mxu0 0.0
    %4234 = vmatprep.subr.mxu0 0.0
    %4235 = vmatpush1.msra.mxu0 0.0
    %4236 = vmatprep.subr.mxu0 0.0
    %4237 = vmatpush1.msra.mxu0 0.0
    %4238 = vmatprep.subr.mxu0 0.0
    %4239 = vmatpush1.msra.mxu0 0.0
    %4240 = vmatprep.subr.mxu0 0.0
    %4241 = vmatpush1.msra.mxu0 0.0
    %4242 = vmatprep.subr.mxu0 0.0
    %4243 = vmatpush1.msra.mxu0 0.0
    %4244 = vmatprep.subr.mxu0 0.0
    %4245 = vmatpush1.msra.mxu0 0.0
    %4246 = vmatprep.subr.mxu0 0.0
    %4247 = vmatpush1.msra.mxu0 0.0
    %4248 = vmatprep.subr.mxu0 0.0
    %4249 = vmatpush1.msra.mxu0 0.0
    %4250 = vmatprep.subr.mxu0 0.0
    %4251 = vmatpush1.msra.mxu0 0.0
    %4252 = vmatprep.subr.mxu0 0.0
    %4253 = vmatpush1.msra.mxu0 0.0
    %4254 = vmatprep.subr.mxu0 0.0
    %4255 = vmatpush1.msra.mxu0 0.0
    %4256 = vmatprep.subr.mxu0 0.0
    %4257 = vmatpush1.msra.mxu0 0.0
    %4258 = vmatprep.subr.mxu0 0.0
    %4259 = vmatpush1.msra.mxu0 0.0
    %4260 = vmatprep.subr.mxu0 0.0
    %4261 = vmatpush1.msra.mxu0 0.0
    %4262 = vmatprep.subr.mxu0 0.0
    %4263 = vmatpush1.msra.mxu0 0.0
    %4264 = vmatprep.subr.mxu0 0.0
    %4265 = vmatpush1.msra.mxu0 0.0
    %4266 = vmatprep.subr.mxu0 0.0
    %4267 = vmatpush1.msra.mxu0 0.0
    %4268 = vmatprep.subr.mxu0 0.0
    %4269 = vmatpush1.msra.mxu0 0.0
    %4270 = vmatprep.subr.mxu0 0.0
    %4271 = vmatpush1.msra.mxu0 0.0
    %4272 = vmatprep.subr.mxu0 0.0
    %4273 = vmatpush1.msra.mxu0 0.0
    %4274 = vmatprep.subr.mxu0 0.0
    %4275 = vmatpush1.msra.mxu0 0.0
    %4276 = vmatprep.subr.mxu0 0.0
    %4277 = vmatpush1.msra.mxu0 0.0
    %4278 = vmatprep.subr.mxu0 0.0
    %4279 = vmatpush1.msra.mxu0 0.0
    %4280 = vmatprep.subr.mxu0 0.0
    %4281 = vmatpush1.msra.mxu0 0.0
    %4282 = vmatprep.subr.mxu0 0.0
    %4283 = vmatpush1.msra.mxu0 0.0
    %4284 = vmatprep.subr.mxu0 0.0
    %4285 = vmatpush1.msra.mxu0 0.0
    %4286 = vmatprep.subr.mxu0 0.0
    %4287 = vmatpush1.msra.mxu0 0.0
    %4288 = vmatprep.mubr.f32.mxu0 0.0
    %v4289 = vand.u32 %v3977, 4294901760
    %v4290 = vsub.f32 %v3977, %v4289
    %v4291 = vand.u32 %v4290, 4294901760
    %4292 = vmatmul.mubr.f32.gmra.mrb[0].mxu0 %v4291
    %v4293 = vpop.f32.mrb[0].mxu0
    %v4294 = vadd.f32 %v4218, %v4293
    %v4295 = vpop.f32.mrb[0].mxu0
    %v4296 = vadd.f32 %v4220, %v4295
    %4297 = vdwg.mxu0
    %v4298 = vand.u32 %v3983, 4294901760
    %v4299 = vsub.f32 %v3983, %v4298
    %v4300 = vand.u32 %v4299, 4294901760
    %4301 = vmatprep.subr.mxu0 %v4300
    %v4302 = vand.u32 %v3980, 4294901760
    %v4303 = vsub.f32 %v3980, %v4302
    %v4304 = vand.u32 %v4303, 4294901760
    %4305 = vmatpush1.msra.mxu0 %v4304
    %4306 = vmatprep.subr.mxu0 0.0
    %4307 = vmatpush1.msra.mxu0 0.0
    %4308 = vmatprep.subr.mxu0 0.0
    %4309 = vmatpush1.msra.mxu0 0.0
    %4310 = vmatprep.subr.mxu0 0.0
    %4311 = vmatpush1.msra.mxu0 0.0
    %4312 = vmatprep.subr.mxu0 0.0
    %4313 = vmatpush1.msra.mxu0 0.0
    %4314 = vmatprep.subr.mxu0 0.0
    %4315 = vmatpush1.msra.mxu0 0.0
    %4316 = vmatprep.subr.mxu0 0.0
    %4317 = vmatpush1.msra.mxu0 0.0
    %4318 = vmatprep.subr.mxu0 0.0
    %4319 = vmatpush1.msra.mxu0 0.0
    %4320 = vmatprep.subr.mxu0 0.0
    %4321 = vmatpush1.msra.mxu0 0.0
    %4322 = vmatprep.subr.mxu0 0.0
    %4323 = vmatpush1.msra.mxu0 0.0
    %4324 = vmatprep.subr.mxu0 0.0
    %4325 = vmatpush1.msra.mxu0 0.0
    %4326 = vmatprep.subr.mxu0 0.0
    %4327 = vmatpush1.msra.mxu0 0.0
    %4328 = vmatprep.subr.mxu0 0.0
    %4329 = vmatpush1.msra.mxu0 0.0
    %4330 = vmatprep.subr.mxu0 0.0
    %4331 = vmatpush1.msra.mxu0 0.0
    %4332 = vmatprep.subr.mxu0 0.0
    %4333 = vmatpush1.msra.mxu0 0.0
    %4334 = vmatprep.subr.mxu0 0.0
    %4335 = vmatpush1.msra.mxu0 0.0
    %4336 = vmatprep.subr.mxu0 0.0
    %4337 = vmatpush1.msra.mxu0 0.0
    %4338 = vmatprep.subr.mxu0 0.0
    %4339 = vmatpush1.msra.mxu0 0.0
    %4340 = vmatprep.subr.mxu0 0.0
    %4341 = vmatpush1.msra.mxu0 0.0
    %4342 = vmatprep.subr.mxu0 0.0
    %4343 = vmatpush1.msra.mxu0 0.0
    %4344 = vmatprep.subr.mxu0 0.0
    %4345 = vmatpush1.msra.mxu0 0.0
    %4346 = vmatprep.subr.mxu0 0.0
    %4347 = vmatpush1.msra.mxu0 0.0
    %4348 = vmatprep.subr.mxu0 0.0
    %4349 = vmatpush1.msra.mxu0 0.0
    %4350 = vmatprep.subr.mxu0 0.0
    %4351 = vmatpush1.msra.mxu0 0.0
    %4352 = vmatprep.subr.mxu0 0.0
    %4353 = vmatpush1.msra.mxu0 0.0
    %4354 = vmatprep.subr.mxu0 0.0
    %4355 = vmatpush1.msra.mxu0 0.0
    %4356 = vmatprep.subr.mxu0 0.0
    %4357 = vmatpush1.msra.mxu0 0.0
    %4358 = vmatprep.subr.mxu0 0.0
    %4359 = vmatpush1.msra.mxu0 0.0
    %4360 = vmatprep.subr.mxu0 0.0
    %4361 = vmatpush1.msra.mxu0 0.0
    %4362 = vmatprep.subr.mxu0 0.0
    %4363 = vmatpush1.msra.mxu0 0.0
    %4364 = vmatprep.subr.mxu0 0.0
    %4365 = vmatpush1.msra.mxu0 0.0
    %4366 = vmatprep.subr.mxu0 0.0
    %4367 = vmatpush1.msra.mxu0 0.0
    %4368 = vmatprep.mubr.f32.mxu0 0.0
    %v4369 = vand.u32 %v3977, 4294901760
    %4370 = vmatmul.mubr.f32.gmra.mrb[0].mxu0 %v4369
    %v4371 = vpop.f32.mrb[0].mxu0
    %v4372 = vadd.f32 %v4294, %v4371
    %v4373 = vpop.f32.mrb[0].mxu0
    %v4374 = vadd.f32 %v4296, %v4373
    %4375 = vdwg.mxu0
    %v4376 = vand.u32 %v3983, 4294901760
    %4377 = vmatprep.subr.mxu0 %v4376
    %v4378 = vand.u32 %v3980, 4294901760
    %4379 = vmatpush1.msra.mxu0 %v4378
    %4380 = vmatprep.subr.mxu0 0.0
    %4381 = vmatpush1.msra.mxu0 0.0
    %4382 = vmatprep.subr.mxu0 0.0
    %4383 = vmatpush1.msra.mxu0 0.0
    %4384 = vmatprep.subr.mxu0 0.0
    %4385 = vmatpush1.msra.mxu0 0.0
    %4386 = vmatprep.subr.mxu0 0.0
    %4387 = vmatpush1.msra.mxu0 0.0
    %4388 = vmatprep.subr.mxu0 0.0
    %4389 = vmatpush1.msra.mxu0 0.0
    %4390 = vmatprep.subr.mxu0 0.0
    %4391 = vmatpush1.msra.mxu0 0.0
    %4392 = vmatprep.subr.mxu0 0.0
    %4393 = vmatpush1.msra.mxu0 0.0
    %4394 = vmatprep.subr.mxu0 0.0
    %4395 = vmatpush1.msra.mxu0 0.0
    %4396 = vmatprep.subr.mxu0 0.0
    %4397 = vmatpush1.msra.mxu0 0.0
    %4398 = vmatprep.subr.mxu0 0.0
    %4399 = vmatpush1.msra.mxu0 0.0
    %4400 = vmatprep.subr.mxu0 0.0
    %4401 = vmatpush1.msra.mxu0 0.0
    %4402 = vmatprep.subr.mxu0 0.0
    %4403 = vmatpush1.msra.mxu0 0.0
    %4404 = vmatprep.subr.mxu0 0.0
    %4405 = vmatpush1.msra.mxu0 0.0
    %4406 = vmatprep.subr.mxu0 0.0
    %4407 = vmatpush1.msra.mxu0 0.0
    %4408 = vmatprep.subr.mxu0 0.0
    %4409 = vmatpush1.msra.mxu0 0.0
    %4410 = vmatprep.subr.mxu0 0.0
    %4411 = vmatpush1.msra.mxu0 0.0
    %4412 = vmatprep.subr.mxu0 0.0
    %4413 = vmatpush1.msra.mxu0 0.0
    %4414 = vmatprep.subr.mxu0 0.0
    %4415 = vmatpush1.msra.mxu0 0.0
    %4416 = vmatprep.subr.mxu0 0.0
    %4417 = vmatpush1.msra.mxu0 0.0
    %4418 = vmatprep.subr.mxu0 0.0
    %4419 = vmatpush1.msra.mxu0 0.0
    %4420 = vmatprep.subr.mxu0 0.0
    %4421 = vmatpush1.msra.mxu0 0.0
    %4422 = vmatprep.subr.mxu0 0.0
    %4423 = vmatpush1.msra.mxu0 0.0
    %4424 = vmatprep.subr.mxu0 0.0
    %4425 = vmatpush1.msra.mxu0 0.0
    %4426 = vmatprep.subr.mxu0 0.0
    %4427 = vmatpush1.msra.mxu0 0.0
    %4428 = vmatprep.subr.mxu0 0.0
    %4429 = vmatpush1.msra.mxu0 0.0
    %4430 = vmatprep.subr.mxu0 0.0
    %4431 = vmatpush1.msra.mxu0 0.0
    %4432 = vmatprep.subr.mxu0 0.0
    %4433 = vmatpush1.msra.mxu0 0.0
    %4434 = vmatprep.subr.mxu0 0.0
    %4435 = vmatpush1.msra.mxu0 0.0
    %4436 = vmatprep.subr.mxu0 0.0
    %4437 = vmatpush1.msra.mxu0 0.0
    %4438 = vmatprep.subr.mxu0 0.0
    %4439 = vmatpush1.msra.mxu0 0.0
    %4440 = vmatprep.subr.mxu0 0.0
    %4441 = vmatpush1.msra.mxu0 0.0
    %4442 = vmatprep.mubr.f32.mxu0 0.0
    %v4443 = vand.u32 %v3977, 4294901760
    %4444 = vmatmul.mubr.f32.gmra.mrb[0].mxu0 %v4443
    %v4445 = vpop.f32.mrb[0].mxu0
    %v4446 = vadd.f32 %v4372, %v4445
    %v4447 = vpop.f32.mrb[0].mxu0
    %v4448 = vadd.f32 %v4374, %v4447
    %4449 = vdwg.mxu0
    %v4450 = vadd.f32 %v3960, %v4446
    %v4451 = vadd.f32 %v3961, %v4448
    %4453 = vset.pattern.permute.xlu0 0
    %4454 = vperm.xlu0 %4453, %v54
    %v4455 = vpop.permute.xlu0 %4454
    %v4457 = vadd.f32 %v4450, %v4455
    %v4458 = vadd.f32 %v4451, %v4455
    %v4459 = vmax.f32 %v4457, 0.0
    %v4460 = vmax.f32 %v4458, 0.0
    %4461 = vst [vmem:[%s5] sm:$0xff] %v4459
    %4462 = vst [vmem:[%s5 + $0x8] sm:$0xff] %v4460
    %v4463 = vadd.f32 %v4459, %v4460
    %4464 = vadd.xlane.f32.xlu0 %v4463
    %v4465 = vpop.xlane.xlu0 %4464
    %v4466 = vrcp.pop 256.0
    %v4467 = vmul.f32 %v4465, %v4466
    %v4468 = vmul.f32 %v4467, %v55
    %vm4469 = vcmask 261120
    %v4470 = vsel %vm4469, %v4468, 0.0
    %v4471 = vrot.slane %v4470, 4
    %v4472 = vadd.f32 %v4470, %v4471
    %v4473 = vrot.slane %v4472, 2
    %v4474 = vadd.f32 %v4472, %v4473
    %v4475 = vrot.slane %v4474, 1
    %v4476 = vadd.f32 %v4474, %v4475
    %v4477 = vadd.f32 %v4476, %v56
    %vm4478 = vcmask 253952
    %4479 = vst.msk [vmem:[#allocation2] sm:$0x1] %vm4478, %v4477
    %s4480 = scalar_lea.vmem %s0, 12
    %v4481 = vld [vmem:[%s4480] sm:$0xff]
    %v4482 = vld [vmem:[%s4480 + $0x8] sm:$0xf]
    %v4485 = vcombine.high %v4481, %v4481
    %4486 = vrot.lane.b32.xlu0 %v4481, 113
    %v4487 = vpop.permute.xlu0 %4486
    %4488 = vrot.lane.b32.xlu0 %v4485, 113
    %v4489 = vpop.permute.xlu0 %4488
    %4490 = vrot.lane.b32.xlu0 %v4482, 113
    %v4491 = vpop.permute.xlu0 %4490
    %v4492 = vsel %vm68, %v4487, %v4489
    %v4493 = vsel %vm68, %v4489, %v4491
    %v4496 = vsel %vm50, %v4492, 0.0
    %v4497 = vsel %vm51, %v4493, 0.0
    %v4498 = vld [vmem:[%s1] sm:$0xff]
    %v4499 = vld [vmem:[%s1 + $0x8] sm:$0xff]
    %4500 = vrot.lane.b32.xlu0 %v4481, 112
    %v4501 = vpop.permute.xlu0 %4500
    %4502 = vrot.lane.b32.xlu0 %v4485, 112
    %v4503 = vpop.permute.xlu0 %4502
    %4504 = vrot.lane.b32.xlu0 %v4482, 112
    %v4505 = vpop.permute.xlu0 %4504
    %v4506 = vsel %vm83, %v4501, %v4503
    %v4507 = vsel %vm83, %v4503, %v4505
    %v4509 = vsel %vm86, %v4499, 0
    %v4511 = vsel %vm90, %v4506, 0
    %v4513 = vsel %vm90, %v4507, 0
    %v4515 = vand.u32 %v4513, 4294901760
    %4516 = vmatprep.subr.mxu0 %v4515
    %v4517 = vand.u32 %v4511, 4294901760
    %4518 = vmatpush1.msra.mxu0 %v4517
    %4519 = vmatprep.subr.mxu0 0.0
    %4520 = vmatpush1.msra.mxu0 0.0
    %4521 = vmatprep.subr.mxu0 0.0
    %4522 = vmatpush1.msra.mxu0 0.0
    %4523 = vmatprep.subr.mxu0 0.0
    %4524 = vmatpush1.msra.mxu0 0.0
    %4525 = vmatprep.subr.mxu0 0.0
    %4526 = vmatpush1.msra.mxu0 0.0
    %4527 = vmatprep.subr.mxu0 0.0
    %4528 = vmatpush1.msra.mxu0 0.0
    %4529 = vmatprep.subr.mxu0 0.0
    %4530 = vmatpush1.msra.mxu0 0.0
    %4531 = vmatprep.subr.mxu0 0.0
    %4532 = vmatpush1.msra.mxu0 0.0
    %4533 = vmatprep.subr.mxu0 0.0
    %4534 = vmatpush1.msra.mxu0 0.0
    %4535 = vmatprep.subr.mxu0 0.0
    %4536 = vmatpush1.msra.mxu0 0.0
    %4537 = vmatprep.subr.mxu0 0.0
    %4538 = vmatpush1.msra.mxu0 0.0
    %4539 = vmatprep.subr.mxu0 0.0
    %4540 = vmatpush1.msra.mxu0 0.0
    %4541 = vmatprep.subr.mxu0 0.0
    %4542 = vmatpush1.msra.mxu0 0.0
    %4543 = vmatprep.subr.mxu0 0.0
    %4544 = vmatpush1.msra.mxu0 0.0
    %4545 = vmatprep.subr.mxu0 0.0
    %4546 = vmatpush1.msra.mxu0 0.0
    %4547 = vmatprep.subr.mxu0 0.0
    %4548 = vmatpush1.msra.mxu0 0.0
    %4549 = vmatprep.subr.mxu0 0.0
    %4550 = vmatpush1.msra.mxu0 0.0
    %4551 = vmatprep.subr.mxu0 0.0
    %4552 = vmatpush1.msra.mxu0 0.0
    %4553 = vmatprep.subr.mxu0 0.0
    %4554 = vmatpush1.msra.mxu0 0.0
    %4555 = vmatprep.subr.mxu0 0.0
    %4556 = vmatpush1.msra.mxu0 0.0
    %4557 = vmatprep.subr.mxu0 0.0
    %4558 = vmatpush1.msra.mxu0 0.0
    %4559 = vmatprep.subr.mxu0 0.0
    %4560 = vmatpush1.msra.mxu0 0.0
    %4561 = vmatprep.subr.mxu0 0.0
    %4562 = vmatpush1.msra.mxu0 0.0
    %4563 = vmatprep.subr.mxu0 0.0
    %4564 = vmatpush1.msra.mxu0 0.0
    %4565 = vmatprep.subr.mxu0 0.0
    %4566 = vmatpush1.msra.mxu0 0.0
    %4567 = vmatprep.subr.mxu0 0.0
    %4568 = vmatpush1.msra.mxu0 0.0
    %4569 = vmatprep.subr.mxu0 0.0
    %4570 = vmatpush1.msra.mxu0 0.0
    %4571 = vmatprep.subr.mxu0 0.0
    %4572 = vmatpush1.msra.mxu0 0.0
    %4573 = vmatprep.subr.mxu0 0.0
    %4574 = vmatpush1.msra.mxu0 0.0
    %4575 = vmatprep.subr.mxu0 0.0
    %4576 = vmatpush1.msra.mxu0 0.0
    %4577 = vmatprep.subr.mxu0 0.0
    %4578 = vmatpush1.msra.mxu0 0.0
    %4579 = vmatprep.subr.mxu0 0.0
    %4580 = vmatpush1.msra.mxu0 0.0
    %4581 = vmatprep.mubr.f32.mxu0 0.0
    %v4582 = vand.u32 %v4509, 4294901760
    %v4583 = vsub.f32 %v4509, %v4582
    %v4584 = vand.u32 %v4583, 4294901760
    %v4585 = vsub.f32 %v4583, %v4584
    %v4586 = vand.u32 %v4585, 4294901760
    %4587 = vmatmul.mubr.f32.gmra.mrb[0].mxu0 %v4586
    %v4588 = vpop.f32.mrb[0].mxu0
    %v4589 = vadd.f32 0.0, %v4588
    %v4590 = vpop.f32.mrb[0].mxu0
    %v4591 = vadd.f32 0.0, %v4590
    %4592 = vdwg.mxu0
    %v4593 = vand.u32 %v4513, 4294901760
    %v4594 = vsub.f32 %v4513, %v4593
    %v4595 = vand.u32 %v4594, 4294901760
    %v4596 = vsub.f32 %v4594, %v4595
    %v4597 = vand.u32 %v4596, 4294901760
    %4598 = vmatprep.subr.mxu0 %v4597
    %v4599 = vand.u32 %v4511, 4294901760
    %v4600 = vsub.f32 %v4511, %v4599
    %v4601 = vand.u32 %v4600, 4294901760
    %v4602 = vsub.f32 %v4600, %v4601
    %v4603 = vand.u32 %v4602, 4294901760
    %4604 = vmatpush1.msra.mxu0 %v4603
    %4605 = vmatprep.subr.mxu0 0.0
    %4606 = vmatpush1.msra.mxu0 0.0
    %4607 = vmatprep.subr.mxu0 0.0
    %4608 = vmatpush1.msra.mxu0 0.0
    %4609 = vmatprep.subr.mxu0 0.0
    %4610 = vmatpush1.msra.mxu0 0.0
    %4611 = vmatprep.subr.mxu0 0.0
    %4612 = vmatpush1.msra.mxu0 0.0
    %4613 = vmatprep.subr.mxu0 0.0
    %4614 = vmatpush1.msra.mxu0 0.0
    %4615 = vmatprep.subr.mxu0 0.0
    %4616 = vmatpush1.msra.mxu0 0.0
    %4617 = vmatprep.subr.mxu0 0.0
    %4618 = vmatpush1.msra.mxu0 0.0
    %4619 = vmatprep.subr.mxu0 0.0
    %4620 = vmatpush1.msra.mxu0 0.0
    %4621 = vmatprep.subr.mxu0 0.0
    %4622 = vmatpush1.msra.mxu0 0.0
    %4623 = vmatprep.subr.mxu0 0.0
    %4624 = vmatpush1.msra.mxu0 0.0
    %4625 = vmatprep.subr.mxu0 0.0
    %4626 = vmatpush1.msra.mxu0 0.0
    %4627 = vmatprep.subr.mxu0 0.0
    %4628 = vmatpush1.msra.mxu0 0.0
    %4629 = vmatprep.subr.mxu0 0.0
    %4630 = vmatpush1.msra.mxu0 0.0
    %4631 = vmatprep.subr.mxu0 0.0
    %4632 = vmatpush1.msra.mxu0 0.0
    %4633 = vmatprep.subr.mxu0 0.0
    %4634 = vmatpush1.msra.mxu0 0.0
    %4635 = vmatprep.subr.mxu0 0.0
    %4636 = vmatpush1.msra.mxu0 0.0
    %4637 = vmatprep.subr.mxu0 0.0
    %4638 = vmatpush1.msra.mxu0 0.0
    %4639 = vmatprep.subr.mxu0 0.0
    %4640 = vmatpush1.msra.mxu0 0.0
    %4641 = vmatprep.subr.mxu0 0.0
    %4642 = vmatpush1.msra.mxu0 0.0
    %4643 = vmatprep.subr.mxu0 0.0
    %4644 = vmatpush1.msra.mxu0 0.0
    %4645 = vmatprep.subr.mxu0 0.0
    %4646 = vmatpush1.msra.mxu0 0.0
    %4647 = vmatprep.subr.mxu0 0.0
    %4648 = vmatpush1.msra.mxu0 0.0
    %4649 = vmatprep.subr.mxu0 0.0
    %4650 = vmatpush1.msra.mxu0 0.0
    %4651 = vmatprep.subr.mxu0 0.0
    %4652 = vmatpush1.msra.mxu0 0.0
    %4653 = vmatprep.subr.mxu0 0.0
    %4654 = vmatpush1.msra.mxu0 0.0
    %4655 = vmatprep.subr.mxu0 0.0
    %4656 = vmatpush1.msra.mxu0 0.0
    %4657 = vmatprep.subr.mxu0 0.0
    %4658 = vmatpush1.msra.mxu0 0.0
    %4659 = vmatprep.subr.mxu0 0.0
    %4660 = vmatpush1.msra.mxu0 0.0
    %4661 = vmatprep.subr.mxu0 0.0
    %4662 = vmatpush1.msra.mxu0 0.0
    %4663 = vmatprep.subr.mxu0 0.0
    %4664 = vmatpush1.msra.mxu0 0.0
    %4665 = vmatprep.subr.mxu0 0.0
    %4666 = vmatpush1.msra.mxu0 0.0
    %4667 = vmatprep.mubr.f32.mxu0 0.0
    %v4668 = vand.u32 %v4509, 4294901760
    %4669 = vmatmul.mubr.f32.gmra.mrb[0].mxu0 %v4668
    %v4670 = vpop.f32.mrb[0].mxu0
    %v4671 = vadd.f32 %v4589, %v4670
    %v4672 = vpop.f32.mrb[0].mxu0
    %v4673 = vadd.f32 %v4591, %v4672
    %4674 = vdwg.mxu0
    %v4675 = vand.u32 %v4513, 4294901760
    %v4676 = vsub.f32 %v4513, %v4675
    %4677 = vmatprep.subr.mxu0 %v4676
    %v4678 = vand.u32 %v4511, 4294901760
    %v4679 = vsub.f32 %v4511, %v4678
    %4680 = vmatpush1.msra.mxu0 %v4679
    %4681 = vmatprep.subr.mxu0 0.0
    %4682 = vmatpush1.msra.mxu0 0.0
    %4683 = vmatprep.subr.mxu0 0.0
    %4684 = vmatpush1.msra.mxu0 0.0
    %4685 = vmatprep.subr.mxu0 0.0
    %4686 = vmatpush1.msra.mxu0 0.0
    %4687 = vmatprep.subr.mxu0 0.0
    %4688 = vmatpush1.msra.mxu0 0.0
    %4689 = vmatprep.subr.mxu0 0.0
    %4690 = vmatpush1.msra.mxu0 0.0
    %4691 = vmatprep.subr.mxu0 0.0
    %4692 = vmatpush1.msra.mxu0 0.0
    %4693 = vmatprep.subr.mxu0 0.0
    %4694 = vmatpush1.msra.mxu0 0.0
    %4695 = vmatprep.subr.mxu0 0.0
    %4696 = vmatpush1.msra.mxu0 0.0
    %4697 = vmatprep.subr.mxu0 0.0
    %4698 = vmatpush1.msra.mxu0 0.0
    %4699 = vmatprep.subr.mxu0 0.0
    %4700 = vmatpush1.msra.mxu0 0.0
    %4701 = vmatprep.subr.mxu0 0.0
    %4702 = vmatpush1.msra.mxu0 0.0
    %4703 = vmatprep.subr.mxu0 0.0
    %4704 = vmatpush1.msra.mxu0 0.0
    %4705 = vmatprep.subr.mxu0 0.0
    %4706 = vmatpush1.msra.mxu0 0.0
    %4707 = vmatprep.subr.mxu0 0.0
    %4708 = vmatpush1.msra.mxu0 0.0
    %4709 = vmatprep.subr.mxu0 0.0
    %4710 = vmatpush1.msra.mxu0 0.0
    %4711 = vmatprep.subr.mxu0 0.0
    %4712 = vmatpush1.msra.mxu0 0.0
    %4713 = vmatprep.subr.mxu0 0.0
    %4714 = vmatpush1.msra.mxu0 0.0
    %4715 = vmatprep.subr.mxu0 0.0
    %4716 = vmatpush1.msra.mxu0 0.0
    %4717 = vmatprep.subr.mxu0 0.0
    %4718 = vmatpush1.msra.mxu0 0.0
    %4719 = vmatprep.subr.mxu0 0.0
    %4720 = vmatpush1.msra.mxu0 0.0
    %4721 = vmatprep.subr.mxu0 0.0
    %4722 = vmatpush1.msra.mxu0 0.0
    %4723 = vmatprep.subr.mxu0 0.0
    %4724 = vmatpush1.msra.mxu0 0.0
    %4725 = vmatprep.subr.mxu0 0.0
    %4726 = vmatpush1.msra.mxu0 0.0
    %4727 = vmatprep.subr.mxu0 0.0
    %4728 = vmatpush1.msra.mxu0 0.0
    %4729 = vmatprep.subr.mxu0 0.0
    %4730 = vmatpush1.msra.mxu0 0.0
    %4731 = vmatprep.subr.mxu0 0.0
    %4732 = vmatpush1.msra.mxu0 0.0
    %4733 = vmatprep.subr.mxu0 0.0
    %4734 = vmatpush1.msra.mxu0 0.0
    %4735 = vmatprep.subr.mxu0 0.0
    %4736 = vmatpush1.msra.mxu0 0.0
    %4737 = vmatprep.subr.mxu0 0.0
    %4738 = vmatpush1.msra.mxu0 0.0
    %4739 = vmatprep.subr.mxu0 0.0
    %4740 = vmatpush1.msra.mxu0 0.0
    %4741 = vmatprep.subr.mxu0 0.0
    %4742 = vmatpush1.msra.mxu0 0.0
    %4743 = vmatprep.mubr.f32.mxu0 0.0
    %v4744 = vand.u32 %v4509, 4294901760
    %v4745 = vsub.f32 %v4509, %v4744
    %4746 = vmatmul.mubr.f32.gmra.mrb[0].mxu0 %v4745
    %v4747 = vpop.f32.mrb[0].mxu0
    %v4748 = vadd.f32 %v4671, %v4747
    %v4749 = vpop.f32.mrb[0].mxu0
    %v4750 = vadd.f32 %v4673, %v4749
    %4751 = vdwg.mxu0
    %v4752 = vand.u32 %v4513, 4294901760
    %4753 = vmatprep.subr.mxu0 %v4752
    %v4754 = vand.u32 %v4511, 4294901760
    %4755 = vmatpush1.msra.mxu0 %v4754
    %4756 = vmatprep.subr.mxu0 0.0
    %4757 = vmatpush1.msra.mxu0 0.0
    %4758 = vmatprep.subr.mxu0 0.0
    %4759 = vmatpush1.msra.mxu0 0.0
    %4760 = vmatprep.subr.mxu0 0.0
    %4761 = vmatpush1.msra.mxu0 0.0
    %4762 = vmatprep.subr.mxu0 0.0
    %4763 = vmatpush1.msra.mxu0 0.0
    %4764 = vmatprep.subr.mxu0 0.0
    %4765 = vmatpush1.msra.mxu0 0.0
    %4766 = vmatprep.subr.mxu0 0.0
    %4767 = vmatpush1.msra.mxu0 0.0
    %4768 = vmatprep.subr.mxu0 0.0
    %4769 = vmatpush1.msra.mxu0 0.0
    %4770 = vmatprep.subr.mxu0 0.0
    %4771 = vmatpush1.msra.mxu0 0.0
    %4772 = vmatprep.subr.mxu0 0.0
    %4773 = vmatpush1.msra.mxu0 0.0
    %4774 = vmatprep.subr.mxu0 0.0
    %4775 = vmatpush1.msra.mxu0 0.0
    %4776 = vmatprep.subr.mxu0 0.0
    %4777 = vmatpush1.msra.mxu0 0.0
    %4778 = vmatprep.subr.mxu0 0.0
    %4779 = vmatpush1.msra.mxu0 0.0
    %4780 = vmatprep.subr.mxu0 0.0
    %4781 = vmatpush1.msra.mxu0 0.0
    %4782 = vmatprep.subr.mxu0 0.0
    %4783 = vmatpush1.msra.mxu0 0.0
    %4784 = vmatprep.subr.mxu0 0.0
    %4785 = vmatpush1.msra.mxu0 0.0
    %4786 = vmatprep.subr.mxu0 0.0
    %4787 = vmatpush1.msra.mxu0 0.0
    %4788 = vmatprep.subr.mxu0 0.0
    %4789 = vmatpush1.msra.mxu0 0.0
    %4790 = vmatprep.subr.mxu0 0.0
    %4791 = vmatpush1.msra.mxu0 0.0
    %4792 = vmatprep.subr.mxu0 0.0
    %4793 = vmatpush1.msra.mxu0 0.0
    %4794 = vmatprep.subr.mxu0 0.0
    %4795 = vmatpush1.msra.mxu0 0.0
    %4796 = vmatprep.subr.mxu0 0.0
    %4797 = vmatpush1.msra.mxu0 0.0
    %4798 = vmatprep.subr.mxu0 0.0
    %4799 = vmatpush1.msra.mxu0 0.0
    %4800 = vmatprep.subr.mxu0 0.0
    %4801 = vmatpush1.msra.mxu0 0.0
    %4802 = vmatprep.subr.mxu0 0.0
    %4803 = vmatpush1.msra.mxu0 0.0
    %4804 = vmatprep.subr.mxu0 0.0
    %4805 = vmatpush1.msra.mxu0 0.0
    %4806 = vmatprep.subr.mxu0 0.0
    %4807 = vmatpush1.msra.mxu0 0.0
    %4808 = vmatprep.subr.mxu0 0.0
    %4809 = vmatpush1.msra.mxu0 0.0
    %4810 = vmatprep.subr.mxu0 0.0
    %4811 = vmatpush1.msra.mxu0 0.0
    %4812 = vmatprep.subr.mxu0 0.0
    %4813 = vmatpush1.msra.mxu0 0.0
    %4814 = vmatprep.subr.mxu0 0.0
    %4815 = vmatpush1.msra.mxu0 0.0
    %4816 = vmatprep.subr.mxu0 0.0
    %4817 = vmatpush1.msra.mxu0 0.0
    %4818 = vmatprep.mubr.f32.mxu0 0.0
    %v4819 = vand.u32 %v4509, 4294901760
    %v4820 = vsub.f32 %v4509, %v4819
    %v4821 = vand.u32 %v4820, 4294901760
    %4822 = vmatmul.mubr.f32.gmra.mrb[0].mxu0 %v4821
    %v4823 = vpop.f32.mrb[0].mxu0
    %v4824 = vadd.f32 %v4748, %v4823
    %v4825 = vpop.f32.mrb[0].mxu0
    %v4826 = vadd.f32 %v4750, %v4825
    %4827 = vdwg.mxu0
    %v4828 = vand.u32 %v4513, 4294901760
    %v4829 = vsub.f32 %v4513, %v4828
    %v4830 = vand.u32 %v4829, 4294901760
    %4831 = vmatprep.subr.mxu0 %v4830
    %v4832 = vand.u32 %v4511, 4294901760
    %v4833 = vsub.f32 %v4511, %v4832
    %v4834 = vand.u32 %v4833, 4294901760
    %4835 = vmatpush1.msra.mxu0 %v4834
    %4836 = vmatprep.subr.mxu0 0.0
    %4837 = vmatpush1.msra.mxu0 0.0
    %4838 = vmatprep.subr.mxu0 0.0
    %4839 = vmatpush1.msra.mxu0 0.0
    %4840 = vmatprep.subr.mxu0 0.0
    %4841 = vmatpush1.msra.mxu0 0.0
    %4842 = vmatprep.subr.mxu0 0.0
    %4843 = vmatpush1.msra.mxu0 0.0
    %4844 = vmatprep.subr.mxu0 0.0
    %4845 = vmatpush1.msra.mxu0 0.0
    %4846 = vmatprep.subr.mxu0 0.0
    %4847 = vmatpush1.msra.mxu0 0.0
    %4848 = vmatprep.subr.mxu0 0.0
    %4849 = vmatpush1.msra.mxu0 0.0
    %4850 = vmatprep.subr.mxu0 0.0
    %4851 = vmatpush1.msra.mxu0 0.0
    %4852 = vmatprep.subr.mxu0 0.0
    %4853 = vmatpush1.msra.mxu0 0.0
    %4854 = vmatprep.subr.mxu0 0.0
    %4855 = vmatpush1.msra.mxu0 0.0
    %4856 = vmatprep.subr.mxu0 0.0
    %4857 = vmatpush1.msra.mxu0 0.0
    %4858 = vmatprep.subr.mxu0 0.0
    %4859 = vmatpush1.msra.mxu0 0.0
    %4860 = vmatprep.subr.mxu0 0.0
    %4861 = vmatpush1.msra.mxu0 0.0
    %4862 = vmatprep.subr.mxu0 0.0
    %4863 = vmatpush1.msra.mxu0 0.0
    %4864 = vmatprep.subr.mxu0 0.0
    %4865 = vmatpush1.msra.mxu0 0.0
    %4866 = vmatprep.subr.mxu0 0.0
    %4867 = vmatpush1.msra.mxu0 0.0
    %4868 = vmatprep.subr.mxu0 0.0
    %4869 = vmatpush1.msra.mxu0 0.0
    %4870 = vmatprep.subr.mxu0 0.0
    %4871 = vmatpush1.msra.mxu0 0.0
    %4872 = vmatprep.subr.mxu0 0.0
    %4873 = vmatpush1.msra.mxu0 0.0
    %4874 = vmatprep.subr.mxu0 0.0
    %4875 = vmatpush1.msra.mxu0 0.0
    %4876 = vmatprep.subr.mxu0 0.0
    %4877 = vmatpush1.msra.mxu0 0.0
    %4878 = vmatprep.subr.mxu0 0.0
    %4879 = vmatpush1.msra.mxu0 0.0
    %4880 = vmatprep.subr.mxu0 0.0
    %4881 = vmatpush1.msra.mxu0 0.0
    %4882 = vmatprep.subr.mxu0 0.0
    %4883 = vmatpush1.msra.mxu0 0.0
    %4884 = vmatprep.subr.mxu0 0.0
    %4885 = vmatpush1.msra.mxu0 0.0
    %4886 = vmatprep.subr.mxu0 0.0
    %4887 = vmatpush1.msra.mxu0 0.0
    %4888 = vmatprep.subr.mxu0 0.0
    %4889 = vmatpush1.msra.mxu0 0.0
    %4890 = vmatprep.subr.mxu0 0.0
    %4891 = vmatpush1.msra.mxu0 0.0
    %4892 = vmatprep.subr.mxu0 0.0
    %4893 = vmatpush1.msra.mxu0 0.0
    %4894 = vmatprep.subr.mxu0 0.0
    %4895 = vmatpush1.msra.mxu0 0.0
    %4896 = vmatprep.subr.mxu0 0.0
    %4897 = vmatpush1.msra.mxu0 0.0
    %4898 = vmatprep.mubr.f32.mxu0 0.0
    %v4899 = vand.u32 %v4509, 4294901760
    %4900 = vmatmul.mubr.f32.gmra.mrb[0].mxu0 %v4899
    %v4901 = vpop.f32.mrb[0].mxu0
    %v4902 = vadd.f32 %v4824, %v4901
    %v4903 = vpop.f32.mrb[0].mxu0
    %v4904 = vadd.f32 %v4826, %v4903
    %4905 = vdwg.mxu0
    %v4906 = vand.u32 %v4513, 4294901760
    %4907 = vmatprep.subr.mxu0 %v4906
    %v4908 = vand.u32 %v4511, 4294901760
    %4909 = vmatpush1.msra.mxu0 %v4908
    %4910 = vmatprep.subr.mxu0 0.0
    %4911 = vmatpush1.msra.mxu0 0.0
    %4912 = vmatprep.subr.mxu0 0.0
    %4913 = vmatpush1.msra.mxu0 0.0
    %4914 = vmatprep.subr.mxu0 0.0
    %4915 = vmatpush1.msra.mxu0 0.0
    %4916 = vmatprep.subr.mxu0 0.0
    %4917 = vmatpush1.msra.mxu0 0.0
    %4918 = vmatprep.subr.mxu0 0.0
    %4919 = vmatpush1.msra.mxu0 0.0
    %4920 = vmatprep.subr.mxu0 0.0
    %4921 = vmatpush1.msra.mxu0 0.0
    %4922 = vmatprep.subr.mxu0 0.0
    %4923 = vmatpush1.msra.mxu0 0.0
    %4924 = vmatprep.subr.mxu0 0.0
    %4925 = vmatpush1.msra.mxu0 0.0
    %4926 = vmatprep.subr.mxu0 0.0
    %4927 = vmatpush1.msra.mxu0 0.0
    %4928 = vmatprep.subr.mxu0 0.0
    %4929 = vmatpush1.msra.mxu0 0.0
    %4930 = vmatprep.subr.mxu0 0.0
    %4931 = vmatpush1.msra.mxu0 0.0
    %4932 = vmatprep.subr.mxu0 0.0
    %4933 = vmatpush1.msra.mxu0 0.0
    %4934 = vmatprep.subr.mxu0 0.0
    %4935 = vmatpush1.msra.mxu0 0.0
    %4936 = vmatprep.subr.mxu0 0.0
    %4937 = vmatpush1.msra.mxu0 0.0
    %4938 = vmatprep.subr.mxu0 0.0
    %4939 = vmatpush1.msra.mxu0 0.0
    %4940 = vmatprep.subr.mxu0 0.0
    %4941 = vmatpush1.msra.mxu0 0.0
    %4942 = vmatprep.subr.mxu0 0.0
    %4943 = vmatpush1.msra.mxu0 0.0
    %4944 = vmatprep.subr.mxu0 0.0
    %4945 = vmatpush1.msra.mxu0 0.0
    %4946 = vmatprep.subr.mxu0 0.0
    %4947 = vmatpush1.msra.mxu0 0.0
    %4948 = vmatprep.subr.mxu0 0.0
    %4949 = vmatpush1.msra.mxu0 0.0
    %4950 = vmatprep.subr.mxu0 0.0
    %4951 = vmatpush1.msra.mxu0 0.0
    %4952 = vmatprep.subr.mxu0 0.0
    %4953 = vmatpush1.msra.mxu0 0.0
    %4954 = vmatprep.subr.mxu0 0.0
    %4955 = vmatpush1.msra.mxu0 0.0
    %4956 = vmatprep.subr.mxu0 0.0
    %4957 = vmatpush1.msra.mxu0 0.0
    %4958 = vmatprep.subr.mxu0 0.0
    %4959 = vmatpush1.msra.mxu0 0.0
    %4960 = vmatprep.subr.mxu0 0.0
    %4961 = vmatpush1.msra.mxu0 0.0
    %4962 = vmatprep.subr.mxu0 0.0
    %4963 = vmatpush1.msra.mxu0 0.0
    %4964 = vmatprep.subr.mxu0 0.0
    %4965 = vmatpush1.msra.mxu0 0.0
    %4966 = vmatprep.subr.mxu0 0.0
    %4967 = vmatpush1.msra.mxu0 0.0
    %4968 = vmatprep.subr.mxu0 0.0
    %4969 = vmatpush1.msra.mxu0 0.0
    %4970 = vmatprep.subr.mxu0 0.0
    %4971 = vmatpush1.msra.mxu0 0.0
    %4972 = vmatprep.mubr.f32.mxu0 0.0
    %v4973 = vand.u32 %v4509, 4294901760
    %4974 = vmatmul.mubr.f32.gmra.mrb[0].mxu0 %v4973
    %v4975 = vpop.f32.mrb[0].mxu0
    %v4976 = vadd.f32 %v4902, %v4975
    %v4977 = vpop.f32.mrb[0].mxu0
    %v4978 = vadd.f32 %v4904, %v4977
    %4979 = vdwg.mxu0
    %v4981 = vsel %vm86, %v4498, 0
    %v4984 = vsel %vm90, %v4496, 0
    %v4987 = vsel %vm90, %v4497, 0
    %v4989 = vand.u32 %v4987, 4294901760
    %4990 = vmatprep.subr.mxu0 %v4989
    %v4991 = vand.u32 %v4984, 4294901760
    %4992 = vmatpush1.msra.mxu0 %v4991
    %4993 = vmatprep.subr.mxu0 0.0
    %4994 = vmatpush1.msra.mxu0 0.0
    %4995 = vmatprep.subr.mxu0 0.0
    %4996 = vmatpush1.msra.mxu0 0.0
    %4997 = vmatprep.subr.mxu0 0.0
    %4998 = vmatpush1.msra.mxu0 0.0
    %4999 = vmatprep.subr.mxu0 0.0
    %5000 = vmatpush1.msra.mxu0 0.0
    %5001 = vmatprep.subr.mxu0 0.0
    %5002 = vmatpush1.msra.mxu0 0.0
    %5003 = vmatprep.subr.mxu0 0.0
    %5004 = vmatpush1.msra.mxu0 0.0
    %5005 = vmatprep.subr.mxu0 0.0
    %5006 = vmatpush1.msra.mxu0 0.0
    %5007 = vmatprep.subr.mxu0 0.0
    %5008 = vmatpush1.msra.mxu0 0.0
    %5009 = vmatprep.subr.mxu0 0.0
    %5010 = vmatpush1.msra.mxu0 0.0
    %5011 = vmatprep.subr.mxu0 0.0
    %5012 = vmatpush1.msra.mxu0 0.0
    %5013 = vmatprep.subr.mxu0 0.0
    %5014 = vmatpush1.msra.mxu0 0.0
    %5015 = vmatprep.subr.mxu0 0.0
    %5016 = vmatpush1.msra.mxu0 0.0
    %5017 = vmatprep.subr.mxu0 0.0
    %5018 = vmatpush1.msra.mxu0 0.0
    %5019 = vmatprep.subr.mxu0 0.0
    %5020 = vmatpush1.msra.mxu0 0.0
    %5021 = vmatprep.subr.mxu0 0.0
    %5022 = vmatpush1.msra.mxu0 0.0
    %5023 = vmatprep.subr.mxu0 0.0
    %5024 = vmatpush1.msra.mxu0 0.0
    %5025 = vmatprep.subr.mxu0 0.0
    %5026 = vmatpush1.msra.mxu0 0.0
    %5027 = vmatprep.subr.mxu0 0.0
    %5028 = vmatpush1.msra.mxu0 0.0
    %5029 = vmatprep.subr.mxu0 0.0
    %5030 = vmatpush1.msra.mxu0 0.0
    %5031 = vmatprep.subr.mxu0 0.0
    %5032 = vmatpush1.msra.mxu0 0.0
    %5033 = vmatprep.subr.mxu0 0.0
    %5034 = vmatpush1.msra.mxu0 0.0
    %5035 = vmatprep.subr.mxu0 0.0
    %5036 = vmatpush1.msra.mxu0 0.0
    %5037 = vmatprep.subr.mxu0 0.0
    %5038 = vmatpush1.msra.mxu0 0.0
    %5039 = vmatprep.subr.mxu0 0.0
    %5040 = vmatpush1.msra.mxu0 0.0
    %5041 = vmatprep.subr.mxu0 0.0
    %5042 = vmatpush1.msra.mxu0 0.0
    %5043 = vmatprep.subr.mxu0 0.0
    %5044 = vmatpush1.msra.mxu0 0.0
    %5045 = vmatprep.subr.mxu0 0.0
    %5046 = vmatpush1.msra.mxu0 0.0
    %5047 = vmatprep.subr.mxu0 0.0
    %5048 = vmatpush1.msra.mxu0 0.0
    %5049 = vmatprep.subr.mxu0 0.0
    %5050 = vmatpush1.msra.mxu0 0.0
    %5051 = vmatprep.subr.mxu0 0.0
    %5052 = vmatpush1.msra.mxu0 0.0
    %5053 = vmatprep.subr.mxu0 0.0
    %5054 = vmatpush1.msra.mxu0 0.0
    %5055 = vmatprep.mubr.f32.mxu0 0.0
    %v5056 = vand.u32 %v4981, 4294901760
    %v5057 = vsub.f32 %v4981, %v5056
    %v5058 = vand.u32 %v5057, 4294901760
    %v5059 = vsub.f32 %v5057, %v5058
    %v5060 = vand.u32 %v5059, 4294901760
    %5061 = vmatmul.mubr.f32.gmra.mrb[0].mxu0 %v5060
    %v5062 = vpop.f32.mrb[0].mxu0
    %v5063 = vadd.f32 %v4976, %v5062
    %v5064 = vpop.f32.mrb[0].mxu0
    %v5065 = vadd.f32 %v4978, %v5064
    %5066 = vdwg.mxu0
    %v5067 = vand.u32 %v4987, 4294901760
    %v5068 = vsub.f32 %v4987, %v5067
    %v5069 = vand.u32 %v5068, 4294901760
    %v5070 = vsub.f32 %v5068, %v5069
    %v5071 = vand.u32 %v5070, 4294901760
    %5072 = vmatprep.subr.mxu0 %v5071
    %v5073 = vand.u32 %v4984, 4294901760
    %v5074 = vsub.f32 %v4984, %v5073
    %v5075 = vand.u32 %v5074, 4294901760
    %v5076 = vsub.f32 %v5074, %v5075
    %v5077 = vand.u32 %v5076, 4294901760
    %5078 = vmatpush1.msra.mxu0 %v5077
    %5079 = vmatprep.subr.mxu0 0.0
    %5080 = vmatpush1.msra.mxu0 0.0
    %5081 = vmatprep.subr.mxu0 0.0
    %5082 = vmatpush1.msra.mxu0 0.0
    %5083 = vmatprep.subr.mxu0 0.0
    %5084 = vmatpush1.msra.mxu0 0.0
    %5085 = vmatprep.subr.mxu0 0.0
    %5086 = vmatpush1.msra.mxu0 0.0
    %5087 = vmatprep.subr.mxu0 0.0
    %5088 = vmatpush1.msra.mxu0 0.0
    %5089 = vmatprep.subr.mxu0 0.0
    %5090 = vmatpush1.msra.mxu0 0.0
    %5091 = vmatprep.subr.mxu0 0.0
    %5092 = vmatpush1.msra.mxu0 0.0
    %5093 = vmatprep.subr.mxu0 0.0
    %5094 = vmatpush1.msra.mxu0 0.0
    %5095 = vmatprep.subr.mxu0 0.0
    %5096 = vmatpush1.msra.mxu0 0.0
    %5097 = vmatprep.subr.mxu0 0.0
    %5098 = vmatpush1.msra.mxu0 0.0
    %5099 = vmatprep.subr.mxu0 0.0
    %5100 = vmatpush1.msra.mxu0 0.0
    %5101 = vmatprep.subr.mxu0 0.0
    %5102 = vmatpush1.msra.mxu0 0.0
    %5103 = vmatprep.subr.mxu0 0.0
    %5104 = vmatpush1.msra.mxu0 0.0
    %5105 = vmatprep.subr.mxu0 0.0
    %5106 = vmatpush1.msra.mxu0 0.0
    %5107 = vmatprep.subr.mxu0 0.0
    %5108 = vmatpush1.msra.mxu0 0.0
    %5109 = vmatprep.subr.mxu0 0.0
    %5110 = vmatpush1.msra.mxu0 0.0
    %5111 = vmatprep.subr.mxu0 0.0
    %5112 = vmatpush1.msra.mxu0 0.0
    %5113 = vmatprep.subr.mxu0 0.0
    %5114 = vmatpush1.msra.mxu0 0.0
    %5115 = vmatprep.subr.mxu0 0.0
    %5116 = vmatpush1.msra.mxu0 0.0
    %5117 = vmatprep.subr.mxu0 0.0
    %5118 = vmatpush1.msra.mxu0 0.0
    %5119 = vmatprep.subr.mxu0 0.0
    %5120 = vmatpush1.msra.mxu0 0.0
    %5121 = vmatprep.subr.mxu0 0.0
    %5122 = vmatpush1.msra.mxu0 0.0
    %5123 = vmatprep.subr.mxu0 0.0
    %5124 = vmatpush1.msra.mxu0 0.0
    %5125 = vmatprep.subr.mxu0 0.0
    %5126 = vmatpush1.msra.mxu0 0.0
    %5127 = vmatprep.subr.mxu0 0.0
    %5128 = vmatpush1.msra.mxu0 0.0
    %5129 = vmatprep.subr.mxu0 0.0
    %5130 = vmatpush1.msra.mxu0 0.0
    %5131 = vmatprep.subr.mxu0 0.0
    %5132 = vmatpush1.msra.mxu0 0.0
    %5133 = vmatprep.subr.mxu0 0.0
    %5134 = vmatpush1.msra.mxu0 0.0
    %5135 = vmatprep.subr.mxu0 0.0
    %5136 = vmatpush1.msra.mxu0 0.0
    %5137 = vmatprep.subr.mxu0 0.0
    %5138 = vmatpush1.msra.mxu0 0.0
    %5139 = vmatprep.subr.mxu0 0.0
    %5140 = vmatpush1.msra.mxu0 0.0
    %5141 = vmatprep.mubr.f32.mxu0 0.0
    %v5142 = vand.u32 %v4981, 4294901760
    %5143 = vmatmul.mubr.f32.gmra.mrb[0].mxu0 %v5142
    %v5144 = vpop.f32.mrb[0].mxu0
    %v5145 = vadd.f32 %v5063, %v5144
    %v5146 = vpop.f32.mrb[0].mxu0
    %v5147 = vadd.f32 %v5065, %v5146
    %5148 = vdwg.mxu0
    %v5149 = vand.u32 %v4987, 4294901760
    %v5150 = vsub.f32 %v4987, %v5149
    %5151 = vmatprep.subr.mxu0 %v5150
    %v5152 = vand.u32 %v4984, 4294901760
    %v5153 = vsub.f32 %v4984, %v5152
    %5154 = vmatpush1.msra.mxu0 %v5153
    %5155 = vmatprep.subr.mxu0 0.0
    %5156 = vmatpush1.msra.mxu0 0.0
    %5157 = vmatprep.subr.mxu0 0.0
    %5158 = vmatpush1.msra.mxu0 0.0
    %5159 = vmatprep.subr.mxu0 0.0
    %5160 = vmatpush1.msra.mxu0 0.0
    %5161 = vmatprep.subr.mxu0 0.0
    %5162 = vmatpush1.msra.mxu0 0.0
    %5163 = vmatprep.subr.mxu0 0.0
    %5164 = vmatpush1.msra.mxu0 0.0
    %5165 = vmatprep.subr.mxu0 0.0
    %5166 = vmatpush1.msra.mxu0 0.0
    %5167 = vmatprep.subr.mxu0 0.0
    %5168 = vmatpush1.msra.mxu0 0.0
    %5169 = vmatprep.subr.mxu0 0.0
    %5170 = vmatpush1.msra.mxu0 0.0
    %5171 = vmatprep.subr.mxu0 0.0
    %5172 = vmatpush1.msra.mxu0 0.0
    %5173 = vmatprep.subr.mxu0 0.0
    %5174 = vmatpush1.msra.mxu0 0.0
    %5175 = vmatprep.subr.mxu0 0.0
    %5176 = vmatpush1.msra.mxu0 0.0
    %5177 = vmatprep.subr.mxu0 0.0
    %5178 = vmatpush1.msra.mxu0 0.0
    %5179 = vmatprep.subr.mxu0 0.0
    %5180 = vmatpush1.msra.mxu0 0.0
    %5181 = vmatprep.subr.mxu0 0.0
    %5182 = vmatpush1.msra.mxu0 0.0
    %5183 = vmatprep.subr.mxu0 0.0
    %5184 = vmatpush1.msra.mxu0 0.0
    %5185 = vmatprep.subr.mxu0 0.0
    %5186 = vmatpush1.msra.mxu0 0.0
    %5187 = vmatprep.subr.mxu0 0.0
    %5188 = vmatpush1.msra.mxu0 0.0
    %5189 = vmatprep.subr.mxu0 0.0
    %5190 = vmatpush1.msra.mxu0 0.0
    %5191 = vmatprep.subr.mxu0 0.0
    %5192 = vmatpush1.msra.mxu0 0.0
    %5193 = vmatprep.subr.mxu0 0.0
    %5194 = vmatpush1.msra.mxu0 0.0
    %5195 = vmatprep.subr.mxu0 0.0
    %5196 = vmatpush1.msra.mxu0 0.0
    %5197 = vmatprep.subr.mxu0 0.0
    %5198 = vmatpush1.msra.mxu0 0.0
    %5199 = vmatprep.subr.mxu0 0.0
    %5200 = vmatpush1.msra.mxu0 0.0
    %5201 = vmatprep.subr.mxu0 0.0
    %5202 = vmatpush1.msra.mxu0 0.0
    %5203 = vmatprep.subr.mxu0 0.0
    %5204 = vmatpush1.msra.mxu0 0.0
    %5205 = vmatprep.subr.mxu0 0.0
    %5206 = vmatpush1.msra.mxu0 0.0
    %5207 = vmatprep.subr.mxu0 0.0
    %5208 = vmatpush1.msra.mxu0 0.0
    %5209 = vmatprep.subr.mxu0 0.0
    %5210 = vmatpush1.msra.mxu0 0.0
    %5211 = vmatprep.subr.mxu0 0.0
    %5212 = vmatpush1.msra.mxu0 0.0
    %5213 = vmatprep.subr.mxu0 0.0
    %5214 = vmatpush1.msra.mxu0 0.0
    %5215 = vmatprep.subr.mxu0 0.0
    %5216 = vmatpush1.msra.mxu0 0.0
    %5217 = vmatprep.mubr.f32.mxu0 0.0
    %v5218 = vand.u32 %v4981, 4294901760
    %v5219 = vsub.f32 %v4981, %v5218
    %5220 = vmatmul.mubr.f32.gmra.mrb[0].mxu0 %v5219
    %v5221 = vpop.f32.mrb[0].mxu0
    %v5222 = vadd.f32 %v5145, %v5221
    %v5223 = vpop.f32.mrb[0].mxu0
    %v5224 = vadd.f32 %v5147, %v5223
    %5225 = vdwg.mxu0
    %v5226 = vand.u32 %v4987, 4294901760
    %5227 = vmatprep.subr.mxu0 %v5226
    %v5228 = vand.u32 %v4984, 4294901760
    %5229 = vmatpush1.msra.mxu0 %v5228
    %5230 = vmatprep.subr.mxu0 0.0
    %5231 = vmatpush1.msra.mxu0 0.0
    %5232 = vmatprep.subr.mxu0 0.0
    %5233 = vmatpush1.msra.mxu0 0.0
    %5234 = vmatprep.subr.mxu0 0.0
    %5235 = vmatpush1.msra.mxu0 0.0
    %5236 = vmatprep.subr.mxu0 0.0
    %5237 = vmatpush1.msra.mxu0 0.0
    %5238 = vmatprep.subr.mxu0 0.0
    %5239 = vmatpush1.msra.mxu0 0.0
    %5240 = vmatprep.subr.mxu0 0.0
    %5241 = vmatpush1.msra.mxu0 0.0
    %5242 = vmatprep.subr.mxu0 0.0
    %5243 = vmatpush1.msra.mxu0 0.0
    %5244 = vmatprep.subr.mxu0 0.0
    %5245 = vmatpush1.msra.mxu0 0.0
    %5246 = vmatprep.subr.mxu0 0.0
    %5247 = vmatpush1.msra.mxu0 0.0
    %5248 = vmatprep.subr.mxu0 0.0
    %5249 = vmatpush1.msra.mxu0 0.0
    %5250 = vmatprep.subr.mxu0 0.0
    %5251 = vmatpush1.msra.mxu0 0.0
    %5252 = vmatprep.subr.mxu0 0.0
    %5253 = vmatpush1.msra.mxu0 0.0
    %5254 = vmatprep.subr.mxu0 0.0
    %5255 = vmatpush1.msra.mxu0 0.0
    %5256 = vmatprep.subr.mxu0 0.0
    %5257 = vmatpush1.msra.mxu0 0.0
    %5258 = vmatprep.subr.mxu0 0.0
    %5259 = vmatpush1.msra.mxu0 0.0
    %5260 = vmatprep.subr.mxu0 0.0
    %5261 = vmatpush1.msra.mxu0 0.0
    %5262 = vmatprep.subr.mxu0 0.0
    %5263 = vmatpush1.msra.mxu0 0.0
    %5264 = vmatprep.subr.mxu0 0.0
    %5265 = vmatpush1.msra.mxu0 0.0
    %5266 = vmatprep.subr.mxu0 0.0
    %5267 = vmatpush1.msra.mxu0 0.0
    %5268 = vmatprep.subr.mxu0 0.0
    %5269 = vmatpush1.msra.mxu0 0.0
    %5270 = vmatprep.subr.mxu0 0.0
    %5271 = vmatpush1.msra.mxu0 0.0
    %5272 = vmatprep.subr.mxu0 0.0
    %5273 = vmatpush1.msra.mxu0 0.0
    %5274 = vmatprep.subr.mxu0 0.0
    %5275 = vmatpush1.msra.mxu0 0.0
    %5276 = vmatprep.subr.mxu0 0.0
    %5277 = vmatpush1.msra.mxu0 0.0
    %5278 = vmatprep.subr.mxu0 0.0
    %5279 = vmatpush1.msra.mxu0 0.0
    %5280 = vmatprep.subr.mxu0 0.0
    %5281 = vmatpush1.msra.mxu0 0.0
    %5282 = vmatprep.subr.mxu0 0.0
    %5283 = vmatpush1.msra.mxu0 0.0
    %5284 = vmatprep.subr.mxu0 0.0
    %5285 = vmatpush1.msra.mxu0 0.0
    %5286 = vmatprep.subr.mxu0 0.0
    %5287 = vmatpush1.msra.mxu0 0.0
    %5288 = vmatprep.subr.mxu0 0.0
    %5289 = vmatpush1.msra.mxu0 0.0
    %5290 = vmatprep.subr.mxu0 0.0
    %5291 = vmatpush1.msra.mxu0 0.0
    %5292 = vmatprep.mubr.f32.mxu0 0.0
    %v5293 = vand.u32 %v4981, 4294901760
    %v5294 = vsub.f32 %v4981, %v5293
    %v5295 = vand.u32 %v5294, 4294901760
    %5296 = vmatmul.mubr.f32.gmra.mrb[0].mxu0 %v5295
    %v5297 = vpop.f32.mrb[0].mxu0
    %v5298 = vadd.f32 %v5222, %v5297
    %v5299 = vpop.f32.mrb[0].mxu0
    %v5300 = vadd.f32 %v5224, %v5299
    %5301 = vdwg.mxu0
    %v5302 = vand.u32 %v4987, 4294901760
    %v5303 = vsub.f32 %v4987, %v5302
    %v5304 = vand.u32 %v5303, 4294901760
    %5305 = vmatprep.subr.mxu0 %v5304
    %v5306 = vand.u32 %v4984, 4294901760
    %v5307 = vsub.f32 %v4984, %v5306
    %v5308 = vand.u32 %v5307, 4294901760
    %5309 = vmatpush1.msra.mxu0 %v5308
    %5310 = vmatprep.subr.mxu0 0.0
    %5311 = vmatpush1.msra.mxu0 0.0
    %5312 = vmatprep.subr.mxu0 0.0
    %5313 = vmatpush1.msra.mxu0 0.0
    %5314 = vmatprep.subr.mxu0 0.0
    %5315 = vmatpush1.msra.mxu0 0.0
    %5316 = vmatprep.subr.mxu0 0.0
    %5317 = vmatpush1.msra.mxu0 0.0
    %5318 = vmatprep.subr.mxu0 0.0
    %5319 = vmatpush1.msra.mxu0 0.0
    %5320 = vmatprep.subr.mxu0 0.0
    %5321 = vmatpush1.msra.mxu0 0.0
    %5322 = vmatprep.subr.mxu0 0.0
    %5323 = vmatpush1.msra.mxu0 0.0
    %5324 = vmatprep.subr.mxu0 0.0
    %5325 = vmatpush1.msra.mxu0 0.0
    %5326 = vmatprep.subr.mxu0 0.0
    %5327 = vmatpush1.msra.mxu0 0.0
    %5328 = vmatprep.subr.mxu0 0.0
    %5329 = vmatpush1.msra.mxu0 0.0
    %5330 = vmatprep.subr.mxu0 0.0
    %5331 = vmatpush1.msra.mxu0 0.0
    %5332 = vmatprep.subr.mxu0 0.0
    %5333 = vmatpush1.msra.mxu0 0.0
    %5334 = vmatprep.subr.mxu0 0.0
    %5335 = vmatpush1.msra.mxu0 0.0
    %5336 = vmatprep.subr.mxu0 0.0
    %5337 = vmatpush1.msra.mxu0 0.0
    %5338 = vmatprep.subr.mxu0 0.0
    %5339 = vmatpush1.msra.mxu0 0.0
    %5340 = vmatprep.subr.mxu0 0.0
    %5341 = vmatpush1.msra.mxu0 0.0
    %5342 = vmatprep.subr.mxu0 0.0
    %5343 = vmatpush1.msra.mxu0 0.0
    %5344 = vmatprep.subr.mxu0 0.0
    %5345 = vmatpush1.msra.mxu0 0.0
    %5346 = vmatprep.subr.mxu0 0.0
    %5347 = vmatpush1.msra.mxu0 0.0
    %5348 = vmatprep.subr.mxu0 0.0
    %5349 = vmatpush1.msra.mxu0 0.0
    %5350 = vmatprep.subr.mxu0 0.0
    %5351 = vmatpush1.msra.mxu0 0.0
    %5352 = vmatprep.subr.mxu0 0.0
    %5353 = vmatpush1.msra.mxu0 0.0
    %5354 = vmatprep.subr.mxu0 0.0
    %5355 = vmatpush1.msra.mxu0 0.0
    %5356 = vmatprep.subr.mxu0 0.0
    %5357 = vmatpush1.msra.mxu0 0.0
    %5358 = vmatprep.subr.mxu0 0.0
    %5359 = vmatpush1.msra.mxu0 0.0
    %5360 = vmatprep.subr.mxu0 0.0
    %5361 = vmatpush1.msra.mxu0 0.0
    %5362 = vmatprep.subr.mxu0 0.0
    %5363 = vmatpush1.msra.mxu0 0.0
    %5364 = vmatprep.subr.mxu0 0.0
    %5365 = vmatpush1.msra.mxu0 0.0
    %5366 = vmatprep.subr.mxu0 0.0
    %5367 = vmatpush1.msra.mxu0 0.0
    %5368 = vmatprep.subr.mxu0 0.0
    %5369 = vmatpush1.msra.mxu0 0.0
    %5370 = vmatprep.subr.mxu0 0.0
    %5371 = vmatpush1.msra.mxu0 0.0
    %5372 = vmatprep.mubr.f32.mxu0 0.0
    %v5373 = vand.u32 %v4981, 4294901760
    %5374 = vmatmul.mubr.f32.gmra.mrb[0].mxu0 %v5373
    %v5375 = vpop.f32.mrb[0].mxu0
    %v5376 = vadd.f32 %v5298, %v5375
    %v5377 = vpop.f32.mrb[0].mxu0
    %v5378 = vadd.f32 %v5300, %v5377
    %5379 = vdwg.mxu0
    %v5380 = vand.u32 %v4987, 4294901760
    %5381 = vmatprep.subr.mxu0 %v5380
    %v5382 = vand.u32 %v4984, 4294901760
    %5383 = vmatpush1.msra.mxu0 %v5382
    %5384 = vmatprep.subr.mxu0 0.0
    %5385 = vmatpush1.msra.mxu0 0.0
    %5386 = vmatprep.subr.mxu0 0.0
    %5387 = vmatpush1.msra.mxu0 0.0
    %5388 = vmatprep.subr.mxu0 0.0
    %5389 = vmatpush1.msra.mxu0 0.0
    %5390 = vmatprep.subr.mxu0 0.0
    %5391 = vmatpush1.msra.mxu0 0.0
    %5392 = vmatprep.subr.mxu0 0.0
    %5393 = vmatpush1.msra.mxu0 0.0
    %5394 = vmatprep.subr.mxu0 0.0
    %5395 = vmatpush1.msra.mxu0 0.0
    %5396 = vmatprep.subr.mxu0 0.0
    %5397 = vmatpush1.msra.mxu0 0.0
    %5398 = vmatprep.subr.mxu0 0.0
    %5399 = vmatpush1.msra.mxu0 0.0
    %5400 = vmatprep.subr.mxu0 0.0
    %5401 = vmatpush1.msra.mxu0 0.0
    %5402 = vmatprep.subr.mxu0 0.0
    %5403 = vmatpush1.msra.mxu0 0.0
    %5404 = vmatprep.subr.mxu0 0.0
    %5405 = vmatpush1.msra.mxu0 0.0
    %5406 = vmatprep.subr.mxu0 0.0
    %5407 = vmatpush1.msra.mxu0 0.0
    %5408 = vmatprep.subr.mxu0 0.0
    %5409 = vmatpush1.msra.mxu0 0.0
    %5410 = vmatprep.subr.mxu0 0.0
    %5411 = vmatpush1.msra.mxu0 0.0
    %5412 = vmatprep.subr.mxu0 0.0
    %5413 = vmatpush1.msra.mxu0 0.0
    %5414 = vmatprep.subr.mxu0 0.0
    %5415 = vmatpush1.msra.mxu0 0.0
    %5416 = vmatprep.subr.mxu0 0.0
    %5417 = vmatpush1.msra.mxu0 0.0
    %5418 = vmatprep.subr.mxu0 0.0
    %5419 = vmatpush1.msra.mxu0 0.0
    %5420 = vmatprep.subr.mxu0 0.0
    %5421 = vmatpush1.msra.mxu0 0.0
    %5422 = vmatprep.subr.mxu0 0.0
    %5423 = vmatpush1.msra.mxu0 0.0
    %5424 = vmatprep.subr.mxu0 0.0
    %5425 = vmatpush1.msra.mxu0 0.0
    %5426 = vmatprep.subr.mxu0 0.0
    %5427 = vmatpush1.msra.mxu0 0.0
    %5428 = vmatprep.subr.mxu0 0.0
    %5429 = vmatpush1.msra.mxu0 0.0
    %5430 = vmatprep.subr.mxu0 0.0
    %5431 = vmatpush1.msra.mxu0 0.0
    %5432 = vmatprep.subr.mxu0 0.0
    %5433 = vmatpush1.msra.mxu0 0.0
    %5434 = vmatprep.subr.mxu0 0.0
    %5435 = vmatpush1.msra.mxu0 0.0
    %5436 = vmatprep.subr.mxu0 0.0
    %5437 = vmatpush1.msra.mxu0 0.0
    %5438 = vmatprep.subr.mxu0 0.0
    %5439 = vmatpush1.msra.mxu0 0.0
    %5440 = vmatprep.subr.mxu0 0.0
    %5441 = vmatpush1.msra.mxu0 0.0
    %5442 = vmatprep.subr.mxu0 0.0
    %5443 = vmatpush1.msra.mxu0 0.0
    %5444 = vmatprep.subr.mxu0 0.0
    %5445 = vmatpush1.msra.mxu0 0.0
    %5446 = vmatprep.mubr.f32.mxu0 0.0
    %v5447 = vand.u32 %v4981, 4294901760
    %5448 = vmatmul.mubr.f32.gmra.mrb[0].mxu0 %v5447
    %v5449 = vpop.f32.mrb[0].mxu0
    %v5450 = vadd.f32 %v5376, %v5449
    %v5451 = vpop.f32.mrb[0].mxu0
    %v5452 = vadd.f32 %v5378, %v5451
    %5453 = vdwg.mxu0
    %5454 = vrot.lane.b32.xlu0 %v4481, 111
    %v5455 = vpop.permute.xlu0 %5454
    %5456 = vrot.lane.b32.xlu0 %v4485, 111
    %v5457 = vpop.permute.xlu0 %5456
    %5458 = vrot.lane.b32.xlu0 %v4482, 111
    %v5459 = vpop.permute.xlu0 %5458
    %v5460 = vsel %vm1040, %v5455, %v5457
    %v5461 = vsel %vm1040, %v5457, %v5459
    %v5464 = vsel %vm52, %v5460, 0.0
    %v5465 = vsel %vm53, %v5461, 0.0
    %v5466 = vld [vmem:[%s1 + $0x10] sm:$0xff]
    %v5468 = vsel %vm86, %v5466, 0
    %v5471 = vsel %vm90, %v5464, 0
    %v5474 = vsel %vm90, %v5465, 0
    %v5476 = vand.u32 %v5474, 4294901760
    %5477 = vmatprep.subr.mxu0 %v5476
    %v5478 = vand.u32 %v5471, 4294901760
    %5479 = vmatpush1.msra.mxu0 %v5478
    %5480 = vmatprep.subr.mxu0 0.0
    %5481 = vmatpush1.msra.mxu0 0.0
    %5482 = vmatprep.subr.mxu0 0.0
    %5483 = vmatpush1.msra.mxu0 0.0
    %5484 = vmatprep.subr.mxu0 0.0
    %5485 = vmatpush1.msra.mxu0 0.0
    %5486 = vmatprep.subr.mxu0 0.0
    %5487 = vmatpush1.msra.mxu0 0.0
    %5488 = vmatprep.subr.mxu0 0.0
    %5489 = vmatpush1.msra.mxu0 0.0
    %5490 = vmatprep.subr.mxu0 0.0
    %5491 = vmatpush1.msra.mxu0 0.0
    %5492 = vmatprep.subr.mxu0 0.0
    %5493 = vmatpush1.msra.mxu0 0.0
    %5494 = vmatprep.subr.mxu0 0.0
    %5495 = vmatpush1.msra.mxu0 0.0
    %5496 = vmatprep.subr.mxu0 0.0
    %5497 = vmatpush1.msra.mxu0 0.0
    %5498 = vmatprep.subr.mxu0 0.0
    %5499 = vmatpush1.msra.mxu0 0.0
    %5500 = vmatprep.subr.mxu0 0.0
    %5501 = vmatpush1.msra.mxu0 0.0
    %5502 = vmatprep.subr.mxu0 0.0
    %5503 = vmatpush1.msra.mxu0 0.0
    %5504 = vmatprep.subr.mxu0 0.0
    %5505 = vmatpush1.msra.mxu0 0.0
    %5506 = vmatprep.subr.mxu0 0.0
    %5507 = vmatpush1.msra.mxu0 0.0
    %5508 = vmatprep.subr.mxu0 0.0
    %5509 = vmatpush1.msra.mxu0 0.0
    %5510 = vmatprep.subr.mxu0 0.0
    %5511 = vmatpush1.msra.mxu0 0.0
    %5512 = vmatprep.subr.mxu0 0.0
    %5513 = vmatpush1.msra.mxu0 0.0
    %5514 = vmatprep.subr.mxu0 0.0
    %5515 = vmatpush1.msra.mxu0 0.0
    %5516 = vmatprep.subr.mxu0 0.0
    %5517 = vmatpush1.msra.mxu0 0.0
    %5518 = vmatprep.subr.mxu0 0.0
    %5519 = vmatpush1.msra.mxu0 0.0
    %5520 = vmatprep.subr.mxu0 0.0
    %5521 = vmatpush1.msra.mxu0 0.0
    %5522 = vmatprep.subr.mxu0 0.0
    %5523 = vmatpush1.msra.mxu0 0.0
    %5524 = vmatprep.subr.mxu0 0.0
    %5525 = vmatpush1.msra.mxu0 0.0
    %5526 = vmatprep.subr.mxu0 0.0
    %5527 = vmatpush1.msra.mxu0 0.0
    %5528 = vmatprep.subr.mxu0 0.0
    %5529 = vmatpush1.msra.mxu0 0.0
    %5530 = vmatprep.subr.mxu0 0.0
    %5531 = vmatpush1.msra.mxu0 0.0
    %5532 = vmatprep.subr.mxu0 0.0
    %5533 = vmatpush1.msra.mxu0 0.0
    %5534 = vmatprep.subr.mxu0 0.0
    %5535 = vmatpush1.msra.mxu0 0.0
    %5536 = vmatprep.subr.mxu0 0.0
    %5537 = vmatpush1.msra.mxu0 0.0
    %5538 = vmatprep.subr.mxu0 0.0
    %5539 = vmatpush1.msra.mxu0 0.0
    %5540 = vmatprep.subr.mxu0 0.0
    %5541 = vmatpush1.msra.mxu0 0.0
    %5542 = vmatprep.mubr.f32.mxu0 0.0
    %v5543 = vand.u32 %v5468, 4294901760
    %v5544 = vsub.f32 %v5468, %v5543
    %v5545 = vand.u32 %v5544, 4294901760
    %v5546 = vsub.f32 %v5544, %v5545
    %v5547 = vand.u32 %v5546, 4294901760
    %5548 = vmatmul.mubr.f32.gmra.mrb[0].mxu0 %v5547
    %v5549 = vpop.f32.mrb[0].mxu0
    %v5550 = vadd.f32 0.0, %v5549
    %v5551 = vpop.f32.mrb[0].mxu0
    %v5552 = vadd.f32 0.0, %v5551
    %5553 = vdwg.mxu0
    %v5554 = vand.u32 %v5474, 4294901760
    %v5555 = vsub.f32 %v5474, %v5554
    %v5556 = vand.u32 %v5555, 4294901760
    %v5557 = vsub.f32 %v5555, %v5556
    %v5558 = vand.u32 %v5557, 4294901760
    %5559 = vmatprep.subr.mxu0 %v5558
    %v5560 = vand.u32 %v5471, 4294901760
    %v5561 = vsub.f32 %v5471, %v5560
    %v5562 = vand.u32 %v5561, 4294901760
    %v5563 = vsub.f32 %v5561, %v5562
    %v5564 = vand.u32 %v5563, 4294901760
    %5565 = vmatpush1.msra.mxu0 %v5564
    %5566 = vmatprep.subr.mxu0 0.0
    %5567 = vmatpush1.msra.mxu0 0.0
    %5568 = vmatprep.subr.mxu0 0.0
    %5569 = vmatpush1.msra.mxu0 0.0
    %5570 = vmatprep.subr.mxu0 0.0
    %5571 = vmatpush1.msra.mxu0 0.0
    %5572 = vmatprep.subr.mxu0 0.0
    %5573 = vmatpush1.msra.mxu0 0.0
    %5574 = vmatprep.subr.mxu0 0.0
    %5575 = vmatpush1.msra.mxu0 0.0
    %5576 = vmatprep.subr.mxu0 0.0
    %5577 = vmatpush1.msra.mxu0 0.0
    %5578 = vmatprep.subr.mxu0 0.0
    %5579 = vmatpush1.msra.mxu0 0.0
    %5580 = vmatprep.subr.mxu0 0.0
    %5581 = vmatpush1.msra.mxu0 0.0
    %5582 = vmatprep.subr.mxu0 0.0
    %5583 = vmatpush1.msra.mxu0 0.0
    %5584 = vmatprep.subr.mxu0 0.0
    %5585 = vmatpush1.msra.mxu0 0.0
    %5586 = vmatprep.subr.mxu0 0.0
    %5587 = vmatpush1.msra.mxu0 0.0
    %5588 = vmatprep.subr.mxu0 0.0
    %5589 = vmatpush1.msra.mxu0 0.0
    %5590 = vmatprep.subr.mxu0 0.0
    %5591 = vmatpush1.msra.mxu0 0.0
    %5592 = vmatprep.subr.mxu0 0.0
    %5593 = vmatpush1.msra.mxu0 0.0
    %5594 = vmatprep.subr.mxu0 0.0
    %5595 = vmatpush1.msra.mxu0 0.0
    %5596 = vmatprep.subr.mxu0 0.0
    %5597 = vmatpush1.msra.mxu0 0.0
    %5598 = vmatprep.subr.mxu0 0.0
    %5599 = vmatpush1.msra.mxu0 0.0
    %5600 = vmatprep.subr.mxu0 0.0
    %5601 = vmatpush1.msra.mxu0 0.0
    %5602 = vmatprep.subr.mxu0 0.0
    %5603 = vmatpush1.msra.mxu0 0.0
    %5604 = vmatprep.subr.mxu0 0.0
    %5605 = vmatpush1.msra.mxu0 0.0
    %5606 = vmatprep.subr.mxu0 0.0
    %5607 = vmatpush1.msra.mxu0 0.0
    %5608 = vmatprep.subr.mxu0 0.0
    %5609 = vmatpush1.msra.mxu0 0.0
    %5610 = vmatprep.subr.mxu0 0.0
    %5611 = vmatpush1.msra.mxu0 0.0
    %5612 = vmatprep.subr.mxu0 0.0
    %5613 = vmatpush1.msra.mxu0 0.0
    %5614 = vmatprep.subr.mxu0 0.0
    %5615 = vmatpush1.msra.mxu0 0.0
    %5616 = vmatprep.subr.mxu0 0.0
    %5617 = vmatpush1.msra.mxu0 0.0
    %5618 = vmatprep.subr.mxu0 0.0
    %5619 = vmatpush1.msra.mxu0 0.0
    %5620 = vmatprep.subr.mxu0 0.0
    %5621 = vmatpush1.msra.mxu0 0.0
    %5622 = vmatprep.subr.mxu0 0.0
    %5623 = vmatpush1.msra.mxu0 0.0
    %5624 = vmatprep.subr.mxu0 0.0
    %5625 = vmatpush1.msra.mxu0 0.0
    %5626 = vmatprep.subr.mxu0 0.0
    %5627 = vmatpush1.msra.mxu0 0.0
    %5628 = vmatprep.mubr.f32.mxu0 0.0
    %v5629 = vand.u32 %v5468, 4294901760
    %5630 = vmatmul.mubr.f32.gmra.mrb[0].mxu0 %v5629
    %v5631 = vpop.f32.mrb[0].mxu0
    %v5632 = vadd.f32 %v5550, %v5631
    %v5633 = vpop.f32.mrb[0].mxu0
    %v5634 = vadd.f32 %v5552, %v5633
    %5635 = vdwg.mxu0
    %v5636 = vand.u32 %v5474, 4294901760
    %v5637 = vsub.f32 %v5474, %v5636
    %5638 = vmatprep.subr.mxu0 %v5637
    %v5639 = vand.u32 %v5471, 4294901760
    %v5640 = vsub.f32 %v5471, %v5639
    %5641 = vmatpush1.msra.mxu0 %v5640
    %5642 = vmatprep.subr.mxu0 0.0
    %5643 = vmatpush1.msra.mxu0 0.0
    %5644 = vmatprep.subr.mxu0 0.0
    %5645 = vmatpush1.msra.mxu0 0.0
    %5646 = vmatprep.subr.mxu0 0.0
    %5647 = vmatpush1.msra.mxu0 0.0
    %5648 = vmatprep.subr.mxu0 0.0
    %5649 = vmatpush1.msra.mxu0 0.0
    %5650 = vmatprep.subr.mxu0 0.0
    %5651 = vmatpush1.msra.mxu0 0.0
    %5652 = vmatprep.subr.mxu0 0.0
    %5653 = vmatpush1.msra.mxu0 0.0
    %5654 = vmatprep.subr.mxu0 0.0
    %5655 = vmatpush1.msra.mxu0 0.0
    %5656 = vmatprep.subr.mxu0 0.0
    %5657 = vmatpush1.msra.mxu0 0.0
    %5658 = vmatprep.subr.mxu0 0.0
    %5659 = vmatpush1.msra.mxu0 0.0
    %5660 = vmatprep.subr.mxu0 0.0
    %5661 = vmatpush1.msra.mxu0 0.0
    %5662 = vmatprep.subr.mxu0 0.0
    %5663 = vmatpush1.msra.mxu0 0.0
    %5664 = vmatprep.subr.mxu0 0.0
    %5665 = vmatpush1.msra.mxu0 0.0
    %5666 = vmatprep.subr.mxu0 0.0
    %5667 = vmatpush1.msra.mxu0 0.0
    %5668 = vmatprep.subr.mxu0 0.0
    %5669 = vmatpush1.msra.mxu0 0.0
    %5670 = vmatprep.subr.mxu0 0.0
    %5671 = vmatpush1.msra.mxu0 0.0
    %5672 = vmatprep.subr.mxu0 0.0
    %5673 = vmatpush1.msra.mxu0 0.0
    %5674 = vmatprep.subr.mxu0 0.0
    %5675 = vmatpush1.msra.mxu0 0.0
    %5676 = vmatprep.subr.mxu0 0.0
    %5677 = vmatpush1.msra.mxu0 0.0
    %5678 = vmatprep.subr.mxu0 0.0
    %5679 = vmatpush1.msra.mxu0 0.0
    %5680 = vmatprep.subr.mxu0 0.0
    %5681 = vmatpush1.msra.mxu0 0.0
    %5682 = vmatprep.subr.mxu0 0.0
    %5683 = vmatpush1.msra.mxu0 0.0
    %5684 = vmatprep.subr.mxu0 0.0
    %5685 = vmatpush1.msra.mxu0 0.0
    %5686 = vmatprep.subr.mxu0 0.0
    %5687 = vmatpush1.msra.mxu0 0.0
    %5688 = vmatprep.subr.mxu0 0.0
    %5689 = vmatpush1.msra.mxu0 0.0
    %5690 = vmatprep.subr.mxu0 0.0
    %5691 = vmatpush1.msra.mxu0 0.0
    %5692 = vmatprep.subr.mxu0 0.0
    %5693 = vmatpush1.msra.mxu0 0.0
    %5694 = vmatprep.subr.mxu0 0.0
    %5695 = vmatpush1.msra.mxu0 0.0
    %5696 = vmatprep.subr.mxu0 0.0
    %5697 = vmatpush1.msra.mxu0 0.0
    %5698 = vmatprep.subr.mxu0 0.0
    %5699 = vmatpush1.msra.mxu0 0.0
    %5700 = vmatprep.subr.mxu0 0.0
    %5701 = vmatpush1.msra.mxu0 0.0
    %5702 = vmatprep.subr.mxu0 0.0
    %5703 = vmatpush1.msra.mxu0 0.0
    %5704 = vmatprep.mubr.f32.mxu0 0.0
    %v5705 = vand.u32 %v5468, 4294901760
    %v5706 = vsub.f32 %v5468, %v5705
    %5707 = vmatmul.mubr.f32.gmra.mrb[0].mxu0 %v5706
    %v5708 = vpop.f32.mrb[0].mxu0
    %v5709 = vadd.f32 %v5632, %v5708
    %v5710 = vpop.f32.mrb[0].mxu0
    %v5711 = vadd.f32 %v5634, %v5710
    %5712 = vdwg.mxu0
    %v5713 = vand.u32 %v5474, 4294901760
    %5714 = vmatprep.subr.mxu0 %v5713
    %v5715 = vand.u32 %v5471, 4294901760
    %5716 = vmatpush1.msra.mxu0 %v5715
    %5717 = vmatprep.subr.mxu0 0.0
    %5718 = vmatpush1.msra.mxu0 0.0
    %5719 = vmatprep.subr.mxu0 0.0
    %5720 = vmatpush1.msra.mxu0 0.0
    %5721 = vmatprep.subr.mxu0 0.0
    %5722 = vmatpush1.msra.mxu0 0.0
    %5723 = vmatprep.subr.mxu0 0.0
    %5724 = vmatpush1.msra.mxu0 0.0
    %5725 = vmatprep.subr.mxu0 0.0
    %5726 = vmatpush1.msra.mxu0 0.0
    %5727 = vmatprep.subr.mxu0 0.0
    %5728 = vmatpush1.msra.mxu0 0.0
    %5729 = vmatprep.subr.mxu0 0.0
    %5730 = vmatpush1.msra.mxu0 0.0
    %5731 = vmatprep.subr.mxu0 0.0
    %5732 = vmatpush1.msra.mxu0 0.0
    %5733 = vmatprep.subr.mxu0 0.0
    %5734 = vmatpush1.msra.mxu0 0.0
    %5735 = vmatprep.subr.mxu0 0.0
    %5736 = vmatpush1.msra.mxu0 0.0
    %5737 = vmatprep.subr.mxu0 0.0
    %5738 = vmatpush1.msra.mxu0 0.0
    %5739 = vmatprep.subr.mxu0 0.0
    %5740 = vmatpush1.msra.mxu0 0.0
    %5741 = vmatprep.subr.mxu0 0.0
    %5742 = vmatpush1.msra.mxu0 0.0
    %5743 = vmatprep.subr.mxu0 0.0
    %5744 = vmatpush1.msra.mxu0 0.0
    %5745 = vmatprep.subr.mxu0 0.0
    %5746 = vmatpush1.msra.mxu0 0.0
    %5747 = vmatprep.subr.mxu0 0.0
    %5748 = vmatpush1.msra.mxu0 0.0
    %5749 = vmatprep.subr.mxu0 0.0
    %5750 = vmatpush1.msra.mxu0 0.0
    %5751 = vmatprep.subr.mxu0 0.0
    %5752 = vmatpush1.msra.mxu0 0.0
    %5753 = vmatprep.subr.mxu0 0.0
    %5754 = vmatpush1.msra.mxu0 0.0
    %5755 = vmatprep.subr.mxu0 0.0
    %5756 = vmatpush1.msra.mxu0 0.0
    %5757 = vmatprep.subr.mxu0 0.0
    %5758 = vmatpush1.msra.mxu0 0.0
    %5759 = vmatprep.subr.mxu0 0.0
    %5760 = vmatpush1.msra.mxu0 0.0
    %5761 = vmatprep.subr.mxu0 0.0
    %5762 = vmatpush1.msra.mxu0 0.0
    %5763 = vmatprep.subr.mxu0 0.0
    %5764 = vmatpush1.msra.mxu0 0.0
    %5765 = vmatprep.subr.mxu0 0.0
    %5766 = vmatpush1.msra.mxu0 0.0
    %5767 = vmatprep.subr.mxu0 0.0
    %5768 = vmatpush1.msra.mxu0 0.0
    %5769 = vmatprep.subr.mxu0 0.0
    %5770 = vmatpush1.msra.mxu0 0.0
    %5771 = vmatprep.subr.mxu0 0.0
    %5772 = vmatpush1.msra.mxu0 0.0
    %5773 = vmatprep.subr.mxu0 0.0
    %5774 = vmatpush1.msra.mxu0 0.0
    %5775 = vmatprep.subr.mxu0 0.0
    %5776 = vmatpush1.msra.mxu0 0.0
    %5777 = vmatprep.subr.mxu0 0.0
    %5778 = vmatpush1.msra.mxu0 0.0
    %5779 = vmatprep.mubr.f32.mxu0 0.0
    %v5780 = vand.u32 %v5468, 4294901760
    %v5781 = vsub.f32 %v5468, %v5780
    %v5782 = vand.u32 %v5781, 4294901760
    %5783 = vmatmul.mubr.f32.gmra.mrb[0].mxu0 %v5782
    %v5784 = vpop.f32.mrb[0].mxu0
    %v5785 = vadd.f32 %v5709, %v5784
    %v5786 = vpop.f32.mrb[0].mxu0
    %v5787 = vadd.f32 %v5711, %v5786
    %5788 = vdwg.mxu0
    %v5789 = vand.u32 %v5474, 4294901760
    %v5790 = vsub.f32 %v5474, %v5789
    %v5791 = vand.u32 %v5790, 4294901760
    %5792 = vmatprep.subr.mxu0 %v5791
    %v5793 = vand.u32 %v5471, 4294901760
    %v5794 = vsub.f32 %v5471, %v5793
    %v5795 = vand.u32 %v5794, 4294901760
    %5796 = vmatpush1.msra.mxu0 %v5795
    %5797 = vmatprep.subr.mxu0 0.0
    %5798 = vmatpush1.msra.mxu0 0.0
    %5799 = vmatprep.subr.mxu0 0.0
    %5800 = vmatpush1.msra.mxu0 0.0
    %5801 = vmatprep.subr.mxu0 0.0
    %5802 = vmatpush1.msra.mxu0 0.0
    %5803 = vmatprep.subr.mxu0 0.0
    %5804 = vmatpush1.msra.mxu0 0.0
    %5805 = vmatprep.subr.mxu0 0.0
    %5806 = vmatpush1.msra.mxu0 0.0
    %5807 = vmatprep.subr.mxu0 0.0
    %5808 = vmatpush1.msra.mxu0 0.0
    %5809 = vmatprep.subr.mxu0 0.0
    %5810 = vmatpush1.msra.mxu0 0.0
    %5811 = vmatprep.subr.mxu0 0.0
    %5812 = vmatpush1.msra.mxu0 0.0
    %5813 = vmatprep.subr.mxu0 0.0
    %5814 = vmatpush1.msra.mxu0 0.0
    %5815 = vmatprep.subr.mxu0 0.0
    %5816 = vmatpush1.msra.mxu0 0.0
    %5817 = vmatprep.subr.mxu0 0.0
    %5818 = vmatpush1.msra.mxu0 0.0
    %5819 = vmatprep.subr.mxu0 0.0
    %5820 = vmatpush1.msra.mxu0 0.0
    %5821 = vmatprep.subr.mxu0 0.0
    %5822 = vmatpush1.msra.mxu0 0.0
    %5823 = vmatprep.subr.mxu0 0.0
    %5824 = vmatpush1.msra.mxu0 0.0
    %5825 = vmatprep.subr.mxu0 0.0
    %5826 = vmatpush1.msra.mxu0 0.0
    %5827 = vmatprep.subr.mxu0 0.0
    %5828 = vmatpush1.msra.mxu0 0.0
    %5829 = vmatprep.subr.mxu0 0.0
    %5830 = vmatpush1.msra.mxu0 0.0
    %5831 = vmatprep.subr.mxu0 0.0
    %5832 = vmatpush1.msra.mxu0 0.0
    %5833 = vmatprep.subr.mxu0 0.0
    %5834 = vmatpush1.msra.mxu0 0.0
    %5835 = vmatprep.subr.mxu0 0.0
    %5836 = vmatpush1.msra.mxu0 0.0
    %5837 = vmatprep.subr.mxu0 0.0
    %5838 = vmatpush1.msra.mxu0 0.0
    %5839 = vmatprep.subr.mxu0 0.0
    %5840 = vmatpush1.msra.mxu0 0.0
    %5841 = vmatprep.subr.mxu0 0.0
    %5842 = vmatpush1.msra.mxu0 0.0
    %5843 = vmatprep.subr.mxu0 0.0
    %5844 = vmatpush1.msra.mxu0 0.0
    %5845 = vmatprep.subr.mxu0 0.0
    %5846 = vmatpush1.msra.mxu0 0.0
    %5847 = vmatprep.subr.mxu0 0.0
    %5848 = vmatpush1.msra.mxu0 0.0
    %5849 = vmatprep.subr.mxu0 0.0
    %5850 = vmatpush1.msra.mxu0 0.0
    %5851 = vmatprep.subr.mxu0 0.0
    %5852 = vmatpush1.msra.mxu0 0.0
    %5853 = vmatprep.subr.mxu0 0.0
    %5854 = vmatpush1.msra.mxu0 0.0
    %5855 = vmatprep.subr.mxu0 0.0
    %5856 = vmatpush1.msra.mxu0 0.0
    %5857 = vmatprep.subr.mxu0 0.0
    %5858 = vmatpush1.msra.mxu0 0.0
    %5859 = vmatprep.mubr.f32.mxu0 0.0
    %v5860 = vand.u32 %v5468, 4294901760
    %5861 = vmatmul.mubr.f32.gmra.mrb[0].mxu0 %v5860
    %v5862 = vpop.f32.mrb[0].mxu0
    %v5863 = vadd.f32 %v5785, %v5862
    %v5864 = vpop.f32.mrb[0].mxu0
    %v5865 = vadd.f32 %v5787, %v5864
    %5866 = vdwg.mxu0
    %v5867 = vand.u32 %v5474, 4294901760
    %5868 = vmatprep.subr.mxu0 %v5867
    %v5869 = vand.u32 %v5471, 4294901760
    %5870 = vmatpush1.msra.mxu0 %v5869
    %5871 = vmatprep.subr.mxu0 0.0
    %5872 = vmatpush1.msra.mxu0 0.0
    %5873 = vmatprep.subr.mxu0 0.0
    %5874 = vmatpush1.msra.mxu0 0.0
    %5875 = vmatprep.subr.mxu0 0.0
    %5876 = vmatpush1.msra.mxu0 0.0
    %5877 = vmatprep.subr.mxu0 0.0
    %5878 = vmatpush1.msra.mxu0 0.0
    %5879 = vmatprep.subr.mxu0 0.0
    %5880 = vmatpush1.msra.mxu0 0.0
    %5881 = vmatprep.subr.mxu0 0.0
    %5882 = vmatpush1.msra.mxu0 0.0
    %5883 = vmatprep.subr.mxu0 0.0
    %5884 = vmatpush1.msra.mxu0 0.0
    %5885 = vmatprep.subr.mxu0 0.0
    %5886 = vmatpush1.msra.mxu0 0.0
    %5887 = vmatprep.subr.mxu0 0.0
    %5888 = vmatpush1.msra.mxu0 0.0
    %5889 = vmatprep.subr.mxu0 0.0
    %5890 = vmatpush1.msra.mxu0 0.0
    %5891 = vmatprep.subr.mxu0 0.0
    %5892 = vmatpush1.msra.mxu0 0.0
    %5893 = vmatprep.subr.mxu0 0.0
    %5894 = vmatpush1.msra.mxu0 0.0
    %5895 = vmatprep.subr.mxu0 0.0
    %5896 = vmatpush1.msra.mxu0 0.0
    %5897 = vmatprep.subr.mxu0 0.0
    %5898 = vmatpush1.msra.mxu0 0.0
    %5899 = vmatprep.subr.mxu0 0.0
    %5900 = vmatpush1.msra.mxu0 0.0
    %5901 = vmatprep.subr.mxu0 0.0
    %5902 = vmatpush1.msra.mxu0 0.0
    %5903 = vmatprep.subr.mxu0 0.0
    %5904 = vmatpush1.msra.mxu0 0.0
    %5905 = vmatprep.subr.mxu0 0.0
    %5906 = vmatpush1.msra.mxu0 0.0
    %5907 = vmatprep.subr.mxu0 0.0
    %5908 = vmatpush1.msra.mxu0 0.0
    %5909 = vmatprep.subr.mxu0 0.0
    %5910 = vmatpush1.msra.mxu0 0.0
    %5911 = vmatprep.subr.mxu0 0.0
    %5912 = vmatpush1.msra.mxu0 0.0
    %5913 = vmatprep.subr.mxu0 0.0
    %5914 = vmatpush1.msra.mxu0 0.0
    %5915 = vmatprep.subr.mxu0 0.0
    %5916 = vmatpush1.msra.mxu0 0.0
    %5917 = vmatprep.subr.mxu0 0.0
    %5918 = vmatpush1.msra.mxu0 0.0
    %5919 = vmatprep.subr.mxu0 0.0
    %5920 = vmatpush1.msra.mxu0 0.0
    %5921 = vmatprep.subr.mxu0 0.0
    %5922 = vmatpush1.msra.mxu0 0.0
    %5923 = vmatprep.subr.mxu0 0.0
    %5924 = vmatpush1.msra.mxu0 0.0
    %5925 = vmatprep.subr.mxu0 0.0
    %5926 = vmatpush1.msra.mxu0 0.0
    %5927 = vmatprep.subr.mxu0 0.0
    %5928 = vmatpush1.msra.mxu0 0.0
    %5929 = vmatprep.subr.mxu0 0.0
    %5930 = vmatpush1.msra.mxu0 0.0
    %5931 = vmatprep.subr.mxu0 0.0
    %5932 = vmatpush1.msra.mxu0 0.0
    %5933 = vmatprep.mubr.f32.mxu0 0.0
    %v5934 = vand.u32 %v5468, 4294901760
    %5935 = vmatmul.mubr.f32.gmra.mrb[0].mxu0 %v5934
    %v5936 = vpop.f32.mrb[0].mxu0
    %v5937 = vadd.f32 %v5863, %v5936
    %v5938 = vpop.f32.mrb[0].mxu0
    %v5939 = vadd.f32 %v5865, %v5938
    %5940 = vdwg.mxu0
    %v5941 = vadd.f32 %v5450, %v5937
    %v5942 = vadd.f32 %v5452, %v5939
    %5943 = vrot.lane.b32.xlu0 %v4481, 97
    %v5944 = vpop.permute.xlu0 %5943
    %5945 = vrot.lane.b32.xlu0 %v4485, 97
    %v5946 = vpop.permute.xlu0 %5945
    %5947 = vrot.lane.b32.xlu0 %v4482, 97
    %v5948 = vpop.permute.xlu0 %5947
    %v5949 = vsel %vm1530, %v5944, %v5946
    %v5950 = vsel %vm1530, %v5946, %v5948
    %v5953 = vsel %vm50, %v5949, 0.0
    %v5954 = vsel %vm51, %v5950, 0.0
    %v5955 = vld [vmem:[%s1 + $0x18] sm:$0xff]
    %v5957 = vsel %vm86, %v5955, 0
    %v5960 = vsel %vm90, %v5953, 0
    %v5963 = vsel %vm90, %v5954, 0
    %v5965 = vand.u32 %v5963, 4294901760
    %5966 = vmatprep.subr.mxu0 %v5965
    %v5967 = vand.u32 %v5960, 4294901760
    %5968 = vmatpush1.msra.mxu0 %v5967
    %5969 = vmatprep.subr.mxu0 0.0
    %5970 = vmatpush1.msra.mxu0 0.0
    %5971 = vmatprep.subr.mxu0 0.0
    %5972 = vmatpush1.msra.mxu0 0.0
    %5973 = vmatprep.subr.mxu0 0.0
    %5974 = vmatpush1.msra.mxu0 0.0
    %5975 = vmatprep.subr.mxu0 0.0
    %5976 = vmatpush1.msra.mxu0 0.0
    %5977 = vmatprep.subr.mxu0 0.0
    %5978 = vmatpush1.msra.mxu0 0.0
    %5979 = vmatprep.subr.mxu0 0.0
    %5980 = vmatpush1.msra.mxu0 0.0
    %5981 = vmatprep.subr.mxu0 0.0
    %5982 = vmatpush1.msra.mxu0 0.0
    %5983 = vmatprep.subr.mxu0 0.0
    %5984 = vmatpush1.msra.mxu0 0.0
    %5985 = vmatprep.subr.mxu0 0.0
    %5986 = vmatpush1.msra.mxu0 0.0
    %5987 = vmatprep.subr.mxu0 0.0
    %5988 = vmatpush1.msra.mxu0 0.0
    %5989 = vmatprep.subr.mxu0 0.0
    %5990 = vmatpush1.msra.mxu0 0.0
    %5991 = vmatprep.subr.mxu0 0.0
    %5992 = vmatpush1.msra.mxu0 0.0
    %5993 = vmatprep.subr.mxu0 0.0
    %5994 = vmatpush1.msra.mxu0 0.0
    %5995 = vmatprep.subr.mxu0 0.0
    %5996 = vmatpush1.msra.mxu0 0.0
    %5997 = vmatprep.subr.mxu0 0.0
    %5998 = vmatpush1.msra.mxu0 0.0
    %5999 = vmatprep.subr.mxu0 0.0
    %6000 = vmatpush1.msra.mxu0 0.0
    %6001 = vmatprep.subr.mxu0 0.0
    %6002 = vmatpush1.msra.mxu0 0.0
    %6003 = vmatprep.subr.mxu0 0.0
    %6004 = vmatpush1.msra.mxu0 0.0
    %6005 = vmatprep.subr.mxu0 0.0
    %6006 = vmatpush1.msra.mxu0 0.0
    %6007 = vmatprep.subr.mxu0 0.0
    %6008 = vmatpush1.msra.mxu0 0.0
    %6009 = vmatprep.subr.mxu0 0.0
    %6010 = vmatpush1.msra.mxu0 0.0
    %6011 = vmatprep.subr.mxu0 0.0
    %6012 = vmatpush1.msra.mxu0 0.0
    %6013 = vmatprep.subr.mxu0 0.0
    %6014 = vmatpush1.msra.mxu0 0.0
    %6015 = vmatprep.subr.mxu0 0.0
    %6016 = vmatpush1.msra.mxu0 0.0
    %6017 = vmatprep.subr.mxu0 0.0
    %6018 = vmatpush1.msra.mxu0 0.0
    %6019 = vmatprep.subr.mxu0 0.0
    %6020 = vmatpush1.msra.mxu0 0.0
    %6021 = vmatprep.subr.mxu0 0.0
    %6022 = vmatpush1.msra.mxu0 0.0
    %6023 = vmatprep.subr.mxu0 0.0
    %6024 = vmatpush1.msra.mxu0 0.0
    %6025 = vmatprep.subr.mxu0 0.0
    %6026 = vmatpush1.msra.mxu0 0.0
    %6027 = vmatprep.subr.mxu0 0.0
    %6028 = vmatpush1.msra.mxu0 0.0
    %6029 = vmatprep.subr.mxu0 0.0
    %6030 = vmatpush1.msra.mxu0 0.0
    %6031 = vmatprep.mubr.f32.mxu0 0.0
    %v6032 = vand.u32 %v5957, 4294901760
    %v6033 = vsub.f32 %v5957, %v6032
    %v6034 = vand.u32 %v6033, 4294901760
    %v6035 = vsub.f32 %v6033, %v6034
    %v6036 = vand.u32 %v6035, 4294901760
    %6037 = vmatmul.mubr.f32.gmra.mrb[0].mxu0 %v6036
    %v6038 = vpop.f32.mrb[0].mxu0
    %v6039 = vadd.f32 0.0, %v6038
    %v6040 = vpop.f32.mrb[0].mxu0
    %v6041 = vadd.f32 0.0, %v6040
    %6042 = vdwg.mxu0
    %v6043 = vand.u32 %v5963, 4294901760
    %v6044 = vsub.f32 %v5963, %v6043
    %v6045 = vand.u32 %v6044, 4294901760
    %v6046 = vsub.f32 %v6044, %v6045
    %v6047 = vand.u32 %v6046, 4294901760
    %6048 = vmatprep.subr.mxu0 %v6047
    %v6049 = vand.u32 %v5960, 4294901760
    %v6050 = vsub.f32 %v5960, %v6049
    %v6051 = vand.u32 %v6050, 4294901760
    %v6052 = vsub.f32 %v6050, %v6051
    %v6053 = vand.u32 %v6052, 4294901760
    %6054 = vmatpush1.msra.mxu0 %v6053
    %6055 = vmatprep.subr.mxu0 0.0
    %6056 = vmatpush1.msra.mxu0 0.0
    %6057 = vmatprep.subr.mxu0 0.0
    %6058 = vmatpush1.msra.mxu0 0.0
    %6059 = vmatprep.subr.mxu0 0.0
    %6060 = vmatpush1.msra.mxu0 0.0
    %6061 = vmatprep.subr.mxu0 0.0
    %6062 = vmatpush1.msra.mxu0 0.0
    %6063 = vmatprep.subr.mxu0 0.0
    %6064 = vmatpush1.msra.mxu0 0.0
    %6065 = vmatprep.subr.mxu0 0.0
    %6066 = vmatpush1.msra.mxu0 0.0
    %6067 = vmatprep.subr.mxu0 0.0
    %6068 = vmatpush1.msra.mxu0 0.0
    %6069 = vmatprep.subr.mxu0 0.0
    %6070 = vmatpush1.msra.mxu0 0.0
    %6071 = vmatprep.subr.mxu0 0.0
    %6072 = vmatpush1.msra.mxu0 0.0
    %6073 = vmatprep.subr.mxu0 0.0
    %6074 = vmatpush1.msra.mxu0 0.0
    %6075 = vmatprep.subr.mxu0 0.0
    %6076 = vmatpush1.msra.mxu0 0.0
    %6077 = vmatprep.subr.mxu0 0.0
    %6078 = vmatpush1.msra.mxu0 0.0
    %6079 = vmatprep.subr.mxu0 0.0
    %6080 = vmatpush1.msra.mxu0 0.0
    %6081 = vmatprep.subr.mxu0 0.0
    %6082 = vmatpush1.msra.mxu0 0.0
    %6083 = vmatprep.subr.mxu0 0.0
    %6084 = vmatpush1.msra.mxu0 0.0
    %6085 = vmatprep.subr.mxu0 0.0
    %6086 = vmatpush1.msra.mxu0 0.0
    %6087 = vmatprep.subr.mxu0 0.0
    %6088 = vmatpush1.msra.mxu0 0.0
    %6089 = vmatprep.subr.mxu0 0.0
    %6090 = vmatpush1.msra.mxu0 0.0
    %6091 = vmatprep.subr.mxu0 0.0
    %6092 = vmatpush1.msra.mxu0 0.0
    %6093 = vmatprep.subr.mxu0 0.0
    %6094 = vmatpush1.msra.mxu0 0.0
    %6095 = vmatprep.subr.mxu0 0.0
    %6096 = vmatpush1.msra.mxu0 0.0
    %6097 = vmatprep.subr.mxu0 0.0
    %6098 = vmatpush1.msra.mxu0 0.0
    %6099 = vmatprep.subr.mxu0 0.0
    %6100 = vmatpush1.msra.mxu0 0.0
    %6101 = vmatprep.subr.mxu0 0.0
    %6102 = vmatpush1.msra.mxu0 0.0
    %6103 = vmatprep.subr.mxu0 0.0
    %6104 = vmatpush1.msra.mxu0 0.0
    %6105 = vmatprep.subr.mxu0 0.0
    %6106 = vmatpush1.msra.mxu0 0.0
    %6107 = vmatprep.subr.mxu0 0.0
    %6108 = vmatpush1.msra.mxu0 0.0
    %6109 = vmatprep.subr.mxu0 0.0
    %6110 = vmatpush1.msra.mxu0 0.0
    %6111 = vmatprep.subr.mxu0 0.0
    %6112 = vmatpush1.msra.mxu0 0.0
    %6113 = vmatprep.subr.mxu0 0.0
    %6114 = vmatpush1.msra.mxu0 0.0
    %6115 = vmatprep.subr.mxu0 0.0
    %6116 = vmatpush1.msra.mxu0 0.0
    %6117 = vmatprep.mubr.f32.mxu0 0.0
    %v6118 = vand.u32 %v5957, 4294901760
    %6119 = vmatmul.mubr.f32.gmra.mrb[0].mxu0 %v6118
    %v6120 = vpop.f32.mrb[0].mxu0
    %v6121 = vadd.f32 %v6039, %v6120
    %v6122 = vpop.f32.mrb[0].mxu0
    %v6123 = vadd.f32 %v6041, %v6122
    %6124 = vdwg.mxu0
    %v6125 = vand.u32 %v5963, 4294901760
    %v6126 = vsub.f32 %v5963, %v6125
    %6127 = vmatprep.subr.mxu0 %v6126
    %v6128 = vand.u32 %v5960, 4294901760
    %v6129 = vsub.f32 %v5960, %v6128
    %6130 = vmatpush1.msra.mxu0 %v6129
    %6131 = vmatprep.subr.mxu0 0.0
    %6132 = vmatpush1.msra.mxu0 0.0
    %6133 = vmatprep.subr.mxu0 0.0
    %6134 = vmatpush1.msra.mxu0 0.0
    %6135 = vmatprep.subr.mxu0 0.0
    %6136 = vmatpush1.msra.mxu0 0.0
    %6137 = vmatprep.subr.mxu0 0.0
    %6138 = vmatpush1.msra.mxu0 0.0
    %6139 = vmatprep.subr.mxu0 0.0
    %6140 = vmatpush1.msra.mxu0 0.0
    %6141 = vmatprep.subr.mxu0 0.0
    %6142 = vmatpush1.msra.mxu0 0.0
    %6143 = vmatprep.subr.mxu0 0.0
    %6144 = vmatpush1.msra.mxu0 0.0
    %6145 = vmatprep.subr.mxu0 0.0
    %6146 = vmatpush1.msra.mxu0 0.0
    %6147 = vmatprep.subr.mxu0 0.0
    %6148 = vmatpush1.msra.mxu0 0.0
    %6149 = vmatprep.subr.mxu0 0.0
    %6150 = vmatpush1.msra.mxu0 0.0
    %6151 = vmatprep.subr.mxu0 0.0
    %6152 = vmatpush1.msra.mxu0 0.0
    %6153 = vmatprep.subr.mxu0 0.0
    %6154 = vmatpush1.msra.mxu0 0.0
    %6155 = vmatprep.subr.mxu0 0.0
    %6156 = vmatpush1.msra.mxu0 0.0
    %6157 = vmatprep.subr.mxu0 0.0
    %6158 = vmatpush1.msra.mxu0 0.0
    %6159 = vmatprep.subr.mxu0 0.0
    %6160 = vmatpush1.msra.mxu0 0.0
    %6161 = vmatprep.subr.mxu0 0.0
    %6162 = vmatpush1.msra.mxu0 0.0
    %6163 = vmatprep.subr.mxu0 0.0
    %6164 = vmatpush1.msra.mxu0 0.0
    %6165 = vmatprep.subr.mxu0 0.0
    %6166 = vmatpush1.msra.mxu0 0.0
    %6167 = vmatprep.subr.mxu0 0.0
    %6168 = vmatpush1.msra.mxu0 0.0
    %6169 = vmatprep.subr.mxu0 0.0
    %6170 = vmatpush1.msra.mxu0 0.0
    %6171 = vmatprep.subr.mxu0 0.0
    %6172 = vmatpush1.msra.mxu0 0.0
    %6173 = vmatprep.subr.mxu0 0.0
    %6174 = vmatpush1.msra.mxu0 0.0
    %6175 = vmatprep.subr.mxu0 0.0
    %6176 = vmatpush1.msra.mxu0 0.0
    %6177 = vmatprep.subr.mxu0 0.0
    %6178 = vmatpush1.msra.mxu0 0.0
    %6179 = vmatprep.subr.mxu0 0.0
    %6180 = vmatpush1.msra.mxu0 0.0
    %6181 = vmatprep.subr.mxu0 0.0
    %6182 = vmatpush1.msra.mxu0 0.0
    %6183 = vmatprep.subr.mxu0 0.0
    %6184 = vmatpush1.msra.mxu0 0.0
    %6185 = vmatprep.subr.mxu0 0.0
    %6186 = vmatpush1.msra.mxu0 0.0
    %6187 = vmatprep.subr.mxu0 0.0
    %6188 = vmatpush1.msra.mxu0 0.0
    %6189 = vmatprep.subr.mxu0 0.0
    %6190 = vmatpush1.msra.mxu0 0.0
    %6191 = vmatprep.subr.mxu0 0.0
    %6192 = vmatpush1.msra.mxu0 0.0
    %6193 = vmatprep.mubr.f32.mxu0 0.0
    %v6194 = vand.u32 %v5957, 4294901760
    %v6195 = vsub.f32 %v5957, %v6194
    %6196 = vmatmul.mubr.f32.gmra.mrb[0].mxu0 %v6195
    %v6197 = vpop.f32.mrb[0].mxu0
    %v6198 = vadd.f32 %v6121, %v6197
    %v6199 = vpop.f32.mrb[0].mxu0
    %v6200 = vadd.f32 %v6123, %v6199
    %6201 = vdwg.mxu0
    %v6202 = vand.u32 %v5963, 4294901760
    %6203 = vmatprep.subr.mxu0 %v6202
    %v6204 = vand.u32 %v5960, 4294901760
    %6205 = vmatpush1.msra.mxu0 %v6204
    %6206 = vmatprep.subr.mxu0 0.0
    %6207 = vmatpush1.msra.mxu0 0.0
    %6208 = vmatprep.subr.mxu0 0.0
    %6209 = vmatpush1.msra.mxu0 0.0
    %6210 = vmatprep.subr.mxu0 0.0
    %6211 = vmatpush1.msra.mxu0 0.0
    %6212 = vmatprep.subr.mxu0 0.0
    %6213 = vmatpush1.msra.mxu0 0.0
    %6214 = vmatprep.subr.mxu0 0.0
    %6215 = vmatpush1.msra.mxu0 0.0
    %6216 = vmatprep.subr.mxu0 0.0
    %6217 = vmatpush1.msra.mxu0 0.0
    %6218 = vmatprep.subr.mxu0 0.0
    %6219 = vmatpush1.msra.mxu0 0.0
    %6220 = vmatprep.subr.mxu0 0.0
    %6221 = vmatpush1.msra.mxu0 0.0
    %6222 = vmatprep.subr.mxu0 0.0
    %6223 = vmatpush1.msra.mxu0 0.0
    %6224 = vmatprep.subr.mxu0 0.0
    %6225 = vmatpush1.msra.mxu0 0.0
    %6226 = vmatprep.subr.mxu0 0.0
    %6227 = vmatpush1.msra.mxu0 0.0
    %6228 = vmatprep.subr.mxu0 0.0
    %6229 = vmatpush1.msra.mxu0 0.0
    %6230 = vmatprep.subr.mxu0 0.0
    %6231 = vmatpush1.msra.mxu0 0.0
    %6232 = vmatprep.subr.mxu0 0.0
    %6233 = vmatpush1.msra.mxu0 0.0
    %6234 = vmatprep.subr.mxu0 0.0
    %6235 = vmatpush1.msra.mxu0 0.0
    %6236 = vmatprep.subr.mxu0 0.0
    %6237 = vmatpush1.msra.mxu0 0.0
    %6238 = vmatprep.subr.mxu0 0.0
    %6239 = vmatpush1.msra.mxu0 0.0
    %6240 = vmatprep.subr.mxu0 0.0
    %6241 = vmatpush1.msra.mxu0 0.0
    %6242 = vmatprep.subr.mxu0 0.0
    %6243 = vmatpush1.msra.mxu0 0.0
    %6244 = vmatprep.subr.mxu0 0.0
    %6245 = vmatpush1.msra.mxu0 0.0
    %6246 = vmatprep.subr.mxu0 0.0
    %6247 = vmatpush1.msra.mxu0 0.0
    %6248 = vmatprep.subr.mxu0 0.0
    %6249 = vmatpush1.msra.mxu0 0.0
    %6250 = vmatprep.subr.mxu0 0.0
    %6251 = vmatpush1.msra.mxu0 0.0
    %6252 = vmatprep.subr.mxu0 0.0
    %6253 = vmatpush1.msra.mxu0 0.0
    %6254 = vmatprep.subr.mxu0 0.0
    %6255 = vmatpush1.msra.mxu0 0.0
    %6256 = vmatprep.subr.mxu0 0.0
    %6257 = vmatpush1.msra.mxu0 0.0
    %6258 = vmatprep.subr.mxu0 0.0
    %6259 = vmatpush1.msra.mxu0 0.0
    %6260 = vmatprep.subr.mxu0 0.0
    %6261 = vmatpush1.msra.mxu0 0.0
    %6262 = vmatprep.subr.mxu0 0.0
    %6263 = vmatpush1.msra.mxu0 0.0
    %6264 = vmatprep.subr.mxu0 0.0
    %6265 = vmatpush1.msra.mxu0 0.0
    %6266 = vmatprep.subr.mxu0 0.0
    %6267 = vmatpush1.msra.mxu0 0.0
    %6268 = vmatprep.mubr.f32.mxu0 0.0
    %v6269 = vand.u32 %v5957, 4294901760
    %v6270 = vsub.f32 %v5957, %v6269
    %v6271 = vand.u32 %v6270, 4294901760
    %6272 = vmatmul.mubr.f32.gmra.mrb[0].mxu0 %v6271
    %v6273 = vpop.f32.mrb[0].mxu0
    %v6274 = vadd.f32 %v6198, %v6273
    %v6275 = vpop.f32.mrb[0].mxu0
    %v6276 = vadd.f32 %v6200, %v6275
    %6277 = vdwg.mxu0
    %v6278 = vand.u32 %v5963, 4294901760
    %v6279 = vsub.f32 %v5963, %v6278
    %v6280 = vand.u32 %v6279, 4294901760
    %6281 = vmatprep.subr.mxu0 %v6280
    %v6282 = vand.u32 %v5960, 4294901760
    %v6283 = vsub.f32 %v5960, %v6282
    %v6284 = vand.u32 %v6283, 4294901760
    %6285 = vmatpush1.msra.mxu0 %v6284
    %6286 = vmatprep.subr.mxu0 0.0
    %6287 = vmatpush1.msra.mxu0 0.0
    %6288 = vmatprep.subr.mxu0 0.0
    %6289 = vmatpush1.msra.mxu0 0.0
    %6290 = vmatprep.subr.mxu0 0.0
    %6291 = vmatpush1.msra.mxu0 0.0
    %6292 = vmatprep.subr.mxu0 0.0
    %6293 = vmatpush1.msra.mxu0 0.0
    %6294 = vmatprep.subr.mxu0 0.0
    %6295 = vmatpush1.msra.mxu0 0.0
    %6296 = vmatprep.subr.mxu0 0.0
    %6297 = vmatpush1.msra.mxu0 0.0
    %6298 = vmatprep.subr.mxu0 0.0
    %6299 = vmatpush1.msra.mxu0 0.0
    %6300 = vmatprep.subr.mxu0 0.0
    %6301 = vmatpush1.msra.mxu0 0.0
    %6302 = vmatprep.subr.mxu0 0.0
    %6303 = vmatpush1.msra.mxu0 0.0
    %6304 = vmatprep.subr.mxu0 0.0
    %6305 = vmatpush1.msra.mxu0 0.0
    %6306 = vmatprep.subr.mxu0 0.0
    %6307 = vmatpush1.msra.mxu0 0.0
    %6308 = vmatprep.subr.mxu0 0.0
    %6309 = vmatpush1.msra.mxu0 0.0
    %6310 = vmatprep.subr.mxu0 0.0
    %6311 = vmatpush1.msra.mxu0 0.0
    %6312 = vmatprep.subr.mxu0 0.0
    %6313 = vmatpush1.msra.mxu0 0.0
    %6314 = vmatprep.subr.mxu0 0.0
    %6315 = vmatpush1.msra.mxu0 0.0
    %6316 = vmatprep.subr.mxu0 0.0
    %6317 = vmatpush1.msra.mxu0 0.0
    %6318 = vmatprep.subr.mxu0 0.0
    %6319 = vmatpush1.msra.mxu0 0.0
    %6320 = vmatprep.subr.mxu0 0.0
    %6321 = vmatpush1.msra.mxu0 0.0
    %6322 = vmatprep.subr.mxu0 0.0
    %6323 = vmatpush1.msra.mxu0 0.0
    %6324 = vmatprep.subr.mxu0 0.0
    %6325 = vmatpush1.msra.mxu0 0.0
    %6326 = vmatprep.subr.mxu0 0.0
    %6327 = vmatpush1.msra.mxu0 0.0
    %6328 = vmatprep.subr.mxu0 0.0
    %6329 = vmatpush1.msra.mxu0 0.0
    %6330 = vmatprep.subr.mxu0 0.0
    %6331 = vmatpush1.msra.mxu0 0.0
    %6332 = vmatprep.subr.mxu0 0.0
    %6333 = vmatpush1.msra.mxu0 0.0
    %6334 = vmatprep.subr.mxu0 0.0
    %6335 = vmatpush1.msra.mxu0 0.0
    %6336 = vmatprep.subr.mxu0 0.0
    %6337 = vmatpush1.msra.mxu0 0.0
    %6338 = vmatprep.subr.mxu0 0.0
    %6339 = vmatpush1.msra.mxu0 0.0
    %6340 = vmatprep.subr.mxu0 0.0
    %6341 = vmatpush1.msra.mxu0 0.0
    %6342 = vmatprep.subr.mxu0 0.0
    %6343 = vmatpush1.msra.mxu0 0.0
    %6344 = vmatprep.subr.mxu0 0.0
    %6345 = vmatpush1.msra.mxu0 0.0
    %6346 = vmatprep.subr.mxu0 0.0
    %6347 = vmatpush1.msra.mxu0 0.0
    %6348 = vmatprep.mubr.f32.mxu0 0.0
    %v6349 = vand.u32 %v5957, 4294901760
    %6350 = vmatmul.mubr.f32.gmra.mrb[0].mxu0 %v6349
    %v6351 = vpop.f32.mrb[0].mxu0
    %v6352 = vadd.f32 %v6274, %v6351
    %v6353 = vpop.f32.mrb[0].mxu0
    %v6354 = vadd.f32 %v6276, %v6353
    %6355 = vdwg.mxu0
    %v6356 = vand.u32 %v5963, 4294901760
    %6357 = vmatprep.subr.mxu0 %v6356
    %v6358 = vand.u32 %v5960, 4294901760
    %6359 = vmatpush1.msra.mxu0 %v6358
    %6360 = vmatprep.subr.mxu0 0.0
    %6361 = vmatpush1.msra.mxu0 0.0
    %6362 = vmatprep.subr.mxu0 0.0
    %6363 = vmatpush1.msra.mxu0 0.0
    %6364 = vmatprep.subr.mxu0 0.0
    %6365 = vmatpush1.msra.mxu0 0.0
    %6366 = vmatprep.subr.mxu0 0.0
    %6367 = vmatpush1.msra.mxu0 0.0
    %6368 = vmatprep.subr.mxu0 0.0
    %6369 = vmatpush1.msra.mxu0 0.0
    %6370 = vmatprep.subr.mxu0 0.0
    %6371 = vmatpush1.msra.mxu0 0.0
    %6372 = vmatprep.subr.mxu0 0.0
    %6373 = vmatpush1.msra.mxu0 0.0
    %6374 = vmatprep.subr.mxu0 0.0
    %6375 = vmatpush1.msra.mxu0 0.0
    %6376 = vmatprep.subr.mxu0 0.0
    %6377 = vmatpush1.msra.mxu0 0.0
    %6378 = vmatprep.subr.mxu0 0.0
    %6379 = vmatpush1.msra.mxu0 0.0
    %6380 = vmatprep.subr.mxu0 0.0
    %6381 = vmatpush1.msra.mxu0 0.0
    %6382 = vmatprep.subr.mxu0 0.0
    %6383 = vmatpush1.msra.mxu0 0.0
    %6384 = vmatprep.subr.mxu0 0.0
    %6385 = vmatpush1.msra.mxu0 0.0
    %6386 = vmatprep.subr.mxu0 0.0
    %6387 = vmatpush1.msra.mxu0 0.0
    %6388 = vmatprep.subr.mxu0 0.0
    %6389 = vmatpush1.msra.mxu0 0.0
    %6390 = vmatprep.subr.mxu0 0.0
    %6391 = vmatpush1.msra.mxu0 0.0
    %6392 = vmatprep.subr.mxu0 0.0
    %6393 = vmatpush1.msra.mxu0 0.0
    %6394 = vmatprep.subr.mxu0 0.0
    %6395 = vmatpush1.msra.mxu0 0.0
    %6396 = vmatprep.subr.mxu0 0.0
    %6397 = vmatpush1.msra.mxu0 0.0
    %6398 = vmatprep.subr.mxu0 0.0
    %6399 = vmatpush1.msra.mxu0 0.0
    %6400 = vmatprep.subr.mxu0 0.0
    %6401 = vmatpush1.msra.mxu0 0.0
    %6402 = vmatprep.subr.mxu0 0.0
    %6403 = vmatpush1.msra.mxu0 0.0
    %6404 = vmatprep.subr.mxu0 0.0
    %6405 = vmatpush1.msra.mxu0 0.0
    %6406 = vmatprep.subr.mxu0 0.0
    %6407 = vmatpush1.msra.mxu0 0.0
    %6408 = vmatprep.subr.mxu0 0.0
    %6409 = vmatpush1.msra.mxu0 0.0
    %6410 = vmatprep.subr.mxu0 0.0
    %6411 = vmatpush1.msra.mxu0 0.0
    %6412 = vmatprep.subr.mxu0 0.0
    %6413 = vmatpush1.msra.mxu0 0.0
    %6414 = vmatprep.subr.mxu0 0.0
    %6415 = vmatpush1.msra.mxu0 0.0
    %6416 = vmatprep.subr.mxu0 0.0
    %6417 = vmatpush1.msra.mxu0 0.0
    %6418 = vmatprep.subr.mxu0 0.0
    %6419 = vmatpush1.msra.mxu0 0.0
    %6420 = vmatprep.subr.mxu0 0.0
    %6421 = vmatpush1.msra.mxu0 0.0
    %6422 = vmatprep.mubr.f32.mxu0 0.0
    %v6423 = vand.u32 %v5957, 4294901760
    %6424 = vmatmul.mubr.f32.gmra.mrb[0].mxu0 %v6423
    %v6425 = vpop.f32.mrb[0].mxu0
    %v6426 = vadd.f32 %v6352, %v6425
    %v6427 = vpop.f32.mrb[0].mxu0
    %v6428 = vadd.f32 %v6354, %v6427
    %6429 = vdwg.mxu0
    %v6430 = vadd.f32 %v5941, %v6426
    %v6431 = vadd.f32 %v5942, %v6428
    %v6432 = vld [vmem:[%s1 + $0x20] sm:$0xff]
    %6433 = vrot.lane.b32.xlu0 %v4481, 96
    %v6434 = vpop.permute.xlu0 %6433
    %6435 = vrot.lane.b32.xlu0 %v4485, 96
    %v6436 = vpop.permute.xlu0 %6435
    %6437 = vrot.lane.b32.xlu0 %v4482, 96
    %v6438 = vpop.permute.xlu0 %6437
    %v6439 = vsel %vm2021, %v6434, %v6436
    %v6440 = vsel %vm2021, %v6436, %v6438
    %v6442 = vsel %vm86, %v6432, 0
    %v6444 = vsel %vm90, %v6439, 0
    %v6446 = vsel %vm90, %v6440, 0
    %v6448 = vand.u32 %v6446, 4294901760
    %6449 = vmatprep.subr.mxu0 %v6448
    %v6450 = vand.u32 %v6444, 4294901760
    %6451 = vmatpush1.msra.mxu0 %v6450
    %6452 = vmatprep.subr.mxu0 0.0
    %6453 = vmatpush1.msra.mxu0 0.0
    %6454 = vmatprep.subr.mxu0 0.0
    %6455 = vmatpush1.msra.mxu0 0.0
    %6456 = vmatprep.subr.mxu0 0.0
    %6457 = vmatpush1.msra.mxu0 0.0
    %6458 = vmatprep.subr.mxu0 0.0
    %6459 = vmatpush1.msra.mxu0 0.0
    %6460 = vmatprep.subr.mxu0 0.0
    %6461 = vmatpush1.msra.mxu0 0.0
    %6462 = vmatprep.subr.mxu0 0.0
    %6463 = vmatpush1.msra.mxu0 0.0
    %6464 = vmatprep.subr.mxu0 0.0
    %6465 = vmatpush1.msra.mxu0 0.0
    %6466 = vmatprep.subr.mxu0 0.0
    %6467 = vmatpush1.msra.mxu0 0.0
    %6468 = vmatprep.subr.mxu0 0.0
    %6469 = vmatpush1.msra.mxu0 0.0
    %6470 = vmatprep.subr.mxu0 0.0
    %6471 = vmatpush1.msra.mxu0 0.0
    %6472 = vmatprep.subr.mxu0 0.0
    %6473 = vmatpush1.msra.mxu0 0.0
    %6474 = vmatprep.subr.mxu0 0.0
    %6475 = vmatpush1.msra.mxu0 0.0
    %6476 = vmatprep.subr.mxu0 0.0
    %6477 = vmatpush1.msra.mxu0 0.0
    %6478 = vmatprep.subr.mxu0 0.0
    %6479 = vmatpush1.msra.mxu0 0.0
    %6480 = vmatprep.subr.mxu0 0.0
    %6481 = vmatpush1.msra.mxu0 0.0
    %6482 = vmatprep.subr.mxu0 0.0
    %6483 = vmatpush1.msra.mxu0 0.0
    %6484 = vmatprep.subr.mxu0 0.0
    %6485 = vmatpush1.msra.mxu0 0.0
    %6486 = vmatprep.subr.mxu0 0.0
    %6487 = vmatpush1.msra.mxu0 0.0
    %6488 = vmatprep.subr.mxu0 0.0
    %6489 = vmatpush1.msra.mxu0 0.0
    %6490 = vmatprep.subr.mxu0 0.0
    %6491 = vmatpush1.msra.mxu0 0.0
    %6492 = vmatprep.subr.mxu0 0.0
    %6493 = vmatpush1.msra.mxu0 0.0
    %6494 = vmatprep.subr.mxu0 0.0
    %6495 = vmatpush1.msra.mxu0 0.0
    %6496 = vmatprep.subr.mxu0 0.0
    %6497 = vmatpush1.msra.mxu0 0.0
    %6498 = vmatprep.subr.mxu0 0.0
    %6499 = vmatpush1.msra.mxu0 0.0
    %6500 = vmatprep.subr.mxu0 0.0
    %6501 = vmatpush1.msra.mxu0 0.0
    %6502 = vmatprep.subr.mxu0 0.0
    %6503 = vmatpush1.msra.mxu0 0.0
    %6504 = vmatprep.subr.mxu0 0.0
    %6505 = vmatpush1.msra.mxu0 0.0
    %6506 = vmatprep.subr.mxu0 0.0
    %6507 = vmatpush1.msra.mxu0 0.0
    %6508 = vmatprep.subr.mxu0 0.0
    %6509 = vmatpush1.msra.mxu0 0.0
    %6510 = vmatprep.subr.mxu0 0.0
    %6511 = vmatpush1.msra.mxu0 0.0
    %6512 = vmatprep.subr.mxu0 0.0
    %6513 = vmatpush1.msra.mxu0 0.0
    %6514 = vmatprep.mubr.f32.mxu0 0.0
    %v6515 = vand.u32 %v6442, 4294901760
    %v6516 = vsub.f32 %v6442, %v6515
    %v6517 = vand.u32 %v6516, 4294901760
    %v6518 = vsub.f32 %v6516, %v6517
    %v6519 = vand.u32 %v6518, 4294901760
    %6520 = vmatmul.mubr.f32.gmra.mrb[0].mxu0 %v6519
    %v6521 = vpop.f32.mrb[0].mxu0
    %v6522 = vadd.f32 0.0, %v6521
    %v6523 = vpop.f32.mrb[0].mxu0
    %v6524 = vadd.f32 0.0, %v6523
    %6525 = vdwg.mxu0
    %v6526 = vand.u32 %v6446, 4294901760
    %v6527 = vsub.f32 %v6446, %v6526
    %v6528 = vand.u32 %v6527, 4294901760
    %v6529 = vsub.f32 %v6527, %v6528
    %v6530 = vand.u32 %v6529, 4294901760
    %6531 = vmatprep.subr.mxu0 %v6530
    %v6532 = vand.u32 %v6444, 4294901760
    %v6533 = vsub.f32 %v6444, %v6532
    %v6534 = vand.u32 %v6533, 4294901760
    %v6535 = vsub.f32 %v6533, %v6534
    %v6536 = vand.u32 %v6535, 4294901760
    %6537 = vmatpush1.msra.mxu0 %v6536
    %6538 = vmatprep.subr.mxu0 0.0
    %6539 = vmatpush1.msra.mxu0 0.0
    %6540 = vmatprep.subr.mxu0 0.0
    %6541 = vmatpush1.msra.mxu0 0.0
    %6542 = vmatprep.subr.mxu0 0.0
    %6543 = vmatpush1.msra.mxu0 0.0
    %6544 = vmatprep.subr.mxu0 0.0
    %6545 = vmatpush1.msra.mxu0 0.0
    %6546 = vmatprep.subr.mxu0 0.0
    %6547 = vmatpush1.msra.mxu0 0.0
    %6548 = vmatprep.subr.mxu0 0.0
    %6549 = vmatpush1.msra.mxu0 0.0
    %6550 = vmatprep.subr.mxu0 0.0
    %6551 = vmatpush1.msra.mxu0 0.0
    %6552 = vmatprep.subr.mxu0 0.0
    %6553 = vmatpush1.msra.mxu0 0.0
    %6554 = vmatprep.subr.mxu0 0.0
    %6555 = vmatpush1.msra.mxu0 0.0
    %6556 = vmatprep.subr.mxu0 0.0
    %6557 = vmatpush1.msra.mxu0 0.0
    %6558 = vmatprep.subr.mxu0 0.0
    %6559 = vmatpush1.msra.mxu0 0.0
    %6560 = vmatprep.subr.mxu0 0.0
    %6561 = vmatpush1.msra.mxu0 0.0
    %6562 = vmatprep.subr.mxu0 0.0
    %6563 = vmatpush1.msra.mxu0 0.0
    %6564 = vmatprep.subr.mxu0 0.0
    %6565 = vmatpush1.msra.mxu0 0.0
    %6566 = vmatprep.subr.mxu0 0.0
    %6567 = vmatpush1.msra.mxu0 0.0
    %6568 = vmatprep.subr.mxu0 0.0
    %6569 = vmatpush1.msra.mxu0 0.0
    %6570 = vmatprep.subr.mxu0 0.0
    %6571 = vmatpush1.msra.mxu0 0.0
    %6572 = vmatprep.subr.mxu0 0.0
    %6573 = vmatpush1.msra.mxu0 0.0
    %6574 = vmatprep.subr.mxu0 0.0
    %6575 = vmatpush1.msra.mxu0 0.0
    %6576 = vmatprep.subr.mxu0 0.0
    %6577 = vmatpush1.msra.mxu0 0.0
    %6578 = vmatprep.subr.mxu0 0.0
    %6579 = vmatpush1.msra.mxu0 0.0
    %6580 = vmatprep.subr.mxu0 0.0
    %6581 = vmatpush1.msra.mxu0 0.0
    %6582 = vmatprep.subr.mxu0 0.0
    %6583 = vmatpush1.msra.mxu0 0.0
    %6584 = vmatprep.subr.mxu0 0.0
    %6585 = vmatpush1.msra.mxu0 0.0
    %6586 = vmatprep.subr.mxu0 0.0
    %6587 = vmatpush1.msra.mxu0 0.0
    %6588 = vmatprep.subr.mxu0 0.0
    %6589 = vmatpush1.msra.mxu0 0.0
    %6590 = vmatprep.subr.mxu0 0.0
    %6591 = vmatpush1.msra.mxu0 0.0
    %6592 = vmatprep.subr.mxu0 0.0
    %6593 = vmatpush1.msra.mxu0 0.0
    %6594 = vmatprep.subr.mxu0 0.0
    %6595 = vmatpush1.msra.mxu0 0.0
    %6596 = vmatprep.subr.mxu0 0.0
    %6597 = vmatpush1.msra.mxu0 0.0
    %6598 = vmatprep.subr.mxu0 0.0
    %6599 = vmatpush1.msra.mxu0 0.0
    %6600 = vmatprep.mubr.f32.mxu0 0.0
    %v6601 = vand.u32 %v6442, 4294901760
    %6602 = vmatmul.mubr.f32.gmra.mrb[0].mxu0 %v6601
    %v6603 = vpop.f32.mrb[0].mxu0
    %v6604 = vadd.f32 %v6522, %v6603
    %v6605 = vpop.f32.mrb[0].mxu0
    %v6606 = vadd.f32 %v6524, %v6605
    %6607 = vdwg.mxu0
    %v6608 = vand.u32 %v6446, 4294901760
    %v6609 = vsub.f32 %v6446, %v6608
    %6610 = vmatprep.subr.mxu0 %v6609
    %v6611 = vand.u32 %v6444, 4294901760
    %v6612 = vsub.f32 %v6444, %v6611
    %6613 = vmatpush1.msra.mxu0 %v6612
    %6614 = vmatprep.subr.mxu0 0.0
    %6615 = vmatpush1.msra.mxu0 0.0
    %6616 = vmatprep.subr.mxu0 0.0
    %6617 = vmatpush1.msra.mxu0 0.0
    %6618 = vmatprep.subr.mxu0 0.0
    %6619 = vmatpush1.msra.mxu0 0.0
    %6620 = vmatprep.subr.mxu0 0.0
    %6621 = vmatpush1.msra.mxu0 0.0
    %6622 = vmatprep.subr.mxu0 0.0
    %6623 = vmatpush1.msra.mxu0 0.0
    %6624 = vmatprep.subr.mxu0 0.0
    %6625 = vmatpush1.msra.mxu0 0.0
    %6626 = vmatprep.subr.mxu0 0.0
    %6627 = vmatpush1.msra.mxu0 0.0
    %6628 = vmatprep.subr.mxu0 0.0
    %6629 = vmatpush1.msra.mxu0 0.0
    %6630 = vmatprep.subr.mxu0 0.0
    %6631 = vmatpush1.msra.mxu0 0.0
    %6632 = vmatprep.subr.mxu0 0.0
    %6633 = vmatpush1.msra.mxu0 0.0
    %6634 = vmatprep.subr.mxu0 0.0
    %6635 = vmatpush1.msra.mxu0 0.0
    %6636 = vmatprep.subr.mxu0 0.0
    %6637 = vmatpush1.msra.mxu0 0.0
    %6638 = vmatprep.subr.mxu0 0.0
    %6639 = vmatpush1.msra.mxu0 0.0
    %6640 = vmatprep.subr.mxu0 0.0
    %6641 = vmatpush1.msra.mxu0 0.0
    %6642 = vmatprep.subr.mxu0 0.0
    %6643 = vmatpush1.msra.mxu0 0.0
    %6644 = vmatprep.subr.mxu0 0.0
    %6645 = vmatpush1.msra.mxu0 0.0
    %6646 = vmatprep.subr.mxu0 0.0
    %6647 = vmatpush1.msra.mxu0 0.0
    %6648 = vmatprep.subr.mxu0 0.0
    %6649 = vmatpush1.msra.mxu0 0.0
    %6650 = vmatprep.subr.mxu0 0.0
    %6651 = vmatpush1.msra.mxu0 0.0
    %6652 = vmatprep.subr.mxu0 0.0
    %6653 = vmatpush1.msra.mxu0 0.0
    %6654 = vmatprep.subr.mxu0 0.0
    %6655 = vmatpush1.msra.mxu0 0.0
    %6656 = vmatprep.subr.mxu0 0.0
    %6657 = vmatpush1.msra.mxu0 0.0
    %6658 = vmatprep.subr.mxu0 0.0
    %6659 = vmatpush1.msra.mxu0 0.0
    %6660 = vmatprep.subr.mxu0 0.0
    %6661 = vmatpush1.msra.mxu0 0.0
    %6662 = vmatprep.subr.mxu0 0.0
    %6663 = vmatpush1.msra.mxu0 0.0
    %6664 = vmatprep.subr.mxu0 0.0
    %6665 = vmatpush1.msra.mxu0 0.0
    %6666 = vmatprep.subr.mxu0 0.0
    %6667 = vmatpush1.msra.mxu0 0.0
    %6668 = vmatprep.subr.mxu0 0.0
    %6669 = vmatpush1.msra.mxu0 0.0
    %6670 = vmatprep.subr.mxu0 0.0
    %6671 = vmatpush1.msra.mxu0 0.0
    %6672 = vmatprep.subr.mxu0 0.0
    %6673 = vmatpush1.msra.mxu0 0.0
    %6674 = vmatprep.subr.mxu0 0.0
    %6675 = vmatpush1.msra.mxu0 0.0
    %6676 = vmatprep.mubr.f32.mxu0 0.0
    %v6677 = vand.u32 %v6442, 4294901760
    %v6678 = vsub.f32 %v6442, %v6677
    %6679 = vmatmul.mubr.f32.gmra.mrb[0].mxu0 %v6678
    %v6680 = vpop.f32.mrb[0].mxu0
    %v6681 = vadd.f32 %v6604, %v6680
    %v6682 = vpop.f32.mrb[0].mxu0
    %v6683 = vadd.f32 %v6606, %v6682
    %6684 = vdwg.mxu0
    %v6685 = vand.u32 %v6446, 4294901760
    %6686 = vmatprep.subr.mxu0 %v6685
    %v6687 = vand.u32 %v6444, 4294901760
    %6688 = vmatpush1.msra.mxu0 %v6687
    %6689 = vmatprep.subr.mxu0 0.0
    %6690 = vmatpush1.msra.mxu0 0.0
    %6691 = vmatprep.subr.mxu0 0.0
    %6692 = vmatpush1.msra.mxu0 0.0
    %6693 = vmatprep.subr.mxu0 0.0
    %6694 = vmatpush1.msra.mxu0 0.0
    %6695 = vmatprep.subr.mxu0 0.0
    %6696 = vmatpush1.msra.mxu0 0.0
    %6697 = vmatprep.subr.mxu0 0.0
    %6698 = vmatpush1.msra.mxu0 0.0
    %6699 = vmatprep.subr.mxu0 0.0
    %6700 = vmatpush1.msra.mxu0 0.0
    %6701 = vmatprep.subr.mxu0 0.0
    %6702 = vmatpush1.msra.mxu0 0.0
    %6703 = vmatprep.subr.mxu0 0.0
    %6704 = vmatpush1.msra.mxu0 0.0
    %6705 = vmatprep.subr.mxu0 0.0
    %6706 = vmatpush1.msra.mxu0 0.0
    %6707 = vmatprep.subr.mxu0 0.0
    %6708 = vmatpush1.msra.mxu0 0.0
    %6709 = vmatprep.subr.mxu0 0.0
    %6710 = vmatpush1.msra.mxu0 0.0
    %6711 = vmatprep.subr.mxu0 0.0
    %6712 = vmatpush1.msra.mxu0 0.0
    %6713 = vmatprep.subr.mxu0 0.0
    %6714 = vmatpush1.msra.mxu0 0.0
    %6715 = vmatprep.subr.mxu0 0.0
    %6716 = vmatpush1.msra.mxu0 0.0
    %6717 = vmatprep.subr.mxu0 0.0
    %6718 = vmatpush1.msra.mxu0 0.0
    %6719 = vmatprep.subr.mxu0 0.0
    %6720 = vmatpush1.msra.mxu0 0.0
    %6721 = vmatprep.subr.mxu0 0.0
    %6722 = vmatpush1.msra.mxu0 0.0
    %6723 = vmatprep.subr.mxu0 0.0
    %6724 = vmatpush1.msra.mxu0 0.0
    %6725 = vmatprep.subr.mxu0 0.0
    %6726 = vmatpush1.msra.mxu0 0.0
    %6727 = vmatprep.subr.mxu0 0.0
    %6728 = vmatpush1.msra.mxu0 0.0
    %6729 = vmatprep.subr.mxu0 0.0
    %6730 = vmatpush1.msra.mxu0 0.0
    %6731 = vmatprep.subr.mxu0 0.0
    %6732 = vmatpush1.msra.mxu0 0.0
    %6733 = vmatprep.subr.mxu0 0.0
    %6734 = vmatpush1.msra.mxu0 0.0
    %6735 = vmatprep.subr.mxu0 0.0
    %6736 = vmatpush1.msra.mxu0 0.0
    %6737 = vmatprep.subr.mxu0 0.0
    %6738 = vmatpush1.msra.mxu0 0.0
    %6739 = vmatprep.subr.mxu0 0.0
    %6740 = vmatpush1.msra.mxu0 0.0
    %6741 = vmatprep.subr.mxu0 0.0
    %6742 = vmatpush1.msra.mxu0 0.0
    %6743 = vmatprep.subr.mxu0 0.0
    %6744 = vmatpush1.msra.mxu0 0.0
    %6745 = vmatprep.subr.mxu0 0.0
    %6746 = vmatpush1.msra.mxu0 0.0
    %6747 = vmatprep.subr.mxu0 0.0
    %6748 = vmatpush1.msra.mxu0 0.0
    %6749 = vmatprep.subr.mxu0 0.0
    %6750 = vmatpush1.msra.mxu0 0.0
    %6751 = vmatprep.mubr.f32.mxu0 0.0
    %v6752 = vand.u32 %v6442, 4294901760
    %v6753 = vsub.f32 %v6442, %v6752
    %v6754 = vand.u32 %v6753, 4294901760
    %6755 = vmatmul.mubr.f32.gmra.mrb[0].mxu0 %v6754
    %v6756 = vpop.f32.mrb[0].mxu0
    %v6757 = vadd.f32 %v6681, %v6756
    %v6758 = vpop.f32.mrb[0].mxu0
    %v6759 = vadd.f32 %v6683, %v6758
    %6760 = vdwg.mxu0
    %v6761 = vand.u32 %v6446, 4294901760
    %v6762 = vsub.f32 %v6446, %v6761
    %v6763 = vand.u32 %v6762, 4294901760
    %6764 = vmatprep.subr.mxu0 %v6763
    %v6765 = vand.u32 %v6444, 4294901760
    %v6766 = vsub.f32 %v6444, %v6765
    %v6767 = vand.u32 %v6766, 4294901760
    %6768 = vmatpush1.msra.mxu0 %v6767
    %6769 = vmatprep.subr.mxu0 0.0
    %6770 = vmatpush1.msra.mxu0 0.0
    %6771 = vmatprep.subr.mxu0 0.0
    %6772 = vmatpush1.msra.mxu0 0.0
    %6773 = vmatprep.subr.mxu0 0.0
    %6774 = vmatpush1.msra.mxu0 0.0
    %6775 = vmatprep.subr.mxu0 0.0
    %6776 = vmatpush1.msra.mxu0 0.0
    %6777 = vmatprep.subr.mxu0 0.0
    %6778 = vmatpush1.msra.mxu0 0.0
    %6779 = vmatprep.subr.mxu0 0.0
    %6780 = vmatpush1.msra.mxu0 0.0
    %6781 = vmatprep.subr.mxu0 0.0
    %6782 = vmatpush1.msra.mxu0 0.0
    %6783 = vmatprep.subr.mxu0 0.0
    %6784 = vmatpush1.msra.mxu0 0.0
    %6785 = vmatprep.subr.mxu0 0.0
    %6786 = vmatpush1.msra.mxu0 0.0
    %6787 = vmatprep.subr.mxu0 0.0
    %6788 = vmatpush1.msra.mxu0 0.0
    %6789 = vmatprep.subr.mxu0 0.0
    %6790 = vmatpush1.msra.mxu0 0.0
    %6791 = vmatprep.subr.mxu0 0.0
    %6792 = vmatpush1.msra.mxu0 0.0
    %6793 = vmatprep.subr.mxu0 0.0
    %6794 = vmatpush1.msra.mxu0 0.0
    %6795 = vmatprep.subr.mxu0 0.0
    %6796 = vmatpush1.msra.mxu0 0.0
    %6797 = vmatprep.subr.mxu0 0.0
    %6798 = vmatpush1.msra.mxu0 0.0
    %6799 = vmatprep.subr.mxu0 0.0
    %6800 = vmatpush1.msra.mxu0 0.0
    %6801 = vmatprep.subr.mxu0 0.0
    %6802 = vmatpush1.msra.mxu0 0.0
    %6803 = vmatprep.subr.mxu0 0.0
    %6804 = vmatpush1.msra.mxu0 0.0
    %6805 = vmatprep.subr.mxu0 0.0
    %6806 = vmatpush1.msra.mxu0 0.0
    %6807 = vmatprep.subr.mxu0 0.0
    %6808 = vmatpush1.msra.mxu0 0.0
    %6809 = vmatprep.subr.mxu0 0.0
    %6810 = vmatpush1.msra.mxu0 0.0
    %6811 = vmatprep.subr.mxu0 0.0
    %6812 = vmatpush1.msra.mxu0 0.0
    %6813 = vmatprep.subr.mxu0 0.0
    %6814 = vmatpush1.msra.mxu0 0.0
    %6815 = vmatprep.subr.mxu0 0.0
    %6816 = vmatpush1.msra.mxu0 0.0
    %6817 = vmatprep.subr.mxu0 0.0
    %6818 = vmatpush1.msra.mxu0 0.0
    %6819 = vmatprep.subr.mxu0 0.0
    %6820 = vmatpush1.msra.mxu0 0.0
    %6821 = vmatprep.subr.mxu0 0.0
    %6822 = vmatpush1.msra.mxu0 0.0
    %6823 = vmatprep.subr.mxu0 0.0
    %6824 = vmatpush1.msra.mxu0 0.0
    %6825 = vmatprep.subr.mxu0 0.0
    %6826 = vmatpush1.msra.mxu0 0.0
    %6827 = vmatprep.subr.mxu0 0.0
    %6828 = vmatpush1.msra.mxu0 0.0
    %6829 = vmatprep.subr.mxu0 0.0
    %6830 = vmatpush1.msra.mxu0 0.0
    %6831 = vmatprep.mubr.f32.mxu0 0.0
    %v6832 = vand.u32 %v6442, 4294901760
    %6833 = vmatmul.mubr.f32.gmra.mrb[0].mxu0 %v6832
    %v6834 = vpop.f32.mrb[0].mxu0
    %v6835 = vadd.f32 %v6757, %v6834
    %v6836 = vpop.f32.mrb[0].mxu0
    %v6837 = vadd.f32 %v6759, %v6836
    %6838 = vdwg.mxu0
    %v6839 = vand.u32 %v6446, 4294901760
    %6840 = vmatprep.subr.mxu0 %v6839
    %v6841 = vand.u32 %v6444, 4294901760
    %6842 = vmatpush1.msra.mxu0 %v6841
    %6843 = vmatprep.subr.mxu0 0.0
    %6844 = vmatpush1.msra.mxu0 0.0
    %6845 = vmatprep.subr.mxu0 0.0
    %6846 = vmatpush1.msra.mxu0 0.0
    %6847 = vmatprep.subr.mxu0 0.0
    %6848 = vmatpush1.msra.mxu0 0.0
    %6849 = vmatprep.subr.mxu0 0.0
    %6850 = vmatpush1.msra.mxu0 0.0
    %6851 = vmatprep.subr.mxu0 0.0
    %6852 = vmatpush1.msra.mxu0 0.0
    %6853 = vmatprep.subr.mxu0 0.0
    %6854 = vmatpush1.msra.mxu0 0.0
    %6855 = vmatprep.subr.mxu0 0.0
    %6856 = vmatpush1.msra.mxu0 0.0
    %6857 = vmatprep.subr.mxu0 0.0
    %6858 = vmatpush1.msra.mxu0 0.0
    %6859 = vmatprep.subr.mxu0 0.0
    %6860 = vmatpush1.msra.mxu0 0.0
    %6861 = vmatprep.subr.mxu0 0.0
    %6862 = vmatpush1.msra.mxu0 0.0
    %6863 = vmatprep.subr.mxu0 0.0
    %6864 = vmatpush1.msra.mxu0 0.0
    %6865 = vmatprep.subr.mxu0 0.0
    %6866 = vmatpush1.msra.mxu0 0.0
    %6867 = vmatprep.subr.mxu0 0.0
    %6868 = vmatpush1.msra.mxu0 0.0
    %6869 = vmatprep.subr.mxu0 0.0
    %6870 = vmatpush1.msra.mxu0 0.0
    %6871 = vmatprep.subr.mxu0 0.0
    %6872 = vmatpush1.msra.mxu0 0.0
    %6873 = vmatprep.subr.mxu0 0.0
    %6874 = vmatpush1.msra.mxu0 0.0
    %6875 = vmatprep.subr.mxu0 0.0
    %6876 = vmatpush1.msra.mxu0 0.0
    %6877 = vmatprep.subr.mxu0 0.0
    %6878 = vmatpush1.msra.mxu0 0.0
    %6879 = vmatprep.subr.mxu0 0.0
    %6880 = vmatpush1.msra.mxu0 0.0
    %6881 = vmatprep.subr.mxu0 0.0
    %6882 = vmatpush1.msra.mxu0 0.0
    %6883 = vmatprep.subr.mxu0 0.0
    %6884 = vmatpush1.msra.mxu0 0.0
    %6885 = vmatprep.subr.mxu0 0.0
    %6886 = vmatpush1.msra.mxu0 0.0
    %6887 = vmatprep.subr.mxu0 0.0
    %6888 = vmatpush1.msra.mxu0 0.0
    %6889 = vmatprep.subr.mxu0 0.0
    %6890 = vmatpush1.msra.mxu0 0.0
    %6891 = vmatprep.subr.mxu0 0.0
    %6892 = vmatpush1.msra.mxu0 0.0
    %6893 = vmatprep.subr.mxu0 0.0
    %6894 = vmatpush1.msra.mxu0 0.0
    %6895 = vmatprep.subr.mxu0 0.0
    %6896 = vmatpush1.msra.mxu0 0.0
    %6897 = vmatprep.subr.mxu0 0.0
    %6898 = vmatpush1.msra.mxu0 0.0
    %6899 = vmatprep.subr.mxu0 0.0
    %6900 = vmatpush1.msra.mxu0 0.0
    %6901 = vmatprep.subr.mxu0 0.0
    %6902 = vmatpush1.msra.mxu0 0.0
    %6903 = vmatprep.subr.mxu0 0.0
    %6904 = vmatpush1.msra.mxu0 0.0
    %6905 = vmatprep.mubr.f32.mxu0 0.0
    %v6906 = vand.u32 %v6442, 4294901760
    %6907 = vmatmul.mubr.f32.gmra.mrb[0].mxu0 %v6906
    %v6908 = vpop.f32.mrb[0].mxu0
    %v6909 = vadd.f32 %v6835, %v6908
    %v6910 = vpop.f32.mrb[0].mxu0
    %v6911 = vadd.f32 %v6837, %v6910
    %6912 = vdwg.mxu0
    %v6913 = vadd.f32 %v6430, %v6909
    %v6914 = vadd.f32 %v6431, %v6911
    %6915 = vrot.lane.b32.xlu0 %v4481, 95
    %v6916 = vpop.permute.xlu0 %6915
    %6917 = vrot.lane.b32.xlu0 %v4485, 95
    %v6918 = vpop.permute.xlu0 %6917
    %6919 = vrot.lane.b32.xlu0 %v4482, 95
    %v6920 = vpop.permute.xlu0 %6919
    %v6921 = vsel %vm2504, %v6916, %v6918
    %v6922 = vsel %vm2504, %v6918, %v6920
    %v6925 = vsel %vm52, %v6921, 0.0
    %v6926 = vsel %vm53, %v6922, 0.0
    %v6927 = vld [vmem:[%s1 + $0x28] sm:$0xff]
    %v6929 = vsel %vm86, %v6927, 0
    %v6932 = vsel %vm90, %v6925, 0
    %v6935 = vsel %vm90, %v6926, 0
    %v6937 = vand.u32 %v6935, 4294901760
    %6938 = vmatprep.subr.mxu0 %v6937
    %v6939 = vand.u32 %v6932, 4294901760
    %6940 = vmatpush1.msra.mxu0 %v6939
    %6941 = vmatprep.subr.mxu0 0.0
    %6942 = vmatpush1.msra.mxu0 0.0
    %6943 = vmatprep.subr.mxu0 0.0
    %6944 = vmatpush1.msra.mxu0 0.0
    %6945 = vmatprep.subr.mxu0 0.0
    %6946 = vmatpush1.msra.mxu0 0.0
    %6947 = vmatprep.subr.mxu0 0.0
    %6948 = vmatpush1.msra.mxu0 0.0
    %6949 = vmatprep.subr.mxu0 0.0
    %6950 = vmatpush1.msra.mxu0 0.0
    %6951 = vmatprep.subr.mxu0 0.0
    %6952 = vmatpush1.msra.mxu0 0.0
    %6953 = vmatprep.subr.mxu0 0.0
    %6954 = vmatpush1.msra.mxu0 0.0
    %6955 = vmatprep.subr.mxu0 0.0
    %6956 = vmatpush1.msra.mxu0 0.0
    %6957 = vmatprep.subr.mxu0 0.0
    %6958 = vmatpush1.msra.mxu0 0.0
    %6959 = vmatprep.subr.mxu0 0.0
    %6960 = vmatpush1.msra.mxu0 0.0
    %6961 = vmatprep.subr.mxu0 0.0
    %6962 = vmatpush1.msra.mxu0 0.0
    %6963 = vmatprep.subr.mxu0 0.0
    %6964 = vmatpush1.msra.mxu0 0.0
    %6965 = vmatprep.subr.mxu0 0.0
    %6966 = vmatpush1.msra.mxu0 0.0
    %6967 = vmatprep.subr.mxu0 0.0
    %6968 = vmatpush1.msra.mxu0 0.0
    %6969 = vmatprep.subr.mxu0 0.0
    %6970 = vmatpush1.msra.mxu0 0.0
    %6971 = vmatprep.subr.mxu0 0.0
    %6972 = vmatpush1.msra.mxu0 0.0
    %6973 = vmatprep.subr.mxu0 0.0
    %6974 = vmatpush1.msra.mxu0 0.0
    %6975 = vmatprep.subr.mxu0 0.0
    %6976 = vmatpush1.msra.mxu0 0.0
    %6977 = vmatprep.subr.mxu0 0.0
    %6978 = vmatpush1.msra.mxu0 0.0
    %6979 = vmatprep.subr.mxu0 0.0
    %6980 = vmatpush1.msra.mxu0 0.0
    %6981 = vmatprep.subr.mxu0 0.0
    %6982 = vmatpush1.msra.mxu0 0.0
    %6983 = vmatprep.subr.mxu0 0.0
    %6984 = vmatpush1.msra.mxu0 0.0
    %6985 = vmatprep.subr.mxu0 0.0
    %6986 = vmatpush1.msra.mxu0 0.0
    %6987 = vmatprep.subr.mxu0 0.0
    %6988 = vmatpush1.msra.mxu0 0.0
    %6989 = vmatprep.subr.mxu0 0.0
    %6990 = vmatpush1.msra.mxu0 0.0
    %6991 = vmatprep.subr.mxu0 0.0
    %6992 = vmatpush1.msra.mxu0 0.0
    %6993 = vmatprep.subr.mxu0 0.0
    %6994 = vmatpush1.msra.mxu0 0.0
    %6995 = vmatprep.subr.mxu0 0.0
    %6996 = vmatpush1.msra.mxu0 0.0
    %6997 = vmatprep.subr.mxu0 0.0
    %6998 = vmatpush1.msra.mxu0 0.0
    %6999 = vmatprep.subr.mxu0 0.0
    %7000 = vmatpush1.msra.mxu0 0.0
    %7001 = vmatprep.subr.mxu0 0.0
    %7002 = vmatpush1.msra.mxu0 0.0
    %7003 = vmatprep.mubr.f32.mxu0 0.0
    %v7004 = vand.u32 %v6929, 4294901760
    %v7005 = vsub.f32 %v6929, %v7004
    %v7006 = vand.u32 %v7005, 4294901760
    %v7007 = vsub.f32 %v7005, %v7006
    %v7008 = vand.u32 %v7007, 4294901760
    %7009 = vmatmul.mubr.f32.gmra.mrb[0].mxu0 %v7008
    %v7010 = vpop.f32.mrb[0].mxu0
    %v7011 = vadd.f32 0.0, %v7010
    %v7012 = vpop.f32.mrb[0].mxu0
    %v7013 = vadd.f32 0.0, %v7012
    %7014 = vdwg.mxu0
    %v7015 = vand.u32 %v6935, 4294901760
    %v7016 = vsub.f32 %v6935, %v7015
    %v7017 = vand.u32 %v7016, 4294901760
    %v7018 = vsub.f32 %v7016, %v7017
    %v7019 = vand.u32 %v7018, 4294901760
    %7020 = vmatprep.subr.mxu0 %v7019
    %v7021 = vand.u32 %v6932, 4294901760
    %v7022 = vsub.f32 %v6932, %v7021
    %v7023 = vand.u32 %v7022, 4294901760
    %v7024 = vsub.f32 %v7022, %v7023
    %v7025 = vand.u32 %v7024, 4294901760
    %7026 = vmatpush1.msra.mxu0 %v7025
    %7027 = vmatprep.subr.mxu0 0.0
    %7028 = vmatpush1.msra.mxu0 0.0
    %7029 = vmatprep.subr.mxu0 0.0
    %7030 = vmatpush1.msra.mxu0 0.0
    %7031 = vmatprep.subr.mxu0 0.0
    %7032 = vmatpush1.msra.mxu0 0.0
    %7033 = vmatprep.subr.mxu0 0.0
    %7034 = vmatpush1.msra.mxu0 0.0
    %7035 = vmatprep.subr.mxu0 0.0
    %7036 = vmatpush1.msra.mxu0 0.0
    %7037 = vmatprep.subr.mxu0 0.0
    %7038 = vmatpush1.msra.mxu0 0.0
    %7039 = vmatprep.subr.mxu0 0.0
    %7040 = vmatpush1.msra.mxu0 0.0
    %7041 = vmatprep.subr.mxu0 0.0
    %7042 = vmatpush1.msra.mxu0 0.0
    %7043 = vmatprep.subr.mxu0 0.0
    %7044 = vmatpush1.msra.mxu0 0.0
    %7045 = vmatprep.subr.mxu0 0.0
    %7046 = vmatpush1.msra.mxu0 0.0
    %7047 = vmatprep.subr.mxu0 0.0
    %7048 = vmatpush1.msra.mxu0 0.0
    %7049 = vmatprep.subr.mxu0 0.0
    %7050 = vmatpush1.msra.mxu0 0.0
    %7051 = vmatprep.subr.mxu0 0.0
    %7052 = vmatpush1.msra.mxu0 0.0
    %7053 = vmatprep.subr.mxu0 0.0
    %7054 = vmatpush1.msra.mxu0 0.0
    %7055 = vmatprep.subr.mxu0 0.0
    %7056 = vmatpush1.msra.mxu0 0.0
    %7057 = vmatprep.subr.mxu0 0.0
    %7058 = vmatpush1.msra.mxu0 0.0
    %7059 = vmatprep.subr.mxu0 0.0
    %7060 = vmatpush1.msra.mxu0 0.0
    %7061 = vmatprep.subr.mxu0 0.0
    %7062 = vmatpush1.msra.mxu0 0.0
    %7063 = vmatprep.subr.mxu0 0.0
    %7064 = vmatpush1.msra.mxu0 0.0
    %7065 = vmatprep.subr.mxu0 0.0
    %7066 = vmatpush1.msra.mxu0 0.0
    %7067 = vmatprep.subr.mxu0 0.0
    %7068 = vmatpush1.msra.mxu0 0.0
    %7069 = vmatprep.subr.mxu0 0.0
    %7070 = vmatpush1.msra.mxu0 0.0
    %7071 = vmatprep.subr.mxu0 0.0
    %7072 = vmatpush1.msra.mxu0 0.0
    %7073 = vmatprep.subr.mxu0 0.0
    %7074 = vmatpush1.msra.mxu0 0.0
    %7075 = vmatprep.subr.mxu0 0.0
    %7076 = vmatpush1.msra.mxu0 0.0
    %7077 = vmatprep.subr.mxu0 0.0
    %7078 = vmatpush1.msra.mxu0 0.0
    %7079 = vmatprep.subr.mxu0 0.0
    %7080 = vmatpush1.msra.mxu0 0.0
    %7081 = vmatprep.subr.mxu0 0.0
    %7082 = vmatpush1.msra.mxu0 0.0
    %7083 = vmatprep.subr.mxu0 0.0
    %7084 = vmatpush1.msra.mxu0 0.0
    %7085 = vmatprep.subr.mxu0 0.0
    %7086 = vmatpush1.msra.mxu0 0.0
    %7087 = vmatprep.subr.mxu0 0.0
    %7088 = vmatpush1.msra.mxu0 0.0
    %7089 = vmatprep.mubr.f32.mxu0 0.0
    %v7090 = vand.u32 %v6929, 4294901760
    %7091 = vmatmul.mubr.f32.gmra.mrb[0].mxu0 %v7090
    %v7092 = vpop.f32.mrb[0].mxu0
    %v7093 = vadd.f32 %v7011, %v7092
    %v7094 = vpop.f32.mrb[0].mxu0
    %v7095 = vadd.f32 %v7013, %v7094
    %7096 = vdwg.mxu0
    %v7097 = vand.u32 %v6935, 4294901760
    %v7098 = vsub.f32 %v6935, %v7097
    %7099 = vmatprep.subr.mxu0 %v7098
    %v7100 = vand.u32 %v6932, 4294901760
    %v7101 = vsub.f32 %v6932, %v7100
    %7102 = vmatpush1.msra.mxu0 %v7101
    %7103 = vmatprep.subr.mxu0 0.0
    %7104 = vmatpush1.msra.mxu0 0.0
    %7105 = vmatprep.subr.mxu0 0.0
    %7106 = vmatpush1.msra.mxu0 0.0
    %7107 = vmatprep.subr.mxu0 0.0
    %7108 = vmatpush1.msra.mxu0 0.0
    %7109 = vmatprep.subr.mxu0 0.0
    %7110 = vmatpush1.msra.mxu0 0.0
    %7111 = vmatprep.subr.mxu0 0.0
    %7112 = vmatpush1.msra.mxu0 0.0
    %7113 = vmatprep.subr.mxu0 0.0
    %7114 = vmatpush1.msra.mxu0 0.0
    %7115 = vmatprep.subr.mxu0 0.0
    %7116 = vmatpush1.msra.mxu0 0.0
    %7117 = vmatprep.subr.mxu0 0.0
    %7118 = vmatpush1.msra.mxu0 0.0
    %7119 = vmatprep.subr.mxu0 0.0
    %7120 = vmatpush1.msra.mxu0 0.0
    %7121 = vmatprep.subr.mxu0 0.0
    %7122 = vmatpush1.msra.mxu0 0.0
    %7123 = vmatprep.subr.mxu0 0.0
    %7124 = vmatpush1.msra.mxu0 0.0
    %7125 = vmatprep.subr.mxu0 0.0
    %7126 = vmatpush1.msra.mxu0 0.0
    %7127 = vmatprep.subr.mxu0 0.0
    %7128 = vmatpush1.msra.mxu0 0.0
    %7129 = vmatprep.subr.mxu0 0.0
    %7130 = vmatpush1.msra.mxu0 0.0
    %7131 = vmatprep.subr.mxu0 0.0
    %7132 = vmatpush1.msra.mxu0 0.0
    %7133 = vmatprep.subr.mxu0 0.0
    %7134 = vmatpush1.msra.mxu0 0.0
    %7135 = vmatprep.subr.mxu0 0.0
    %7136 = vmatpush1.msra.mxu0 0.0
    %7137 = vmatprep.subr.mxu0 0.0
    %7138 = vmatpush1.msra.mxu0 0.0
    %7139 = vmatprep.subr.mxu0 0.0
    %7140 = vmatpush1.msra.mxu0 0.0
    %7141 = vmatprep.subr.mxu0 0.0
    %7142 = vmatpush1.msra.mxu0 0.0
    %7143 = vmatprep.subr.mxu0 0.0
    %7144 = vmatpush1.msra.mxu0 0.0
    %7145 = vmatprep.subr.mxu0 0.0
    %7146 = vmatpush1.msra.mxu0 0.0
    %7147 = vmatprep.subr.mxu0 0.0
    %7148 = vmatpush1.msra.mxu0 0.0
    %7149 = vmatprep.subr.mxu0 0.0
    %7150 = vmatpush1.msra.mxu0 0.0
    %7151 = vmatprep.subr.mxu0 0.0
    %7152 = vmatpush1.msra.mxu0 0.0
    %7153 = vmatprep.subr.mxu0 0.0
    %7154 = vmatpush1.msra.mxu0 0.0
    %7155 = vmatprep.subr.mxu0 0.0
    %7156 = vmatpush1.msra.mxu0 0.0
    %7157 = vmatprep.subr.mxu0 0.0
    %7158 = vmatpush1.msra.mxu0 0.0
    %7159 = vmatprep.subr.mxu0 0.0
    %7160 = vmatpush1.msra.mxu0 0.0
    %7161 = vmatprep.subr.mxu0 0.0
    %7162 = vmatpush1.msra.mxu0 0.0
    %7163 = vmatprep.subr.mxu0 0.0
    %7164 = vmatpush1.msra.mxu0 0.0
    %7165 = vmatprep.mubr.f32.mxu0 0.0
    %v7166 = vand.u32 %v6929, 4294901760
    %v7167 = vsub.f32 %v6929, %v7166
    %7168 = vmatmul.mubr.f32.gmra.mrb[0].mxu0 %v7167
    %v7169 = vpop.f32.mrb[0].mxu0
    %v7170 = vadd.f32 %v7093, %v7169
    %v7171 = vpop.f32.mrb[0].mxu0
    %v7172 = vadd.f32 %v7095, %v7171
    %7173 = vdwg.mxu0
    %v7174 = vand.u32 %v6935, 4294901760
    %7175 = vmatprep.subr.mxu0 %v7174
    %v7176 = vand.u32 %v6932, 4294901760
    %7177 = vmatpush1.msra.mxu0 %v7176
    %7178 = vmatprep.subr.mxu0 0.0
    %7179 = vmatpush1.msra.mxu0 0.0
    %7180 = vmatprep.subr.mxu0 0.0
    %7181 = vmatpush1.msra.mxu0 0.0
    %7182 = vmatprep.subr.mxu0 0.0
    %7183 = vmatpush1.msra.mxu0 0.0
    %7184 = vmatprep.subr.mxu0 0.0
    %7185 = vmatpush1.msra.mxu0 0.0
    %7186 = vmatprep.subr.mxu0 0.0
    %7187 = vmatpush1.msra.mxu0 0.0
    %7188 = vmatprep.subr.mxu0 0.0
    %7189 = vmatpush1.msra.mxu0 0.0
    %7190 = vmatprep.subr.mxu0 0.0
    %7191 = vmatpush1.msra.mxu0 0.0
    %7192 = vmatprep.subr.mxu0 0.0
    %7193 = vmatpush1.msra.mxu0 0.0
    %7194 = vmatprep.subr.mxu0 0.0
    %7195 = vmatpush1.msra.mxu0 0.0
    %7196 = vmatprep.subr.mxu0 0.0
    %7197 = vmatpush1.msra.mxu0 0.0
    %7198 = vmatprep.subr.mxu0 0.0
    %7199 = vmatpush1.msra.mxu0 0.0
    %7200 = vmatprep.subr.mxu0 0.0
    %7201 = vmatpush1.msra.mxu0 0.0
    %7202 = vmatprep.subr.mxu0 0.0
    %7203 = vmatpush1.msra.mxu0 0.0
    %7204 = vmatprep.subr.mxu0 0.0
    %7205 = vmatpush1.msra.mxu0 0.0
    %7206 = vmatprep.subr.mxu0 0.0
    %7207 = vmatpush1.msra.mxu0 0.0
    %7208 = vmatprep.subr.mxu0 0.0
    %7209 = vmatpush1.msra.mxu0 0.0
    %7210 = vmatprep.subr.mxu0 0.0
    %7211 = vmatpush1.msra.mxu0 0.0
    %7212 = vmatprep.subr.mxu0 0.0
    %7213 = vmatpush1.msra.mxu0 0.0
    %7214 = vmatprep.subr.mxu0 0.0
    %7215 = vmatpush1.msra.mxu0 0.0
    %7216 = vmatprep.subr.mxu0 0.0
    %7217 = vmatpush1.msra.mxu0 0.0
    %7218 = vmatprep.subr.mxu0 0.0
    %7219 = vmatpush1.msra.mxu0 0.0
    %7220 = vmatprep.subr.mxu0 0.0
    %7221 = vmatpush1.msra.mxu0 0.0
    %7222 = vmatprep.subr.mxu0 0.0
    %7223 = vmatpush1.msra.mxu0 0.0
    %7224 = vmatprep.subr.mxu0 0.0
    %7225 = vmatpush1.msra.mxu0 0.0
    %7226 = vmatprep.subr.mxu0 0.0
    %7227 = vmatpush1.msra.mxu0 0.0
    %7228 = vmatprep.subr.mxu0 0.0
    %7229 = vmatpush1.msra.mxu0 0.0
    %7230 = vmatprep.subr.mxu0 0.0
    %7231 = vmatpush1.msra.mxu0 0.0
    %7232 = vmatprep.subr.mxu0 0.0
    %7233 = vmatpush1.msra.mxu0 0.0
    %7234 = vmatprep.subr.mxu0 0.0
    %7235 = vmatpush1.msra.mxu0 0.0
    %7236 = vmatprep.subr.mxu0 0.0
    %7237 = vmatpush1.msra.mxu0 0.0
    %7238 = vmatprep.subr.mxu0 0.0
    %7239 = vmatpush1.msra.mxu0 0.0
    %7240 = vmatprep.mubr.f32.mxu0 0.0
    %v7241 = vand.u32 %v6929, 4294901760
    %v7242 = vsub.f32 %v6929, %v7241
    %v7243 = vand.u32 %v7242, 4294901760
    %7244 = vmatmul.mubr.f32.gmra.mrb[0].mxu0 %v7243
    %v7245 = vpop.f32.mrb[0].mxu0
    %v7246 = vadd.f32 %v7170, %v7245
    %v7247 = vpop.f32.mrb[0].mxu0
    %v7248 = vadd.f32 %v7172, %v7247
    %7249 = vdwg.mxu0
    %v7250 = vand.u32 %v6935, 4294901760
    %v7251 = vsub.f32 %v6935, %v7250
    %v7252 = vand.u32 %v7251, 4294901760
    %7253 = vmatprep.subr.mxu0 %v7252
    %v7254 = vand.u32 %v6932, 4294901760
    %v7255 = vsub.f32 %v6932, %v7254
    %v7256 = vand.u32 %v7255, 4294901760
    %7257 = vmatpush1.msra.mxu0 %v7256
    %7258 = vmatprep.subr.mxu0 0.0
    %7259 = vmatpush1.msra.mxu0 0.0
    %7260 = vmatprep.subr.mxu0 0.0
    %7261 = vmatpush1.msra.mxu0 0.0
    %7262 = vmatprep.subr.mxu0 0.0
    %7263 = vmatpush1.msra.mxu0 0.0
    %7264 = vmatprep.subr.mxu0 0.0
    %7265 = vmatpush1.msra.mxu0 0.0
    %7266 = vmatprep.subr.mxu0 0.0
    %7267 = vmatpush1.msra.mxu0 0.0
    %7268 = vmatprep.subr.mxu0 0.0
    %7269 = vmatpush1.msra.mxu0 0.0
    %7270 = vmatprep.subr.mxu0 0.0
    %7271 = vmatpush1.msra.mxu0 0.0
    %7272 = vmatprep.subr.mxu0 0.0
    %7273 = vmatpush1.msra.mxu0 0.0
    %7274 = vmatprep.subr.mxu0 0.0
    %7275 = vmatpush1.msra.mxu0 0.0
    %7276 = vmatprep.subr.mxu0 0.0
    %7277 = vmatpush1.msra.mxu0 0.0
    %7278 = vmatprep.subr.mxu0 0.0
    %7279 = vmatpush1.msra.mxu0 0.0
    %7280 = vmatprep.subr.mxu0 0.0
    %7281 = vmatpush1.msra.mxu0 0.0
    %7282 = vmatprep.subr.mxu0 0.0
    %7283 = vmatpush1.msra.mxu0 0.0
    %7284 = vmatprep.subr.mxu0 0.0
    %7285 = vmatpush1.msra.mxu0 0.0
    %7286 = vmatprep.subr.mxu0 0.0
    %7287 = vmatpush1.msra.mxu0 0.0
    %7288 = vmatprep.subr.mxu0 0.0
    %7289 = vmatpush1.msra.mxu0 0.0
    %7290 = vmatprep.subr.mxu0 0.0
    %7291 = vmatpush1.msra.mxu0 0.0
    %7292 = vmatprep.subr.mxu0 0.0
    %7293 = vmatpush1.msra.mxu0 0.0
    %7294 = vmatprep.subr.mxu0 0.0
    %7295 = vmatpush1.msra.mxu0 0.0
    %7296 = vmatprep.subr.mxu0 0.0
    %7297 = vmatpush1.msra.mxu0 0.0
    %7298 = vmatprep.subr.mxu0 0.0
    %7299 = vmatpush1.msra.mxu0 0.0
    %7300 = vmatprep.subr.mxu0 0.0
    %7301 = vmatpush1.msra.mxu0 0.0
    %7302 = vmatprep.subr.mxu0 0.0
    %7303 = vmatpush1.msra.mxu0 0.0
    %7304 = vmatprep.subr.mxu0 0.0
    %7305 = vmatpush1.msra.mxu0 0.0
    %7306 = vmatprep.subr.mxu0 0.0
    %7307 = vmatpush1.msra.mxu0 0.0
    %7308 = vmatprep.subr.mxu0 0.0
    %7309 = vmatpush1.msra.mxu0 0.0
    %7310 = vmatprep.subr.mxu0 0.0
    %7311 = vmatpush1.msra.mxu0 0.0
    %7312 = vmatprep.subr.mxu0 0.0
    %7313 = vmatpush1.msra.mxu0 0.0
    %7314 = vmatprep.subr.mxu0 0.0
    %7315 = vmatpush1.msra.mxu0 0.0
    %7316 = vmatprep.subr.mxu0 0.0
    %7317 = vmatpush1.msra.mxu0 0.0
    %7318 = vmatprep.subr.mxu0 0.0
    %7319 = vmatpush1.msra.mxu0 0.0
    %7320 = vmatprep.mubr.f32.mxu0 0.0
    %v7321 = vand.u32 %v6929, 4294901760
    %7322 = vmatmul.mubr.f32.gmra.mrb[0].mxu0 %v7321
    %v7323 = vpop.f32.mrb[0].mxu0
    %v7324 = vadd.f32 %v7246, %v7323
    %v7325 = vpop.f32.mrb[0].mxu0
    %v7326 = vadd.f32 %v7248, %v7325
    %7327 = vdwg.mxu0
    %v7328 = vand.u32 %v6935, 4294901760
    %7329 = vmatprep.subr.mxu0 %v7328
    %v7330 = vand.u32 %v6932, 4294901760
    %7331 = vmatpush1.msra.mxu0 %v7330
    %7332 = vmatprep.subr.mxu0 0.0
    %7333 = vmatpush1.msra.mxu0 0.0
    %7334 = vmatprep.subr.mxu0 0.0
    %7335 = vmatpush1.msra.mxu0 0.0
    %7336 = vmatprep.subr.mxu0 0.0
    %7337 = vmatpush1.msra.mxu0 0.0
    %7338 = vmatprep.subr.mxu0 0.0
    %7339 = vmatpush1.msra.mxu0 0.0
    %7340 = vmatprep.subr.mxu0 0.0
    %7341 = vmatpush1.msra.mxu0 0.0
    %7342 = vmatprep.subr.mxu0 0.0
    %7343 = vmatpush1.msra.mxu0 0.0
    %7344 = vmatprep.subr.mxu0 0.0
    %7345 = vmatpush1.msra.mxu0 0.0
    %7346 = vmatprep.subr.mxu0 0.0
    %7347 = vmatpush1.msra.mxu0 0.0
    %7348 = vmatprep.subr.mxu0 0.0
    %7349 = vmatpush1.msra.mxu0 0.0
    %7350 = vmatprep.subr.mxu0 0.0
    %7351 = vmatpush1.msra.mxu0 0.0
    %7352 = vmatprep.subr.mxu0 0.0
    %7353 = vmatpush1.msra.mxu0 0.0
    %7354 = vmatprep.subr.mxu0 0.0
    %7355 = vmatpush1.msra.mxu0 0.0
    %7356 = vmatprep.subr.mxu0 0.0
    %7357 = vmatpush1.msra.mxu0 0.0
    %7358 = vmatprep.subr.mxu0 0.0
    %7359 = vmatpush1.msra.mxu0 0.0
    %7360 = vmatprep.subr.mxu0 0.0
    %7361 = vmatpush1.msra.mxu0 0.0
    %7362 = vmatprep.subr.mxu0 0.0
    %7363 = vmatpush1.msra.mxu0 0.0
    %7364 = vmatprep.subr.mxu0 0.0
    %7365 = vmatpush1.msra.mxu0 0.0
    %7366 = vmatprep.subr.mxu0 0.0
    %7367 = vmatpush1.msra.mxu0 0.0
    %7368 = vmatprep.subr.mxu0 0.0
    %7369 = vmatpush1.msra.mxu0 0.0
    %7370 = vmatprep.subr.mxu0 0.0
    %7371 = vmatpush1.msra.mxu0 0.0
    %7372 = vmatprep.subr.mxu0 0.0
    %7373 = vmatpush1.msra.mxu0 0.0
    %7374 = vmatprep.subr.mxu0 0.0
    %7375 = vmatpush1.msra.mxu0 0.0
    %7376 = vmatprep.subr.mxu0 0.0
    %7377 = vmatpush1.msra.mxu0 0.0
    %7378 = vmatprep.subr.mxu0 0.0
    %7379 = vmatpush1.msra.mxu0 0.0
    %7380 = vmatprep.subr.mxu0 0.0
    %7381 = vmatpush1.msra.mxu0 0.0
    %7382 = vmatprep.subr.mxu0 0.0
    %7383 = vmatpush1.msra.mxu0 0.0
    %7384 = vmatprep.subr.mxu0 0.0
    %7385 = vmatpush1.msra.mxu0 0.0
    %7386 = vmatprep.subr.mxu0 0.0
    %7387 = vmatpush1.msra.mxu0 0.0
    %7388 = vmatprep.subr.mxu0 0.0
    %7389 = vmatpush1.msra.mxu0 0.0
    %7390 = vmatprep.subr.mxu0 0.0
    %7391 = vmatpush1.msra.mxu0 0.0
    %7392 = vmatprep.subr.mxu0 0.0
    %7393 = vmatpush1.msra.mxu0 0.0
    %7394 = vmatprep.mubr.f32.mxu0 0.0
    %v7395 = vand.u32 %v6929, 4294901760
    %7396 = vmatmul.mubr.f32.gmra.mrb[0].mxu0 %v7395
    %v7397 = vpop.f32.mrb[0].mxu0
    %v7398 = vadd.f32 %v7324, %v7397
    %v7399 = vpop.f32.mrb[0].mxu0
    %v7400 = vadd.f32 %v7326, %v7399
    %7401 = vdwg.mxu0
    %v7402 = vadd.f32 %v6913, %v7398
    %v7403 = vadd.f32 %v6914, %v7400
    %7404 = vrot.lane.b32.xlu0 %v4481, 81
    %v7405 = vpop.permute.xlu0 %7404
    %7406 = vrot.lane.b32.xlu0 %v4485, 81
    %v7407 = vpop.permute.xlu0 %7406
    %7408 = vrot.lane.b32.xlu0 %v4482, 81
    %v7409 = vpop.permute.xlu0 %7408
    %v7410 = vsel %vm2994, %v7405, %v7407
    %v7411 = vsel %vm2994, %v7407, %v7409
    %v7414 = vsel %vm50, %v7410, 0.0
    %v7415 = vsel %vm51, %v7411, 0.0
    %v7416 = vld [vmem:[%s1 + $0x30] sm:$0xff]
    %v7418 = vsel %vm86, %v7416, 0
    %v7421 = vsel %vm90, %v7414, 0
    %v7424 = vsel %vm90, %v7415, 0
    %v7426 = vand.u32 %v7424, 4294901760
    %7427 = vmatprep.subr.mxu0 %v7426
    %v7428 = vand.u32 %v7421, 4294901760
    %7429 = vmatpush1.msra.mxu0 %v7428
    %7430 = vmatprep.subr.mxu0 0.0
    %7431 = vmatpush1.msra.mxu0 0.0
    %7432 = vmatprep.subr.mxu0 0.0
    %7433 = vmatpush1.msra.mxu0 0.0
    %7434 = vmatprep.subr.mxu0 0.0
    %7435 = vmatpush1.msra.mxu0 0.0
    %7436 = vmatprep.subr.mxu0 0.0
    %7437 = vmatpush1.msra.mxu0 0.0
    %7438 = vmatprep.subr.mxu0 0.0
    %7439 = vmatpush1.msra.mxu0 0.0
    %7440 = vmatprep.subr.mxu0 0.0
    %7441 = vmatpush1.msra.mxu0 0.0
    %7442 = vmatprep.subr.mxu0 0.0
    %7443 = vmatpush1.msra.mxu0 0.0
    %7444 = vmatprep.subr.mxu0 0.0
    %7445 = vmatpush1.msra.mxu0 0.0
    %7446 = vmatprep.subr.mxu0 0.0
    %7447 = vmatpush1.msra.mxu0 0.0
    %7448 = vmatprep.subr.mxu0 0.0
    %7449 = vmatpush1.msra.mxu0 0.0
    %7450 = vmatprep.subr.mxu0 0.0
    %7451 = vmatpush1.msra.mxu0 0.0
    %7452 = vmatprep.subr.mxu0 0.0
    %7453 = vmatpush1.msra.mxu0 0.0
    %7454 = vmatprep.subr.mxu0 0.0
    %7455 = vmatpush1.msra.mxu0 0.0
    %7456 = vmatprep.subr.mxu0 0.0
    %7457 = vmatpush1.msra.mxu0 0.0
    %7458 = vmatprep.subr.mxu0 0.0
    %7459 = vmatpush1.msra.mxu0 0.0
    %7460 = vmatprep.subr.mxu0 0.0
    %7461 = vmatpush1.msra.mxu0 0.0
    %7462 = vmatprep.subr.mxu0 0.0
    %7463 = vmatpush1.msra.mxu0 0.0
    %7464 = vmatprep.subr.mxu0 0.0
    %7465 = vmatpush1.msra.mxu0 0.0
    %7466 = vmatprep.subr.mxu0 0.0
    %7467 = vmatpush1.msra.mxu0 0.0
    %7468 = vmatprep.subr.mxu0 0.0
    %7469 = vmatpush1.msra.mxu0 0.0
    %7470 = vmatprep.subr.mxu0 0.0
    %7471 = vmatpush1.msra.mxu0 0.0
    %7472 = vmatprep.subr.mxu0 0.0
    %7473 = vmatpush1.msra.mxu0 0.0
    %7474 = vmatprep.subr.mxu0 0.0
    %7475 = vmatpush1.msra.mxu0 0.0
    %7476 = vmatprep.subr.mxu0 0.0
    %7477 = vmatpush1.msra.mxu0 0.0
    %7478 = vmatprep.subr.mxu0 0.0
    %7479 = vmatpush1.msra.mxu0 0.0
    %7480 = vmatprep.subr.mxu0 0.0
    %7481 = vmatpush1.msra.mxu0 0.0
    %7482 = vmatprep.subr.mxu0 0.0
    %7483 = vmatpush1.msra.mxu0 0.0
    %7484 = vmatprep.subr.mxu0 0.0
    %7485 = vmatpush1.msra.mxu0 0.0
    %7486 = vmatprep.subr.mxu0 0.0
    %7487 = vmatpush1.msra.mxu0 0.0
    %7488 = vmatprep.subr.mxu0 0.0
    %7489 = vmatpush1.msra.mxu0 0.0
    %7490 = vmatprep.subr.mxu0 0.0
    %7491 = vmatpush1.msra.mxu0 0.0
    %7492 = vmatprep.mubr.f32.mxu0 0.0
    %v7493 = vand.u32 %v7418, 4294901760
    %v7494 = vsub.f32 %v7418, %v7493
    %v7495 = vand.u32 %v7494, 4294901760
    %v7496 = vsub.f32 %v7494, %v7495
    %v7497 = vand.u32 %v7496, 4294901760
    %7498 = vmatmul.mubr.f32.gmra.mrb[0].mxu0 %v7497
    %v7499 = vpop.f32.mrb[0].mxu0
    %v7500 = vadd.f32 0.0, %v7499
    %v7501 = vpop.f32.mrb[0].mxu0
    %v7502 = vadd.f32 0.0, %v7501
    %7503 = vdwg.mxu0
    %v7504 = vand.u32 %v7424, 4294901760
    %v7505 = vsub.f32 %v7424, %v7504
    %v7506 = vand.u32 %v7505, 4294901760
    %v7507 = vsub.f32 %v7505, %v7506
    %v7508 = vand.u32 %v7507, 4294901760
    %7509 = vmatprep.subr.mxu0 %v7508
    %v7510 = vand.u32 %v7421, 4294901760
    %v7511 = vsub.f32 %v7421, %v7510
    %v7512 = vand.u32 %v7511, 4294901760
    %v7513 = vsub.f32 %v7511, %v7512
    %v7514 = vand.u32 %v7513, 4294901760
    %7515 = vmatpush1.msra.mxu0 %v7514
    %7516 = vmatprep.subr.mxu0 0.0
    %7517 = vmatpush1.msra.mxu0 0.0
    %7518 = vmatprep.subr.mxu0 0.0
    %7519 = vmatpush1.msra.mxu0 0.0
    %7520 = vmatprep.subr.mxu0 0.0
    %7521 = vmatpush1.msra.mxu0 0.0
    %7522 = vmatprep.subr.mxu0 0.0
    %7523 = vmatpush1.msra.mxu0 0.0
    %7524 = vmatprep.subr.mxu0 0.0
    %7525 = vmatpush1.msra.mxu0 0.0
    %7526 = vmatprep.subr.mxu0 0.0
    %7527 = vmatpush1.msra.mxu0 0.0
    %7528 = vmatprep.subr.mxu0 0.0
    %7529 = vmatpush1.msra.mxu0 0.0
    %7530 = vmatprep.subr.mxu0 0.0
    %7531 = vmatpush1.msra.mxu0 0.0
    %7532 = vmatprep.subr.mxu0 0.0
    %7533 = vmatpush1.msra.mxu0 0.0
    %7534 = vmatprep.subr.mxu0 0.0
    %7535 = vmatpush1.msra.mxu0 0.0
    %7536 = vmatprep.subr.mxu0 0.0
    %7537 = vmatpush1.msra.mxu0 0.0
    %7538 = vmatprep.subr.mxu0 0.0
    %7539 = vmatpush1.msra.mxu0 0.0
    %7540 = vmatprep.subr.mxu0 0.0
    %7541 = vmatpush1.msra.mxu0 0.0
    %7542 = vmatprep.subr.mxu0 0.0
    %7543 = vmatpush1.msra.mxu0 0.0
    %7544 = vmatprep.subr.mxu0 0.0
    %7545 = vmatpush1.msra.mxu0 0.0
    %7546 = vmatprep.subr.mxu0 0.0
    %7547 = vmatpush1.msra.mxu0 0.0
    %7548 = vmatprep.subr.mxu0 0.0
    %7549 = vmatpush1.msra.mxu0 0.0
    %7550 = vmatprep.subr.mxu0 0.0
    %7551 = vmatpush1.msra.mxu0 0.0
    %7552 = vmatprep.subr.mxu0 0.0
    %7553 = vmatpush1.msra.mxu0 0.0
    %7554 = vmatprep.subr.mxu0 0.0
    %7555 = vmatpush1.msra.mxu0 0.0
    %7556 = vmatprep.subr.mxu0 0.0
    %7557 = vmatpush1.msra.mxu0 0.0
    %7558 = vmatprep.subr.mxu0 0.0
    %7559 = vmatpush1.msra.mxu0 0.0
    %7560 = vmatprep.subr.mxu0 0.0
    %7561 = vmatpush1.msra.mxu0 0.0
    %7562 = vmatprep.subr.mxu0 0.0
    %7563 = vmatpush1.msra.mxu0 0.0
    %7564 = vmatprep.subr.mxu0 0.0
    %7565 = vmatpush1.msra.mxu0 0.0
    %7566 = vmatprep.subr.mxu0 0.0
    %7567 = vmatpush1.msra.mxu0 0.0
    %7568 = vmatprep.subr.mxu0 0.0
    %7569 = vmatpush1.msra.mxu0 0.0
    %7570 = vmatprep.subr.mxu0 0.0
    %7571 = vmatpush1.msra.mxu0 0.0
    %7572 = vmatprep.subr.mxu0 0.0
    %7573 = vmatpush1.msra.mxu0 0.0
    %7574 = vmatprep.subr.mxu0 0.0
    %7575 = vmatpush1.msra.mxu0 0.0
    %7576 = vmatprep.subr.mxu0 0.0
    %7577 = vmatpush1.msra.mxu0 0.0
    %7578 = vmatprep.mubr.f32.mxu0 0.0
    %v7579 = vand.u32 %v7418, 4294901760
    %7580 = vmatmul.mubr.f32.gmra.mrb[0].mxu0 %v7579
    %v7581 = vpop.f32.mrb[0].mxu0
    %v7582 = vadd.f32 %v7500, %v7581
    %v7583 = vpop.f32.mrb[0].mxu0
    %v7584 = vadd.f32 %v7502, %v7583
    %7585 = vdwg.mxu0
    %v7586 = vand.u32 %v7424, 4294901760
    %v7587 = vsub.f32 %v7424, %v7586
    %7588 = vmatprep.subr.mxu0 %v7587
    %v7589 = vand.u32 %v7421, 4294901760
    %v7590 = vsub.f32 %v7421, %v7589
    %7591 = vmatpush1.msra.mxu0 %v7590
    %7592 = vmatprep.subr.mxu0 0.0
    %7593 = vmatpush1.msra.mxu0 0.0
    %7594 = vmatprep.subr.mxu0 0.0
    %7595 = vmatpush1.msra.mxu0 0.0
    %7596 = vmatprep.subr.mxu0 0.0
    %7597 = vmatpush1.msra.mxu0 0.0
    %7598 = vmatprep.subr.mxu0 0.0
    %7599 = vmatpush1.msra.mxu0 0.0
    %7600 = vmatprep.subr.mxu0 0.0
    %7601 = vmatpush1.msra.mxu0 0.0
    %7602 = vmatprep.subr.mxu0 0.0
    %7603 = vmatpush1.msra.mxu0 0.0
    %7604 = vmatprep.subr.mxu0 0.0
    %7605 = vmatpush1.msra.mxu0 0.0
    %7606 = vmatprep.subr.mxu0 0.0
    %7607 = vmatpush1.msra.mxu0 0.0
    %7608 = vmatprep.subr.mxu0 0.0
    %7609 = vmatpush1.msra.mxu0 0.0
    %7610 = vmatprep.subr.mxu0 0.0
    %7611 = vmatpush1.msra.mxu0 0.0
    %7612 = vmatprep.subr.mxu0 0.0
    %7613 = vmatpush1.msra.mxu0 0.0
    %7614 = vmatprep.subr.mxu0 0.0
    %7615 = vmatpush1.msra.mxu0 0.0
    %7616 = vmatprep.subr.mxu0 0.0
    %7617 = vmatpush1.msra.mxu0 0.0
    %7618 = vmatprep.subr.mxu0 0.0
    %7619 = vmatpush1.msra.mxu0 0.0
    %7620 = vmatprep.subr.mxu0 0.0
    %7621 = vmatpush1.msra.mxu0 0.0
    %7622 = vmatprep.subr.mxu0 0.0
    %7623 = vmatpush1.msra.mxu0 0.0
    %7624 = vmatprep.subr.mxu0 0.0
    %7625 = vmatpush1.msra.mxu0 0.0
    %7626 = vmatprep.subr.mxu0 0.0
    %7627 = vmatpush1.msra.mxu0 0.0
    %7628 = vmatprep.subr.mxu0 0.0
    %7629 = vmatpush1.msra.mxu0 0.0
    %7630 = vmatprep.subr.mxu0 0.0
    %7631 = vmatpush1.msra.mxu0 0.0
    %7632 = vmatprep.subr.mxu0 0.0
    %7633 = vmatpush1.msra.mxu0 0.0
    %7634 = vmatprep.subr.mxu0 0.0
    %7635 = vmatpush1.msra.mxu0 0.0
    %7636 = vmatprep.subr.mxu0 0.0
    %7637 = vmatpush1.msra.mxu0 0.0
    %7638 = vmatprep.subr.mxu0 0.0
    %7639 = vmatpush1.msra.mxu0 0.0
    %7640 = vmatprep.subr.mxu0 0.0
    %7641 = vmatpush1.msra.mxu0 0.0
    %7642 = vmatprep.subr.mxu0 0.0
    %7643 = vmatpush1.msra.mxu0 0.0
    %7644 = vmatprep.subr.mxu0 0.0
    %7645 = vmatpush1.msra.mxu0 0.0
    %7646 = vmatprep.subr.mxu0 0.0
    %7647 = vmatpush1.msra.mxu0 0.0
    %7648 = vmatprep.subr.mxu0 0.0
    %7649 = vmatpush1.msra.mxu0 0.0
    %7650 = vmatprep.subr.mxu0 0.0
    %7651 = vmatpush1.msra.mxu0 0.0
    %7652 = vmatprep.subr.mxu0 0.0
    %7653 = vmatpush1.msra.mxu0 0.0
    %7654 = vmatprep.mubr.f32.mxu0 0.0
    %v7655 = vand.u32 %v7418, 4294901760
    %v7656 = vsub.f32 %v7418, %v7655
    %7657 = vmatmul.mubr.f32.gmra.mrb[0].mxu0 %v7656
    %v7658 = vpop.f32.mrb[0].mxu0
    %v7659 = vadd.f32 %v7582, %v7658
    %v7660 = vpop.f32.mrb[0].mxu0
    %v7661 = vadd.f32 %v7584, %v7660
    %7662 = vdwg.mxu0
    %v7663 = vand.u32 %v7424, 4294901760
    %7664 = vmatprep.subr.mxu0 %v7663
    %v7665 = vand.u32 %v7421, 4294901760
    %7666 = vmatpush1.msra.mxu0 %v7665
    %7667 = vmatprep.subr.mxu0 0.0
    %7668 = vmatpush1.msra.mxu0 0.0
    %7669 = vmatprep.subr.mxu0 0.0
    %7670 = vmatpush1.msra.mxu0 0.0
    %7671 = vmatprep.subr.mxu0 0.0
    %7672 = vmatpush1.msra.mxu0 0.0
    %7673 = vmatprep.subr.mxu0 0.0
    %7674 = vmatpush1.msra.mxu0 0.0
    %7675 = vmatprep.subr.mxu0 0.0
    %7676 = vmatpush1.msra.mxu0 0.0
    %7677 = vmatprep.subr.mxu0 0.0
    %7678 = vmatpush1.msra.mxu0 0.0
    %7679 = vmatprep.subr.mxu0 0.0
    %7680 = vmatpush1.msra.mxu0 0.0
    %7681 = vmatprep.subr.mxu0 0.0
    %7682 = vmatpush1.msra.mxu0 0.0
    %7683 = vmatprep.subr.mxu0 0.0
    %7684 = vmatpush1.msra.mxu0 0.0
    %7685 = vmatprep.subr.mxu0 0.0
    %7686 = vmatpush1.msra.mxu0 0.0
    %7687 = vmatprep.subr.mxu0 0.0
    %7688 = vmatpush1.msra.mxu0 0.0
    %7689 = vmatprep.subr.mxu0 0.0
    %7690 = vmatpush1.msra.mxu0 0.0
    %7691 = vmatprep.subr.mxu0 0.0
    %7692 = vmatpush1.msra.mxu0 0.0
    %7693 = vmatprep.subr.mxu0 0.0
    %7694 = vmatpush1.msra.mxu0 0.0
    %7695 = vmatprep.subr.mxu0 0.0
    %7696 = vmatpush1.msra.mxu0 0.0
    %7697 = vmatprep.subr.mxu0 0.0
    %7698 = vmatpush1.msra.mxu0 0.0
    %7699 = vmatprep.subr.mxu0 0.0
    %7700 = vmatpush1.msra.mxu0 0.0
    %7701 = vmatprep.subr.mxu0 0.0
    %7702 = vmatpush1.msra.mxu0 0.0
    %7703 = vmatprep.subr.mxu0 0.0
    %7704 = vmatpush1.msra.mxu0 0.0
    %7705 = vmatprep.subr.mxu0 0.0
    %7706 = vmatpush1.msra.mxu0 0.0
    %7707 = vmatprep.subr.mxu0 0.0
    %7708 = vmatpush1.msra.mxu0 0.0
    %7709 = vmatprep.subr.mxu0 0.0
    %7710 = vmatpush1.msra.mxu0 0.0
    %7711 = vmatprep.subr.mxu0 0.0
    %7712 = vmatpush1.msra.mxu0 0.0
    %7713 = vmatprep.subr.mxu0 0.0
    %7714 = vmatpush1.msra.mxu0 0.0
    %7715 = vmatprep.subr.mxu0 0.0
    %7716 = vmatpush1.msra.mxu0 0.0
    %7717 = vmatprep.subr.mxu0 0.0
    %7718 = vmatpush1.msra.mxu0 0.0
    %7719 = vmatprep.subr.mxu0 0.0
    %7720 = vmatpush1.msra.mxu0 0.0
    %7721 = vmatprep.subr.mxu0 0.0
    %7722 = vmatpush1.msra.mxu0 0.0
    %7723 = vmatprep.subr.mxu0 0.0
    %7724 = vmatpush1.msra.mxu0 0.0
    %7725 = vmatprep.subr.mxu0 0.0
    %7726 = vmatpush1.msra.mxu0 0.0
    %7727 = vmatprep.subr.mxu0 0.0
    %7728 = vmatpush1.msra.mxu0 0.0
    %7729 = vmatprep.mubr.f32.mxu0 0.0
    %v7730 = vand.u32 %v7418, 4294901760
    %v7731 = vsub.f32 %v7418, %v7730
    %v7732 = vand.u32 %v7731, 4294901760
    %7733 = vmatmul.mubr.f32.gmra.mrb[0].mxu0 %v7732
    %v7734 = vpop.f32.mrb[0].mxu0
    %v7735 = vadd.f32 %v7659, %v7734
    %v7736 = vpop.f32.mrb[0].mxu0
    %v7737 = vadd.f32 %v7661, %v7736
    %7738 = vdwg.mxu0
    %v7739 = vand.u32 %v7424, 4294901760
    %v7740 = vsub.f32 %v7424, %v7739
    %v7741 = vand.u32 %v7740, 4294901760
    %7742 = vmatprep.subr.mxu0 %v7741
    %v7743 = vand.u32 %v7421, 4294901760
    %v7744 = vsub.f32 %v7421, %v7743
    %v7745 = vand.u32 %v7744, 4294901760
    %7746 = vmatpush1.msra.mxu0 %v7745
    %7747 = vmatprep.subr.mxu0 0.0
    %7748 = vmatpush1.msra.mxu0 0.0
    %7749 = vmatprep.subr.mxu0 0.0
    %7750 = vmatpush1.msra.mxu0 0.0
    %7751 = vmatprep.subr.mxu0 0.0
    %7752 = vmatpush1.msra.mxu0 0.0
    %7753 = vmatprep.subr.mxu0 0.0
    %7754 = vmatpush1.msra.mxu0 0.0
    %7755 = vmatprep.subr.mxu0 0.0
    %7756 = vmatpush1.msra.mxu0 0.0
    %7757 = vmatprep.subr.mxu0 0.0
    %7758 = vmatpush1.msra.mxu0 0.0
    %7759 = vmatprep.subr.mxu0 0.0
    %7760 = vmatpush1.msra.mxu0 0.0
    %7761 = vmatprep.subr.mxu0 0.0
    %7762 = vmatpush1.msra.mxu0 0.0
    %7763 = vmatprep.subr.mxu0 0.0
    %7764 = vmatpush1.msra.mxu0 0.0
    %7765 = vmatprep.subr.mxu0 0.0
    %7766 = vmatpush1.msra.mxu0 0.0
    %7767 = vmatprep.subr.mxu0 0.0
    %7768 = vmatpush1.msra.mxu0 0.0
    %7769 = vmatprep.subr.mxu0 0.0
    %7770 = vmatpush1.msra.mxu0 0.0
    %7771 = vmatprep.subr.mxu0 0.0
    %7772 = vmatpush1.msra.mxu0 0.0
    %7773 = vmatprep.subr.mxu0 0.0
    %7774 = vmatpush1.msra.mxu0 0.0
    %7775 = vmatprep.subr.mxu0 0.0
    %7776 = vmatpush1.msra.mxu0 0.0
    %7777 = vmatprep.subr.mxu0 0.0
    %7778 = vmatpush1.msra.mxu0 0.0
    %7779 = vmatprep.subr.mxu0 0.0
    %7780 = vmatpush1.msra.mxu0 0.0
    %7781 = vmatprep.subr.mxu0 0.0
    %7782 = vmatpush1.msra.mxu0 0.0
    %7783 = vmatprep.subr.mxu0 0.0
    %7784 = vmatpush1.msra.mxu0 0.0
    %7785 = vmatprep.subr.mxu0 0.0
    %7786 = vmatpush1.msra.mxu0 0.0
    %7787 = vmatprep.subr.mxu0 0.0
    %7788 = vmatpush1.msra.mxu0 0.0
    %7789 = vmatprep.subr.mxu0 0.0
    %7790 = vmatpush1.msra.mxu0 0.0
    %7791 = vmatprep.subr.mxu0 0.0
    %7792 = vmatpush1.msra.mxu0 0.0
    %7793 = vmatprep.subr.mxu0 0.0
    %7794 = vmatpush1.msra.mxu0 0.0
    %7795 = vmatprep.subr.mxu0 0.0
    %7796 = vmatpush1.msra.mxu0 0.0
    %7797 = vmatprep.subr.mxu0 0.0
    %7798 = vmatpush1.msra.mxu0 0.0
    %7799 = vmatprep.subr.mxu0 0.0
    %7800 = vmatpush1.msra.mxu0 0.0
    %7801 = vmatprep.subr.mxu0 0.0
    %7802 = vmatpush1.msra.mxu0 0.0
    %7803 = vmatprep.subr.mxu0 0.0
    %7804 = vmatpush1.msra.mxu0 0.0
    %7805 = vmatprep.subr.mxu0 0.0
    %7806 = vmatpush1.msra.mxu0 0.0
    %7807 = vmatprep.subr.mxu0 0.0
    %7808 = vmatpush1.msra.mxu0 0.0
    %7809 = vmatprep.mubr.f32.mxu0 0.0
    %v7810 = vand.u32 %v7418, 4294901760
    %7811 = vmatmul.mubr.f32.gmra.mrb[0].mxu0 %v7810
    %v7812 = vpop.f32.mrb[0].mxu0
    %v7813 = vadd.f32 %v7735, %v7812
    %v7814 = vpop.f32.mrb[0].mxu0
    %v7815 = vadd.f32 %v7737, %v7814
    %7816 = vdwg.mxu0
    %v7817 = vand.u32 %v7424, 4294901760
    %7818 = vmatprep.subr.mxu0 %v7817
    %v7819 = vand.u32 %v7421, 4294901760
    %7820 = vmatpush1.msra.mxu0 %v7819
    %7821 = vmatprep.subr.mxu0 0.0
    %7822 = vmatpush1.msra.mxu0 0.0
    %7823 = vmatprep.subr.mxu0 0.0
    %7824 = vmatpush1.msra.mxu0 0.0
    %7825 = vmatprep.subr.mxu0 0.0
    %7826 = vmatpush1.msra.mxu0 0.0
    %7827 = vmatprep.subr.mxu0 0.0
    %7828 = vmatpush1.msra.mxu0 0.0
    %7829 = vmatprep.subr.mxu0 0.0
    %7830 = vmatpush1.msra.mxu0 0.0
    %7831 = vmatprep.subr.mxu0 0.0
    %7832 = vmatpush1.msra.mxu0 0.0
    %7833 = vmatprep.subr.mxu0 0.0
    %7834 = vmatpush1.msra.mxu0 0.0
    %7835 = vmatprep.subr.mxu0 0.0
    %7836 = vmatpush1.msra.mxu0 0.0
    %7837 = vmatprep.subr.mxu0 0.0
    %7838 = vmatpush1.msra.mxu0 0.0
    %7839 = vmatprep.subr.mxu0 0.0
    %7840 = vmatpush1.msra.mxu0 0.0
    %7841 = vmatprep.subr.mxu0 0.0
    %7842 = vmatpush1.msra.mxu0 0.0
    %7843 = vmatprep.subr.mxu0 0.0
    %7844 = vmatpush1.msra.mxu0 0.0
    %7845 = vmatprep.subr.mxu0 0.0
    %7846 = vmatpush1.msra.mxu0 0.0
    %7847 = vmatprep.subr.mxu0 0.0
    %7848 = vmatpush1.msra.mxu0 0.0
    %7849 = vmatprep.subr.mxu0 0.0
    %7850 = vmatpush1.msra.mxu0 0.0
    %7851 = vmatprep.subr.mxu0 0.0
    %7852 = vmatpush1.msra.mxu0 0.0
    %7853 = vmatprep.subr.mxu0 0.0
    %7854 = vmatpush1.msra.mxu0 0.0
    %7855 = vmatprep.subr.mxu0 0.0
    %7856 = vmatpush1.msra.mxu0 0.0
    %7857 = vmatprep.subr.mxu0 0.0
    %7858 = vmatpush1.msra.mxu0 0.0
    %7859 = vmatprep.subr.mxu0 0.0
    %7860 = vmatpush1.msra.mxu0 0.0
    %7861 = vmatprep.subr.mxu0 0.0
    %7862 = vmatpush1.msra.mxu0 0.0
    %7863 = vmatprep.subr.mxu0 0.0
    %7864 = vmatpush1.msra.mxu0 0.0
    %7865 = vmatprep.subr.mxu0 0.0
    %7866 = vmatpush1.msra.mxu0 0.0
    %7867 = vmatprep.subr.mxu0 0.0
    %7868 = vmatpush1.msra.mxu0 0.0
    %7869 = vmatprep.subr.mxu0 0.0
    %7870 = vmatpush1.msra.mxu0 0.0
    %7871 = vmatprep.subr.mxu0 0.0
    %7872 = vmatpush1.msra.mxu0 0.0
    %7873 = vmatprep.subr.mxu0 0.0
    %7874 = vmatpush1.msra.mxu0 0.0
    %7875 = vmatprep.subr.mxu0 0.0
    %7876 = vmatpush1.msra.mxu0 0.0
    %7877 = vmatprep.subr.mxu0 0.0
    %7878 = vmatpush1.msra.mxu0 0.0
    %7879 = vmatprep.subr.mxu0 0.0
    %7880 = vmatpush1.msra.mxu0 0.0
    %7881 = vmatprep.subr.mxu0 0.0
    %7882 = vmatpush1.msra.mxu0 0.0
    %7883 = vmatprep.mubr.f32.mxu0 0.0
    %v7884 = vand.u32 %v7418, 4294901760
    %7885 = vmatmul.mubr.f32.gmra.mrb[0].mxu0 %v7884
    %v7886 = vpop.f32.mrb[0].mxu0
    %v7887 = vadd.f32 %v7813, %v7886
    %v7888 = vpop.f32.mrb[0].mxu0
    %v7889 = vadd.f32 %v7815, %v7888
    %7890 = vdwg.mxu0
    %v7891 = vadd.f32 %v7402, %v7887
    %v7892 = vadd.f32 %v7403, %v7889
    %v7893 = vld [vmem:[%s1 + $0x38] sm:$0xff]
    %7894 = vrot.lane.b32.xlu0 %v4481, 80
    %v7895 = vpop.permute.xlu0 %7894
    %7896 = vrot.lane.b32.xlu0 %v4485, 80
    %v7897 = vpop.permute.xlu0 %7896
    %7898 = vrot.lane.b32.xlu0 %v4482, 80
    %v7899 = vpop.permute.xlu0 %7898
    %v7900 = vsel %vm3485, %v7895, %v7897
    %v7901 = vsel %vm3485, %v7897, %v7899
    %v7903 = vsel %vm86, %v7893, 0
    %v7905 = vsel %vm90, %v7900, 0
    %v7907 = vsel %vm90, %v7901, 0
    %v7909 = vand.u32 %v7907, 4294901760
    %7910 = vmatprep.subr.mxu0 %v7909
    %v7911 = vand.u32 %v7905, 4294901760
    %7912 = vmatpush1.msra.mxu0 %v7911
    %7913 = vmatprep.subr.mxu0 0.0
    %7914 = vmatpush1.msra.mxu0 0.0
    %7915 = vmatprep.subr.mxu0 0.0
    %7916 = vmatpush1.msra.mxu0 0.0
    %7917 = vmatprep.subr.mxu0 0.0
    %7918 = vmatpush1.msra.mxu0 0.0
    %7919 = vmatprep.subr.mxu0 0.0
    %7920 = vmatpush1.msra.mxu0 0.0
    %7921 = vmatprep.subr.mxu0 0.0
    %7922 = vmatpush1.msra.mxu0 0.0
    %7923 = vmatprep.subr.mxu0 0.0
    %7924 = vmatpush1.msra.mxu0 0.0
    %7925 = vmatprep.subr.mxu0 0.0
    %7926 = vmatpush1.msra.mxu0 0.0
    %7927 = vmatprep.subr.mxu0 0.0
    %7928 = vmatpush1.msra.mxu0 0.0
    %7929 = vmatprep.subr.mxu0 0.0
    %7930 = vmatpush1.msra.mxu0 0.0
    %7931 = vmatprep.subr.mxu0 0.0
    %7932 = vmatpush1.msra.mxu0 0.0
    %7933 = vmatprep.subr.mxu0 0.0
    %7934 = vmatpush1.msra.mxu0 0.0
    %7935 = vmatprep.subr.mxu0 0.0
    %7936 = vmatpush1.msra.mxu0 0.0
    %7937 = vmatprep.subr.mxu0 0.0
    %7938 = vmatpush1.msra.mxu0 0.0
    %7939 = vmatprep.subr.mxu0 0.0
    %7940 = vmatpush1.msra.mxu0 0.0
    %7941 = vmatprep.subr.mxu0 0.0
    %7942 = vmatpush1.msra.mxu0 0.0
    %7943 = vmatprep.subr.mxu0 0.0
    %7944 = vmatpush1.msra.mxu0 0.0
    %7945 = vmatprep.subr.mxu0 0.0
    %7946 = vmatpush1.msra.mxu0 0.0
    %7947 = vmatprep.subr.mxu0 0.0
    %7948 = vmatpush1.msra.mxu0 0.0
    %7949 = vmatprep.subr.mxu0 0.0
    %7950 = vmatpush1.msra.mxu0 0.0
    %7951 = vmatprep.subr.mxu0 0.0
    %7952 = vmatpush1.msra.mxu0 0.0
    %7953 = vmatprep.subr.mxu0 0.0
    %7954 = vmatpush1.msra.mxu0 0.0
    %7955 = vmatprep.subr.mxu0 0.0
    %7956 = vmatpush1.msra.mxu0 0.0
    %7957 = vmatprep.subr.mxu0 0.0
    %7958 = vmatpush1.msra.mxu0 0.0
    %7959 = vmatprep.subr.mxu0 0.0
    %7960 = vmatpush1.msra.mxu0 0.0
    %7961 = vmatprep.subr.mxu0 0.0
    %7962 = vmatpush1.msra.mxu0 0.0
    %7963 = vmatprep.subr.mxu0 0.0
    %7964 = vmatpush1.msra.mxu0 0.0
    %7965 = vmatprep.subr.mxu0 0.0
    %7966 = vmatpush1.msra.mxu0 0.0
    %7967 = vmatprep.subr.mxu0 0.0
    %7968 = vmatpush1.msra.mxu0 0.0
    %7969 = vmatprep.subr.mxu0 0.0
    %7970 = vmatpush1.msra.mxu0 0.0
    %7971 = vmatprep.subr.mxu0 0.0
    %7972 = vmatpush1.msra.mxu0 0.0
    %7973 = vmatprep.subr.mxu0 0.0
    %7974 = vmatpush1.msra.mxu0 0.0
    %7975 = vmatprep.mubr.f32.mxu0 0.0
    %v7976 = vand.u32 %v7903, 4294901760
    %v7977 = vsub.f32 %v7903, %v7976
    %v7978 = vand.u32 %v7977, 4294901760
    %v7979 = vsub.f32 %v7977, %v7978
    %v7980 = vand.u32 %v7979, 4294901760
    %7981 = vmatmul.mubr.f32.gmra.mrb[0].mxu0 %v7980
    %v7982 = vpop.f32.mrb[0].mxu0
    %v7983 = vadd.f32 0.0, %v7982
    %v7984 = vpop.f32.mrb[0].mxu0
    %v7985 = vadd.f32 0.0, %v7984
    %7986 = vdwg.mxu0
    %v7987 = vand.u32 %v7907, 4294901760
    %v7988 = vsub.f32 %v7907, %v7987
    %v7989 = vand.u32 %v7988, 4294901760
    %v7990 = vsub.f32 %v7988, %v7989
    %v7991 = vand.u32 %v7990, 4294901760
    %7992 = vmatprep.subr.mxu0 %v7991
    %v7993 = vand.u32 %v7905, 4294901760
    %v7994 = vsub.f32 %v7905, %v7993
    %v7995 = vand.u32 %v7994, 4294901760
    %v7996 = vsub.f32 %v7994, %v7995
    %v7997 = vand.u32 %v7996, 4294901760
    %7998 = vmatpush1.msra.mxu0 %v7997
    %7999 = vmatprep.subr.mxu0 0.0
    %8000 = vmatpush1.msra.mxu0 0.0
    %8001 = vmatprep.subr.mxu0 0.0
    %8002 = vmatpush1.msra.mxu0 0.0
    %8003 = vmatprep.subr.mxu0 0.0
    %8004 = vmatpush1.msra.mxu0 0.0
    %8005 = vmatprep.subr.mxu0 0.0
    %8006 = vmatpush1.msra.mxu0 0.0
    %8007 = vmatprep.subr.mxu0 0.0
    %8008 = vmatpush1.msra.mxu0 0.0
    %8009 = vmatprep.subr.mxu0 0.0
    %8010 = vmatpush1.msra.mxu0 0.0
    %8011 = vmatprep.subr.mxu0 0.0
    %8012 = vmatpush1.msra.mxu0 0.0
    %8013 = vmatprep.subr.mxu0 0.0
    %8014 = vmatpush1.msra.mxu0 0.0
    %8015 = vmatprep.subr.mxu0 0.0
    %8016 = vmatpush1.msra.mxu0 0.0
    %8017 = vmatprep.subr.mxu0 0.0
    %8018 = vmatpush1.msra.mxu0 0.0
    %8019 = vmatprep.subr.mxu0 0.0
    %8020 = vmatpush1.msra.mxu0 0.0
    %8021 = vmatprep.subr.mxu0 0.0
    %8022 = vmatpush1.msra.mxu0 0.0
    %8023 = vmatprep.subr.mxu0 0.0
    %8024 = vmatpush1.msra.mxu0 0.0
    %8025 = vmatprep.subr.mxu0 0.0
    %8026 = vmatpush1.msra.mxu0 0.0
    %8027 = vmatprep.subr.mxu0 0.0
    %8028 = vmatpush1.msra.mxu0 0.0
    %8029 = vmatprep.subr.mxu0 0.0
    %8030 = vmatpush1.msra.mxu0 0.0
    %8031 = vmatprep.subr.mxu0 0.0
    %8032 = vmatpush1.msra.mxu0 0.0
    %8033 = vmatprep.subr.mxu0 0.0
    %8034 = vmatpush1.msra.mxu0 0.0
    %8035 = vmatprep.subr.mxu0 0.0
    %8036 = vmatpush1.msra.mxu0 0.0
    %8037 = vmatprep.subr.mxu0 0.0
    %8038 = vmatpush1.msra.mxu0 0.0
    %8039 = vmatprep.subr.mxu0 0.0
    %8040 = vmatpush1.msra.mxu0 0.0
    %8041 = vmatprep.subr.mxu0 0.0
    %8042 = vmatpush1.msra.mxu0 0.0
    %8043 = vmatprep.subr.mxu0 0.0
    %8044 = vmatpush1.msra.mxu0 0.0
    %8045 = vmatprep.subr.mxu0 0.0
    %8046 = vmatpush1.msra.mxu0 0.0
    %8047 = vmatprep.subr.mxu0 0.0
    %8048 = vmatpush1.msra.mxu0 0.0
    %8049 = vmatprep.subr.mxu0 0.0
    %8050 = vmatpush1.msra.mxu0 0.0
    %8051 = vmatprep.subr.mxu0 0.0
    %8052 = vmatpush1.msra.mxu0 0.0
    %8053 = vmatprep.subr.mxu0 0.0
    %8054 = vmatpush1.msra.mxu0 0.0
    %8055 = vmatprep.subr.mxu0 0.0
    %8056 = vmatpush1.msra.mxu0 0.0
    %8057 = vmatprep.subr.mxu0 0.0
    %8058 = vmatpush1.msra.mxu0 0.0
    %8059 = vmatprep.subr.mxu0 0.0
    %8060 = vmatpush1.msra.mxu0 0.0
    %8061 = vmatprep.mubr.f32.mxu0 0.0
    %v8062 = vand.u32 %v7903, 4294901760
    %8063 = vmatmul.mubr.f32.gmra.mrb[0].mxu0 %v8062
    %v8064 = vpop.f32.mrb[0].mxu0
    %v8065 = vadd.f32 %v7983, %v8064
    %v8066 = vpop.f32.mrb[0].mxu0
    %v8067 = vadd.f32 %v7985, %v8066
    %8068 = vdwg.mxu0
    %v8069 = vand.u32 %v7907, 4294901760
    %v8070 = vsub.f32 %v7907, %v8069
    %8071 = vmatprep.subr.mxu0 %v8070
    %v8072 = vand.u32 %v7905, 4294901760
    %v8073 = vsub.f32 %v7905, %v8072
    %8074 = vmatpush1.msra.mxu0 %v8073
    %8075 = vmatprep.subr.mxu0 0.0
    %8076 = vmatpush1.msra.mxu0 0.0
    %8077 = vmatprep.subr.mxu0 0.0
    %8078 = vmatpush1.msra.mxu0 0.0
    %8079 = vmatprep.subr.mxu0 0.0
    %8080 = vmatpush1.msra.mxu0 0.0
    %8081 = vmatprep.subr.mxu0 0.0
    %8082 = vmatpush1.msra.mxu0 0.0
    %8083 = vmatprep.subr.mxu0 0.0
    %8084 = vmatpush1.msra.mxu0 0.0
    %8085 = vmatprep.subr.mxu0 0.0
    %8086 = vmatpush1.msra.mxu0 0.0
    %8087 = vmatprep.subr.mxu0 0.0
    %8088 = vmatpush1.msra.mxu0 0.0
    %8089 = vmatprep.subr.mxu0 0.0
    %8090 = vmatpush1.msra.mxu0 0.0
    %8091 = vmatprep.subr.mxu0 0.0
    %8092 = vmatpush1.msra.mxu0 0.0
    %8093 = vmatprep.subr.mxu0 0.0
    %8094 = vmatpush1.msra.mxu0 0.0
    %8095 = vmatprep.subr.mxu0 0.0
    %8096 = vmatpush1.msra.mxu0 0.0
    %8097 = vmatprep.subr.mxu0 0.0
    %8098 = vmatpush1.msra.mxu0 0.0
    %8099 = vmatprep.subr.mxu0 0.0
    %8100 = vmatpush1.msra.mxu0 0.0
    %8101 = vmatprep.subr.mxu0 0.0
    %8102 = vmatpush1.msra.mxu0 0.0
    %8103 = vmatprep.subr.mxu0 0.0
    %8104 = vmatpush1.msra.mxu0 0.0
    %8105 = vmatprep.subr.mxu0 0.0
    %8106 = vmatpush1.msra.mxu0 0.0
    %8107 = vmatprep.subr.mxu0 0.0
    %8108 = vmatpush1.msra.mxu0 0.0
    %8109 = vmatprep.subr.mxu0 0.0
    %8110 = vmatpush1.msra.mxu0 0.0
    %8111 = vmatprep.subr.mxu0 0.0
    %8112 = vmatpush1.msra.mxu0 0.0
    %8113 = vmatprep.subr.mxu0 0.0
    %8114 = vmatpush1.msra.mxu0 0.0
    %8115 = vmatprep.subr.mxu0 0.0
    %8116 = vmatpush1.msra.mxu0 0.0
    %8117 = vmatprep.subr.mxu0 0.0
    %8118 = vmatpush1.msra.mxu0 0.0
    %8119 = vmatprep.subr.mxu0 0.0
    %8120 = vmatpush1.msra.mxu0 0.0
    %8121 = vmatprep.subr.mxu0 0.0
    %8122 = vmatpush1.msra.mxu0 0.0
    %8123 = vmatprep.subr.mxu0 0.0
    %8124 = vmatpush1.msra.mxu0 0.0
    %8125 = vmatprep.subr.mxu0 0.0
    %8126 = vmatpush1.msra.mxu0 0.0
    %8127 = vmatprep.subr.mxu0 0.0
    %8128 = vmatpush1.msra.mxu0 0.0
    %8129 = vmatprep.subr.mxu0 0.0
    %8130 = vmatpush1.msra.mxu0 0.0
    %8131 = vmatprep.subr.mxu0 0.0
    %8132 = vmatpush1.msra.mxu0 0.0
    %8133 = vmatprep.subr.mxu0 0.0
    %8134 = vmatpush1.msra.mxu0 0.0
    %8135 = vmatprep.subr.mxu0 0.0
    %8136 = vmatpush1.msra.mxu0 0.0
    %8137 = vmatprep.mubr.f32.mxu0 0.0
    %v8138 = vand.u32 %v7903, 4294901760
    %v8139 = vsub.f32 %v7903, %v8138
    %8140 = vmatmul.mubr.f32.gmra.mrb[0].mxu0 %v8139
    %v8141 = vpop.f32.mrb[0].mxu0
    %v8142 = vadd.f32 %v8065, %v8141
    %v8143 = vpop.f32.mrb[0].mxu0
    %v8144 = vadd.f32 %v8067, %v8143
    %8145 = vdwg.mxu0
    %v8146 = vand.u32 %v7907, 4294901760
    %8147 = vmatprep.subr.mxu0 %v8146
    %v8148 = vand.u32 %v7905, 4294901760
    %8149 = vmatpush1.msra.mxu0 %v8148
    %8150 = vmatprep.subr.mxu0 0.0
    %8151 = vmatpush1.msra.mxu0 0.0
    %8152 = vmatprep.subr.mxu0 0.0
    %8153 = vmatpush1.msra.mxu0 0.0
    %8154 = vmatprep.subr.mxu0 0.0
    %8155 = vmatpush1.msra.mxu0 0.0
    %8156 = vmatprep.subr.mxu0 0.0
    %8157 = vmatpush1.msra.mxu0 0.0
    %8158 = vmatprep.subr.mxu0 0.0
    %8159 = vmatpush1.msra.mxu0 0.0
    %8160 = vmatprep.subr.mxu0 0.0
    %8161 = vmatpush1.msra.mxu0 0.0
    %8162 = vmatprep.subr.mxu0 0.0
    %8163 = vmatpush1.msra.mxu0 0.0
    %8164 = vmatprep.subr.mxu0 0.0
    %8165 = vmatpush1.msra.mxu0 0.0
    %8166 = vmatprep.subr.mxu0 0.0
    %8167 = vmatpush1.msra.mxu0 0.0
    %8168 = vmatprep.subr.mxu0 0.0
    %8169 = vmatpush1.msra.mxu0 0.0
    %8170 = vmatprep.subr.mxu0 0.0
    %8171 = vmatpush1.msra.mxu0 0.0
    %8172 = vmatprep.subr.mxu0 0.0
    %8173 = vmatpush1.msra.mxu0 0.0
    %8174 = vmatprep.subr.mxu0 0.0
    %8175 = vmatpush1.msra.mxu0 0.0
    %8176 = vmatprep.subr.mxu0 0.0
    %8177 = vmatpush1.msra.mxu0 0.0
    %8178 = vmatprep.subr.mxu0 0.0
    %8179 = vmatpush1.msra.mxu0 0.0
    %8180 = vmatprep.subr.mxu0 0.0
    %8181 = vmatpush1.msra.mxu0 0.0
    %8182 = vmatprep.subr.mxu0 0.0
    %8183 = vmatpush1.msra.mxu0 0.0
    %8184 = vmatprep.subr.mxu0 0.0
    %8185 = vmatpush1.msra.mxu0 0.0
    %8186 = vmatprep.subr.mxu0 0.0
    %8187 = vmatpush1.msra.mxu0 0.0
    %8188 = vmatprep.subr.mxu0 0.0
    %8189 = vmatpush1.msra.mxu0 0.0
    %8190 = vmatprep.subr.mxu0 0.0
    %8191 = vmatpush1.msra.mxu0 0.0
    %8192 = vmatprep.subr.mxu0 0.0
    %8193 = vmatpush1.msra.mxu0 0.0
    %8194 = vmatprep.subr.mxu0 0.0
    %8195 = vmatpush1.msra.mxu0 0.0
    %8196 = vmatprep.subr.mxu0 0.0
    %8197 = vmatpush1.msra.mxu0 0.0
    %8198 = vmatprep.subr.mxu0 0.0
    %8199 = vmatpush1.msra.mxu0 0.0
    %8200 = vmatprep.subr.mxu0 0.0
    %8201 = vmatpush1.msra.mxu0 0.0
    %8202 = vmatprep.subr.mxu0 0.0
    %8203 = vmatpush1.msra.mxu0 0.0
    %8204 = vmatprep.subr.mxu0 0.0
    %8205 = vmatpush1.msra.mxu0 0.0
    %8206 = vmatprep.subr.mxu0 0.0
    %8207 = vmatpush1.msra.mxu0 0.0
    %8208 = vmatprep.subr.mxu0 0.0
    %8209 = vmatpush1.msra.mxu0 0.0
    %8210 = vmatprep.subr.mxu0 0.0
    %8211 = vmatpush1.msra.mxu0 0.0
    %8212 = vmatprep.mubr.f32.mxu0 0.0
    %v8213 = vand.u32 %v7903, 4294901760
    %v8214 = vsub.f32 %v7903, %v8213
    %v8215 = vand.u32 %v8214, 4294901760
    %8216 = vmatmul.mubr.f32.gmra.mrb[0].mxu0 %v8215
    %v8217 = vpop.f32.mrb[0].mxu0
    %v8218 = vadd.f32 %v8142, %v8217
    %v8219 = vpop.f32.mrb[0].mxu0
    %v8220 = vadd.f32 %v8144, %v8219
    %8221 = vdwg.mxu0
    %v8222 = vand.u32 %v7907, 4294901760
    %v8223 = vsub.f32 %v7907, %v8222
    %v8224 = vand.u32 %v8223, 4294901760
    %8225 = vmatprep.subr.mxu0 %v8224
    %v8226 = vand.u32 %v7905, 4294901760
    %v8227 = vsub.f32 %v7905, %v8226
    %v8228 = vand.u32 %v8227, 4294901760
    %8229 = vmatpush1.msra.mxu0 %v8228
    %8230 = vmatprep.subr.mxu0 0.0
    %8231 = vmatpush1.msra.mxu0 0.0
    %8232 = vmatprep.subr.mxu0 0.0
    %8233 = vmatpush1.msra.mxu0 0.0
    %8234 = vmatprep.subr.mxu0 0.0
    %8235 = vmatpush1.msra.mxu0 0.0
    %8236 = vmatprep.subr.mxu0 0.0
    %8237 = vmatpush1.msra.mxu0 0.0
    %8238 = vmatprep.subr.mxu0 0.0
    %8239 = vmatpush1.msra.mxu0 0.0
    %8240 = vmatprep.subr.mxu0 0.0
    %8241 = vmatpush1.msra.mxu0 0.0
    %8242 = vmatprep.subr.mxu0 0.0
    %8243 = vmatpush1.msra.mxu0 0.0
    %8244 = vmatprep.subr.mxu0 0.0
    %8245 = vmatpush1.msra.mxu0 0.0
    %8246 = vmatprep.subr.mxu0 0.0
    %8247 = vmatpush1.msra.mxu0 0.0
    %8248 = vmatprep.subr.mxu0 0.0
    %8249 = vmatpush1.msra.mxu0 0.0
    %8250 = vmatprep.subr.mxu0 0.0
    %8251 = vmatpush1.msra.mxu0 0.0
    %8252 = vmatprep.subr.mxu0 0.0
    %8253 = vmatpush1.msra.mxu0 0.0
    %8254 = vmatprep.subr.mxu0 0.0
    %8255 = vmatpush1.msra.mxu0 0.0
    %8256 = vmatprep.subr.mxu0 0.0
    %8257 = vmatpush1.msra.mxu0 0.0
    %8258 = vmatprep.subr.mxu0 0.0
    %8259 = vmatpush1.msra.mxu0 0.0
    %8260 = vmatprep.subr.mxu0 0.0
    %8261 = vmatpush1.msra.mxu0 0.0
    %8262 = vmatprep.subr.mxu0 0.0
    %8263 = vmatpush1.msra.mxu0 0.0
    %8264 = vmatprep.subr.mxu0 0.0
    %8265 = vmatpush1.msra.mxu0 0.0
    %8266 = vmatprep.subr.mxu0 0.0
    %8267 = vmatpush1.msra.mxu0 0.0
    %8268 = vmatprep.subr.mxu0 0.0
    %8269 = vmatpush1.msra.mxu0 0.0
    %8270 = vmatprep.subr.mxu0 0.0
    %8271 = vmatpush1.msra.mxu0 0.0
    %8272 = vmatprep.subr.mxu0 0.0
    %8273 = vmatpush1.msra.mxu0 0.0
    %8274 = vmatprep.subr.mxu0 0.0
    %8275 = vmatpush1.msra.mxu0 0.0
    %8276 = vmatprep.subr.mxu0 0.0
    %8277 = vmatpush1.msra.mxu0 0.0
    %8278 = vmatprep.subr.mxu0 0.0
    %8279 = vmatpush1.msra.mxu0 0.0
    %8280 = vmatprep.subr.mxu0 0.0
    %8281 = vmatpush1.msra.mxu0 0.0
    %8282 = vmatprep.subr.mxu0 0.0
    %8283 = vmatpush1.msra.mxu0 0.0
    %8284 = vmatprep.subr.mxu0 0.0
    %8285 = vmatpush1.msra.mxu0 0.0
    %8286 = vmatprep.subr.mxu0 0.0
    %8287 = vmatpush1.msra.mxu0 0.0
    %8288 = vmatprep.subr.mxu0 0.0
    %8289 = vmatpush1.msra.mxu0 0.0
    %8290 = vmatprep.subr.mxu0 0.0
    %8291 = vmatpush1.msra.mxu0 0.0
    %8292 = vmatprep.mubr.f32.mxu0 0.0
    %v8293 = vand.u32 %v7903, 4294901760
    %8294 = vmatmul.mubr.f32.gmra.mrb[0].mxu0 %v8293
    %v8295 = vpop.f32.mrb[0].mxu0
    %v8296 = vadd.f32 %v8218, %v8295
    %v8297 = vpop.f32.mrb[0].mxu0
    %v8298 = vadd.f32 %v8220, %v8297
    %8299 = vdwg.mxu0
    %v8300 = vand.u32 %v7907, 4294901760
    %8301 = vmatprep.subr.mxu0 %v8300
    %v8302 = vand.u32 %v7905, 4294901760
    %8303 = vmatpush1.msra.mxu0 %v8302
    %8304 = vmatprep.subr.mxu0 0.0
    %8305 = vmatpush1.msra.mxu0 0.0
    %8306 = vmatprep.subr.mxu0 0.0
    %8307 = vmatpush1.msra.mxu0 0.0
    %8308 = vmatprep.subr.mxu0 0.0
    %8309 = vmatpush1.msra.mxu0 0.0
    %8310 = vmatprep.subr.mxu0 0.0
    %8311 = vmatpush1.msra.mxu0 0.0
    %8312 = vmatprep.subr.mxu0 0.0
    %8313 = vmatpush1.msra.mxu0 0.0
    %8314 = vmatprep.subr.mxu0 0.0
    %8315 = vmatpush1.msra.mxu0 0.0
    %8316 = vmatprep.subr.mxu0 0.0
    %8317 = vmatpush1.msra.mxu0 0.0
    %8318 = vmatprep.subr.mxu0 0.0
    %8319 = vmatpush1.msra.mxu0 0.0
    %8320 = vmatprep.subr.mxu0 0.0
    %8321 = vmatpush1.msra.mxu0 0.0
    %8322 = vmatprep.subr.mxu0 0.0
    %8323 = vmatpush1.msra.mxu0 0.0
    %8324 = vmatprep.subr.mxu0 0.0
    %8325 = vmatpush1.msra.mxu0 0.0
    %8326 = vmatprep.subr.mxu0 0.0
    %8327 = vmatpush1.msra.mxu0 0.0
    %8328 = vmatprep.subr.mxu0 0.0
    %8329 = vmatpush1.msra.mxu0 0.0
    %8330 = vmatprep.subr.mxu0 0.0
    %8331 = vmatpush1.msra.mxu0 0.0
    %8332 = vmatprep.subr.mxu0 0.0
    %8333 = vmatpush1.msra.mxu0 0.0
    %8334 = vmatprep.subr.mxu0 0.0
    %8335 = vmatpush1.msra.mxu0 0.0
    %8336 = vmatprep.subr.mxu0 0.0
    %8337 = vmatpush1.msra.mxu0 0.0
    %8338 = vmatprep.subr.mxu0 0.0
    %8339 = vmatpush1.msra.mxu0 0.0
    %8340 = vmatprep.subr.mxu0 0.0
    %8341 = vmatpush1.msra.mxu0 0.0
    %8342 = vmatprep.subr.mxu0 0.0
    %8343 = vmatpush1.msra.mxu0 0.0
    %8344 = vmatprep.subr.mxu0 0.0
    %8345 = vmatpush1.msra.mxu0 0.0
    %8346 = vmatprep.subr.mxu0 0.0
    %8347 = vmatpush1.msra.mxu0 0.0
    %8348 = vmatprep.subr.mxu0 0.0
    %8349 = vmatpush1.msra.mxu0 0.0
    %8350 = vmatprep.subr.mxu0 0.0
    %8351 = vmatpush1.msra.mxu0 0.0
    %8352 = vmatprep.subr.mxu0 0.0
    %8353 = vmatpush1.msra.mxu0 0.0
    %8354 = vmatprep.subr.mxu0 0.0
    %8355 = vmatpush1.msra.mxu0 0.0
    %8356 = vmatprep.subr.mxu0 0.0
    %8357 = vmatpush1.msra.mxu0 0.0
    %8358 = vmatprep.subr.mxu0 0.0
    %8359 = vmatpush1.msra.mxu0 0.0
    %8360 = vmatprep.subr.mxu0 0.0
    %8361 = vmatpush1.msra.mxu0 0.0
    %8362 = vmatprep.subr.mxu0 0.0
    %8363 = vmatpush1.msra.mxu0 0.0
    %8364 = vmatprep.subr.mxu0 0.0
    %8365 = vmatpush1.msra.mxu0 0.0
    %8366 = vmatprep.mubr.f32.mxu0 0.0
    %v8367 = vand.u32 %v7903, 4294901760
    %8368 = vmatmul.mubr.f32.gmra.mrb[0].mxu0 %v8367
    %v8369 = vpop.f32.mrb[0].mxu0
    %v8370 = vadd.f32 %v8296, %v8369
    %v8371 = vpop.f32.mrb[0].mxu0
    %v8372 = vadd.f32 %v8298, %v8371
    %8373 = vdwg.mxu0
    %v8374 = vadd.f32 %v7891, %v8370
    %v8375 = vadd.f32 %v7892, %v8372
    %8376 = vrot.lane.b32.xlu0 %v4481, 79
    %v8377 = vpop.permute.xlu0 %8376
    %8378 = vrot.lane.b32.xlu0 %v4485, 79
    %v8379 = vpop.permute.xlu0 %8378
    %8380 = vrot.lane.b32.xlu0 %v4482, 79
    %v8381 = vpop.permute.xlu0 %8380
    %v8382 = vsel %vm3968, %v8377, %v8379
    %v8383 = vsel %vm3968, %v8379, %v8381
    %v8386 = vsel %vm52, %v8382, 0.0
    %v8387 = vsel %vm53, %v8383, 0.0
    %v8388 = vld [vmem:[%s1 + $0x40] sm:$0xff]
    %v8390 = vsel %vm86, %v8388, 0
    %v8393 = vsel %vm90, %v8386, 0
    %v8396 = vsel %vm90, %v8387, 0
    %v8398 = vand.u32 %v8396, 4294901760
    %8399 = vmatprep.subr.mxu0 %v8398
    %v8400 = vand.u32 %v8393, 4294901760
    %8401 = vmatpush1.msra.mxu0 %v8400
    %8402 = vmatprep.subr.mxu0 0.0
    %8403 = vmatpush1.msra.mxu0 0.0
    %8404 = vmatprep.subr.mxu0 0.0
    %8405 = vmatpush1.msra.mxu0 0.0
    %8406 = vmatprep.subr.mxu0 0.0
    %8407 = vmatpush1.msra.mxu0 0.0
    %8408 = vmatprep.subr.mxu0 0.0
    %8409 = vmatpush1.msra.mxu0 0.0
    %8410 = vmatprep.subr.mxu0 0.0
    %8411 = vmatpush1.msra.mxu0 0.0
    %8412 = vmatprep.subr.mxu0 0.0
    %8413 = vmatpush1.msra.mxu0 0.0
    %8414 = vmatprep.subr.mxu0 0.0
    %8415 = vmatpush1.msra.mxu0 0.0
    %8416 = vmatprep.subr.mxu0 0.0
    %8417 = vmatpush1.msra.mxu0 0.0
    %8418 = vmatprep.subr.mxu0 0.0
    %8419 = vmatpush1.msra.mxu0 0.0
    %8420 = vmatprep.subr.mxu0 0.0
    %8421 = vmatpush1.msra.mxu0 0.0
    %8422 = vmatprep.subr.mxu0 0.0
    %8423 = vmatpush1.msra.mxu0 0.0
    %8424 = vmatprep.subr.mxu0 0.0
    %8425 = vmatpush1.msra.mxu0 0.0
    %8426 = vmatprep.subr.mxu0 0.0
    %8427 = vmatpush1.msra.mxu0 0.0
    %8428 = vmatprep.subr.mxu0 0.0
    %8429 = vmatpush1.msra.mxu0 0.0
    %8430 = vmatprep.subr.mxu0 0.0
    %8431 = vmatpush1.msra.mxu0 0.0
    %8432 = vmatprep.subr.mxu0 0.0
    %8433 = vmatpush1.msra.mxu0 0.0
    %8434 = vmatprep.subr.mxu0 0.0
    %8435 = vmatpush1.msra.mxu0 0.0
    %8436 = vmatprep.subr.mxu0 0.0
    %8437 = vmatpush1.msra.mxu0 0.0
    %8438 = vmatprep.subr.mxu0 0.0
    %8439 = vmatpush1.msra.mxu0 0.0
    %8440 = vmatprep.subr.mxu0 0.0
    %8441 = vmatpush1.msra.mxu0 0.0
    %8442 = vmatprep.subr.mxu0 0.0
    %8443 = vmatpush1.msra.mxu0 0.0
    %8444 = vmatprep.subr.mxu0 0.0
    %8445 = vmatpush1.msra.mxu0 0.0
    %8446 = vmatprep.subr.mxu0 0.0
    %8447 = vmatpush1.msra.mxu0 0.0
    %8448 = vmatprep.subr.mxu0 0.0
    %8449 = vmatpush1.msra.mxu0 0.0
    %8450 = vmatprep.subr.mxu0 0.0
    %8451 = vmatpush1.msra.mxu0 0.0
    %8452 = vmatprep.subr.mxu0 0.0
    %8453 = vmatpush1.msra.mxu0 0.0
    %8454 = vmatprep.subr.mxu0 0.0
    %8455 = vmatpush1.msra.mxu0 0.0
    %8456 = vmatprep.subr.mxu0 0.0
    %8457 = vmatpush1.msra.mxu0 0.0
    %8458 = vmatprep.subr.mxu0 0.0
    %8459 = vmatpush1.msra.mxu0 0.0
    %8460 = vmatprep.subr.mxu0 0.0
    %8461 = vmatpush1.msra.mxu0 0.0
    %8462 = vmatprep.subr.mxu0 0.0
    %8463 = vmatpush1.msra.mxu0 0.0
    %8464 = vmatprep.mubr.f32.mxu0 0.0
    %v8465 = vand.u32 %v8390, 4294901760
    %v8466 = vsub.f32 %v8390, %v8465
    %v8467 = vand.u32 %v8466, 4294901760
    %v8468 = vsub.f32 %v8466, %v8467
    %v8469 = vand.u32 %v8468, 4294901760
    %8470 = vmatmul.mubr.f32.gmra.mrb[0].mxu0 %v8469
    %v8471 = vpop.f32.mrb[0].mxu0
    %v8472 = vadd.f32 0.0, %v8471
    %v8473 = vpop.f32.mrb[0].mxu0
    %v8474 = vadd.f32 0.0, %v8473
    %8475 = vdwg.mxu0
    %v8476 = vand.u32 %v8396, 4294901760
    %v8477 = vsub.f32 %v8396, %v8476
    %v8478 = vand.u32 %v8477, 4294901760
    %v8479 = vsub.f32 %v8477, %v8478
    %v8480 = vand.u32 %v8479, 4294901760
    %8481 = vmatprep.subr.mxu0 %v8480
    %v8482 = vand.u32 %v8393, 4294901760
    %v8483 = vsub.f32 %v8393, %v8482
    %v8484 = vand.u32 %v8483, 4294901760
    %v8485 = vsub.f32 %v8483, %v8484
    %v8486 = vand.u32 %v8485, 4294901760
    %8487 = vmatpush1.msra.mxu0 %v8486
    %8488 = vmatprep.subr.mxu0 0.0
    %8489 = vmatpush1.msra.mxu0 0.0
    %8490 = vmatprep.subr.mxu0 0.0
    %8491 = vmatpush1.msra.mxu0 0.0
    %8492 = vmatprep.subr.mxu0 0.0
    %8493 = vmatpush1.msra.mxu0 0.0
    %8494 = vmatprep.subr.mxu0 0.0
    %8495 = vmatpush1.msra.mxu0 0.0
    %8496 = vmatprep.subr.mxu0 0.0
    %8497 = vmatpush1.msra.mxu0 0.0
    %8498 = vmatprep.subr.mxu0 0.0
    %8499 = vmatpush1.msra.mxu0 0.0
    %8500 = vmatprep.subr.mxu0 0.0
    %8501 = vmatpush1.msra.mxu0 0.0
    %8502 = vmatprep.subr.mxu0 0.0
    %8503 = vmatpush1.msra.mxu0 0.0
    %8504 = vmatprep.subr.mxu0 0.0
    %8505 = vmatpush1.msra.mxu0 0.0
    %8506 = vmatprep.subr.mxu0 0.0
    %8507 = vmatpush1.msra.mxu0 0.0
    %8508 = vmatprep.subr.mxu0 0.0
    %8509 = vmatpush1.msra.mxu0 0.0
    %8510 = vmatprep.subr.mxu0 0.0
    %8511 = vmatpush1.msra.mxu0 0.0
    %8512 = vmatprep.subr.mxu0 0.0
    %8513 = vmatpush1.msra.mxu0 0.0
    %8514 = vmatprep.subr.mxu0 0.0
    %8515 = vmatpush1.msra.mxu0 0.0
    %8516 = vmatprep.subr.mxu0 0.0
    %8517 = vmatpush1.msra.mxu0 0.0
    %8518 = vmatprep.subr.mxu0 0.0
    %8519 = vmatpush1.msra.mxu0 0.0
    %8520 = vmatprep.subr.mxu0 0.0
    %8521 = vmatpush1.msra.mxu0 0.0
    %8522 = vmatprep.subr.mxu0 0.0
    %8523 = vmatpush1.msra.mxu0 0.0
    %8524 = vmatprep.subr.mxu0 0.0
    %8525 = vmatpush1.msra.mxu0 0.0
    %8526 = vmatprep.subr.mxu0 0.0
    %8527 = vmatpush1.msra.mxu0 0.0
    %8528 = vmatprep.subr.mxu0 0.0
    %8529 = vmatpush1.msra.mxu0 0.0
    %8530 = vmatprep.subr.mxu0 0.0
    %8531 = vmatpush1.msra.mxu0 0.0
    %8532 = vmatprep.subr.mxu0 0.0
    %8533 = vmatpush1.msra.mxu0 0.0
    %8534 = vmatprep.subr.mxu0 0.0
    %8535 = vmatpush1.msra.mxu0 0.0
    %8536 = vmatprep.subr.mxu0 0.0
    %8537 = vmatpush1.msra.mxu0 0.0
    %8538 = vmatprep.subr.mxu0 0.0
    %8539 = vmatpush1.msra.mxu0 0.0
    %8540 = vmatprep.subr.mxu0 0.0
    %8541 = vmatpush1.msra.mxu0 0.0
    %8542 = vmatprep.subr.mxu0 0.0
    %8543 = vmatpush1.msra.mxu0 0.0
    %8544 = vmatprep.subr.mxu0 0.0
    %8545 = vmatpush1.msra.mxu0 0.0
    %8546 = vmatprep.subr.mxu0 0.0
    %8547 = vmatpush1.msra.mxu0 0.0
    %8548 = vmatprep.subr.mxu0 0.0
    %8549 = vmatpush1.msra.mxu0 0.0
    %8550 = vmatprep.mubr.f32.mxu0 0.0
    %v8551 = vand.u32 %v8390, 4294901760
    %8552 = vmatmul.mubr.f32.gmra.mrb[0].mxu0 %v8551
    %v8553 = vpop.f32.mrb[0].mxu0
    %v8554 = vadd.f32 %v8472, %v8553
    %v8555 = vpop.f32.mrb[0].mxu0
    %v8556 = vadd.f32 %v8474, %v8555
    %8557 = vdwg.mxu0
    %v8558 = vand.u32 %v8396, 4294901760
    %v8559 = vsub.f32 %v8396, %v8558
    %8560 = vmatprep.subr.mxu0 %v8559
    %v8561 = vand.u32 %v8393, 4294901760
    %v8562 = vsub.f32 %v8393, %v8561
    %8563 = vmatpush1.msra.mxu0 %v8562
    %8564 = vmatprep.subr.mxu0 0.0
    %8565 = vmatpush1.msra.mxu0 0.0
    %8566 = vmatprep.subr.mxu0 0.0
    %8567 = vmatpush1.msra.mxu0 0.0
    %8568 = vmatprep.subr.mxu0 0.0
    %8569 = vmatpush1.msra.mxu0 0.0
    %8570 = vmatprep.subr.mxu0 0.0
    %8571 = vmatpush1.msra.mxu0 0.0
    %8572 = vmatprep.subr.mxu0 0.0
    %8573 = vmatpush1.msra.mxu0 0.0
    %8574 = vmatprep.subr.mxu0 0.0
    %8575 = vmatpush1.msra.mxu0 0.0
    %8576 = vmatprep.subr.mxu0 0.0
    %8577 = vmatpush1.msra.mxu0 0.0
    %8578 = vmatprep.subr.mxu0 0.0
    %8579 = vmatpush1.msra.mxu0 0.0
    %8580 = vmatprep.subr.mxu0 0.0
    %8581 = vmatpush1.msra.mxu0 0.0
    %8582 = vmatprep.subr.mxu0 0.0
    %8583 = vmatpush1.msra.mxu0 0.0
    %8584 = vmatprep.subr.mxu0 0.0
    %8585 = vmatpush1.msra.mxu0 0.0
    %8586 = vmatprep.subr.mxu0 0.0
    %8587 = vmatpush1.msra.mxu0 0.0
    %8588 = vmatprep.subr.mxu0 0.0
    %8589 = vmatpush1.msra.mxu0 0.0
    %8590 = vmatprep.subr.mxu0 0.0
    %8591 = vmatpush1.msra.mxu0 0.0
    %8592 = vmatprep.subr.mxu0 0.0
    %8593 = vmatpush1.msra.mxu0 0.0
    %8594 = vmatprep.subr.mxu0 0.0
    %8595 = vmatpush1.msra.mxu0 0.0
    %8596 = vmatprep.subr.mxu0 0.0
    %8597 = vmatpush1.msra.mxu0 0.0
    %8598 = vmatprep.subr.mxu0 0.0
    %8599 = vmatpush1.msra.mxu0 0.0
    %8600 = vmatprep.subr.mxu0 0.0
    %8601 = vmatpush1.msra.mxu0 0.0
    %8602 = vmatprep.subr.mxu0 0.0
    %8603 = vmatpush1.msra.mxu0 0.0
    %8604 = vmatprep.subr.mxu0 0.0
    %8605 = vmatpush1.msra.mxu0 0.0
    %8606 = vmatprep.subr.mxu0 0.0
    %8607 = vmatpush1.msra.mxu0 0.0
    %8608 = vmatprep.subr.mxu0 0.0
    %8609 = vmatpush1.msra.mxu0 0.0
    %8610 = vmatprep.subr.mxu0 0.0
    %8611 = vmatpush1.msra.mxu0 0.0
    %8612 = vmatprep.subr.mxu0 0.0
    %8613 = vmatpush1.msra.mxu0 0.0
    %8614 = vmatprep.subr.mxu0 0.0
    %8615 = vmatpush1.msra.mxu0 0.0
    %8616 = vmatprep.subr.mxu0 0.0
    %8617 = vmatpush1.msra.mxu0 0.0
    %8618 = vmatprep.subr.mxu0 0.0
    %8619 = vmatpush1.msra.mxu0 0.0
    %8620 = vmatprep.subr.mxu0 0.0
    %8621 = vmatpush1.msra.mxu0 0.0
    %8622 = vmatprep.subr.mxu0 0.0
    %8623 = vmatpush1.msra.mxu0 0.0
    %8624 = vmatprep.subr.mxu0 0.0
    %8625 = vmatpush1.msra.mxu0 0.0
    %8626 = vmatprep.mubr.f32.mxu0 0.0
    %v8627 = vand.u32 %v8390, 4294901760
    %v8628 = vsub.f32 %v8390, %v8627
    %8629 = vmatmul.mubr.f32.gmra.mrb[0].mxu0 %v8628
    %v8630 = vpop.f32.mrb[0].mxu0
    %v8631 = vadd.f32 %v8554, %v8630
    %v8632 = vpop.f32.mrb[0].mxu0
    %v8633 = vadd.f32 %v8556, %v8632
    %8634 = vdwg.mxu0
    %v8635 = vand.u32 %v8396, 4294901760
    %8636 = vmatprep.subr.mxu0 %v8635
    %v8637 = vand.u32 %v8393, 4294901760
    %8638 = vmatpush1.msra.mxu0 %v8637
    %8639 = vmatprep.subr.mxu0 0.0
    %8640 = vmatpush1.msra.mxu0 0.0
    %8641 = vmatprep.subr.mxu0 0.0
    %8642 = vmatpush1.msra.mxu0 0.0
    %8643 = vmatprep.subr.mxu0 0.0
    %8644 = vmatpush1.msra.mxu0 0.0
    %8645 = vmatprep.subr.mxu0 0.0
    %8646 = vmatpush1.msra.mxu0 0.0
    %8647 = vmatprep.subr.mxu0 0.0
    %8648 = vmatpush1.msra.mxu0 0.0
    %8649 = vmatprep.subr.mxu0 0.0
    %8650 = vmatpush1.msra.mxu0 0.0
    %8651 = vmatprep.subr.mxu0 0.0
    %8652 = vmatpush1.msra.mxu0 0.0
    %8653 = vmatprep.subr.mxu0 0.0
    %8654 = vmatpush1.msra.mxu0 0.0
    %8655 = vmatprep.subr.mxu0 0.0
    %8656 = vmatpush1.msra.mxu0 0.0
    %8657 = vmatprep.subr.mxu0 0.0
    %8658 = vmatpush1.msra.mxu0 0.0
    %8659 = vmatprep.subr.mxu0 0.0
    %8660 = vmatpush1.msra.mxu0 0.0
    %8661 = vmatprep.subr.mxu0 0.0
    %8662 = vmatpush1.msra.mxu0 0.0
    %8663 = vmatprep.subr.mxu0 0.0
    %8664 = vmatpush1.msra.mxu0 0.0
    %8665 = vmatprep.subr.mxu0 0.0
    %8666 = vmatpush1.msra.mxu0 0.0
    %8667 = vmatprep.subr.mxu0 0.0
    %8668 = vmatpush1.msra.mxu0 0.0
    %8669 = vmatprep.subr.mxu0 0.0
    %8670 = vmatpush1.msra.mxu0 0.0
    %8671 = vmatprep.subr.mxu0 0.0
    %8672 = vmatpush1.msra.mxu0 0.0
    %8673 = vmatprep.subr.mxu0 0.0
    %8674 = vmatpush1.msra.mxu0 0.0
    %8675 = vmatprep.subr.mxu0 0.0
    %8676 = vmatpush1.msra.mxu0 0.0
    %8677 = vmatprep.subr.mxu0 0.0
    %8678 = vmatpush1.msra.mxu0 0.0
    %8679 = vmatprep.subr.mxu0 0.0
    %8680 = vmatpush1.msra.mxu0 0.0
    %8681 = vmatprep.subr.mxu0 0.0
    %8682 = vmatpush1.msra.mxu0 0.0
    %8683 = vmatprep.subr.mxu0 0.0
    %8684 = vmatpush1.msra.mxu0 0.0
    %8685 = vmatprep.subr.mxu0 0.0
    %8686 = vmatpush1.msra.mxu0 0.0
    %8687 = vmatprep.subr.mxu0 0.0
    %8688 = vmatpush1.msra.mxu0 0.0
    %8689 = vmatprep.subr.mxu0 0.0
    %8690 = vmatpush1.msra.mxu0 0.0
    %8691 = vmatprep.subr.mxu0 0.0
    %8692 = vmatpush1.msra.mxu0 0.0
    %8693 = vmatprep.subr.mxu0 0.0
    %8694 = vmatpush1.msra.mxu0 0.0
    %8695 = vmatprep.subr.mxu0 0.0
    %8696 = vmatpush1.msra.mxu0 0.0
    %8697 = vmatprep.subr.mxu0 0.0
    %8698 = vmatpush1.msra.mxu0 0.0
    %8699 = vmatprep.subr.mxu0 0.0
    %8700 = vmatpush1.msra.mxu0 0.0
    %8701 = vmatprep.mubr.f32.mxu0 0.0
    %v8702 = vand.u32 %v8390, 4294901760
    %v8703 = vsub.f32 %v8390, %v8702
    %v8704 = vand.u32 %v8703, 4294901760
    %8705 = vmatmul.mubr.f32.gmra.mrb[0].mxu0 %v8704
    %v8706 = vpop.f32.mrb[0].mxu0
    %v8707 = vadd.f32 %v8631, %v8706
    %v8708 = vpop.f32.mrb[0].mxu0
    %v8709 = vadd.f32 %v8633, %v8708
    %8710 = vdwg.mxu0
    %v8711 = vand.u32 %v8396, 4294901760
    %v8712 = vsub.f32 %v8396, %v8711
    %v8713 = vand.u32 %v8712, 4294901760
    %8714 = vmatprep.subr.mxu0 %v8713
    %v8715 = vand.u32 %v8393, 4294901760
    %v8716 = vsub.f32 %v8393, %v8715
    %v8717 = vand.u32 %v8716, 4294901760
    %8718 = vmatpush1.msra.mxu0 %v8717
    %8719 = vmatprep.subr.mxu0 0.0
    %8720 = vmatpush1.msra.mxu0 0.0
    %8721 = vmatprep.subr.mxu0 0.0
    %8722 = vmatpush1.msra.mxu0 0.0
    %8723 = vmatprep.subr.mxu0 0.0
    %8724 = vmatpush1.msra.mxu0 0.0
    %8725 = vmatprep.subr.mxu0 0.0
    %8726 = vmatpush1.msra.mxu0 0.0
    %8727 = vmatprep.subr.mxu0 0.0
    %8728 = vmatpush1.msra.mxu0 0.0
    %8729 = vmatprep.subr.mxu0 0.0
    %8730 = vmatpush1.msra.mxu0 0.0
    %8731 = vmatprep.subr.mxu0 0.0
    %8732 = vmatpush1.msra.mxu0 0.0
    %8733 = vmatprep.subr.mxu0 0.0
    %8734 = vmatpush1.msra.mxu0 0.0
    %8735 = vmatprep.subr.mxu0 0.0
    %8736 = vmatpush1.msra.mxu0 0.0
    %8737 = vmatprep.subr.mxu0 0.0
    %8738 = vmatpush1.msra.mxu0 0.0
    %8739 = vmatprep.subr.mxu0 0.0
    %8740 = vmatpush1.msra.mxu0 0.0
    %8741 = vmatprep.subr.mxu0 0.0
    %8742 = vmatpush1.msra.mxu0 0.0
    %8743 = vmatprep.subr.mxu0 0.0
    %8744 = vmatpush1.msra.mxu0 0.0
    %8745 = vmatprep.subr.mxu0 0.0
    %8746 = vmatpush1.msra.mxu0 0.0
    %8747 = vmatprep.subr.mxu0 0.0
    %8748 = vmatpush1.msra.mxu0 0.0
    %8749 = vmatprep.subr.mxu0 0.0
    %8750 = vmatpush1.msra.mxu0 0.0
    %8751 = vmatprep.subr.mxu0 0.0
    %8752 = vmatpush1.msra.mxu0 0.0
    %8753 = vmatprep.subr.mxu0 0.0
    %8754 = vmatpush1.msra.mxu0 0.0
    %8755 = vmatprep.subr.mxu0 0.0
    %8756 = vmatpush1.msra.mxu0 0.0
    %8757 = vmatprep.subr.mxu0 0.0
    %8758 = vmatpush1.msra.mxu0 0.0
    %8759 = vmatprep.subr.mxu0 0.0
    %8760 = vmatpush1.msra.mxu0 0.0
    %8761 = vmatprep.subr.mxu0 0.0
    %8762 = vmatpush1.msra.mxu0 0.0
    %8763 = vmatprep.subr.mxu0 0.0
    %8764 = vmatpush1.msra.mxu0 0.0
    %8765 = vmatprep.subr.mxu0 0.0
    %8766 = vmatpush1.msra.mxu0 0.0
    %8767 = vmatprep.subr.mxu0 0.0
    %8768 = vmatpush1.msra.mxu0 0.0
    %8769 = vmatprep.subr.mxu0 0.0
    %8770 = vmatpush1.msra.mxu0 0.0
    %8771 = vmatprep.subr.mxu0 0.0
    %8772 = vmatpush1.msra.mxu0 0.0
    %8773 = vmatprep.subr.mxu0 0.0
    %8774 = vmatpush1.msra.mxu0 0.0
    %8775 = vmatprep.subr.mxu0 0.0
    %8776 = vmatpush1.msra.mxu0 0.0
    %8777 = vmatprep.subr.mxu0 0.0
    %8778 = vmatpush1.msra.mxu0 0.0
    %8779 = vmatprep.subr.mxu0 0.0
    %8780 = vmatpush1.msra.mxu0 0.0
    %8781 = vmatprep.mubr.f32.mxu0 0.0
    %v8782 = vand.u32 %v8390, 4294901760
    %8783 = vmatmul.mubr.f32.gmra.mrb[0].mxu0 %v8782
    %v8784 = vpop.f32.mrb[0].mxu0
    %v8785 = vadd.f32 %v8707, %v8784
    %v8786 = vpop.f32.mrb[0].mxu0
    %v8787 = vadd.f32 %v8709, %v8786
    %8788 = vdwg.mxu0
    %v8789 = vand.u32 %v8396, 4294901760
    %8790 = vmatprep.subr.mxu0 %v8789
    %v8791 = vand.u32 %v8393, 4294901760
    %8792 = vmatpush1.msra.mxu0 %v8791
    %8793 = vmatprep.subr.mxu0 0.0
    %8794 = vmatpush1.msra.mxu0 0.0
    %8795 = vmatprep.subr.mxu0 0.0
    %8796 = vmatpush1.msra.mxu0 0.0
    %8797 = vmatprep.subr.mxu0 0.0
    %8798 = vmatpush1.msra.mxu0 0.0
    %8799 = vmatprep.subr.mxu0 0.0
    %8800 = vmatpush1.msra.mxu0 0.0
    %8801 = vmatprep.subr.mxu0 0.0
    %8802 = vmatpush1.msra.mxu0 0.0
    %8803 = vmatprep.subr.mxu0 0.0
    %8804 = vmatpush1.msra.mxu0 0.0
    %8805 = vmatprep.subr.mxu0 0.0
    %8806 = vmatpush1.msra.mxu0 0.0
    %8807 = vmatprep.subr.mxu0 0.0
    %8808 = vmatpush1.msra.mxu0 0.0
    %8809 = vmatprep.subr.mxu0 0.0
    %8810 = vmatpush1.msra.mxu0 0.0
    %8811 = vmatprep.subr.mxu0 0.0
    %8812 = vmatpush1.msra.mxu0 0.0
    %8813 = vmatprep.subr.mxu0 0.0
    %8814 = vmatpush1.msra.mxu0 0.0
    %8815 = vmatprep.subr.mxu0 0.0
    %8816 = vmatpush1.msra.mxu0 0.0
    %8817 = vmatprep.subr.mxu0 0.0
    %8818 = vmatpush1.msra.mxu0 0.0
    %8819 = vmatprep.subr.mxu0 0.0
    %8820 = vmatpush1.msra.mxu0 0.0
    %8821 = vmatprep.subr.mxu0 0.0
    %8822 = vmatpush1.msra.mxu0 0.0
    %8823 = vmatprep.subr.mxu0 0.0
    %8824 = vmatpush1.msra.mxu0 0.0
    %8825 = vmatprep.subr.mxu0 0.0
    %8826 = vmatpush1.msra.mxu0 0.0
    %8827 = vmatprep.subr.mxu0 0.0
    %8828 = vmatpush1.msra.mxu0 0.0
    %8829 = vmatprep.subr.mxu0 0.0
    %8830 = vmatpush1.msra.mxu0 0.0
    %8831 = vmatprep.subr.mxu0 0.0
    %8832 = vmatpush1.msra.mxu0 0.0
    %8833 = vmatprep.subr.mxu0 0.0
    %8834 = vmatpush1.msra.mxu0 0.0
    %8835 = vmatprep.subr.mxu0 0.0
    %8836 = vmatpush1.msra.mxu0 0.0
    %8837 = vmatprep.subr.mxu0 0.0
    %8838 = vmatpush1.msra.mxu0 0.0
    %8839 = vmatprep.subr.mxu0 0.0
    %8840 = vmatpush1.msra.mxu0 0.0
    %8841 = vmatprep.subr.mxu0 0.0
    %8842 = vmatpush1.msra.mxu0 0.0
    %8843 = vmatprep.subr.mxu0 0.0
    %8844 = vmatpush1.msra.mxu0 0.0
    %8845 = vmatprep.subr.mxu0 0.0
    %8846 = vmatpush1.msra.mxu0 0.0
    %8847 = vmatprep.subr.mxu0 0.0
    %8848 = vmatpush1.msra.mxu0 0.0
    %8849 = vmatprep.subr.mxu0 0.0
    %8850 = vmatpush1.msra.mxu0 0.0
    %8851 = vmatprep.subr.mxu0 0.0
    %8852 = vmatpush1.msra.mxu0 0.0
    %8853 = vmatprep.subr.mxu0 0.0
    %8854 = vmatpush1.msra.mxu0 0.0
    %8855 = vmatprep.mubr.f32.mxu0 0.0
    %v8856 = vand.u32 %v8390, 4294901760
    %8857 = vmatmul.mubr.f32.gmra.mrb[0].mxu0 %v8856
    %v8858 = vpop.f32.mrb[0].mxu0
    %v8859 = vadd.f32 %v8785, %v8858
    %v8860 = vpop.f32.mrb[0].mxu0
    %v8861 = vadd.f32 %v8787, %v8860
    %8862 = vdwg.mxu0
    %v8863 = vadd.f32 %v8374, %v8859
    %v8864 = vadd.f32 %v8375, %v8861
    %v8865 = vadd.f32 %v8863, %v4455
    %v8866 = vadd.f32 %v8864, %v4455
    %v8867 = vmax.f32 %v8865, 0.0
    %v8868 = vmax.f32 %v8866, 0.0
    %s8869 = scalar_lea.vmem %s5, 16
    %8870 = vst [vmem:[%s8869] sm:$0xff] %v8867
    %8871 = vst [vmem:[%s8869 + $0x8] sm:$0xff] %v8868
    %v8872 = vadd.f32 %v8867, %v8868
    %8873 = vadd.xlane.f32.xlu0 %v8872
    %v8874 = vpop.xlane.xlu0 %8873
    %v8875 = vmul.f32 %v8874, %v4466
    %v8876 = vmul.f32 %v8875, %v55
    %v8877 = vsel %vm4469, %v8876, 0.0
    %v8878 = vrot.slane %v8877, 4
    %v8879 = vadd.f32 %v8877, %v8878
    %v8880 = vrot.slane %v8879, 2
    %v8881 = vadd.f32 %v8879, %v8880
    %v8882 = vrot.slane %v8881, 1
    %v8883 = vadd.f32 %v8881, %v8882
    %v8884 = vadd.f32 %v8883, %v56
    %8885 = vst.msk [vmem:[#allocation2 + $0x1] sm:$0x1] %vm4478, %v8884
    // Predicated region
    $region22: #{inner_model.1} parent=1 // pred_check
      _
    $region23: #{inner_model.1} parent=1 // pred_check_branch
      %8887 = sbr.rel (0) target = $region25
    $region24: #{inner_model.1} parent=1 // pred_region
      _
    $region25: #{inner_model.1} parent=1 // pred_fallthru
      _
    // Predicated region
    $region26: #{inner_model.1} parent=1 // pred_check
      _
    $region27: #{inner_model.1} parent=1 // pred_check_branch
      %8889 = sbr.rel (0) target = $region29
    $region28: #{inner_model.1} parent=1 // pred_region
      %s8891 = ssub.s32 32, 32
      %8892 = vsyncadd [#allocation3], %s8891
      %s8894 = sshll.u32 [#allocation2], 4
      %s8895 = int_to_ptr.vmem [resolvable:$true] %s8894
      %8897 = dma.vmem_to_hbm [thread:$0]  %s8895, 32, %s6, [#allocation3]
    $region29: #{inner_model.1} parent=1 // pred_fallthru
      _
    // Predicated region
    $region30: #{inner_model.1} parent=1 // pred_check
      _
    $region31: #{inner_model.1} parent=1 // pred_check_branch
      %8899 = sbr.rel (0) target = $region33
    $region32: #{inner_model.1} parent=1 // pred_region
      _
    $region33: #{inner_model.1} parent=1 // pred_fallthru
      _
    // Predicated region
    $region34: #{inner_model.1} parent=1 // pred_check
      _
    $region35: #{inner_model.1} parent=1 // pred_check_branch
      %8901 = sbr.rel (0) target = $region37
    $region36: #{inner_model.1} parent=1 // pred_region
      %8902 = dma.done [#allocation3], 32
    $region37: #{inner_model.1} parent=1 // pred_fallthru
      _
    %8903 = vsyncpa [#allocation3], 1

</llo_original>
